<compile_context>
chip_gen: v7x
topology: tpu7x:2x2x1
jax: 0.10.0
libtpu: 0.0.40
codegen_flags: <defaults>
</compile_context>

<pallas_src>
import functools
import math

import jax
import jax.numpy as jnp
from jax import lax
from jax.experimental import pallas as pl
from jax.experimental.pallas import tpu as pltpu

SIZES = (1, 128, 128, 1)  # matches MLP_join default
HID = 128
_INV_SQRT2 = 1.0 / math.sqrt(2.0)


def _gelu(x, approx):
    if approx:
        # tanh approximation -> lowers to the EUP (transcendental) slot.
        return jax.nn.gelu(x, approximate=True)
    # PyTorch F.gelu default: exact erf formulation (VPU polynomial).
    return 0.5 * x * (1.0 + lax.erf(x * _INV_SQRT2))


def _mlp_join_kernel(x_ref, w1a_ref, w2_ref, b2_ref, w3_ref, b3_ref, o_ref,
                     *, approx_gelu):
    # x_ref: (2, tile_n) = [samples ; ones], lane-dense.
    xaug = x_ref[...].astype(jnp.float32)

    # Layer 1 (+ bias) as a K=2 MXU matmul: [w1 | b1] @ [x ; 1].
    h = jnp.dot(w1a_ref[...], xaug, preferred_element_type=jnp.float32)   # (128, tile_n)
    h = _gelu(h, approx_gelu)

    # Layer 2: dense (128,128) @ (128,tile_n) on the MXU, f32 accumulation.
    # w2 is pre-transposed (and optionally pre-cast to mm_dtype) in the wrapper.
    w2 = w2_ref[...]
    h = jnp.dot(w2, h.astype(w2.dtype), preferred_element_type=jnp.float32) + b2_ref[...]
    h = _gelu(h, approx_gelu)
    # TODO(synk): on v6e/v7x the elementwise chain above could run in bf16 (packed VPU/EUP);
    # kept f32 so the same kernel is also the right choice on v5e (no bf16 VALU/EUP).

    # Layer 3: (1,128) @ (128,tile_n); scalar bias read from SMEM.
    w3 = w3_ref[...]
    o = jnp.dot(w3, h.astype(w3.dtype), preferred_element_type=jnp.float32) + b3_ref[0, 0]
    o_ref[...] = o.astype(o_ref.dtype)


def init_params(key, sizes=SIZES, dtype=jnp.float32):
    """Deterministic synthetic parameters (shapes match nn.Linear(m, n), stored (in,out))."""
    params = []
    for m, n in zip(sizes[:-1], sizes[1:]):
        key, kw, kb = jax.random.split(key, 3)
        bound = 1.0 / math.sqrt(m)
        w = jax.random.uniform(kw, (m, n), dtype, -bound, bound)
        b = jax.random.uniform(kb, (1, n), dtype, -bound, bound)
        params.append((w, b))
    return params


@functools.partial(jax.jit, static_argnames=("tile_n", "mm_dtype", "approx_gelu"))
def mlp_join_forward(x, params, tile_n=4096, mm_dtype=jnp.float32, approx_gelu=True):
    # tile_n: samples per grid step.  Multiples of 256 fill v6e/v7x MXU passes (128 on v5e).
    # Sweep per generation: v5e/v6e up to 16-32K, v7x <= ~8K (64 MiB VMEM, and keep grid >= 2).
    (w1, b1), (w2, b2), (w3, b3) = params
    orig_shape = x.shape
    assert orig_shape[-1] == SIZES[0], "last dim must equal sizes[0] (=1)"
    assert tile_n % 128 == 0, "tile_n must be a multiple of 128 (prefer 256 on v6e/v7x)"

    # Flatten the batch onto the lane axis: (1, N), pad N up to a multiple of tile_n.
    x2 = x.reshape(1, -1)
    n = x2.shape[1]
    pad = (-n) % tile_n
    if pad:
        x2 = jnp.pad(x2, ((0, 0), (0, pad)))
    n_pad = x2.shape[1]
    grid = (n_pad // tile_n,)

    # Augmented layer-1 operands: x_aug = [x ; 1] (2, N), w1aug = [w1 | b1] (128, 2).
    x_aug = jnp.concatenate([x2, jnp.ones_like(x2)], axis=0)

    # Pre-transpose weights once so the kernel works in the column (lane-dense) layout.
    w1aug = jnp.concatenate([w1.T, b1.T], axis=1).astype(jnp.float32)   # (128, 2)
    w2t = w2.T.astype(mm_dtype)                                         # (128, 128) MXU operand
    b2c = b2.T.astype(jnp.float32)                                      # (128, 1)
    w3r = w3.T.astype(mm_dtype)                                         # (1, 128)
    b3s = b3.astype(jnp.float32)                                        # (1, 1) scalar -> SMEM

    resident = lambda i: (0, 0)  # weights/biases: single block, resident across the grid

    wbytes = sum(int(a.size) * a.dtype.itemsize for a in (w1aug, w2t, b2c, w3r, b3s))
    cost = pl.CostEstimate(
        flops=2 * n_pad * (2 * HID + HID * HID + HID),
        transcendentals=2 * HID * n_pad,     # two gelu layers of width 128 (EUP on tanh path)
        bytes_accessed=2 * 4 * n_pad + 4 * n_pad + wbytes,
    )

    out = pl.pallas_call(
        functools.partial(_mlp_join_kernel, approx_gelu=approx_gelu),
        out_shape=jax.ShapeDtypeStruct((1, n_pad), x.dtype),
        grid_spec=pltpu.PrefetchScalarGridSpec(
            num_scalar_prefetch=0,
            grid=grid,
            in_specs=[
                pl.BlockSpec((2, tile_n), lambda i: (0, i)),          # [x ; 1] (lane-dense)
                pl.BlockSpec((HID, 2), resident),                     # [w1 | b1]
                pl.BlockSpec((HID, HID), resident),                   # w2^T
                pl.BlockSpec((HID, 1), resident),                     # b2 column
                pl.BlockSpec((1, HID), resident),                     # w3 row
                pl.BlockSpec(memory_space=pltpu.MemorySpace.SMEM),    # b3 scalar
            ],
            out_specs=pl.BlockSpec((1, tile_n), lambda i: (0, i)),    # lane-dense output
        ),
        compiler_params=pltpu.CompilerParams(
            dimension_semantics=("parallel",),        # megacore sharding on v7x (keep grid >= 2)
            vmem_limit_bytes=48 * 1024 * 1024,        # headroom for bigger tile_n sweeps
        ),
        cost_estimate=cost,
    )(x_aug, w1aug, w2t, b2c, w3r, b3s)

    out = out.reshape(-1)[:n]
    return out.reshape(orig_shape[:-1] + (SIZES[-1],))


def _reference_forward(x, params, approx=False):
    (w1, b1), (w2, b2), (w3, b3) = params
    if approx:
        g = lambda v: jax.nn.gelu(v, approximate=True)
    else:
        g = lambda v: 0.5 * v * (1.0 + lax.erf(v * _INV_SQRT2))
    h = g(x @ w1 + b1)
    h = g(h @ w2 + b2)
    return h @ w3 + b3


if __name__ == "__main__":
    key = jax.random.PRNGKey(0)
    kx, kp = jax.random.split(key)

    # Small input consistent with the module: batch=2, seq=8, feature=1.
    x = jax.random.normal(kx, (2, 8, 1), dtype=jnp.float32)
    params = init_params(kp)

    # Exact-erf path: matches PyTorch F.gelu numerics (f32 end to end).
    y_exact = jax.block_until_ready(mlp_join_forward(x, params, approx_gelu=False))

    # Default fast path: tanh gelu on the EUP, f32 MXU operands.
    # (On real v6e/v7x hardware, additionally pass mm_dtype=jnp.bfloat16.)
    y_fast = jax.block_until_ready(mlp_join_forward(x, params))

    x_flat = x.reshape(-1, 1)
    y_ref_exact = _reference_forward(x_flat, params, approx=False).reshape(2, 8, 1)
    y_ref_fast = _reference_forward(x_flat, params, approx=True).reshape(2, 8, 1)

    assert y_exact.shape == (2, 8, 1) and y_fast.shape == (2, 8, 1)
    assert jnp.allclose(y_exact, y_ref_exact, atol=2e-5, rtol=2e-5), "erf-gelu kernel mismatch"
    assert jnp.allclose(y_fast, y_ref_fast, atol=2e-5, rtol=2e-5), "tanh-gelu kernel mismatch"

    print("KERNEL_OK")
</pallas_src>

<mosaic_0001>
module attributes {stable_mosaic.version = 11 : i64} {
  func.func @_mlp_join_kernel(%arg0: i32, %arg1: memref<2x4096xf32, #tpu.memory_space<vmem>>, %arg2: memref<128x2xf32, #tpu.memory_space<vmem>>, %arg3: memref<128x128xf32, #tpu.memory_space<vmem>>, %arg4: memref<128x1xf32, #tpu.memory_space<vmem>>, %arg5: memref<1x128xf32, #tpu.memory_space<vmem>>, %arg6: memref<1x1xf32, #tpu.memory_space<smem>>, %arg7: memref<1x4096xf32, #tpu.memory_space<vmem>>) attributes {dimension_semantics = [#tpu.dimension_semantics<parallel>], iteration_bounds = array<i64: 1>, scalar_prefetch = 0 : i64, scratch_operands = 0 : i64, tpu.core_type = #tpu.core_type<tc>, window_params = [{transform_indices = @transform_0, window_bounds = array<i64: 2, 4096>}, {pipeline_mode = #tpu.pipeline_mode<synchronous>, transform_indices = @transform_1, window_bounds = array<i64: 128, 2>}, {pipeline_mode = #tpu.pipeline_mode<synchronous>, transform_indices = @transform_2, window_bounds = array<i64: 128, 128>}, {pipeline_mode = #tpu.pipeline_mode<synchronous>, transform_indices = @transform_3, window_bounds = array<i64: 128, 1>}, {pipeline_mode = #tpu.pipeline_mode<synchronous>, transform_indices = @transform_4, window_bounds = array<i64: 1, 128>}, {transform_indices = @transform_5, window_bounds = array<i64: 1, 1>}, {transform_indices = @transform_6, window_bounds = array<i64: 1, 4096>}]} {
    %c0 = arith.constant 0 : index
    %c0_0 = arith.constant 0 : index
    %0 = vector.load %arg1[%c0, %c0_0] : memref<2x4096xf32, #tpu.memory_space<vmem>>, vector<2x4096xf32>
    %c0_1 = arith.constant 0 : index
    %c0_2 = arith.constant 0 : index
    %1 = vector.load %arg2[%c0_1, %c0_2] : memref<128x2xf32, #tpu.memory_space<vmem>>, vector<128x2xf32>
    %cst = arith.constant dense<0.000000e+00> : vector<128x4096xf32>
    %2 = tpu.matmul %1, %0, %cst {dimension_numbers = #tpu.dot_dimension_numbers<[1], [0], [0], [1], [0, 0, 1, 1], [], []>} : vector<128x2xf32>, vector<2x4096xf32>, vector<128x4096xf32> -> vector<128x4096xf32>
    %cst_3 = arith.constant 5.000000e-01 : f32
    %3 = vector.broadcast %cst_3 : f32 to vector<128x4096xf32>
    %4 = arith.mulf %3, %2 : vector<128x4096xf32>
    %cst_4 = arith.constant 0.707106769 : f32
    %5 = vector.broadcast %cst_4 : f32 to vector<128x4096xf32>
    %6 = arith.mulf %2, %5 : vector<128x4096xf32>
    %7 = math.erf %6 : vector<128x4096xf32>
    %cst_5 = arith.constant 1.000000e+00 : f32
    %8 = vector.broadcast %cst_5 : f32 to vector<128x4096xf32>
    %9 = arith.addf %8, %7 : vector<128x4096xf32>
    %10 = arith.mulf %4, %9 : vector<128x4096xf32>
    %c0_6 = arith.constant 0 : index
    %c0_7 = arith.constant 0 : index
    %11 = vector.load %arg3[%c0_6, %c0_7] : memref<128x128xf32, #tpu.memory_space<vmem>>, vector<128x128xf32>
    %cst_8 = arith.constant dense<0.000000e+00> : vector<128x4096xf32>
    %12 = tpu.matmul %11, %10, %cst_8 {dimension_numbers = #tpu.dot_dimension_numbers<[1], [0], [0], [1], [0, 0, 1, 1], [], []>} : vector<128x128xf32>, vector<128x4096xf32>, vector<128x4096xf32> -> vector<128x4096xf32>
    %c0_9 = arith.constant 0 : index
    %c0_10 = arith.constant 0 : index
    %13 = vector.load %arg4[%c0_9, %c0_10] : memref<128x1xf32, #tpu.memory_space<vmem>>, vector<128x1xf32>
    %14 = vector.broadcast %13 : vector<128x1xf32> to vector<128x4096xf32>
    %15 = arith.addf %12, %14 : vector<128x4096xf32>
    %cst_11 = arith.constant 5.000000e-01 : f32
    %16 = vector.broadcast %cst_11 : f32 to vector<128x4096xf32>
    %17 = arith.mulf %16, %15 : vector<128x4096xf32>
    %cst_12 = arith.constant 0.707106769 : f32
    %18 = vector.broadcast %cst_12 : f32 to vector<128x4096xf32>
    %19 = arith.mulf %15, %18 : vector<128x4096xf32>
    %20 = math.erf %19 : vector<128x4096xf32>
    %cst_13 = arith.constant 1.000000e+00 : f32
    %21 = vector.broadcast %cst_13 : f32 to vector<128x4096xf32>
    %22 = arith.addf %21, %20 : vector<128x4096xf32>
    %23 = arith.mulf %17, %22 : vector<128x4096xf32>
    %c0_14 = arith.constant 0 : index
    %c0_15 = arith.constant 0 : index
    %24 = vector.load %arg5[%c0_14, %c0_15] : memref<1x128xf32, #tpu.memory_space<vmem>>, vector<1x128xf32>
    %cst_16 = arith.constant dense<0.000000e+00> : vector<1x4096xf32>
    %25 = tpu.matmul %24, %23, %cst_16 {dimension_numbers = #tpu.dot_dimension_numbers<[1], [0], [0], [1], [0, 0, 1, 1], [], []>} : vector<1x128xf32>, vector<128x4096xf32>, vector<1x4096xf32> -> vector<1x4096xf32>
    %c0_17 = arith.constant 0 : index
    %c0_18 = arith.constant 0 : index
    %26 = memref.load %arg6[%c0_17, %c0_18] : memref<1x1xf32, #tpu.memory_space<smem>>
    %27 = vector.broadcast %26 : f32 to vector<1x4096xf32>
    %28 = arith.addf %25, %27 : vector<1x4096xf32>
    %c0_19 = arith.constant 0 : index
    %c0_20 = arith.constant 0 : index
    %29 = vector.load %arg7[%c0_19, %c0_20] : memref<1x4096xf32, #tpu.memory_space<vmem>>, vector<1x4096xf32>
    tpu.vector_store %arg7[%c0_19, %c0_20], %28 {strides = array<i32>} : memref<1x4096xf32, #tpu.memory_space<vmem>>, vector<1x4096xf32>,
    return
  }
  func.func @transform_0(%arg0: i32) -> (i32, i32) {
    %c0_i32 = arith.constant 0 : i32
    %c0_i32_0 = arith.constant 0 : i32
    return %c0_i32, %arg0 : i32, i32
  }
  func.func @transform_1(%arg0: i32) -> (i32, i32) {
    %c0_i32 = arith.constant 0 : i32
    %c0_i32_0 = arith.constant 0 : i32
    %c0_i32_1 = arith.constant 0 : i32
    return %c0_i32, %c0_i32_0 : i32, i32
  }
  func.func @transform_2(%arg0: i32) -> (i32, i32) {
    %c0_i32 = arith.constant 0 : i32
    %c0_i32_0 = arith.constant 0 : i32
    %c0_i32_1 = arith.constant 0 : i32
    return %c0_i32, %c0_i32_0 : i32, i32
  }
  func.func @transform_3(%arg0: i32) -> (i32, i32) {
    %c0_i32 = arith.constant 0 : i32
    %c0_i32_0 = arith.constant 0 : i32
    %c0_i32_1 = arith.constant 0 : i32
    return %c0_i32, %c0_i32_0 : i32, i32
  }
  func.func @transform_4(%arg0: i32) -> (i32, i32) {
    %c0_i32 = arith.constant 0 : i32
    %c0_i32_0 = arith.constant 0 : i32
    %c0_i32_1 = arith.constant 0 : i32
    return %c0_i32, %c0_i32_0 : i32, i32
  }
  func.func @transform_5(%arg0: i32) -> (i32, i32) {
    %c0_i32 = arith.constant 0 : i32
    %c0_i32_0 = arith.constant 0 : i32
    %c0_i32_1 = arith.constant 0 : i32
    return %c0_i32, %c0_i32_0 : i32, i32
  }
  func.func @transform_6(%arg0: i32) -> (i32, i32) {
    %c0_i32 = arith.constant 0 : i32
    %c0_i32_0 = arith.constant 0 : i32
    return %c0_i32, %arg0 : i32, i32
  }
}

</mosaic_0001>

<llo_original>
// kernel: mlp_join_forward.1
$region0: #{mlp_join_forward.1}
  #allocation0 [shape = 'u32[]', space=smem, size = 0x4, offset = 0x4, fixed_abs, tag = 'smem constant byte address 0x4 - core index']
  #allocation1 [shape = 'u32[144,128]{1,0:T(1,128)}', space=vmem, size = 0x12000, scoped, tag = 'internal scratch']
  #allocation2 [shape = 'f32[1,1]{1,0:T(1,128)S(6)}', space=smem, size = 0x200, scoped, tag = 'scoped memory for mlp_join_forward.1']
  %s0 = inlined_call_operand.vmem [shape: f32[2,4096], index: 0, kind: input, shape index: {}]
  %s1 = inlined_call_operand.vmem [shape: f32[128,2], index: 1, kind: input, shape index: {}]
  %s2 = inlined_call_operand.vmem [shape: f32[128,128], index: 2, kind: input, shape index: {}]
  %s3 = inlined_call_operand.vmem [shape: f32[128,1], index: 3, kind: input, shape index: {}]
  %s4 = inlined_call_operand.vmem [shape: f32[1,128], index: 4, kind: input, shape index: {}]
  %s5 = inlined_call_operand.<no memory space> [shape: f32[1,1], index: 5, kind: input, shape index: {}]
  %s6 = inlined_call_operand.vmem [shape: f32[1,4096], index: 6, kind: output, shape index: {}]
  %s7 = sld [smem:[#allocation0]]
  $region34: #{mlp_join_forward.1} parent=0
    _
  %s9 = ssub.s32 1, %s7
  %s10 = scalar_select 0, %s9, %s7
  %11 = sst [smem:[#allocation2]] %s5
  // Predicated region
  $region2: #{mlp_join_forward.1} parent=0 // pred_check
    _
  $region3: #{mlp_join_forward.1} parent=0 // pred_check_branch
    %13 = sbr.rel (0) target = $region5
  $region4: #{mlp_join_forward.1} parent=0 // pred_region
    _
  $region5: #{mlp_join_forward.1} parent=0 // pred_fallthru
    _
  // Predicated region
  $region6: #{mlp_join_forward.1} parent=0 // pred_check
    _
  $region7: #{mlp_join_forward.1} parent=0 // pred_check_branch
    %15 = sbr.rel (0) target = $region9
  $region8: #{mlp_join_forward.1} parent=0 // pred_region
    _
  $region9: #{mlp_join_forward.1} parent=0 // pred_fallthru
    _
  // Predicated region
  $region10: #{mlp_join_forward.1} parent=0 // pred_check
    _
  $region11: #{mlp_join_forward.1} parent=0 // pred_check_branch
    %17 = sbr.rel (0) target = $region13
  $region12: #{mlp_join_forward.1} parent=0 // pred_region
    _
  $region13: #{mlp_join_forward.1} parent=0 // pred_fallthru
    _
  // Predicated region
  $region14: #{mlp_join_forward.1} parent=0 // pred_check
    _
  $region15: #{mlp_join_forward.1} parent=0 // pred_check_branch
    %19 = sbr.rel (0) target = $region17
  $region16: #{mlp_join_forward.1} parent=0 // pred_region
    _
  $region17: #{mlp_join_forward.1} parent=0 // pred_fallthru
    _
  // Predicated region
  $region18: #{mlp_join_forward.1} parent=0 // pred_check
    _
  $region19: #{mlp_join_forward.1} parent=0 // pred_check_branch
    %21 = sbr.rel (0) target = $region21
  $region20: #{mlp_join_forward.1} parent=0 // pred_region
    _
  $region21: #{mlp_join_forward.1} parent=0 // pred_fallthru
    _
  // Predicated region
  $region22: #{mlp_join_forward.1} parent=0 // pred_check
    _
  $region23: #{mlp_join_forward.1} parent=0 // pred_check_branch
    %23 = sbr.rel (0) target = $region25
  $region24: #{mlp_join_forward.1} parent=0 // pred_region
    _
  $region25: #{mlp_join_forward.1} parent=0 // pred_fallthru
    _
  %v24 = vld [vmem:[%s0] sm:$0xff]
  %v25 = vld [vmem:[%s0 + $0x8] sm:$0xff]
  %v26 = vld [vmem:[%s0 + $0x10] sm:$0xff]
  %v27 = vld [vmem:[%s0 + $0x18] sm:$0xff]
  %v28 = vld [vmem:[%s0 + $0x20] sm:$0xff]
  %v29 = vld [vmem:[%s0 + $0x28] sm:$0xff]
  %v30 = vld [vmem:[%s0 + $0x30] sm:$0xff]
  %v31 = vld [vmem:[%s0 + $0x38] sm:$0xff]
  %v32 = vld [vmem:[%s1] sm:$0xff]
  %v33 = vld [vmem:[%s1 + $0x8] sm:$0xff]
  %v34 = vld [vmem:[%s1 + $0x10] sm:$0xff]
  %v35 = vld [vmem:[%s1 + $0x18] sm:$0xff]
  %v36 = vld [vmem:[%s1 + $0x20] sm:$0xff]
  %v37 = vld [vmem:[%s1 + $0x28] sm:$0xff]
  %v38 = vld [vmem:[%s1 + $0x30] sm:$0xff]
  %v39 = vld [vmem:[%s1 + $0x38] sm:$0xff]
  %v40 = vld [vmem:[%s1 + $0x40] sm:$0xff]
  %v41 = vld [vmem:[%s1 + $0x48] sm:$0xff]
  %v42 = vld [vmem:[%s1 + $0x50] sm:$0xff]
  %v43 = vld [vmem:[%s1 + $0x58] sm:$0xff]
  %v44 = vld [vmem:[%s1 + $0x60] sm:$0xff]
  %v45 = vld [vmem:[%s1 + $0x68] sm:$0xff]
  %v46 = vld [vmem:[%s1 + $0x70] sm:$0xff]
  %v47 = vld [vmem:[%s1 + $0x78] sm:$0xff]
  %v56 = vcombine.high %v24, %v24
  %v58 = vunpack.c.l.s4 1983009808
  %v59 = vunpack.c.0.s8 %v58
  %v60 = vlaneseq
  %v61 = vshrl.u32 %v60, 7
  %v62 = vsub.s32 %v59, %v61
  %v63 = vrot.slane %v24, %v62
  %v65 = vunpack.c.l.s4 1983009808
  %v66 = vunpack.c.0.s8 %v65
  %v67 = vlaneseq
  %v68 = vshrl.u32 %v67, 7
  %v69 = vsub.s32 %v66, %v68
  %v70 = vrot.slane %v56, %v69
  %v71 = vcombine.high %v63, %v63
  %v72 = vcombine.high %v70, %v70
  %v73 = vcombine.high %v25, %v25
  %v75 = vunpack.c.l.s4 1983009808
  %v76 = vunpack.c.0.s8 %v75
  %v77 = vlaneseq
  %v78 = vshrl.u32 %v77, 7
  %v79 = vsub.s32 %v76, %v78
  %v80 = vrot.slane %v25, %v79
  %v82 = vunpack.c.l.s4 1983009808
  %v83 = vunpack.c.0.s8 %v82
  %v84 = vlaneseq
  %v85 = vshrl.u32 %v84, 7
  %v86 = vsub.s32 %v83, %v85
  %v87 = vrot.slane %v73, %v86
  %v88 = vcombine.high %v80, %v80
  %v89 = vcombine.high %v87, %v87
  %v90 = vcombine.high %v26, %v26
  %v92 = vunpack.c.l.s4 1983009808
  %v93 = vunpack.c.0.s8 %v92
  %v94 = vlaneseq
  %v95 = vshrl.u32 %v94, 7
  %v96 = vsub.s32 %v93, %v95
  %v97 = vrot.slane %v26, %v96
  %v99 = vunpack.c.l.s4 1983009808
  %v100 = vunpack.c.0.s8 %v99
  %v101 = vlaneseq
  %v102 = vshrl.u32 %v101, 7
  %v103 = vsub.s32 %v100, %v102
  %v104 = vrot.slane %v90, %v103
  %v105 = vcombine.high %v97, %v97
  %v106 = vcombine.high %v104, %v104
  %v107 = vcombine.high %v27, %v27
  %v109 = vunpack.c.l.s4 1983009808
  %v110 = vunpack.c.0.s8 %v109
  %v111 = vlaneseq
  %v112 = vshrl.u32 %v111, 7
  %v113 = vsub.s32 %v110, %v112
  %v114 = vrot.slane %v27, %v113
  %v116 = vunpack.c.l.s4 1983009808
  %v117 = vunpack.c.0.s8 %v116
  %v118 = vlaneseq
  %v119 = vshrl.u32 %v118, 7
  %v120 = vsub.s32 %v117, %v119
  %v121 = vrot.slane %v107, %v120
  %v122 = vcombine.high %v114, %v114
  %v123 = vcombine.high %v121, %v121
  %v124 = vcombine.high %v28, %v28
  %v126 = vunpack.c.l.s4 1983009808
  %v127 = vunpack.c.0.s8 %v126
  %v128 = vlaneseq
  %v129 = vshrl.u32 %v128, 7
  %v130 = vsub.s32 %v127, %v129
  %v131 = vrot.slane %v28, %v130
  %v133 = vunpack.c.l.s4 1983009808
  %v134 = vunpack.c.0.s8 %v133
  %v135 = vlaneseq
  %v136 = vshrl.u32 %v135, 7
  %v137 = vsub.s32 %v134, %v136
  %v138 = vrot.slane %v124, %v137
  %v139 = vcombine.high %v131, %v131
  %v140 = vcombine.high %v138, %v138
  %v141 = vcombine.high %v29, %v29
  %v143 = vunpack.c.l.s4 1983009808
  %v144 = vunpack.c.0.s8 %v143
  %v145 = vlaneseq
  %v146 = vshrl.u32 %v145, 7
  %v147 = vsub.s32 %v144, %v146
  %v148 = vrot.slane %v29, %v147
  %v150 = vunpack.c.l.s4 1983009808
  %v151 = vunpack.c.0.s8 %v150
  %v152 = vlaneseq
  %v153 = vshrl.u32 %v152, 7
  %v154 = vsub.s32 %v151, %v153
  %v155 = vrot.slane %v141, %v154
  %v156 = vcombine.high %v148, %v148
  %v157 = vcombine.high %v155, %v155
  %v158 = vcombine.high %v30, %v30
  %v160 = vunpack.c.l.s4 1983009808
  %v161 = vunpack.c.0.s8 %v160
  %v162 = vlaneseq
  %v163 = vshrl.u32 %v162, 7
  %v164 = vsub.s32 %v161, %v163
  %v165 = vrot.slane %v30, %v164
  %v167 = vunpack.c.l.s4 1983009808
  %v168 = vunpack.c.0.s8 %v167
  %v169 = vlaneseq
  %v170 = vshrl.u32 %v169, 7
  %v171 = vsub.s32 %v168, %v170
  %v172 = vrot.slane %v158, %v171
  %v173 = vcombine.high %v165, %v165
  %v174 = vcombine.high %v172, %v172
  %v175 = vcombine.high %v31, %v31
  %v177 = vunpack.c.l.s4 1983009808
  %v178 = vunpack.c.0.s8 %v177
  %v179 = vlaneseq
  %v180 = vshrl.u32 %v179, 7
  %v181 = vsub.s32 %v178, %v180
  %v182 = vrot.slane %v31, %v181
  %v184 = vunpack.c.l.s4 1983009808
  %v185 = vunpack.c.0.s8 %v184
  %v186 = vlaneseq
  %v187 = vshrl.u32 %v186, 7
  %v188 = vsub.s32 %v185, %v187
  %v189 = vrot.slane %v175, %v188
  %v190 = vcombine.high %v182, %v182
  %v191 = vcombine.high %v189, %v189
  %vm192 = vcmask 15360
  %v194 = vsel %vm192, %v32, 0
  %v197 = vsel %vm192, %v33, 0
  %v200 = vsel %vm192, %v34, 0
  %v203 = vsel %vm192, %v35, 0
  %v206 = vsel %vm192, %v36, 0
  %v209 = vsel %vm192, %v37, 0
  %v212 = vsel %vm192, %v38, 0
  %v215 = vsel %vm192, %v39, 0
  %v218 = vsel %vm192, %v40, 0
  %v221 = vsel %vm192, %v41, 0
  %v224 = vsel %vm192, %v42, 0
  %v227 = vsel %vm192, %v43, 0
  %v230 = vsel %vm192, %v44, 0
  %v233 = vsel %vm192, %v45, 0
  %v236 = vsel %vm192, %v46, 0
  %v239 = vsel %vm192, %v47, 0
  %vm241 = vcmask 1041408
  %v242 = vsel %vm241, %v63, 0
  %v244 = vsel %vm241, %v71, 0
  %v246 = vsel %vm241, %v70, 0
  %v248 = vsel %vm241, %v72, 0
  %v250 = vsel %vm241, %v80, 0
  %v252 = vsel %vm241, %v88, 0
  %v254 = vsel %vm241, %v87, 0
  %v256 = vsel %vm241, %v89, 0
  %v258 = vsel %vm241, %v97, 0
  %v260 = vsel %vm241, %v105, 0
  %v262 = vsel %vm241, %v104, 0
  %v264 = vsel %vm241, %v106, 0
  %v266 = vsel %vm241, %v114, 0
  %v268 = vsel %vm241, %v122, 0
  %v270 = vsel %vm241, %v121, 0
  %v272 = vsel %vm241, %v123, 0
  %v274 = vsel %vm241, %v131, 0
  %v276 = vsel %vm241, %v139, 0
  %v278 = vsel %vm241, %v138, 0
  %v280 = vsel %vm241, %v140, 0
  %v282 = vsel %vm241, %v148, 0
  %v284 = vsel %vm241, %v156, 0
  %v286 = vsel %vm241, %v155, 0
  %v288 = vsel %vm241, %v157, 0
  %v290 = vsel %vm241, %v165, 0
  %v292 = vsel %vm241, %v173, 0
  %v294 = vsel %vm241, %v172, 0
  %v296 = vsel %vm241, %v174, 0
  %v298 = vsel %vm241, %v182, 0
  %v300 = vsel %vm241, %v190, 0
  %v302 = vsel %vm241, %v189, 0
  %v304 = vsel %vm241, %v191, 0
  %306 = vmatprep.subr.mxu0 %v244
  %307 = vmatpush1.msra.mxu0 %v242
  %308 = vmatprep.subr.mxu0 0.0
  %309 = vmatpush1.msra.mxu0 0.0
  %310 = vmatprep.subr.mxu0 0.0
  %311 = vmatpush1.msra.mxu0 0.0
  %312 = vmatprep.subr.mxu0 0.0
  %313 = vmatpush1.msra.mxu0 0.0
  %314 = vmatprep.subr.mxu0 0.0
  %315 = vmatpush1.msra.mxu0 0.0
  %316 = vmatprep.subr.mxu0 0.0
  %317 = vmatpush1.msra.mxu0 0.0
  %318 = vmatprep.subr.mxu0 0.0
  %319 = vmatpush1.msra.mxu0 0.0
  %320 = vmatprep.subr.mxu0 0.0
  %321 = vmatpush1.msra.mxu0 0.0
  %322 = vmatprep.subr.mxu0 0.0
  %323 = vmatpush1.msra.mxu0 0.0
  %324 = vmatprep.subr.mxu0 0.0
  %325 = vmatpush1.msra.mxu0 0.0
  %326 = vmatprep.subr.mxu0 0.0
  %327 = vmatpush1.msra.mxu0 0.0
  %328 = vmatprep.subr.mxu0 0.0
  %329 = vmatpush1.msra.mxu0 0.0
  %330 = vmatprep.subr.mxu0 0.0
  %331 = vmatpush1.msra.mxu0 0.0
  %332 = vmatprep.subr.mxu0 0.0
  %333 = vmatpush1.msra.mxu0 0.0
  %334 = vmatprep.subr.mxu0 0.0
  %335 = vmatpush1.msra.mxu0 0.0
  %336 = vmatprep.subr.mxu0 0.0
  %337 = vmatpush1.msra.mxu0 0.0
  %338 = vmatprep.subr.mxu0 0.0
  %339 = vmatpush1.msra.mxu0 0.0
  %340 = vmatprep.subr.mxu0 0.0
  %341 = vmatpush1.msra.mxu0 0.0
  %342 = vmatprep.subr.mxu0 0.0
  %343 = vmatpush1.msra.mxu0 0.0
  %344 = vmatprep.subr.mxu0 0.0
  %345 = vmatpush1.msra.mxu0 0.0
  %346 = vmatprep.subr.mxu0 0.0
  %347 = vmatpush1.msra.mxu0 0.0
  %348 = vmatprep.subr.mxu0 0.0
  %349 = vmatpush1.msra.mxu0 0.0
  %350 = vmatprep.subr.mxu0 0.0
  %351 = vmatpush1.msra.mxu0 0.0
  %352 = vmatprep.subr.mxu0 0.0
  %353 = vmatpush1.msra.mxu0 0.0
  %354 = vmatprep.subr.mxu0 0.0
  %355 = vmatpush1.msra.mxu0 0.0
  %356 = vmatprep.subr.mxu0 0.0
  %357 = vmatpush1.msra.mxu0 0.0
  %358 = vmatprep.subr.mxu0 0.0
  %359 = vmatpush1.msra.mxu0 0.0
  %360 = vmatprep.subr.mxu0 0.0
  %361 = vmatpush1.msra.mxu0 0.0
  %362 = vmatprep.subr.mxu0 0.0
  %363 = vmatpush1.msra.mxu0 0.0
  %364 = vmatprep.subr.mxu0 0.0
  %365 = vmatpush1.msra.mxu0 0.0
  %366 = vmatprep.subr.mxu0 0.0
  %367 = vmatpush1.msra.mxu0 0.0
  %368 = vmatprep.subr.mxu0 0.0
  %369 = vmatpush1.msra.mxu0 0.0
  %370 = vmatprep.mubr.f32.mxu0 0.0
  %371 = vmatmul.mubr.f32.gmra.mrb[0].mxu0 %v194
  %v372 = vpop.f32.mrb[0].mxu0
  %v373 = vadd.f32 0.0, %v372
  %v374 = vpop.f32.mrb[0].mxu0
  %v375 = vadd.f32 0.0, %v374
  %376 = vmatprep.mubr.f32.mxu0 0.0
  %377 = vmatmul.mubr.f32.gmra.mrb[0].mxu0 %v197
  %v378 = vpop.f32.mrb[0].mxu0
  %v379 = vadd.f32 0.0, %v378
  %v380 = vpop.f32.mrb[0].mxu0
  %v381 = vadd.f32 0.0, %v380
  %382 = vmatprep.mubr.f32.mxu0 0.0
  %383 = vmatmul.mubr.f32.gmra.mrb[0].mxu0 %v200
  %v384 = vpop.f32.mrb[0].mxu0
  %v385 = vadd.f32 0.0, %v384
  %v386 = vpop.f32.mrb[0].mxu0
  %v387 = vadd.f32 0.0, %v386
  %388 = vmatprep.mubr.f32.mxu0 0.0
  %389 = vmatmul.mubr.f32.gmra.mrb[0].mxu0 %v203
  %v390 = vpop.f32.mrb[0].mxu0
  %v391 = vadd.f32 0.0, %v390
  %v392 = vpop.f32.mrb[0].mxu0
  %v393 = vadd.f32 0.0, %v392
  %394 = vmatprep.mubr.f32.mxu0 0.0
  %395 = vmatmul.mubr.f32.gmra.mrb[0].mxu0 %v206
  %v396 = vpop.f32.mrb[0].mxu0
  %v397 = vadd.f32 0.0, %v396
  %v398 = vpop.f32.mrb[0].mxu0
  %v399 = vadd.f32 0.0, %v398
  %400 = vmatprep.mubr.f32.mxu0 0.0
  %401 = vmatmul.mubr.f32.gmra.mrb[0].mxu0 %v209
  %v402 = vpop.f32.mrb[0].mxu0
  %v403 = vadd.f32 0.0, %v402
  %v404 = vpop.f32.mrb[0].mxu0
  %v405 = vadd.f32 0.0, %v404
  %406 = vmatprep.mubr.f32.mxu0 0.0
  %407 = vmatmul.mubr.f32.gmra.mrb[0].mxu0 %v212
  %v408 = vpop.f32.mrb[0].mxu0
  %v409 = vadd.f32 0.0, %v408
  %v410 = vpop.f32.mrb[0].mxu0
  %v411 = vadd.f32 0.0, %v410
  %412 = vmatprep.mubr.f32.mxu0 0.0
  %413 = vmatmul.mubr.f32.gmra.mrb[0].mxu0 %v215
  %v414 = vpop.f32.mrb[0].mxu0
  %v415 = vadd.f32 0.0, %v414
  %v416 = vpop.f32.mrb[0].mxu0
  %v417 = vadd.f32 0.0, %v416
  %418 = vmatprep.mubr.f32.mxu0 0.0
  %419 = vmatmul.mubr.f32.gmra.mrb[0].mxu0 %v218
  %v420 = vpop.f32.mrb[0].mxu0
  %v421 = vadd.f32 0.0, %v420
  %v422 = vpop.f32.mrb[0].mxu0
  %v423 = vadd.f32 0.0, %v422
  %424 = vmatprep.mubr.f32.mxu0 0.0
  %425 = vmatmul.mubr.f32.gmra.mrb[0].mxu0 %v221
  %v426 = vpop.f32.mrb[0].mxu0
  %v427 = vadd.f32 0.0, %v426
  %v428 = vpop.f32.mrb[0].mxu0
  %v429 = vadd.f32 0.0, %v428
  %430 = vmatprep.mubr.f32.mxu0 0.0
  %431 = vmatmul.mubr.f32.gmra.mrb[0].mxu0 %v224
  %v432 = vpop.f32.mrb[0].mxu0
  %v433 = vadd.f32 0.0, %v432
  %v434 = vpop.f32.mrb[0].mxu0
  %v435 = vadd.f32 0.0, %v434
  %436 = vmatprep.mubr.f32.mxu0 0.0
  %437 = vmatmul.mubr.f32.gmra.mrb[0].mxu0 %v227
  %v438 = vpop.f32.mrb[0].mxu0
  %v439 = vadd.f32 0.0, %v438
  %v440 = vpop.f32.mrb[0].mxu0
  %v441 = vadd.f32 0.0, %v440
  %442 = vmatprep.mubr.f32.mxu0 0.0
  %443 = vmatmul.mubr.f32.gmra.mrb[0].mxu0 %v230
  %v444 = vpop.f32.mrb[0].mxu0
  %v445 = vadd.f32 0.0, %v444
  %v446 = vpop.f32.mrb[0].mxu0
  %v447 = vadd.f32 0.0, %v446
  %448 = vmatprep.mubr.f32.mxu0 0.0
  %449 = vmatmul.mubr.f32.gmra.mrb[0].mxu0 %v233
  %v450 = vpop.f32.mrb[0].mxu0
  %v451 = vadd.f32 0.0, %v450
  %v452 = vpop.f32.mrb[0].mxu0
  %v453 = vadd.f32 0.0, %v452
  %454 = vmatprep.mubr.f32.mxu0 0.0
  %455 = vmatmul.mubr.f32.gmra.mrb[0].mxu0 %v236
  %v456 = vpop.f32.mrb[0].mxu0
  %v457 = vadd.f32 0.0, %v456
  %v458 = vpop.f32.mrb[0].mxu0
  %v459 = vadd.f32 0.0, %v458
  %460 = vmatprep.mubr.f32.mxu0 0.0
  %461 = vmatmul.mubr.f32.gmra.mrb[0].mxu0 %v239
  %v462 = vpop.f32.mrb[0].mxu0
  %v463 = vadd.f32 0.0, %v462
  %v464 = vpop.f32.mrb[0].mxu0
  %v465 = vadd.f32 0.0, %v464
  %466 = vdwg.mxu0
  %467 = vmatprep.subr.mxu0 %v248
  %468 = vmatpush1.msra.mxu0 %v246
  %469 = vmatprep.subr.mxu0 0.0
  %470 = vmatpush1.msra.mxu0 0.0
  %471 = vmatprep.subr.mxu0 0.0
  %472 = vmatpush1.msra.mxu0 0.0
  %473 = vmatprep.subr.mxu0 0.0
  %474 = vmatpush1.msra.mxu0 0.0
  %475 = vmatprep.subr.mxu0 0.0
  %476 = vmatpush1.msra.mxu0 0.0
  %477 = vmatprep.subr.mxu0 0.0
  %478 = vmatpush1.msra.mxu0 0.0
  %479 = vmatprep.subr.mxu0 0.0
  %480 = vmatpush1.msra.mxu0 0.0
  %481 = vmatprep.subr.mxu0 0.0
  %482 = vmatpush1.msra.mxu0 0.0
  %483 = vmatprep.subr.mxu0 0.0
  %484 = vmatpush1.msra.mxu0 0.0
  %485 = vmatprep.subr.mxu0 0.0
  %486 = vmatpush1.msra.mxu0 0.0
  %487 = vmatprep.subr.mxu0 0.0
  %488 = vmatpush1.msra.mxu0 0.0
  %489 = vmatprep.subr.mxu0 0.0
  %490 = vmatpush1.msra.mxu0 0.0
  %491 = vmatprep.subr.mxu0 0.0
  %492 = vmatpush1.msra.mxu0 0.0
  %493 = vmatprep.subr.mxu0 0.0
  %494 = vmatpush1.msra.mxu0 0.0
  %495 = vmatprep.subr.mxu0 0.0
  %496 = vmatpush1.msra.mxu0 0.0
  %497 = vmatprep.subr.mxu0 0.0
  %498 = vmatpush1.msra.mxu0 0.0
  %499 = vmatprep.subr.mxu0 0.0
  %500 = vmatpush1.msra.mxu0 0.0
  %501 = vmatprep.subr.mxu0 0.0
  %502 = vmatpush1.msra.mxu0 0.0
  %503 = vmatprep.subr.mxu0 0.0
  %504 = vmatpush1.msra.mxu0 0.0
  %505 = vmatprep.subr.mxu0 0.0
  %506 = vmatpush1.msra.mxu0 0.0
  %507 = vmatprep.subr.mxu0 0.0
  %508 = vmatpush1.msra.mxu0 0.0
  %509 = vmatprep.subr.mxu0 0.0
  %510 = vmatpush1.msra.mxu0 0.0
  %511 = vmatprep.subr.mxu0 0.0
  %512 = vmatpush1.msra.mxu0 0.0
  %513 = vmatprep.subr.mxu0 0.0
  %514 = vmatpush1.msra.mxu0 0.0
  %515 = vmatprep.subr.mxu0 0.0
  %516 = vmatpush1.msra.mxu0 0.0
  %517 = vmatprep.subr.mxu0 0.0
  %518 = vmatpush1.msra.mxu0 0.0
  %519 = vmatprep.subr.mxu0 0.0
  %520 = vmatpush1.msra.mxu0 0.0
  %521 = vmatprep.subr.mxu0 0.0
  %522 = vmatpush1.msra.mxu0 0.0
  %523 = vmatprep.subr.mxu0 0.0
  %524 = vmatpush1.msra.mxu0 0.0
  %525 = vmatprep.subr.mxu0 0.0
  %526 = vmatpush1.msra.mxu0 0.0
  %527 = vmatprep.subr.mxu0 0.0
  %528 = vmatpush1.msra.mxu0 0.0
  %529 = vmatprep.subr.mxu0 0.0
  %530 = vmatpush1.msra.mxu0 0.0
  %531 = vmatprep.mubr.f32.mxu0 0.0
  %532 = vmatmul.mubr.f32.gmra.mrb[0].mxu0 %v194
  %v533 = vpop.f32.mrb[0].mxu0
  %v534 = vadd.f32 0.0, %v533
  %v535 = vpop.f32.mrb[0].mxu0
  %v536 = vadd.f32 0.0, %v535
  %537 = vmatprep.mubr.f32.mxu0 0.0
  %538 = vmatmul.mubr.f32.gmra.mrb[0].mxu0 %v197
  %v539 = vpop.f32.mrb[0].mxu0
  %v540 = vadd.f32 0.0, %v539
  %v541 = vpop.f32.mrb[0].mxu0
  %v542 = vadd.f32 0.0, %v541
  %543 = vmatprep.mubr.f32.mxu0 0.0
  %544 = vmatmul.mubr.f32.gmra.mrb[0].mxu0 %v200
  %v545 = vpop.f32.mrb[0].mxu0
  %v546 = vadd.f32 0.0, %v545
  %v547 = vpop.f32.mrb[0].mxu0
  %v548 = vadd.f32 0.0, %v547
  %549 = vmatprep.mubr.f32.mxu0 0.0
  %550 = vmatmul.mubr.f32.gmra.mrb[0].mxu0 %v203
  %v551 = vpop.f32.mrb[0].mxu0
  %v552 = vadd.f32 0.0, %v551
  %v553 = vpop.f32.mrb[0].mxu0
  %v554 = vadd.f32 0.0, %v553
  %555 = vmatprep.mubr.f32.mxu0 0.0
  %556 = vmatmul.mubr.f32.gmra.mrb[0].mxu0 %v206
  %v557 = vpop.f32.mrb[0].mxu0
  %v558 = vadd.f32 0.0, %v557
  %v559 = vpop.f32.mrb[0].mxu0
  %v560 = vadd.f32 0.0, %v559
  %561 = vmatprep.mubr.f32.mxu0 0.0
  %562 = vmatmul.mubr.f32.gmra.mrb[0].mxu0 %v209
  %v563 = vpop.f32.mrb[0].mxu0
  %v564 = vadd.f32 0.0, %v563
  %v565 = vpop.f32.mrb[0].mxu0
  %v566 = vadd.f32 0.0, %v565
  %567 = vmatprep.mubr.f32.mxu0 0.0
  %568 = vmatmul.mubr.f32.gmra.mrb[0].mxu0 %v212
  %v569 = vpop.f32.mrb[0].mxu0
  %v570 = vadd.f32 0.0, %v569
  %v571 = vpop.f32.mrb[0].mxu0
  %v572 = vadd.f32 0.0, %v571
  %573 = vmatprep.mubr.f32.mxu0 0.0
  %574 = vmatmul.mubr.f32.gmra.mrb[0].mxu0 %v215
  %v575 = vpop.f32.mrb[0].mxu0
  %v576 = vadd.f32 0.0, %v575
  %v577 = vpop.f32.mrb[0].mxu0
  %v578 = vadd.f32 0.0, %v577
  %579 = vmatprep.mubr.f32.mxu0 0.0
  %580 = vmatmul.mubr.f32.gmra.mrb[0].mxu0 %v218
  %v581 = vpop.f32.mrb[0].mxu0
  %v582 = vadd.f32 0.0, %v581
  %v583 = vpop.f32.mrb[0].mxu0
  %v584 = vadd.f32 0.0, %v583
  %585 = vmatprep.mubr.f32.mxu0 0.0
  %586 = vmatmul.mubr.f32.gmra.mrb[0].mxu0 %v221
  %v587 = vpop.f32.mrb[0].mxu0
  %v588 = vadd.f32 0.0, %v587
  %v589 = vpop.f32.mrb[0].mxu0
  %v590 = vadd.f32 0.0, %v589
  %591 = vmatprep.mubr.f32.mxu0 0.0
  %592 = vmatmul.mubr.f32.gmra.mrb[0].mxu0 %v224
  %v593 = vpop.f32.mrb[0].mxu0
  %v594 = vadd.f32 0.0, %v593
  %v595 = vpop.f32.mrb[0].mxu0
  %v596 = vadd.f32 0.0, %v595
  %597 = vmatprep.mubr.f32.mxu0 0.0
  %598 = vmatmul.mubr.f32.gmra.mrb[0].mxu0 %v227
  %v599 = vpop.f32.mrb[0].mxu0
  %v600 = vadd.f32 0.0, %v599
  %v601 = vpop.f32.mrb[0].mxu0
  %v602 = vadd.f32 0.0, %v601
  %603 = vmatprep.mubr.f32.mxu0 0.0
  %604 = vmatmul.mubr.f32.gmra.mrb[0].mxu0 %v230
  %v605 = vpop.f32.mrb[0].mxu0
  %v606 = vadd.f32 0.0, %v605
  %v607 = vpop.f32.mrb[0].mxu0
  %v608 = vadd.f32 0.0, %v607
  %609 = vmatprep.mubr.f32.mxu0 0.0
  %610 = vmatmul.mubr.f32.gmra.mrb[0].mxu0 %v233
  %v611 = vpop.f32.mrb[0].mxu0
  %v612 = vadd.f32 0.0, %v611
  %v613 = vpop.f32.mrb[0].mxu0
  %v614 = vadd.f32 0.0, %v613
  %615 = vmatprep.mubr.f32.mxu0 0.0
  %616 = vmatmul.mubr.f32.gmra.mrb[0].mxu0 %v236
  %v617 = vpop.f32.mrb[0].mxu0
  %v618 = vadd.f32 0.0, %v617
  %v619 = vpop.f32.mrb[0].mxu0
  %v620 = vadd.f32 0.0, %v619
  %621 = vmatprep.mubr.f32.mxu0 0.0
  %622 = vmatmul.mubr.f32.gmra.mrb[0].mxu0 %v239
  %v623 = vpop.f32.mrb[0].mxu0
  %v624 = vadd.f32 0.0, %v623
  %v625 = vpop.f32.mrb[0].mxu0
  %v626 = vadd.f32 0.0, %v625
  %627 = vdwg.mxu0
  %628 = vmatprep.subr.mxu0 %v252
  %629 = vmatpush1.msra.mxu0 %v250
  %630 = vmatprep.subr.mxu0 0.0
  %631 = vmatpush1.msra.mxu0 0.0
  %632 = vmatprep.subr.mxu0 0.0
  %633 = vmatpush1.msra.mxu0 0.0
  %634 = vmatprep.subr.mxu0 0.0
  %635 = vmatpush1.msra.mxu0 0.0
  %636 = vmatprep.subr.mxu0 0.0
  %637 = vmatpush1.msra.mxu0 0.0
  %638 = vmatprep.subr.mxu0 0.0
  %639 = vmatpush1.msra.mxu0 0.0
  %640 = vmatprep.subr.mxu0 0.0
  %641 = vmatpush1.msra.mxu0 0.0
  %642 = vmatprep.subr.mxu0 0.0
  %643 = vmatpush1.msra.mxu0 0.0
  %644 = vmatprep.subr.mxu0 0.0
  %645 = vmatpush1.msra.mxu0 0.0
  %646 = vmatprep.subr.mxu0 0.0
  %647 = vmatpush1.msra.mxu0 0.0
  %648 = vmatprep.subr.mxu0 0.0
  %649 = vmatpush1.msra.mxu0 0.0
  %650 = vmatprep.subr.mxu0 0.0
  %651 = vmatpush1.msra.mxu0 0.0
  %652 = vmatprep.subr.mxu0 0.0
  %653 = vmatpush1.msra.mxu0 0.0
  %654 = vmatprep.subr.mxu0 0.0
  %655 = vmatpush1.msra.mxu0 0.0
  %656 = vmatprep.subr.mxu0 0.0
  %657 = vmatpush1.msra.mxu0 0.0
  %658 = vmatprep.subr.mxu0 0.0
  %659 = vmatpush1.msra.mxu0 0.0
  %660 = vmatprep.subr.mxu0 0.0
  %661 = vmatpush1.msra.mxu0 0.0
  %662 = vmatprep.subr.mxu0 0.0
  %663 = vmatpush1.msra.mxu0 0.0
  %664 = vmatprep.subr.mxu0 0.0
  %665 = vmatpush1.msra.mxu0 0.0
  %666 = vmatprep.subr.mxu0 0.0
  %667 = vmatpush1.msra.mxu0 0.0
  %668 = vmatprep.subr.mxu0 0.0
  %669 = vmatpush1.msra.mxu0 0.0
  %670 = vmatprep.subr.mxu0 0.0
  %671 = vmatpush1.msra.mxu0 0.0
  %672 = vmatprep.subr.mxu0 0.0
  %673 = vmatpush1.msra.mxu0 0.0
  %674 = vmatprep.subr.mxu0 0.0
  %675 = vmatpush1.msra.mxu0 0.0
  %676 = vmatprep.subr.mxu0 0.0
  %677 = vmatpush1.msra.mxu0 0.0
  %678 = vmatprep.subr.mxu0 0.0
  %679 = vmatpush1.msra.mxu0 0.0
  %680 = vmatprep.subr.mxu0 0.0
  %681 = vmatpush1.msra.mxu0 0.0
  %682 = vmatprep.subr.mxu0 0.0
  %683 = vmatpush1.msra.mxu0 0.0
  %684 = vmatprep.subr.mxu0 0.0
  %685 = vmatpush1.msra.mxu0 0.0
  %686 = vmatprep.subr.mxu0 0.0
  %687 = vmatpush1.msra.mxu0 0.0
  %688 = vmatprep.subr.mxu0 0.0
  %689 = vmatpush1.msra.mxu0 0.0
  %690 = vmatprep.subr.mxu0 0.0
  %691 = vmatpush1.msra.mxu0 0.0
  %692 = vmatprep.mubr.f32.mxu0 0.0
  %693 = vmatmul.mubr.f32.gmra.mrb[0].mxu0 %v194
  %v694 = vpop.f32.mrb[0].mxu0
  %v695 = vadd.f32 0.0, %v694
  %v696 = vpop.f32.mrb[0].mxu0
  %v697 = vadd.f32 0.0, %v696
  %698 = vmatprep.mubr.f32.mxu0 0.0
  %699 = vmatmul.mubr.f32.gmra.mrb[0].mxu0 %v197
  %v700 = vpop.f32.mrb[0].mxu0
  %v701 = vadd.f32 0.0, %v700
  %v702 = vpop.f32.mrb[0].mxu0
  %v703 = vadd.f32 0.0, %v702
  %704 = vmatprep.mubr.f32.mxu0 0.0
  %705 = vmatmul.mubr.f32.gmra.mrb[0].mxu0 %v200
  %v706 = vpop.f32.mrb[0].mxu0
  %v707 = vadd.f32 0.0, %v706
  %v708 = vpop.f32.mrb[0].mxu0
  %v709 = vadd.f32 0.0, %v708
  %710 = vmatprep.mubr.f32.mxu0 0.0
  %711 = vmatmul.mubr.f32.gmra.mrb[0].mxu0 %v203
  %v712 = vpop.f32.mrb[0].mxu0
  %v713 = vadd.f32 0.0, %v712
  %v714 = vpop.f32.mrb[0].mxu0
  %v715 = vadd.f32 0.0, %v714
  %716 = vmatprep.mubr.f32.mxu0 0.0
  %717 = vmatmul.mubr.f32.gmra.mrb[0].mxu0 %v206
  %v718 = vpop.f32.mrb[0].mxu0
  %v719 = vadd.f32 0.0, %v718
  %v720 = vpop.f32.mrb[0].mxu0
  %v721 = vadd.f32 0.0, %v720
  %722 = vmatprep.mubr.f32.mxu0 0.0
  %723 = vmatmul.mubr.f32.gmra.mrb[0].mxu0 %v209
  %v724 = vpop.f32.mrb[0].mxu0
  %v725 = vadd.f32 0.0, %v724
  %v726 = vpop.f32.mrb[0].mxu0
  %v727 = vadd.f32 0.0, %v726
  %728 = vmatprep.mubr.f32.mxu0 0.0
  %729 = vmatmul.mubr.f32.gmra.mrb[0].mxu0 %v212
  %v730 = vpop.f32.mrb[0].mxu0
  %v731 = vadd.f32 0.0, %v730
  %v732 = vpop.f32.mrb[0].mxu0
  %v733 = vadd.f32 0.0, %v732
  %734 = vmatprep.mubr.f32.mxu0 0.0
  %735 = vmatmul.mubr.f32.gmra.mrb[0].mxu0 %v215
  %v736 = vpop.f32.mrb[0].mxu0
  %v737 = vadd.f32 0.0, %v736
  %v738 = vpop.f32.mrb[0].mxu0
  %v739 = vadd.f32 0.0, %v738
  %740 = vmatprep.mubr.f32.mxu0 0.0
  %741 = vmatmul.mubr.f32.gmra.mrb[0].mxu0 %v218
  %v742 = vpop.f32.mrb[0].mxu0
  %v743 = vadd.f32 0.0, %v742
  %v744 = vpop.f32.mrb[0].mxu0
  %v745 = vadd.f32 0.0, %v744
  %746 = vmatprep.mubr.f32.mxu0 0.0
  %747 = vmatmul.mubr.f32.gmra.mrb[0].mxu0 %v221
  %v748 = vpop.f32.mrb[0].mxu0
  %v749 = vadd.f32 0.0, %v748
  %v750 = vpop.f32.mrb[0].mxu0
  %v751 = vadd.f32 0.0, %v750
  %752 = vmatprep.mubr.f32.mxu0 0.0
  %753 = vmatmul.mubr.f32.gmra.mrb[0].mxu0 %v224
  %v754 = vpop.f32.mrb[0].mxu0
  %v755 = vadd.f32 0.0, %v754
  %v756 = vpop.f32.mrb[0].mxu0
  %v757 = vadd.f32 0.0, %v756
  %758 = vmatprep.mubr.f32.mxu0 0.0
  %759 = vmatmul.mubr.f32.gmra.mrb[0].mxu0 %v227
  %v760 = vpop.f32.mrb[0].mxu0
  %v761 = vadd.f32 0.0, %v760
  %v762 = vpop.f32.mrb[0].mxu0
  %v763 = vadd.f32 0.0, %v762
  %764 = vmatprep.mubr.f32.mxu0 0.0
  %765 = vmatmul.mubr.f32.gmra.mrb[0].mxu0 %v230
  %v766 = vpop.f32.mrb[0].mxu0
  %v767 = vadd.f32 0.0, %v766
  %v768 = vpop.f32.mrb[0].mxu0
  %v769 = vadd.f32 0.0, %v768
  %770 = vmatprep.mubr.f32.mxu0 0.0
  %771 = vmatmul.mubr.f32.gmra.mrb[0].mxu0 %v233
  %v772 = vpop.f32.mrb[0].mxu0
  %v773 = vadd.f32 0.0, %v772
  %v774 = vpop.f32.mrb[0].mxu0
  %v775 = vadd.f32 0.0, %v774
  %776 = vmatprep.mubr.f32.mxu0 0.0
  %777 = vmatmul.mubr.f32.gmra.mrb[0].mxu0 %v236
  %v778 = vpop.f32.mrb[0].mxu0
  %v779 = vadd.f32 0.0, %v778
  %v780 = vpop.f32.mrb[0].mxu0
  %v781 = vadd.f32 0.0, %v780
  %782 = vmatprep.mubr.f32.mxu0 0.0
  %783 = vmatmul.mubr.f32.gmra.mrb[0].mxu0 %v239
  %v784 = vpop.f32.mrb[0].mxu0
  %v785 = vadd.f32 0.0, %v784
  %v786 = vpop.f32.mrb[0].mxu0
  %v787 = vadd.f32 0.0, %v786
  %788 = vdwg.mxu0
  %789 = vmatprep.subr.mxu0 %v256
  %790 = vmatpush1.msra.mxu0 %v254
  %791 = vmatprep.subr.mxu0 0.0
  %792 = vmatpush1.msra.mxu0 0.0
  %793 = vmatprep.subr.mxu0 0.0
  %794 = vmatpush1.msra.mxu0 0.0
  %795 = vmatprep.subr.mxu0 0.0
  %796 = vmatpush1.msra.mxu0 0.0
  %797 = vmatprep.subr.mxu0 0.0
  %798 = vmatpush1.msra.mxu0 0.0
  %799 = vmatprep.subr.mxu0 0.0
  %800 = vmatpush1.msra.mxu0 0.0
  %801 = vmatprep.subr.mxu0 0.0
  %802 = vmatpush1.msra.mxu0 0.0
  %803 = vmatprep.subr.mxu0 0.0
  %804 = vmatpush1.msra.mxu0 0.0
  %805 = vmatprep.subr.mxu0 0.0
  %806 = vmatpush1.msra.mxu0 0.0
  %807 = vmatprep.subr.mxu0 0.0
  %808 = vmatpush1.msra.mxu0 0.0
  %809 = vmatprep.subr.mxu0 0.0
  %810 = vmatpush1.msra.mxu0 0.0
  %811 = vmatprep.subr.mxu0 0.0
  %812 = vmatpush1.msra.mxu0 0.0
  %813 = vmatprep.subr.mxu0 0.0
  %814 = vmatpush1.msra.mxu0 0.0
  %815 = vmatprep.subr.mxu0 0.0
  %816 = vmatpush1.msra.mxu0 0.0
  %817 = vmatprep.subr.mxu0 0.0
  %818 = vmatpush1.msra.mxu0 0.0
  %819 = vmatprep.subr.mxu0 0.0
  %820 = vmatpush1.msra.mxu0 0.0
  %821 = vmatprep.subr.mxu0 0.0
  %822 = vmatpush1.msra.mxu0 0.0
  %823 = vmatprep.subr.mxu0 0.0
  %824 = vmatpush1.msra.mxu0 0.0
  %825 = vmatprep.subr.mxu0 0.0
  %826 = vmatpush1.msra.mxu0 0.0
  %827 = vmatprep.subr.mxu0 0.0
  %828 = vmatpush1.msra.mxu0 0.0
  %829 = vmatprep.subr.mxu0 0.0
  %830 = vmatpush1.msra.mxu0 0.0
  %831 = vmatprep.subr.mxu0 0.0
  %832 = vmatpush1.msra.mxu0 0.0
  %833 = vmatprep.subr.mxu0 0.0
  %834 = vmatpush1.msra.mxu0 0.0
  %835 = vmatprep.subr.mxu0 0.0
  %836 = vmatpush1.msra.mxu0 0.0
  %837 = vmatprep.subr.mxu0 0.0
  %838 = vmatpush1.msra.mxu0 0.0
  %839 = vmatprep.subr.mxu0 0.0
  %840 = vmatpush1.msra.mxu0 0.0
  %841 = vmatprep.subr.mxu0 0.0
  %842 = vmatpush1.msra.mxu0 0.0
  %843 = vmatprep.subr.mxu0 0.0
  %844 = vmatpush1.msra.mxu0 0.0
  %845 = vmatprep.subr.mxu0 0.0
  %846 = vmatpush1.msra.mxu0 0.0
  %847 = vmatprep.subr.mxu0 0.0
  %848 = vmatpush1.msra.mxu0 0.0
  %849 = vmatprep.subr.mxu0 0.0
  %850 = vmatpush1.msra.mxu0 0.0
  %851 = vmatprep.subr.mxu0 0.0
  %852 = vmatpush1.msra.mxu0 0.0
  %853 = vmatprep.mubr.f32.mxu0 0.0
  %854 = vmatmul.mubr.f32.gmra.mrb[0].mxu0 %v194
  %v855 = vpop.f32.mrb[0].mxu0
  %v856 = vadd.f32 0.0, %v855
  %v857 = vpop.f32.mrb[0].mxu0
  %v858 = vadd.f32 0.0, %v857
  %859 = vmatprep.mubr.f32.mxu0 0.0
  %860 = vmatmul.mubr.f32.gmra.mrb[0].mxu0 %v197
  %v861 = vpop.f32.mrb[0].mxu0
  %v862 = vadd.f32 0.0, %v861
  %v863 = vpop.f32.mrb[0].mxu0
  %v864 = vadd.f32 0.0, %v863
  %865 = vmatprep.mubr.f32.mxu0 0.0
  %866 = vmatmul.mubr.f32.gmra.mrb[0].mxu0 %v200
  %v867 = vpop.f32.mrb[0].mxu0
  %v868 = vadd.f32 0.0, %v867
  %v869 = vpop.f32.mrb[0].mxu0
  %v870 = vadd.f32 0.0, %v869
  %871 = vmatprep.mubr.f32.mxu0 0.0
  %872 = vmatmul.mubr.f32.gmra.mrb[0].mxu0 %v203
  %v873 = vpop.f32.mrb[0].mxu0
  %v874 = vadd.f32 0.0, %v873
  %v875 = vpop.f32.mrb[0].mxu0
  %v876 = vadd.f32 0.0, %v875
  %877 = vmatprep.mubr.f32.mxu0 0.0
  %878 = vmatmul.mubr.f32.gmra.mrb[0].mxu0 %v206
  %v879 = vpop.f32.mrb[0].mxu0
  %v880 = vadd.f32 0.0, %v879
  %v881 = vpop.f32.mrb[0].mxu0
  %v882 = vadd.f32 0.0, %v881
  %883 = vmatprep.mubr.f32.mxu0 0.0
  %884 = vmatmul.mubr.f32.gmra.mrb[0].mxu0 %v209
  %v885 = vpop.f32.mrb[0].mxu0
  %v886 = vadd.f32 0.0, %v885
  %v887 = vpop.f32.mrb[0].mxu0
  %v888 = vadd.f32 0.0, %v887
  %889 = vmatprep.mubr.f32.mxu0 0.0
  %890 = vmatmul.mubr.f32.gmra.mrb[0].mxu0 %v212
  %v891 = vpop.f32.mrb[0].mxu0
  %v892 = vadd.f32 0.0, %v891
  %v893 = vpop.f32.mrb[0].mxu0
  %v894 = vadd.f32 0.0, %v893
  %895 = vmatprep.mubr.f32.mxu0 0.0
  %896 = vmatmul.mubr.f32.gmra.mrb[0].mxu0 %v215
  %v897 = vpop.f32.mrb[0].mxu0
  %v898 = vadd.f32 0.0, %v897
  %v899 = vpop.f32.mrb[0].mxu0
  %v900 = vadd.f32 0.0, %v899
  %901 = vmatprep.mubr.f32.mxu0 0.0
  %902 = vmatmul.mubr.f32.gmra.mrb[0].mxu0 %v218
  %v903 = vpop.f32.mrb[0].mxu0
  %v904 = vadd.f32 0.0, %v903
  %v905 = vpop.f32.mrb[0].mxu0
  %v906 = vadd.f32 0.0, %v905
  %907 = vmatprep.mubr.f32.mxu0 0.0
  %908 = vmatmul.mubr.f32.gmra.mrb[0].mxu0 %v221
  %v909 = vpop.f32.mrb[0].mxu0
  %v910 = vadd.f32 0.0, %v909
  %v911 = vpop.f32.mrb[0].mxu0
  %v912 = vadd.f32 0.0, %v911
  %913 = vmatprep.mubr.f32.mxu0 0.0
  %914 = vmatmul.mubr.f32.gmra.mrb[0].mxu0 %v224
  %v915 = vpop.f32.mrb[0].mxu0
  %v916 = vadd.f32 0.0, %v915
  %v917 = vpop.f32.mrb[0].mxu0
  %v918 = vadd.f32 0.0, %v917
  %919 = vmatprep.mubr.f32.mxu0 0.0
  %920 = vmatmul.mubr.f32.gmra.mrb[0].mxu0 %v227
  %v921 = vpop.f32.mrb[0].mxu0
  %v922 = vadd.f32 0.0, %v921
  %v923 = vpop.f32.mrb[0].mxu0
  %v924 = vadd.f32 0.0, %v923
  %925 = vmatprep.mubr.f32.mxu0 0.0
  %926 = vmatmul.mubr.f32.gmra.mrb[0].mxu0 %v230
  %v927 = vpop.f32.mrb[0].mxu0
  %v928 = vadd.f32 0.0, %v927
  %v929 = vpop.f32.mrb[0].mxu0
  %v930 = vadd.f32 0.0, %v929
  %931 = vmatprep.mubr.f32.mxu0 0.0
  %932 = vmatmul.mubr.f32.gmra.mrb[0].mxu0 %v233
  %v933 = vpop.f32.mrb[0].mxu0
  %v934 = vadd.f32 0.0, %v933
  %v935 = vpop.f32.mrb[0].mxu0
  %v936 = vadd.f32 0.0, %v935
  %937 = vmatprep.mubr.f32.mxu0 0.0
  %938 = vmatmul.mubr.f32.gmra.mrb[0].mxu0 %v236
  %v939 = vpop.f32.mrb[0].mxu0
  %v940 = vadd.f32 0.0, %v939
  %v941 = vpop.f32.mrb[0].mxu0
  %v942 = vadd.f32 0.0, %v941
  %943 = vmatprep.mubr.f32.mxu0 0.0
  %944 = vmatmul.mubr.f32.gmra.mrb[0].mxu0 %v239
  %v945 = vpop.f32.mrb[0].mxu0
  %v946 = vadd.f32 0.0, %v945
  %v947 = vpop.f32.mrb[0].mxu0
  %v948 = vadd.f32 0.0, %v947
  %949 = vdwg.mxu0
  %950 = vmatprep.subr.mxu0 %v260
  %951 = vmatpush1.msra.mxu0 %v258
  %952 = vmatprep.subr.mxu0 0.0
  %953 = vmatpush1.msra.mxu0 0.0
  %954 = vmatprep.subr.mxu0 0.0
  %955 = vmatpush1.msra.mxu0 0.0
  %956 = vmatprep.subr.mxu0 0.0
  %957 = vmatpush1.msra.mxu0 0.0
  %958 = vmatprep.subr.mxu0 0.0
  %959 = vmatpush1.msra.mxu0 0.0
  %960 = vmatprep.subr.mxu0 0.0
  %961 = vmatpush1.msra.mxu0 0.0
  %962 = vmatprep.subr.mxu0 0.0
  %963 = vmatpush1.msra.mxu0 0.0
  %964 = vmatprep.subr.mxu0 0.0
  %965 = vmatpush1.msra.mxu0 0.0
  %966 = vmatprep.subr.mxu0 0.0
  %967 = vmatpush1.msra.mxu0 0.0
  %968 = vmatprep.subr.mxu0 0.0
  %969 = vmatpush1.msra.mxu0 0.0
  %970 = vmatprep.subr.mxu0 0.0
  %971 = vmatpush1.msra.mxu0 0.0
  %972 = vmatprep.subr.mxu0 0.0
  %973 = vmatpush1.msra.mxu0 0.0
  %974 = vmatprep.subr.mxu0 0.0
  %975 = vmatpush1.msra.mxu0 0.0
  %976 = vmatprep.subr.mxu0 0.0
  %977 = vmatpush1.msra.mxu0 0.0
  %978 = vmatprep.subr.mxu0 0.0
  %979 = vmatpush1.msra.mxu0 0.0
  %980 = vmatprep.subr.mxu0 0.0
  %981 = vmatpush1.msra.mxu0 0.0
  %982 = vmatprep.subr.mxu0 0.0
  %983 = vmatpush1.msra.mxu0 0.0
  %984 = vmatprep.subr.mxu0 0.0
  %985 = vmatpush1.msra.mxu0 0.0
  %986 = vmatprep.subr.mxu0 0.0
  %987 = vmatpush1.msra.mxu0 0.0
  %988 = vmatprep.subr.mxu0 0.0
  %989 = vmatpush1.msra.mxu0 0.0
  %990 = vmatprep.subr.mxu0 0.0
  %991 = vmatpush1.msra.mxu0 0.0
  %992 = vmatprep.subr.mxu0 0.0
  %993 = vmatpush1.msra.mxu0 0.0
  %994 = vmatprep.subr.mxu0 0.0
  %995 = vmatpush1.msra.mxu0 0.0
  %996 = vmatprep.subr.mxu0 0.0
  %997 = vmatpush1.msra.mxu0 0.0
  %998 = vmatprep.subr.mxu0 0.0
  %999 = vmatpush1.msra.mxu0 0.0
  %1000 = vmatprep.subr.mxu0 0.0
  %1001 = vmatpush1.msra.mxu0 0.0
  %1002 = vmatprep.subr.mxu0 0.0
  %1003 = vmatpush1.msra.mxu0 0.0
  %1004 = vmatprep.subr.mxu0 0.0
  %1005 = vmatpush1.msra.mxu0 0.0
  %1006 = vmatprep.subr.mxu0 0.0
  %1007 = vmatpush1.msra.mxu0 0.0
  %1008 = vmatprep.subr.mxu0 0.0
  %1009 = vmatpush1.msra.mxu0 0.0
  %1010 = vmatprep.subr.mxu0 0.0
  %1011 = vmatpush1.msra.mxu0 0.0
  %1012 = vmatprep.subr.mxu0 0.0
  %1013 = vmatpush1.msra.mxu0 0.0
  %1014 = vmatprep.mubr.f32.mxu0 0.0
  %1015 = vmatmul.mubr.f32.gmra.mrb[0].mxu0 %v194
  %v1016 = vpop.f32.mrb[0].mxu0
  %v1017 = vadd.f32 0.0, %v1016
  %v1018 = vpop.f32.mrb[0].mxu0
  %v1019 = vadd.f32 0.0, %v1018
  %1020 = vmatprep.mubr.f32.mxu0 0.0
  %1021 = vmatmul.mubr.f32.gmra.mrb[0].mxu0 %v197
  %v1022 = vpop.f32.mrb[0].mxu0
  %v1023 = vadd.f32 0.0, %v1022
  %v1024 = vpop.f32.mrb[0].mxu0
  %v1025 = vadd.f32 0.0, %v1024
  %1026 = vmatprep.mubr.f32.mxu0 0.0
  %1027 = vmatmul.mubr.f32.gmra.mrb[0].mxu0 %v200
  %v1028 = vpop.f32.mrb[0].mxu0
  %v1029 = vadd.f32 0.0, %v1028
  %v1030 = vpop.f32.mrb[0].mxu0
  %v1031 = vadd.f32 0.0, %v1030
  %1032 = vmatprep.mubr.f32.mxu0 0.0
  %1033 = vmatmul.mubr.f32.gmra.mrb[0].mxu0 %v203
  %v1034 = vpop.f32.mrb[0].mxu0
  %v1035 = vadd.f32 0.0, %v1034
  %v1036 = vpop.f32.mrb[0].mxu0
  %v1037 = vadd.f32 0.0, %v1036
  %1038 = vmatprep.mubr.f32.mxu0 0.0
  %1039 = vmatmul.mubr.f32.gmra.mrb[0].mxu0 %v206
  %v1040 = vpop.f32.mrb[0].mxu0
  %v1041 = vadd.f32 0.0, %v1040
  %v1042 = vpop.f32.mrb[0].mxu0
  %v1043 = vadd.f32 0.0, %v1042
  %1044 = vmatprep.mubr.f32.mxu0 0.0
  %1045 = vmatmul.mubr.f32.gmra.mrb[0].mxu0 %v209
  %v1046 = vpop.f32.mrb[0].mxu0
  %v1047 = vadd.f32 0.0, %v1046
  %v1048 = vpop.f32.mrb[0].mxu0
  %v1049 = vadd.f32 0.0, %v1048
  %1050 = vmatprep.mubr.f32.mxu0 0.0
  %1051 = vmatmul.mubr.f32.gmra.mrb[0].mxu0 %v212
  %v1052 = vpop.f32.mrb[0].mxu0
  %v1053 = vadd.f32 0.0, %v1052
  %v1054 = vpop.f32.mrb[0].mxu0
  %v1055 = vadd.f32 0.0, %v1054
  %1056 = vmatprep.mubr.f32.mxu0 0.0
  %1057 = vmatmul.mubr.f32.gmra.mrb[0].mxu0 %v215
  %v1058 = vpop.f32.mrb[0].mxu0
  %v1059 = vadd.f32 0.0, %v1058
  %v1060 = vpop.f32.mrb[0].mxu0
  %v1061 = vadd.f32 0.0, %v1060
  %1062 = vmatprep.mubr.f32.mxu0 0.0
  %1063 = vmatmul.mubr.f32.gmra.mrb[0].mxu0 %v218
  %v1064 = vpop.f32.mrb[0].mxu0
  %v1065 = vadd.f32 0.0, %v1064
  %v1066 = vpop.f32.mrb[0].mxu0
  %v1067 = vadd.f32 0.0, %v1066
  %1068 = vmatprep.mubr.f32.mxu0 0.0
  %1069 = vmatmul.mubr.f32.gmra.mrb[0].mxu0 %v221
  %v1070 = vpop.f32.mrb[0].mxu0
  %v1071 = vadd.f32 0.0, %v1070
  %v1072 = vpop.f32.mrb[0].mxu0
  %v1073 = vadd.f32 0.0, %v1072
  %1074 = vmatprep.mubr.f32.mxu0 0.0
  %1075 = vmatmul.mubr.f32.gmra.mrb[0].mxu0 %v224
  %v1076 = vpop.f32.mrb[0].mxu0
  %v1077 = vadd.f32 0.0, %v1076
  %v1078 = vpop.f32.mrb[0].mxu0
  %v1079 = vadd.f32 0.0, %v1078
  %1080 = vmatprep.mubr.f32.mxu0 0.0
  %1081 = vmatmul.mubr.f32.gmra.mrb[0].mxu0 %v227
  %v1082 = vpop.f32.mrb[0].mxu0
  %v1083 = vadd.f32 0.0, %v1082
  %v1084 = vpop.f32.mrb[0].mxu0
  %v1085 = vadd.f32 0.0, %v1084
  %1086 = vmatprep.mubr.f32.mxu0 0.0
  %1087 = vmatmul.mubr.f32.gmra.mrb[0].mxu0 %v230
  %v1088 = vpop.f32.mrb[0].mxu0
  %v1089 = vadd.f32 0.0, %v1088
  %v1090 = vpop.f32.mrb[0].mxu0
  %v1091 = vadd.f32 0.0, %v1090
  %1092 = vmatprep.mubr.f32.mxu0 0.0
  %1093 = vmatmul.mubr.f32.gmra.mrb[0].mxu0 %v233
  %v1094 = vpop.f32.mrb[0].mxu0
  %v1095 = vadd.f32 0.0, %v1094
  %v1096 = vpop.f32.mrb[0].mxu0
  %v1097 = vadd.f32 0.0, %v1096
  %1098 = vmatprep.mubr.f32.mxu0 0.0
  %1099 = vmatmul.mubr.f32.gmra.mrb[0].mxu0 %v236
  %v1100 = vpop.f32.mrb[0].mxu0
  %v1101 = vadd.f32 0.0, %v1100
  %v1102 = vpop.f32.mrb[0].mxu0
  %v1103 = vadd.f32 0.0, %v1102
  %1104 = vmatprep.mubr.f32.mxu0 0.0
  %1105 = vmatmul.mubr.f32.gmra.mrb[0].mxu0 %v239
  %v1106 = vpop.f32.mrb[0].mxu0
  %v1107 = vadd.f32 0.0, %v1106
  %v1108 = vpop.f32.mrb[0].mxu0
  %v1109 = vadd.f32 0.0, %v1108
  %1110 = vdwg.mxu0
  %1111 = vmatprep.subr.mxu0 %v264
  %1112 = vmatpush1.msra.mxu0 %v262
  %1113 = vmatprep.subr.mxu0 0.0
  %1114 = vmatpush1.msra.mxu0 0.0
  %1115 = vmatprep.subr.mxu0 0.0
  %1116 = vmatpush1.msra.mxu0 0.0
  %1117 = vmatprep.subr.mxu0 0.0
  %1118 = vmatpush1.msra.mxu0 0.0
  %1119 = vmatprep.subr.mxu0 0.0
  %1120 = vmatpush1.msra.mxu0 0.0
  %1121 = vmatprep.subr.mxu0 0.0
  %1122 = vmatpush1.msra.mxu0 0.0
  %1123 = vmatprep.subr.mxu0 0.0
  %1124 = vmatpush1.msra.mxu0 0.0
  %1125 = vmatprep.subr.mxu0 0.0
  %1126 = vmatpush1.msra.mxu0 0.0
  %1127 = vmatprep.subr.mxu0 0.0
  %1128 = vmatpush1.msra.mxu0 0.0
  %1129 = vmatprep.subr.mxu0 0.0
  %1130 = vmatpush1.msra.mxu0 0.0
  %1131 = vmatprep.subr.mxu0 0.0
  %1132 = vmatpush1.msra.mxu0 0.0
  %1133 = vmatprep.subr.mxu0 0.0
  %1134 = vmatpush1.msra.mxu0 0.0
  %1135 = vmatprep.subr.mxu0 0.0
  %1136 = vmatpush1.msra.mxu0 0.0
  %1137 = vmatprep.subr.mxu0 0.0
  %1138 = vmatpush1.msra.mxu0 0.0
  %1139 = vmatprep.subr.mxu0 0.0
  %1140 = vmatpush1.msra.mxu0 0.0
  %1141 = vmatprep.subr.mxu0 0.0
  %1142 = vmatpush1.msra.mxu0 0.0
  %1143 = vmatprep.subr.mxu0 0.0
  %1144 = vmatpush1.msra.mxu0 0.0
  %1145 = vmatprep.subr.mxu0 0.0
  %1146 = vmatpush1.msra.mxu0 0.0
  %1147 = vmatprep.subr.mxu0 0.0
  %1148 = vmatpush1.msra.mxu0 0.0
  %1149 = vmatprep.subr.mxu0 0.0
  %1150 = vmatpush1.msra.mxu0 0.0
  %1151 = vmatprep.subr.mxu0 0.0
  %1152 = vmatpush1.msra.mxu0 0.0
  %1153 = vmatprep.subr.mxu0 0.0
  %1154 = vmatpush1.msra.mxu0 0.0
  %1155 = vmatprep.subr.mxu0 0.0
  %1156 = vmatpush1.msra.mxu0 0.0
  %1157 = vmatprep.subr.mxu0 0.0
  %1158 = vmatpush1.msra.mxu0 0.0
  %1159 = vmatprep.subr.mxu0 0.0
  %1160 = vmatpush1.msra.mxu0 0.0
  %1161 = vmatprep.subr.mxu0 0.0
  %1162 = vmatpush1.msra.mxu0 0.0
  %1163 = vmatprep.subr.mxu0 0.0
  %1164 = vmatpush1.msra.mxu0 0.0
  %1165 = vmatprep.subr.mxu0 0.0
  %1166 = vmatpush1.msra.mxu0 0.0
  %1167 = vmatprep.subr.mxu0 0.0
  %1168 = vmatpush1.msra.mxu0 0.0
  %1169 = vmatprep.subr.mxu0 0.0
  %1170 = vmatpush1.msra.mxu0 0.0
  %1171 = vmatprep.subr.mxu0 0.0
  %1172 = vmatpush1.msra.mxu0 0.0
  %1173 = vmatprep.subr.mxu0 0.0
  %1174 = vmatpush1.msra.mxu0 0.0
  %1175 = vmatprep.mubr.f32.mxu0 0.0
  %1176 = vmatmul.mubr.f32.gmra.mrb[0].mxu0 %v194
  %v1177 = vpop.f32.mrb[0].mxu0
  %v1178 = vadd.f32 0.0, %v1177
  %v1179 = vpop.f32.mrb[0].mxu0
  %v1180 = vadd.f32 0.0, %v1179
  %1181 = vmatprep.mubr.f32.mxu0 0.0
  %1182 = vmatmul.mubr.f32.gmra.mrb[0].mxu0 %v197
  %v1183 = vpop.f32.mrb[0].mxu0
  %v1184 = vadd.f32 0.0, %v1183
  %v1185 = vpop.f32.mrb[0].mxu0
  %v1186 = vadd.f32 0.0, %v1185
  %1187 = vmatprep.mubr.f32.mxu0 0.0
  %1188 = vmatmul.mubr.f32.gmra.mrb[0].mxu0 %v200
  %v1189 = vpop.f32.mrb[0].mxu0
  %v1190 = vadd.f32 0.0, %v1189
  %v1191 = vpop.f32.mrb[0].mxu0
  %v1192 = vadd.f32 0.0, %v1191
  %1193 = vmatprep.mubr.f32.mxu0 0.0
  %1194 = vmatmul.mubr.f32.gmra.mrb[0].mxu0 %v203
  %v1195 = vpop.f32.mrb[0].mxu0
  %v1196 = vadd.f32 0.0, %v1195
  %v1197 = vpop.f32.mrb[0].mxu0
  %v1198 = vadd.f32 0.0, %v1197
  %1199 = vmatprep.mubr.f32.mxu0 0.0
  %1200 = vmatmul.mubr.f32.gmra.mrb[0].mxu0 %v206
  %v1201 = vpop.f32.mrb[0].mxu0
  %v1202 = vadd.f32 0.0, %v1201
  %v1203 = vpop.f32.mrb[0].mxu0
  %v1204 = vadd.f32 0.0, %v1203
  %1205 = vmatprep.mubr.f32.mxu0 0.0
  %1206 = vmatmul.mubr.f32.gmra.mrb[0].mxu0 %v209
  %v1207 = vpop.f32.mrb[0].mxu0
  %v1208 = vadd.f32 0.0, %v1207
  %v1209 = vpop.f32.mrb[0].mxu0
  %v1210 = vadd.f32 0.0, %v1209
  %1211 = vmatprep.mubr.f32.mxu0 0.0
  %1212 = vmatmul.mubr.f32.gmra.mrb[0].mxu0 %v212
  %v1213 = vpop.f32.mrb[0].mxu0
  %v1214 = vadd.f32 0.0, %v1213
  %v1215 = vpop.f32.mrb[0].mxu0
  %v1216 = vadd.f32 0.0, %v1215
  %1217 = vmatprep.mubr.f32.mxu0 0.0
  %1218 = vmatmul.mubr.f32.gmra.mrb[0].mxu0 %v215
  %v1219 = vpop.f32.mrb[0].mxu0
  %v1220 = vadd.f32 0.0, %v1219
  %v1221 = vpop.f32.mrb[0].mxu0
  %v1222 = vadd.f32 0.0, %v1221
  %1223 = vmatprep.mubr.f32.mxu0 0.0
  %1224 = vmatmul.mubr.f32.gmra.mrb[0].mxu0 %v218
  %v1225 = vpop.f32.mrb[0].mxu0
  %v1226 = vadd.f32 0.0, %v1225
  %v1227 = vpop.f32.mrb[0].mxu0
  %v1228 = vadd.f32 0.0, %v1227
  %1229 = vmatprep.mubr.f32.mxu0 0.0
  %1230 = vmatmul.mubr.f32.gmra.mrb[0].mxu0 %v221
  %v1231 = vpop.f32.mrb[0].mxu0
  %v1232 = vadd.f32 0.0, %v1231
  %v1233 = vpop.f32.mrb[0].mxu0
  %v1234 = vadd.f32 0.0, %v1233
  %1235 = vmatprep.mubr.f32.mxu0 0.0
  %1236 = vmatmul.mubr.f32.gmra.mrb[0].mxu0 %v224
  %v1237 = vpop.f32.mrb[0].mxu0
  %v1238 = vadd.f32 0.0, %v1237
  %v1239 = vpop.f32.mrb[0].mxu0
  %v1240 = vadd.f32 0.0, %v1239
  %1241 = vmatprep.mubr.f32.mxu0 0.0
  %1242 = vmatmul.mubr.f32.gmra.mrb[0].mxu0 %v227
  %v1243 = vpop.f32.mrb[0].mxu0
  %v1244 = vadd.f32 0.0, %v1243
  %v1245 = vpop.f32.mrb[0].mxu0
  %v1246 = vadd.f32 0.0, %v1245
  %1247 = vmatprep.mubr.f32.mxu0 0.0
  %1248 = vmatmul.mubr.f32.gmra.mrb[0].mxu0 %v230
  %v1249 = vpop.f32.mrb[0].mxu0
  %v1250 = vadd.f32 0.0, %v1249
  %v1251 = vpop.f32.mrb[0].mxu0
  %v1252 = vadd.f32 0.0, %v1251
  %1253 = vmatprep.mubr.f32.mxu0 0.0
  %1254 = vmatmul.mubr.f32.gmra.mrb[0].mxu0 %v233
  %v1255 = vpop.f32.mrb[0].mxu0
  %v1256 = vadd.f32 0.0, %v1255
  %v1257 = vpop.f32.mrb[0].mxu0
  %v1258 = vadd.f32 0.0, %v1257
  %1259 = vmatprep.mubr.f32.mxu0 0.0
  %1260 = vmatmul.mubr.f32.gmra.mrb[0].mxu0 %v236
  %v1261 = vpop.f32.mrb[0].mxu0
  %v1262 = vadd.f32 0.0, %v1261
  %v1263 = vpop.f32.mrb[0].mxu0
  %v1264 = vadd.f32 0.0, %v1263
  %1265 = vmatprep.mubr.f32.mxu0 0.0
  %1266 = vmatmul.mubr.f32.gmra.mrb[0].mxu0 %v239
  %v1267 = vpop.f32.mrb[0].mxu0
  %v1268 = vadd.f32 0.0, %v1267
  %v1269 = vpop.f32.mrb[0].mxu0
  %v1270 = vadd.f32 0.0, %v1269
  %1271 = vdwg.mxu0
  %1272 = vmatprep.subr.mxu0 %v268
  %1273 = vmatpush1.msra.mxu0 %v266
  %1274 = vmatprep.subr.mxu0 0.0
  %1275 = vmatpush1.msra.mxu0 0.0
  %1276 = vmatprep.subr.mxu0 0.0
  %1277 = vmatpush1.msra.mxu0 0.0
  %1278 = vmatprep.subr.mxu0 0.0
  %1279 = vmatpush1.msra.mxu0 0.0
  %1280 = vmatprep.subr.mxu0 0.0
  %1281 = vmatpush1.msra.mxu0 0.0
  %1282 = vmatprep.subr.mxu0 0.0
  %1283 = vmatpush1.msra.mxu0 0.0
  %1284 = vmatprep.subr.mxu0 0.0
  %1285 = vmatpush1.msra.mxu0 0.0
  %1286 = vmatprep.subr.mxu0 0.0
  %1287 = vmatpush1.msra.mxu0 0.0
  %1288 = vmatprep.subr.mxu0 0.0
  %1289 = vmatpush1.msra.mxu0 0.0
  %1290 = vmatprep.subr.mxu0 0.0
  %1291 = vmatpush1.msra.mxu0 0.0
  %1292 = vmatprep.subr.mxu0 0.0
  %1293 = vmatpush1.msra.mxu0 0.0
  %1294 = vmatprep.subr.mxu0 0.0
  %1295 = vmatpush1.msra.mxu0 0.0
  %1296 = vmatprep.subr.mxu0 0.0
  %1297 = vmatpush1.msra.mxu0 0.0
  %1298 = vmatprep.subr.mxu0 0.0
  %1299 = vmatpush1.msra.mxu0 0.0
  %1300 = vmatprep.subr.mxu0 0.0
  %1301 = vmatpush1.msra.mxu0 0.0
  %1302 = vmatprep.subr.mxu0 0.0
  %1303 = vmatpush1.msra.mxu0 0.0
  %1304 = vmatprep.subr.mxu0 0.0
  %1305 = vmatpush1.msra.mxu0 0.0
  %1306 = vmatprep.subr.mxu0 0.0
  %1307 = vmatpush1.msra.mxu0 0.0
  %1308 = vmatprep.subr.mxu0 0.0
  %1309 = vmatpush1.msra.mxu0 0.0
  %1310 = vmatprep.subr.mxu0 0.0
  %1311 = vmatpush1.msra.mxu0 0.0
  %1312 = vmatprep.subr.mxu0 0.0
  %1313 = vmatpush1.msra.mxu0 0.0
  %1314 = vmatprep.subr.mxu0 0.0
  %1315 = vmatpush1.msra.mxu0 0.0
  %1316 = vmatprep.subr.mxu0 0.0
  %1317 = vmatpush1.msra.mxu0 0.0
  %1318 = vmatprep.subr.mxu0 0.0
  %1319 = vmatpush1.msra.mxu0 0.0
  %1320 = vmatprep.subr.mxu0 0.0
  %1321 = vmatpush1.msra.mxu0 0.0
  %1322 = vmatprep.subr.mxu0 0.0
  %1323 = vmatpush1.msra.mxu0 0.0
  %1324 = vmatprep.subr.mxu0 0.0
  %1325 = vmatpush1.msra.mxu0 0.0
  %1326 = vmatprep.subr.mxu0 0.0
  %1327 = vmatpush1.msra.mxu0 0.0
  %1328 = vmatprep.subr.mxu0 0.0
  %1329 = vmatpush1.msra.mxu0 0.0
  %1330 = vmatprep.subr.mxu0 0.0
  %1331 = vmatpush1.msra.mxu0 0.0
  %1332 = vmatprep.subr.mxu0 0.0
  %1333 = vmatpush1.msra.mxu0 0.0
  %1334 = vmatprep.subr.mxu0 0.0
  %1335 = vmatpush1.msra.mxu0 0.0
  %1336 = vmatprep.mubr.f32.mxu0 0.0
  %1337 = vmatmul.mubr.f32.gmra.mrb[0].mxu0 %v194
  %v1338 = vpop.f32.mrb[0].mxu0
  %v1339 = vadd.f32 0.0, %v1338
  %v1340 = vpop.f32.mrb[0].mxu0
  %v1341 = vadd.f32 0.0, %v1340
  %1342 = vmatprep.mubr.f32.mxu0 0.0
  %1343 = vmatmul.mubr.f32.gmra.mrb[0].mxu0 %v197
  %v1344 = vpop.f32.mrb[0].mxu0
  %v1345 = vadd.f32 0.0, %v1344
  %v1346 = vpop.f32.mrb[0].mxu0
  %v1347 = vadd.f32 0.0, %v1346
  %1348 = vmatprep.mubr.f32.mxu0 0.0
  %1349 = vmatmul.mubr.f32.gmra.mrb[0].mxu0 %v200
  %v1350 = vpop.f32.mrb[0].mxu0
  %v1351 = vadd.f32 0.0, %v1350
  %v1352 = vpop.f32.mrb[0].mxu0
  %v1353 = vadd.f32 0.0, %v1352
  %1354 = vmatprep.mubr.f32.mxu0 0.0
  %1355 = vmatmul.mubr.f32.gmra.mrb[0].mxu0 %v203
  %v1356 = vpop.f32.mrb[0].mxu0
  %v1357 = vadd.f32 0.0, %v1356
  %v1358 = vpop.f32.mrb[0].mxu0
  %v1359 = vadd.f32 0.0, %v1358
  %1360 = vmatprep.mubr.f32.mxu0 0.0
  %1361 = vmatmul.mubr.f32.gmra.mrb[0].mxu0 %v206
  %v1362 = vpop.f32.mrb[0].mxu0
  %v1363 = vadd.f32 0.0, %v1362
  %v1364 = vpop.f32.mrb[0].mxu0
  %v1365 = vadd.f32 0.0, %v1364
  %1366 = vmatprep.mubr.f32.mxu0 0.0
  %1367 = vmatmul.mubr.f32.gmra.mrb[0].mxu0 %v209
  %v1368 = vpop.f32.mrb[0].mxu0
  %v1369 = vadd.f32 0.0, %v1368
  %v1370 = vpop.f32.mrb[0].mxu0
  %v1371 = vadd.f32 0.0, %v1370
  %1372 = vmatprep.mubr.f32.mxu0 0.0
  %1373 = vmatmul.mubr.f32.gmra.mrb[0].mxu0 %v212
  %v1374 = vpop.f32.mrb[0].mxu0
  %v1375 = vadd.f32 0.0, %v1374
  %v1376 = vpop.f32.mrb[0].mxu0
  %v1377 = vadd.f32 0.0, %v1376
  %1378 = vmatprep.mubr.f32.mxu0 0.0
  %1379 = vmatmul.mubr.f32.gmra.mrb[0].mxu0 %v215
  %v1380 = vpop.f32.mrb[0].mxu0
  %v1381 = vadd.f32 0.0, %v1380
  %v1382 = vpop.f32.mrb[0].mxu0
  %v1383 = vadd.f32 0.0, %v1382
  %1384 = vmatprep.mubr.f32.mxu0 0.0
  %1385 = vmatmul.mubr.f32.gmra.mrb[0].mxu0 %v218
  %v1386 = vpop.f32.mrb[0].mxu0
  %v1387 = vadd.f32 0.0, %v1386
  %v1388 = vpop.f32.mrb[0].mxu0
  %v1389 = vadd.f32 0.0, %v1388
  %1390 = vmatprep.mubr.f32.mxu0 0.0
  %1391 = vmatmul.mubr.f32.gmra.mrb[0].mxu0 %v221
  %v1392 = vpop.f32.mrb[0].mxu0
  %v1393 = vadd.f32 0.0, %v1392
  %v1394 = vpop.f32.mrb[0].mxu0
  %v1395 = vadd.f32 0.0, %v1394
  %1396 = vmatprep.mubr.f32.mxu0 0.0
  %1397 = vmatmul.mubr.f32.gmra.mrb[0].mxu0 %v224
  %v1398 = vpop.f32.mrb[0].mxu0
  %v1399 = vadd.f32 0.0, %v1398
  %v1400 = vpop.f32.mrb[0].mxu0
  %v1401 = vadd.f32 0.0, %v1400
  %1402 = vmatprep.mubr.f32.mxu0 0.0
  %1403 = vmatmul.mubr.f32.gmra.mrb[0].mxu0 %v227
  %v1404 = vpop.f32.mrb[0].mxu0
  %v1405 = vadd.f32 0.0, %v1404
  %v1406 = vpop.f32.mrb[0].mxu0
  %v1407 = vadd.f32 0.0, %v1406
  %1408 = vmatprep.mubr.f32.mxu0 0.0
  %1409 = vmatmul.mubr.f32.gmra.mrb[0].mxu0 %v230
  %v1410 = vpop.f32.mrb[0].mxu0
  %v1411 = vadd.f32 0.0, %v1410
  %v1412 = vpop.f32.mrb[0].mxu0
  %v1413 = vadd.f32 0.0, %v1412
  %1414 = vmatprep.mubr.f32.mxu0 0.0
  %1415 = vmatmul.mubr.f32.gmra.mrb[0].mxu0 %v233
  %v1416 = vpop.f32.mrb[0].mxu0
  %v1417 = vadd.f32 0.0, %v1416
  %v1418 = vpop.f32.mrb[0].mxu0
  %v1419 = vadd.f32 0.0, %v1418
  %1420 = vmatprep.mubr.f32.mxu0 0.0
  %1421 = vmatmul.mubr.f32.gmra.mrb[0].mxu0 %v236
  %v1422 = vpop.f32.mrb[0].mxu0
  %v1423 = vadd.f32 0.0, %v1422
  %v1424 = vpop.f32.mrb[0].mxu0
  %v1425 = vadd.f32 0.0, %v1424
  %1426 = vmatprep.mubr.f32.mxu0 0.0
  %1427 = vmatmul.mubr.f32.gmra.mrb[0].mxu0 %v239
  %v1428 = vpop.f32.mrb[0].mxu0
  %v1429 = vadd.f32 0.0, %v1428
  %v1430 = vpop.f32.mrb[0].mxu0
  %v1431 = vadd.f32 0.0, %v1430
  %1432 = vdwg.mxu0
  %1433 = vmatprep.subr.mxu0 %v272
  %1434 = vmatpush1.msra.mxu0 %v270
  %1435 = vmatprep.subr.mxu0 0.0
  %1436 = vmatpush1.msra.mxu0 0.0
  %1437 = vmatprep.subr.mxu0 0.0
  %1438 = vmatpush1.msra.mxu0 0.0
  %1439 = vmatprep.subr.mxu0 0.0
  %1440 = vmatpush1.msra.mxu0 0.0
  %1441 = vmatprep.subr.mxu0 0.0
  %1442 = vmatpush1.msra.mxu0 0.0
  %1443 = vmatprep.subr.mxu0 0.0
  %1444 = vmatpush1.msra.mxu0 0.0
  %1445 = vmatprep.subr.mxu0 0.0
  %1446 = vmatpush1.msra.mxu0 0.0
  %1447 = vmatprep.subr.mxu0 0.0
  %1448 = vmatpush1.msra.mxu0 0.0
  %1449 = vmatprep.subr.mxu0 0.0
  %1450 = vmatpush1.msra.mxu0 0.0
  %1451 = vmatprep.subr.mxu0 0.0
  %1452 = vmatpush1.msra.mxu0 0.0
  %1453 = vmatprep.subr.mxu0 0.0
  %1454 = vmatpush1.msra.mxu0 0.0
  %1455 = vmatprep.subr.mxu0 0.0
  %1456 = vmatpush1.msra.mxu0 0.0
  %1457 = vmatprep.subr.mxu0 0.0
  %1458 = vmatpush1.msra.mxu0 0.0
  %1459 = vmatprep.subr.mxu0 0.0
  %1460 = vmatpush1.msra.mxu0 0.0
  %1461 = vmatprep.subr.mxu0 0.0
  %1462 = vmatpush1.msra.mxu0 0.0
  %1463 = vmatprep.subr.mxu0 0.0
  %1464 = vmatpush1.msra.mxu0 0.0
  %1465 = vmatprep.subr.mxu0 0.0
  %1466 = vmatpush1.msra.mxu0 0.0
  %1467 = vmatprep.subr.mxu0 0.0
  %1468 = vmatpush1.msra.mxu0 0.0
  %1469 = vmatprep.subr.mxu0 0.0
  %1470 = vmatpush1.msra.mxu0 0.0
  %1471 = vmatprep.subr.mxu0 0.0
  %1472 = vmatpush1.msra.mxu0 0.0
  %1473 = vmatprep.subr.mxu0 0.0
  %1474 = vmatpush1.msra.mxu0 0.0
  %1475 = vmatprep.subr.mxu0 0.0
  %1476 = vmatpush1.msra.mxu0 0.0
  %1477 = vmatprep.subr.mxu0 0.0
  %1478 = vmatpush1.msra.mxu0 0.0
  %1479 = vmatprep.subr.mxu0 0.0
  %1480 = vmatpush1.msra.mxu0 0.0
  %1481 = vmatprep.subr.mxu0 0.0
  %1482 = vmatpush1.msra.mxu0 0.0
  %1483 = vmatprep.subr.mxu0 0.0
  %1484 = vmatpush1.msra.mxu0 0.0
  %1485 = vmatprep.subr.mxu0 0.0
  %1486 = vmatpush1.msra.mxu0 0.0
  %1487 = vmatprep.subr.mxu0 0.0
  %1488 = vmatpush1.msra.mxu0 0.0
  %1489 = vmatprep.subr.mxu0 0.0
  %1490 = vmatpush1.msra.mxu0 0.0
  %1491 = vmatprep.subr.mxu0 0.0
  %1492 = vmatpush1.msra.mxu0 0.0
  %1493 = vmatprep.subr.mxu0 0.0
  %1494 = vmatpush1.msra.mxu0 0.0
  %1495 = vmatprep.subr.mxu0 0.0
  %1496 = vmatpush1.msra.mxu0 0.0
  %1497 = vmatprep.mubr.f32.mxu0 0.0
  %1498 = vmatmul.mubr.f32.gmra.mrb[0].mxu0 %v194
  %v1499 = vpop.f32.mrb[0].mxu0
  %v1500 = vadd.f32 0.0, %v1499
  %v1501 = vpop.f32.mrb[0].mxu0
  %v1502 = vadd.f32 0.0, %v1501
  %1503 = vmatprep.mubr.f32.mxu0 0.0
  %1504 = vmatmul.mubr.f32.gmra.mrb[0].mxu0 %v197
  %v1505 = vpop.f32.mrb[0].mxu0
  %v1506 = vadd.f32 0.0, %v1505
  %v1507 = vpop.f32.mrb[0].mxu0
  %v1508 = vadd.f32 0.0, %v1507
  %1509 = vmatprep.mubr.f32.mxu0 0.0
  %1510 = vmatmul.mubr.f32.gmra.mrb[0].mxu0 %v200
  %v1511 = vpop.f32.mrb[0].mxu0
  %v1512 = vadd.f32 0.0, %v1511
  %v1513 = vpop.f32.mrb[0].mxu0
  %v1514 = vadd.f32 0.0, %v1513
  %1515 = vmatprep.mubr.f32.mxu0 0.0
  %1516 = vmatmul.mubr.f32.gmra.mrb[0].mxu0 %v203
  %v1517 = vpop.f32.mrb[0].mxu0
  %v1518 = vadd.f32 0.0, %v1517
  %v1519 = vpop.f32.mrb[0].mxu0
  %v1520 = vadd.f32 0.0, %v1519
  %1521 = vmatprep.mubr.f32.mxu0 0.0
  %1522 = vmatmul.mubr.f32.gmra.mrb[0].mxu0 %v206
  %v1523 = vpop.f32.mrb[0].mxu0
  %v1524 = vadd.f32 0.0, %v1523
  %v1525 = vpop.f32.mrb[0].mxu0
  %v1526 = vadd.f32 0.0, %v1525
  %1527 = vmatprep.mubr.f32.mxu0 0.0
  %1528 = vmatmul.mubr.f32.gmra.mrb[0].mxu0 %v209
  %v1529 = vpop.f32.mrb[0].mxu0
  %v1530 = vadd.f32 0.0, %v1529
  %v1531 = vpop.f32.mrb[0].mxu0
  %v1532 = vadd.f32 0.0, %v1531
  %1533 = vmatprep.mubr.f32.mxu0 0.0
  %1534 = vmatmul.mubr.f32.gmra.mrb[0].mxu0 %v212
  %v1535 = vpop.f32.mrb[0].mxu0
  %v1536 = vadd.f32 0.0, %v1535
  %v1537 = vpop.f32.mrb[0].mxu0
  %v1538 = vadd.f32 0.0, %v1537
  %1539 = vmatprep.mubr.f32.mxu0 0.0
  %1540 = vmatmul.mubr.f32.gmra.mrb[0].mxu0 %v215
  %v1541 = vpop.f32.mrb[0].mxu0
  %v1542 = vadd.f32 0.0, %v1541
  %v1543 = vpop.f32.mrb[0].mxu0
  %v1544 = vadd.f32 0.0, %v1543
  %1545 = vmatprep.mubr.f32.mxu0 0.0
  %1546 = vmatmul.mubr.f32.gmra.mrb[0].mxu0 %v218
  %v1547 = vpop.f32.mrb[0].mxu0
  %v1548 = vadd.f32 0.0, %v1547
  %v1549 = vpop.f32.mrb[0].mxu0
  %v1550 = vadd.f32 0.0, %v1549
  %1551 = vmatprep.mubr.f32.mxu0 0.0
  %1552 = vmatmul.mubr.f32.gmra.mrb[0].mxu0 %v221
  %v1553 = vpop.f32.mrb[0].mxu0
  %v1554 = vadd.f32 0.0, %v1553
  %v1555 = vpop.f32.mrb[0].mxu0
  %v1556 = vadd.f32 0.0, %v1555
  %1557 = vmatprep.mubr.f32.mxu0 0.0
  %1558 = vmatmul.mubr.f32.gmra.mrb[0].mxu0 %v224
  %v1559 = vpop.f32.mrb[0].mxu0
  %v1560 = vadd.f32 0.0, %v1559
  %v1561 = vpop.f32.mrb[0].mxu0
  %v1562 = vadd.f32 0.0, %v1561
  %1563 = vmatprep.mubr.f32.mxu0 0.0
  %1564 = vmatmul.mubr.f32.gmra.mrb[0].mxu0 %v227
  %v1565 = vpop.f32.mrb[0].mxu0
  %v1566 = vadd.f32 0.0, %v1565
  %v1567 = vpop.f32.mrb[0].mxu0
  %v1568 = vadd.f32 0.0, %v1567
  %1569 = vmatprep.mubr.f32.mxu0 0.0
  %1570 = vmatmul.mubr.f32.gmra.mrb[0].mxu0 %v230
  %v1571 = vpop.f32.mrb[0].mxu0
  %v1572 = vadd.f32 0.0, %v1571
  %v1573 = vpop.f32.mrb[0].mxu0
  %v1574 = vadd.f32 0.0, %v1573
  %1575 = vmatprep.mubr.f32.mxu0 0.0
  %1576 = vmatmul.mubr.f32.gmra.mrb[0].mxu0 %v233
  %v1577 = vpop.f32.mrb[0].mxu0
  %v1578 = vadd.f32 0.0, %v1577
  %v1579 = vpop.f32.mrb[0].mxu0
  %v1580 = vadd.f32 0.0, %v1579
  %1581 = vmatprep.mubr.f32.mxu0 0.0
  %1582 = vmatmul.mubr.f32.gmra.mrb[0].mxu0 %v236
  %v1583 = vpop.f32.mrb[0].mxu0
  %v1584 = vadd.f32 0.0, %v1583
  %v1585 = vpop.f32.mrb[0].mxu0
  %v1586 = vadd.f32 0.0, %v1585
  %1587 = vmatprep.mubr.f32.mxu0 0.0
  %1588 = vmatmul.mubr.f32.gmra.mrb[0].mxu0 %v239
  %v1589 = vpop.f32.mrb[0].mxu0
  %v1590 = vadd.f32 0.0, %v1589
  %v1591 = vpop.f32.mrb[0].mxu0
  %v1592 = vadd.f32 0.0, %v1591
  %1593 = vdwg.mxu0
  %1594 = vmatprep.subr.mxu0 %v276
  %1595 = vmatpush1.msra.mxu0 %v274
  %1596 = vmatprep.subr.mxu0 0.0
  %1597 = vmatpush1.msra.mxu0 0.0
  %1598 = vmatprep.subr.mxu0 0.0
  %1599 = vmatpush1.msra.mxu0 0.0
  %1600 = vmatprep.subr.mxu0 0.0
  %1601 = vmatpush1.msra.mxu0 0.0
  %1602 = vmatprep.subr.mxu0 0.0
  %1603 = vmatpush1.msra.mxu0 0.0
  %1604 = vmatprep.subr.mxu0 0.0
  %1605 = vmatpush1.msra.mxu0 0.0
  %1606 = vmatprep.subr.mxu0 0.0
  %1607 = vmatpush1.msra.mxu0 0.0
  %1608 = vmatprep.subr.mxu0 0.0
  %1609 = vmatpush1.msra.mxu0 0.0
  %1610 = vmatprep.subr.mxu0 0.0
  %1611 = vmatpush1.msra.mxu0 0.0
  %1612 = vmatprep.subr.mxu0 0.0
  %1613 = vmatpush1.msra.mxu0 0.0
  %1614 = vmatprep.subr.mxu0 0.0
  %1615 = vmatpush1.msra.mxu0 0.0
  %1616 = vmatprep.subr.mxu0 0.0
  %1617 = vmatpush1.msra.mxu0 0.0
  %1618 = vmatprep.subr.mxu0 0.0
  %1619 = vmatpush1.msra.mxu0 0.0
  %1620 = vmatprep.subr.mxu0 0.0
  %1621 = vmatpush1.msra.mxu0 0.0
  %1622 = vmatprep.subr.mxu0 0.0
  %1623 = vmatpush1.msra.mxu0 0.0
  %1624 = vmatprep.subr.mxu0 0.0
  %1625 = vmatpush1.msra.mxu0 0.0
  %1626 = vmatprep.subr.mxu0 0.0
  %1627 = vmatpush1.msra.mxu0 0.0
  %1628 = vmatprep.subr.mxu0 0.0
  %1629 = vmatpush1.msra.mxu0 0.0
  %1630 = vmatprep.subr.mxu0 0.0
  %1631 = vmatpush1.msra.mxu0 0.0
  %1632 = vmatprep.subr.mxu0 0.0
  %1633 = vmatpush1.msra.mxu0 0.0
  %1634 = vmatprep.subr.mxu0 0.0
  %1635 = vmatpush1.msra.mxu0 0.0
  %1636 = vmatprep.subr.mxu0 0.0
  %1637 = vmatpush1.msra.mxu0 0.0
  %1638 = vmatprep.subr.mxu0 0.0
  %1639 = vmatpush1.msra.mxu0 0.0
  %1640 = vmatprep.subr.mxu0 0.0
  %1641 = vmatpush1.msra.mxu0 0.0
  %1642 = vmatprep.subr.mxu0 0.0
  %1643 = vmatpush1.msra.mxu0 0.0
  %1644 = vmatprep.subr.mxu0 0.0
  %1645 = vmatpush1.msra.mxu0 0.0
  %1646 = vmatprep.subr.mxu0 0.0
  %1647 = vmatpush1.msra.mxu0 0.0
  %1648 = vmatprep.subr.mxu0 0.0
  %1649 = vmatpush1.msra.mxu0 0.0
  %1650 = vmatprep.subr.mxu0 0.0
  %1651 = vmatpush1.msra.mxu0 0.0
  %1652 = vmatprep.subr.mxu0 0.0
  %1653 = vmatpush1.msra.mxu0 0.0
  %1654 = vmatprep.subr.mxu0 0.0
  %1655 = vmatpush1.msra.mxu0 0.0
  %1656 = vmatprep.subr.mxu0 0.0
  %1657 = vmatpush1.msra.mxu0 0.0
  %1658 = vmatprep.mubr.f32.mxu0 0.0
  %1659 = vmatmul.mubr.f32.gmra.mrb[0].mxu0 %v194
  %v1660 = vpop.f32.mrb[0].mxu0
  %v1661 = vadd.f32 0.0, %v1660
  %v1662 = vpop.f32.mrb[0].mxu0
  %v1663 = vadd.f32 0.0, %v1662
  %1664 = vmatprep.mubr.f32.mxu0 0.0
  %1665 = vmatmul.mubr.f32.gmra.mrb[0].mxu0 %v197
  %v1666 = vpop.f32.mrb[0].mxu0
  %v1667 = vadd.f32 0.0, %v1666
  %v1668 = vpop.f32.mrb[0].mxu0
  %v1669 = vadd.f32 0.0, %v1668
  %1670 = vmatprep.mubr.f32.mxu0 0.0
  %1671 = vmatmul.mubr.f32.gmra.mrb[0].mxu0 %v200
  %v1672 = vpop.f32.mrb[0].mxu0
  %v1673 = vadd.f32 0.0, %v1672
  %v1674 = vpop.f32.mrb[0].mxu0
  %v1675 = vadd.f32 0.0, %v1674
  %1676 = vmatprep.mubr.f32.mxu0 0.0
  %1677 = vmatmul.mubr.f32.gmra.mrb[0].mxu0 %v203
  %v1678 = vpop.f32.mrb[0].mxu0
  %v1679 = vadd.f32 0.0, %v1678
  %v1680 = vpop.f32.mrb[0].mxu0
  %v1681 = vadd.f32 0.0, %v1680
  %1682 = vmatprep.mubr.f32.mxu0 0.0
  %1683 = vmatmul.mubr.f32.gmra.mrb[0].mxu0 %v206
  %v1684 = vpop.f32.mrb[0].mxu0
  %v1685 = vadd.f32 0.0, %v1684
  %v1686 = vpop.f32.mrb[0].mxu0
  %v1687 = vadd.f32 0.0, %v1686
  %1688 = vmatprep.mubr.f32.mxu0 0.0
  %1689 = vmatmul.mubr.f32.gmra.mrb[0].mxu0 %v209
  %v1690 = vpop.f32.mrb[0].mxu0
  %v1691 = vadd.f32 0.0, %v1690
  %v1692 = vpop.f32.mrb[0].mxu0
  %v1693 = vadd.f32 0.0, %v1692
  %1694 = vmatprep.mubr.f32.mxu0 0.0
  %1695 = vmatmul.mubr.f32.gmra.mrb[0].mxu0 %v212
  %v1696 = vpop.f32.mrb[0].mxu0
  %v1697 = vadd.f32 0.0, %v1696
  %v1698 = vpop.f32.mrb[0].mxu0
  %v1699 = vadd.f32 0.0, %v1698
  %1700 = vmatprep.mubr.f32.mxu0 0.0
  %1701 = vmatmul.mubr.f32.gmra.mrb[0].mxu0 %v215
  %v1702 = vpop.f32.mrb[0].mxu0
  %v1703 = vadd.f32 0.0, %v1702
  %v1704 = vpop.f32.mrb[0].mxu0
  %v1705 = vadd.f32 0.0, %v1704
  %1706 = vmatprep.mubr.f32.mxu0 0.0
  %1707 = vmatmul.mubr.f32.gmra.mrb[0].mxu0 %v218
  %v1708 = vpop.f32.mrb[0].mxu0
  %v1709 = vadd.f32 0.0, %v1708
  %v1710 = vpop.f32.mrb[0].mxu0
  %v1711 = vadd.f32 0.0, %v1710
  %1712 = vmatprep.mubr.f32.mxu0 0.0
  %1713 = vmatmul.mubr.f32.gmra.mrb[0].mxu0 %v221
  %v1714 = vpop.f32.mrb[0].mxu0
  %v1715 = vadd.f32 0.0, %v1714
  %v1716 = vpop.f32.mrb[0].mxu0
  %v1717 = vadd.f32 0.0, %v1716
  %1718 = vmatprep.mubr.f32.mxu0 0.0
  %1719 = vmatmul.mubr.f32.gmra.mrb[0].mxu0 %v224
  %v1720 = vpop.f32.mrb[0].mxu0
  %v1721 = vadd.f32 0.0, %v1720
  %v1722 = vpop.f32.mrb[0].mxu0
  %v1723 = vadd.f32 0.0, %v1722
  %1724 = vmatprep.mubr.f32.mxu0 0.0
  %1725 = vmatmul.mubr.f32.gmra.mrb[0].mxu0 %v227
  %v1726 = vpop.f32.mrb[0].mxu0
  %v1727 = vadd.f32 0.0, %v1726
  %v1728 = vpop.f32.mrb[0].mxu0
  %v1729 = vadd.f32 0.0, %v1728
  %1730 = vmatprep.mubr.f32.mxu0 0.0
  %1731 = vmatmul.mubr.f32.gmra.mrb[0].mxu0 %v230
  %v1732 = vpop.f32.mrb[0].mxu0
  %v1733 = vadd.f32 0.0, %v1732
  %v1734 = vpop.f32.mrb[0].mxu0
  %v1735 = vadd.f32 0.0, %v1734
  %1736 = vmatprep.mubr.f32.mxu0 0.0
  %1737 = vmatmul.mubr.f32.gmra.mrb[0].mxu0 %v233
  %v1738 = vpop.f32.mrb[0].mxu0
  %v1739 = vadd.f32 0.0, %v1738
  %v1740 = vpop.f32.mrb[0].mxu0
  %v1741 = vadd.f32 0.0, %v1740
  %1742 = vmatprep.mubr.f32.mxu0 0.0
  %1743 = vmatmul.mubr.f32.gmra.mrb[0].mxu0 %v236
  %v1744 = vpop.f32.mrb[0].mxu0
  %v1745 = vadd.f32 0.0, %v1744
  %v1746 = vpop.f32.mrb[0].mxu0
  %v1747 = vadd.f32 0.0, %v1746
  %1748 = vmatprep.mubr.f32.mxu0 0.0
  %1749 = vmatmul.mubr.f32.gmra.mrb[0].mxu0 %v239
  %v1750 = vpop.f32.mrb[0].mxu0
  %v1751 = vadd.f32 0.0, %v1750
  %v1752 = vpop.f32.mrb[0].mxu0
  %v1753 = vadd.f32 0.0, %v1752
  %1754 = vdwg.mxu0
  %1755 = vmatprep.subr.mxu0 %v280
  %1756 = vmatpush1.msra.mxu0 %v278
  %1757 = vmatprep.subr.mxu0 0.0
  %1758 = vmatpush1.msra.mxu0 0.0
  %1759 = vmatprep.subr.mxu0 0.0
  %1760 = vmatpush1.msra.mxu0 0.0
  %1761 = vmatprep.subr.mxu0 0.0
  %1762 = vmatpush1.msra.mxu0 0.0
  %1763 = vmatprep.subr.mxu0 0.0
  %1764 = vmatpush1.msra.mxu0 0.0
  %1765 = vmatprep.subr.mxu0 0.0
  %1766 = vmatpush1.msra.mxu0 0.0
  %1767 = vmatprep.subr.mxu0 0.0
  %1768 = vmatpush1.msra.mxu0 0.0
  %1769 = vmatprep.subr.mxu0 0.0
  %1770 = vmatpush1.msra.mxu0 0.0
  %1771 = vmatprep.subr.mxu0 0.0
  %1772 = vmatpush1.msra.mxu0 0.0
  %1773 = vmatprep.subr.mxu0 0.0
  %1774 = vmatpush1.msra.mxu0 0.0
  %1775 = vmatprep.subr.mxu0 0.0
  %1776 = vmatpush1.msra.mxu0 0.0
  %1777 = vmatprep.subr.mxu0 0.0
  %1778 = vmatpush1.msra.mxu0 0.0
  %1779 = vmatprep.subr.mxu0 0.0
  %1780 = vmatpush1.msra.mxu0 0.0
  %1781 = vmatprep.subr.mxu0 0.0
  %1782 = vmatpush1.msra.mxu0 0.0
  %1783 = vmatprep.subr.mxu0 0.0
  %1784 = vmatpush1.msra.mxu0 0.0
  %1785 = vmatprep.subr.mxu0 0.0
  %1786 = vmatpush1.msra.mxu0 0.0
  %1787 = vmatprep.subr.mxu0 0.0
  %1788 = vmatpush1.msra.mxu0 0.0
  %1789 = vmatprep.subr.mxu0 0.0
  %1790 = vmatpush1.msra.mxu0 0.0
  %1791 = vmatprep.subr.mxu0 0.0
  %1792 = vmatpush1.msra.mxu0 0.0
  %1793 = vmatprep.subr.mxu0 0.0
  %1794 = vmatpush1.msra.mxu0 0.0
  %1795 = vmatprep.subr.mxu0 0.0
  %1796 = vmatpush1.msra.mxu0 0.0
  %1797 = vmatprep.subr.mxu0 0.0
  %1798 = vmatpush1.msra.mxu0 0.0
  %1799 = vmatprep.subr.mxu0 0.0
  %1800 = vmatpush1.msra.mxu0 0.0
  %1801 = vmatprep.subr.mxu0 0.0
  %1802 = vmatpush1.msra.mxu0 0.0
  %1803 = vmatprep.subr.mxu0 0.0
  %1804 = vmatpush1.msra.mxu0 0.0
  %1805 = vmatprep.subr.mxu0 0.0
  %1806 = vmatpush1.msra.mxu0 0.0
  %1807 = vmatprep.subr.mxu0 0.0
  %1808 = vmatpush1.msra.mxu0 0.0
  %1809 = vmatprep.subr.mxu0 0.0
  %1810 = vmatpush1.msra.mxu0 0.0
  %1811 = vmatprep.subr.mxu0 0.0
  %1812 = vmatpush1.msra.mxu0 0.0
  %1813 = vmatprep.subr.mxu0 0.0
  %1814 = vmatpush1.msra.mxu0 0.0
  %1815 = vmatprep.subr.mxu0 0.0
  %1816 = vmatpush1.msra.mxu0 0.0
  %1817 = vmatprep.subr.mxu0 0.0
  %1818 = vmatpush1.msra.mxu0 0.0
  %1819 = vmatprep.mubr.f32.mxu0 0.0
  %1820 = vmatmul.mubr.f32.gmra.mrb[0].mxu0 %v194
  %v1821 = vpop.f32.mrb[0].mxu0
  %v1822 = vadd.f32 0.0, %v1821
  %v1823 = vpop.f32.mrb[0].mxu0
  %v1824 = vadd.f32 0.0, %v1823
  %1825 = vmatprep.mubr.f32.mxu0 0.0
  %1826 = vmatmul.mubr.f32.gmra.mrb[0].mxu0 %v197
  %v1827 = vpop.f32.mrb[0].mxu0
  %v1828 = vadd.f32 0.0, %v1827
  %v1829 = vpop.f32.mrb[0].mxu0
  %v1830 = vadd.f32 0.0, %v1829
  %1831 = vmatprep.mubr.f32.mxu0 0.0
  %1832 = vmatmul.mubr.f32.gmra.mrb[0].mxu0 %v200
  %v1833 = vpop.f32.mrb[0].mxu0
  %v1834 = vadd.f32 0.0, %v1833
  %v1835 = vpop.f32.mrb[0].mxu0
  %v1836 = vadd.f32 0.0, %v1835
  %1837 = vmatprep.mubr.f32.mxu0 0.0
  %1838 = vmatmul.mubr.f32.gmra.mrb[0].mxu0 %v203
  %v1839 = vpop.f32.mrb[0].mxu0
  %v1840 = vadd.f32 0.0, %v1839
  %v1841 = vpop.f32.mrb[0].mxu0
  %v1842 = vadd.f32 0.0, %v1841
  %1843 = vmatprep.mubr.f32.mxu0 0.0
  %1844 = vmatmul.mubr.f32.gmra.mrb[0].mxu0 %v206
  %v1845 = vpop.f32.mrb[0].mxu0
  %v1846 = vadd.f32 0.0, %v1845
  %v1847 = vpop.f32.mrb[0].mxu0
  %v1848 = vadd.f32 0.0, %v1847
  %1849 = vmatprep.mubr.f32.mxu0 0.0
  %1850 = vmatmul.mubr.f32.gmra.mrb[0].mxu0 %v209
  %v1851 = vpop.f32.mrb[0].mxu0
  %v1852 = vadd.f32 0.0, %v1851
  %v1853 = vpop.f32.mrb[0].mxu0
  %v1854 = vadd.f32 0.0, %v1853
  %1855 = vmatprep.mubr.f32.mxu0 0.0
  %1856 = vmatmul.mubr.f32.gmra.mrb[0].mxu0 %v212
  %v1857 = vpop.f32.mrb[0].mxu0
  %v1858 = vadd.f32 0.0, %v1857
  %v1859 = vpop.f32.mrb[0].mxu0
  %v1860 = vadd.f32 0.0, %v1859
  %1861 = vmatprep.mubr.f32.mxu0 0.0
  %1862 = vmatmul.mubr.f32.gmra.mrb[0].mxu0 %v215
  %v1863 = vpop.f32.mrb[0].mxu0
  %v1864 = vadd.f32 0.0, %v1863
  %v1865 = vpop.f32.mrb[0].mxu0
  %v1866 = vadd.f32 0.0, %v1865
  %1867 = vmatprep.mubr.f32.mxu0 0.0
  %1868 = vmatmul.mubr.f32.gmra.mrb[0].mxu0 %v218
  %v1869 = vpop.f32.mrb[0].mxu0
  %v1870 = vadd.f32 0.0, %v1869
  %v1871 = vpop.f32.mrb[0].mxu0
  %v1872 = vadd.f32 0.0, %v1871
  %1873 = vmatprep.mubr.f32.mxu0 0.0
  %1874 = vmatmul.mubr.f32.gmra.mrb[0].mxu0 %v221
  %v1875 = vpop.f32.mrb[0].mxu0
  %v1876 = vadd.f32 0.0, %v1875
  %v1877 = vpop.f32.mrb[0].mxu0
  %v1878 = vadd.f32 0.0, %v1877
  %1879 = vmatprep.mubr.f32.mxu0 0.0
  %1880 = vmatmul.mubr.f32.gmra.mrb[0].mxu0 %v224
  %v1881 = vpop.f32.mrb[0].mxu0
  %v1882 = vadd.f32 0.0, %v1881
  %v1883 = vpop.f32.mrb[0].mxu0
  %v1884 = vadd.f32 0.0, %v1883
  %1885 = vmatprep.mubr.f32.mxu0 0.0
  %1886 = vmatmul.mubr.f32.gmra.mrb[0].mxu0 %v227
  %v1887 = vpop.f32.mrb[0].mxu0
  %v1888 = vadd.f32 0.0, %v1887
  %v1889 = vpop.f32.mrb[0].mxu0
  %v1890 = vadd.f32 0.0, %v1889
  %1891 = vmatprep.mubr.f32.mxu0 0.0
  %1892 = vmatmul.mubr.f32.gmra.mrb[0].mxu0 %v230
  %v1893 = vpop.f32.mrb[0].mxu0
  %v1894 = vadd.f32 0.0, %v1893
  %v1895 = vpop.f32.mrb[0].mxu0
  %v1896 = vadd.f32 0.0, %v1895
  %1897 = vmatprep.mubr.f32.mxu0 0.0
  %1898 = vmatmul.mubr.f32.gmra.mrb[0].mxu0 %v233
  %v1899 = vpop.f32.mrb[0].mxu0
  %v1900 = vadd.f32 0.0, %v1899
  %v1901 = vpop.f32.mrb[0].mxu0
  %v1902 = vadd.f32 0.0, %v1901
  %1903 = vmatprep.mubr.f32.mxu0 0.0
  %1904 = vmatmul.mubr.f32.gmra.mrb[0].mxu0 %v236
  %v1905 = vpop.f32.mrb[0].mxu0
  %v1906 = vadd.f32 0.0, %v1905
  %v1907 = vpop.f32.mrb[0].mxu0
  %v1908 = vadd.f32 0.0, %v1907
  %1909 = vmatprep.mubr.f32.mxu0 0.0
  %1910 = vmatmul.mubr.f32.gmra.mrb[0].mxu0 %v239
  %v1911 = vpop.f32.mrb[0].mxu0
  %v1912 = vadd.f32 0.0, %v1911
  %v1913 = vpop.f32.mrb[0].mxu0
  %v1914 = vadd.f32 0.0, %v1913
  %1915 = vdwg.mxu0
  %1916 = vmatprep.subr.mxu0 %v284
  %1917 = vmatpush1.msra.mxu0 %v282
  %1918 = vmatprep.subr.mxu0 0.0
  %1919 = vmatpush1.msra.mxu0 0.0
  %1920 = vmatprep.subr.mxu0 0.0
  %1921 = vmatpush1.msra.mxu0 0.0
  %1922 = vmatprep.subr.mxu0 0.0
  %1923 = vmatpush1.msra.mxu0 0.0
  %1924 = vmatprep.subr.mxu0 0.0
  %1925 = vmatpush1.msra.mxu0 0.0
  %1926 = vmatprep.subr.mxu0 0.0
  %1927 = vmatpush1.msra.mxu0 0.0
  %1928 = vmatprep.subr.mxu0 0.0
  %1929 = vmatpush1.msra.mxu0 0.0
  %1930 = vmatprep.subr.mxu0 0.0
  %1931 = vmatpush1.msra.mxu0 0.0
  %1932 = vmatprep.subr.mxu0 0.0
  %1933 = vmatpush1.msra.mxu0 0.0
  %1934 = vmatprep.subr.mxu0 0.0
  %1935 = vmatpush1.msra.mxu0 0.0
  %1936 = vmatprep.subr.mxu0 0.0
  %1937 = vmatpush1.msra.mxu0 0.0
  %1938 = vmatprep.subr.mxu0 0.0
  %1939 = vmatpush1.msra.mxu0 0.0
  %1940 = vmatprep.subr.mxu0 0.0
  %1941 = vmatpush1.msra.mxu0 0.0
  %1942 = vmatprep.subr.mxu0 0.0
  %1943 = vmatpush1.msra.mxu0 0.0
  %1944 = vmatprep.subr.mxu0 0.0
  %1945 = vmatpush1.msra.mxu0 0.0
  %1946 = vmatprep.subr.mxu0 0.0
  %1947 = vmatpush1.msra.mxu0 0.0
  %1948 = vmatprep.subr.mxu0 0.0
  %1949 = vmatpush1.msra.mxu0 0.0
  %1950 = vmatprep.subr.mxu0 0.0
  %1951 = vmatpush1.msra.mxu0 0.0
  %1952 = vmatprep.subr.mxu0 0.0
  %1953 = vmatpush1.msra.mxu0 0.0
  %1954 = vmatprep.subr.mxu0 0.0
  %1955 = vmatpush1.msra.mxu0 0.0
  %1956 = vmatprep.subr.mxu0 0.0
  %1957 = vmatpush1.msra.mxu0 0.0
  %1958 = vmatprep.subr.mxu0 0.0
  %1959 = vmatpush1.msra.mxu0 0.0
  %1960 = vmatprep.subr.mxu0 0.0
  %1961 = vmatpush1.msra.mxu0 0.0
  %1962 = vmatprep.subr.mxu0 0.0
  %1963 = vmatpush1.msra.mxu0 0.0
  %1964 = vmatprep.subr.mxu0 0.0
  %1965 = vmatpush1.msra.mxu0 0.0
  %1966 = vmatprep.subr.mxu0 0.0
  %1967 = vmatpush1.msra.mxu0 0.0
  %1968 = vmatprep.subr.mxu0 0.0
  %1969 = vmatpush1.msra.mxu0 0.0
  %1970 = vmatprep.subr.mxu0 0.0
  %1971 = vmatpush1.msra.mxu0 0.0
  %1972 = vmatprep.subr.mxu0 0.0
  %1973 = vmatpush1.msra.mxu0 0.0
  %1974 = vmatprep.subr.mxu0 0.0
  %1975 = vmatpush1.msra.mxu0 0.0
  %1976 = vmatprep.subr.mxu0 0.0
  %1977 = vmatpush1.msra.mxu0 0.0
  %1978 = vmatprep.subr.mxu0 0.0
  %1979 = vmatpush1.msra.mxu0 0.0
  %1980 = vmatprep.mubr.f32.mxu0 0.0
  %1981 = vmatmul.mubr.f32.gmra.mrb[0].mxu0 %v194
  %v1982 = vpop.f32.mrb[0].mxu0
  %v1983 = vadd.f32 0.0, %v1982
  %v1984 = vpop.f32.mrb[0].mxu0
  %v1985 = vadd.f32 0.0, %v1984
  %1986 = vmatprep.mubr.f32.mxu0 0.0
  %1987 = vmatmul.mubr.f32.gmra.mrb[0].mxu0 %v197
  %v1988 = vpop.f32.mrb[0].mxu0
  %v1989 = vadd.f32 0.0, %v1988
  %v1990 = vpop.f32.mrb[0].mxu0
  %v1991 = vadd.f32 0.0, %v1990
  %1992 = vmatprep.mubr.f32.mxu0 0.0
  %1993 = vmatmul.mubr.f32.gmra.mrb[0].mxu0 %v200
  %v1994 = vpop.f32.mrb[0].mxu0
  %v1995 = vadd.f32 0.0, %v1994
  %v1996 = vpop.f32.mrb[0].mxu0
  %v1997 = vadd.f32 0.0, %v1996
  %1998 = vmatprep.mubr.f32.mxu0 0.0
  %1999 = vmatmul.mubr.f32.gmra.mrb[0].mxu0 %v203
  %v2000 = vpop.f32.mrb[0].mxu0
  %v2001 = vadd.f32 0.0, %v2000
  %v2002 = vpop.f32.mrb[0].mxu0
  %v2003 = vadd.f32 0.0, %v2002
  %2004 = vmatprep.mubr.f32.mxu0 0.0
  %2005 = vmatmul.mubr.f32.gmra.mrb[0].mxu0 %v206
  %v2006 = vpop.f32.mrb[0].mxu0
  %v2007 = vadd.f32 0.0, %v2006
  %v2008 = vpop.f32.mrb[0].mxu0
  %v2009 = vadd.f32 0.0, %v2008
  %2010 = vmatprep.mubr.f32.mxu0 0.0
  %2011 = vmatmul.mubr.f32.gmra.mrb[0].mxu0 %v209
  %v2012 = vpop.f32.mrb[0].mxu0
  %v2013 = vadd.f32 0.0, %v2012
  %v2014 = vpop.f32.mrb[0].mxu0
  %v2015 = vadd.f32 0.0, %v2014
  %2016 = vmatprep.mubr.f32.mxu0 0.0
  %2017 = vmatmul.mubr.f32.gmra.mrb[0].mxu0 %v212
  %v2018 = vpop.f32.mrb[0].mxu0
  %v2019 = vadd.f32 0.0, %v2018
  %v2020 = vpop.f32.mrb[0].mxu0
  %v2021 = vadd.f32 0.0, %v2020
  %2022 = vmatprep.mubr.f32.mxu0 0.0
  %2023 = vmatmul.mubr.f32.gmra.mrb[0].mxu0 %v215
  %v2024 = vpop.f32.mrb[0].mxu0
  %v2025 = vadd.f32 0.0, %v2024
  %v2026 = vpop.f32.mrb[0].mxu0
  %v2027 = vadd.f32 0.0, %v2026
  %2028 = vmatprep.mubr.f32.mxu0 0.0
  %2029 = vmatmul.mubr.f32.gmra.mrb[0].mxu0 %v218
  %v2030 = vpop.f32.mrb[0].mxu0
  %v2031 = vadd.f32 0.0, %v2030
  %v2032 = vpop.f32.mrb[0].mxu0
  %v2033 = vadd.f32 0.0, %v2032
  %2034 = vmatprep.mubr.f32.mxu0 0.0
  %2035 = vmatmul.mubr.f32.gmra.mrb[0].mxu0 %v221
  %v2036 = vpop.f32.mrb[0].mxu0
  %v2037 = vadd.f32 0.0, %v2036
  %v2038 = vpop.f32.mrb[0].mxu0
  %v2039 = vadd.f32 0.0, %v2038
  %2040 = vmatprep.mubr.f32.mxu0 0.0
  %2041 = vmatmul.mubr.f32.gmra.mrb[0].mxu0 %v224
  %v2042 = vpop.f32.mrb[0].mxu0
  %v2043 = vadd.f32 0.0, %v2042
  %v2044 = vpop.f32.mrb[0].mxu0
  %v2045 = vadd.f32 0.0, %v2044
  %2046 = vmatprep.mubr.f32.mxu0 0.0
  %2047 = vmatmul.mubr.f32.gmra.mrb[0].mxu0 %v227
  %v2048 = vpop.f32.mrb[0].mxu0
  %v2049 = vadd.f32 0.0, %v2048
  %v2050 = vpop.f32.mrb[0].mxu0
  %v2051 = vadd.f32 0.0, %v2050
  %2052 = vmatprep.mubr.f32.mxu0 0.0
  %2053 = vmatmul.mubr.f32.gmra.mrb[0].mxu0 %v230
  %v2054 = vpop.f32.mrb[0].mxu0
  %v2055 = vadd.f32 0.0, %v2054
  %v2056 = vpop.f32.mrb[0].mxu0
  %v2057 = vadd.f32 0.0, %v2056
  %2058 = vmatprep.mubr.f32.mxu0 0.0
  %2059 = vmatmul.mubr.f32.gmra.mrb[0].mxu0 %v233
  %v2060 = vpop.f32.mrb[0].mxu0
  %v2061 = vadd.f32 0.0, %v2060
  %v2062 = vpop.f32.mrb[0].mxu0
  %v2063 = vadd.f32 0.0, %v2062
  %2064 = vmatprep.mubr.f32.mxu0 0.0
  %2065 = vmatmul.mubr.f32.gmra.mrb[0].mxu0 %v236
  %v2066 = vpop.f32.mrb[0].mxu0
  %v2067 = vadd.f32 0.0, %v2066
  %v2068 = vpop.f32.mrb[0].mxu0
  %v2069 = vadd.f32 0.0, %v2068
  %2070 = vmatprep.mubr.f32.mxu0 0.0
  %2071 = vmatmul.mubr.f32.gmra.mrb[0].mxu0 %v239
  %v2072 = vpop.f32.mrb[0].mxu0
  %v2073 = vadd.f32 0.0, %v2072
  %v2074 = vpop.f32.mrb[0].mxu0
  %v2075 = vadd.f32 0.0, %v2074
  %2076 = vdwg.mxu0
  %2077 = vmatprep.subr.mxu0 %v288
  %2078 = vmatpush1.msra.mxu0 %v286
  %2079 = vmatprep.subr.mxu0 0.0
  %2080 = vmatpush1.msra.mxu0 0.0
  %2081 = vmatprep.subr.mxu0 0.0
  %2082 = vmatpush1.msra.mxu0 0.0
  %2083 = vmatprep.subr.mxu0 0.0
  %2084 = vmatpush1.msra.mxu0 0.0
  %2085 = vmatprep.subr.mxu0 0.0
  %2086 = vmatpush1.msra.mxu0 0.0
  %2087 = vmatprep.subr.mxu0 0.0
  %2088 = vmatpush1.msra.mxu0 0.0
  %2089 = vmatprep.subr.mxu0 0.0
  %2090 = vmatpush1.msra.mxu0 0.0
  %2091 = vmatprep.subr.mxu0 0.0
  %2092 = vmatpush1.msra.mxu0 0.0
  %2093 = vmatprep.subr.mxu0 0.0
  %2094 = vmatpush1.msra.mxu0 0.0
  %2095 = vmatprep.subr.mxu0 0.0
  %2096 = vmatpush1.msra.mxu0 0.0
  %2097 = vmatprep.subr.mxu0 0.0
  %2098 = vmatpush1.msra.mxu0 0.0
  %2099 = vmatprep.subr.mxu0 0.0
  %2100 = vmatpush1.msra.mxu0 0.0
  %2101 = vmatprep.subr.mxu0 0.0
  %2102 = vmatpush1.msra.mxu0 0.0
  %2103 = vmatprep.subr.mxu0 0.0
  %2104 = vmatpush1.msra.mxu0 0.0
  %2105 = vmatprep.subr.mxu0 0.0
  %2106 = vmatpush1.msra.mxu0 0.0
  %2107 = vmatprep.subr.mxu0 0.0
  %2108 = vmatpush1.msra.mxu0 0.0
  %2109 = vmatprep.subr.mxu0 0.0
  %2110 = vmatpush1.msra.mxu0 0.0
  %2111 = vmatprep.subr.mxu0 0.0
  %2112 = vmatpush1.msra.mxu0 0.0
  %2113 = vmatprep.subr.mxu0 0.0
  %2114 = vmatpush1.msra.mxu0 0.0
  %2115 = vmatprep.subr.mxu0 0.0
  %2116 = vmatpush1.msra.mxu0 0.0
  %2117 = vmatprep.subr.mxu0 0.0
  %2118 = vmatpush1.msra.mxu0 0.0
  %2119 = vmatprep.subr.mxu0 0.0
  %2120 = vmatpush1.msra.mxu0 0.0
  %2121 = vmatprep.subr.mxu0 0.0
  %2122 = vmatpush1.msra.mxu0 0.0
  %2123 = vmatprep.subr.mxu0 0.0
  %2124 = vmatpush1.msra.mxu0 0.0
  %2125 = vmatprep.subr.mxu0 0.0
  %2126 = vmatpush1.msra.mxu0 0.0
  %2127 = vmatprep.subr.mxu0 0.0
  %2128 = vmatpush1.msra.mxu0 0.0
  %2129 = vmatprep.subr.mxu0 0.0
  %2130 = vmatpush1.msra.mxu0 0.0
  %2131 = vmatprep.subr.mxu0 0.0
  %2132 = vmatpush1.msra.mxu0 0.0
  %2133 = vmatprep.subr.mxu0 0.0
  %2134 = vmatpush1.msra.mxu0 0.0
  %2135 = vmatprep.subr.mxu0 0.0
  %2136 = vmatpush1.msra.mxu0 0.0
  %2137 = vmatprep.subr.mxu0 0.0
  %2138 = vmatpush1.msra.mxu0 0.0
  %2139 = vmatprep.subr.mxu0 0.0
  %2140 = vmatpush1.msra.mxu0 0.0
  %2141 = vmatprep.mubr.f32.mxu0 0.0
  %2142 = vmatmul.mubr.f32.gmra.mrb[0].mxu0 %v194
  %v2143 = vpop.f32.mrb[0].mxu0
  %v2144 = vadd.f32 0.0, %v2143
  %v2145 = vpop.f32.mrb[0].mxu0
  %v2146 = vadd.f32 0.0, %v2145
  %2147 = vmatprep.mubr.f32.mxu0 0.0
  %2148 = vmatmul.mubr.f32.gmra.mrb[0].mxu0 %v197
  %v2149 = vpop.f32.mrb[0].mxu0
  %v2150 = vadd.f32 0.0, %v2149
  %v2151 = vpop.f32.mrb[0].mxu0
  %v2152 = vadd.f32 0.0, %v2151
  %2153 = vmatprep.mubr.f32.mxu0 0.0
  %2154 = vmatmul.mubr.f32.gmra.mrb[0].mxu0 %v200
  %v2155 = vpop.f32.mrb[0].mxu0
  %v2156 = vadd.f32 0.0, %v2155
  %v2157 = vpop.f32.mrb[0].mxu0
  %v2158 = vadd.f32 0.0, %v2157
  %2159 = vmatprep.mubr.f32.mxu0 0.0
  %2160 = vmatmul.mubr.f32.gmra.mrb[0].mxu0 %v203
  %v2161 = vpop.f32.mrb[0].mxu0
  %v2162 = vadd.f32 0.0, %v2161
  %v2163 = vpop.f32.mrb[0].mxu0
  %v2164 = vadd.f32 0.0, %v2163
  %2165 = vmatprep.mubr.f32.mxu0 0.0
  %2166 = vmatmul.mubr.f32.gmra.mrb[0].mxu0 %v206
  %v2167 = vpop.f32.mrb[0].mxu0
  %v2168 = vadd.f32 0.0, %v2167
  %v2169 = vpop.f32.mrb[0].mxu0
  %v2170 = vadd.f32 0.0, %v2169
  %2171 = vmatprep.mubr.f32.mxu0 0.0
  %2172 = vmatmul.mubr.f32.gmra.mrb[0].mxu0 %v209
  %v2173 = vpop.f32.mrb[0].mxu0
  %v2174 = vadd.f32 0.0, %v2173
  %v2175 = vpop.f32.mrb[0].mxu0
  %v2176 = vadd.f32 0.0, %v2175
  %2177 = vmatprep.mubr.f32.mxu0 0.0
  %2178 = vmatmul.mubr.f32.gmra.mrb[0].mxu0 %v212
  %v2179 = vpop.f32.mrb[0].mxu0
  %v2180 = vadd.f32 0.0, %v2179
  %v2181 = vpop.f32.mrb[0].mxu0
  %v2182 = vadd.f32 0.0, %v2181
  %2183 = vmatprep.mubr.f32.mxu0 0.0
  %2184 = vmatmul.mubr.f32.gmra.mrb[0].mxu0 %v215
  %v2185 = vpop.f32.mrb[0].mxu0
  %v2186 = vadd.f32 0.0, %v2185
  %v2187 = vpop.f32.mrb[0].mxu0
  %v2188 = vadd.f32 0.0, %v2187
  %2189 = vmatprep.mubr.f32.mxu0 0.0
  %2190 = vmatmul.mubr.f32.gmra.mrb[0].mxu0 %v218
  %v2191 = vpop.f32.mrb[0].mxu0
  %v2192 = vadd.f32 0.0, %v2191
  %v2193 = vpop.f32.mrb[0].mxu0
  %v2194 = vadd.f32 0.0, %v2193
  %2195 = vmatprep.mubr.f32.mxu0 0.0
  %2196 = vmatmul.mubr.f32.gmra.mrb[0].mxu0 %v221
  %v2197 = vpop.f32.mrb[0].mxu0
  %v2198 = vadd.f32 0.0, %v2197
  %v2199 = vpop.f32.mrb[0].mxu0
  %v2200 = vadd.f32 0.0, %v2199
  %2201 = vmatprep.mubr.f32.mxu0 0.0
  %2202 = vmatmul.mubr.f32.gmra.mrb[0].mxu0 %v224
  %v2203 = vpop.f32.mrb[0].mxu0
  %v2204 = vadd.f32 0.0, %v2203
  %v2205 = vpop.f32.mrb[0].mxu0
  %v2206 = vadd.f32 0.0, %v2205
  %2207 = vmatprep.mubr.f32.mxu0 0.0
  %2208 = vmatmul.mubr.f32.gmra.mrb[0].mxu0 %v227
  %v2209 = vpop.f32.mrb[0].mxu0
  %v2210 = vadd.f32 0.0, %v2209
  %v2211 = vpop.f32.mrb[0].mxu0
  %v2212 = vadd.f32 0.0, %v2211
  %2213 = vmatprep.mubr.f32.mxu0 0.0
  %2214 = vmatmul.mubr.f32.gmra.mrb[0].mxu0 %v230
  %v2215 = vpop.f32.mrb[0].mxu0
  %v2216 = vadd.f32 0.0, %v2215
  %v2217 = vpop.f32.mrb[0].mxu0
  %v2218 = vadd.f32 0.0, %v2217
  %2219 = vmatprep.mubr.f32.mxu0 0.0
  %2220 = vmatmul.mubr.f32.gmra.mrb[0].mxu0 %v233
  %v2221 = vpop.f32.mrb[0].mxu0
  %v2222 = vadd.f32 0.0, %v2221
  %v2223 = vpop.f32.mrb[0].mxu0
  %v2224 = vadd.f32 0.0, %v2223
  %2225 = vmatprep.mubr.f32.mxu0 0.0
  %2226 = vmatmul.mubr.f32.gmra.mrb[0].mxu0 %v236
  %v2227 = vpop.f32.mrb[0].mxu0
  %v2228 = vadd.f32 0.0, %v2227
  %v2229 = vpop.f32.mrb[0].mxu0
  %v2230 = vadd.f32 0.0, %v2229
  %2231 = vmatprep.mubr.f32.mxu0 0.0
  %2232 = vmatmul.mubr.f32.gmra.mrb[0].mxu0 %v239
  %v2233 = vpop.f32.mrb[0].mxu0
  %v2234 = vadd.f32 0.0, %v2233
  %v2235 = vpop.f32.mrb[0].mxu0
  %v2236 = vadd.f32 0.0, %v2235
  %2237 = vdwg.mxu0
  %2238 = vmatprep.subr.mxu0 %v292
  %2239 = vmatpush1.msra.mxu0 %v290
  %2240 = vmatprep.subr.mxu0 0.0
  %2241 = vmatpush1.msra.mxu0 0.0
  %2242 = vmatprep.subr.mxu0 0.0
  %2243 = vmatpush1.msra.mxu0 0.0
  %2244 = vmatprep.subr.mxu0 0.0
  %2245 = vmatpush1.msra.mxu0 0.0
  %2246 = vmatprep.subr.mxu0 0.0
  %2247 = vmatpush1.msra.mxu0 0.0
  %2248 = vmatprep.subr.mxu0 0.0
  %2249 = vmatpush1.msra.mxu0 0.0
  %2250 = vmatprep.subr.mxu0 0.0
  %2251 = vmatpush1.msra.mxu0 0.0
  %2252 = vmatprep.subr.mxu0 0.0
  %2253 = vmatpush1.msra.mxu0 0.0
  %2254 = vmatprep.subr.mxu0 0.0
  %2255 = vmatpush1.msra.mxu0 0.0
  %2256 = vmatprep.subr.mxu0 0.0
  %2257 = vmatpush1.msra.mxu0 0.0
  %2258 = vmatprep.subr.mxu0 0.0
  %2259 = vmatpush1.msra.mxu0 0.0
  %2260 = vmatprep.subr.mxu0 0.0
  %2261 = vmatpush1.msra.mxu0 0.0
  %2262 = vmatprep.subr.mxu0 0.0
  %2263 = vmatpush1.msra.mxu0 0.0
  %2264 = vmatprep.subr.mxu0 0.0
  %2265 = vmatpush1.msra.mxu0 0.0
  %2266 = vmatprep.subr.mxu0 0.0
  %2267 = vmatpush1.msra.mxu0 0.0
  %2268 = vmatprep.subr.mxu0 0.0
  %2269 = vmatpush1.msra.mxu0 0.0
  %2270 = vmatprep.subr.mxu0 0.0
  %2271 = vmatpush1.msra.mxu0 0.0
  %2272 = vmatprep.subr.mxu0 0.0
  %2273 = vmatpush1.msra.mxu0 0.0
  %2274 = vmatprep.subr.mxu0 0.0
  %2275 = vmatpush1.msra.mxu0 0.0
  %2276 = vmatprep.subr.mxu0 0.0
  %2277 = vmatpush1.msra.mxu0 0.0
  %2278 = vmatprep.subr.mxu0 0.0
  %2279 = vmatpush1.msra.mxu0 0.0
  %2280 = vmatprep.subr.mxu0 0.0
  %2281 = vmatpush1.msra.mxu0 0.0
  %2282 = vmatprep.subr.mxu0 0.0
  %2283 = vmatpush1.msra.mxu0 0.0
  %2284 = vmatprep.subr.mxu0 0.0
  %2285 = vmatpush1.msra.mxu0 0.0
  %2286 = vmatprep.subr.mxu0 0.0
  %2287 = vmatpush1.msra.mxu0 0.0
  %2288 = vmatprep.subr.mxu0 0.0
  %2289 = vmatpush1.msra.mxu0 0.0
  %2290 = vmatprep.subr.mxu0 0.0
  %2291 = vmatpush1.msra.mxu0 0.0
  %2292 = vmatprep.subr.mxu0 0.0
  %2293 = vmatpush1.msra.mxu0 0.0
  %2294 = vmatprep.subr.mxu0 0.0
  %2295 = vmatpush1.msra.mxu0 0.0
  %2296 = vmatprep.subr.mxu0 0.0
  %2297 = vmatpush1.msra.mxu0 0.0
  %2298 = vmatprep.subr.mxu0 0.0
  %2299 = vmatpush1.msra.mxu0 0.0
  %2300 = vmatprep.subr.mxu0 0.0
  %2301 = vmatpush1.msra.mxu0 0.0
  %2302 = vmatprep.mubr.f32.mxu0 0.0
  %2303 = vmatmul.mubr.f32.gmra.mrb[0].mxu0 %v194
  %v2304 = vpop.f32.mrb[0].mxu0
  %v2305 = vadd.f32 0.0, %v2304
  %v2306 = vpop.f32.mrb[0].mxu0
  %v2307 = vadd.f32 0.0, %v2306
  %2308 = vmatprep.mubr.f32.mxu0 0.0
  %2309 = vmatmul.mubr.f32.gmra.mrb[0].mxu0 %v197
  %v2310 = vpop.f32.mrb[0].mxu0
  %v2311 = vadd.f32 0.0, %v2310
  %v2312 = vpop.f32.mrb[0].mxu0
  %v2313 = vadd.f32 0.0, %v2312
  %2314 = vmatprep.mubr.f32.mxu0 0.0
  %2315 = vmatmul.mubr.f32.gmra.mrb[0].mxu0 %v200
  %v2316 = vpop.f32.mrb[0].mxu0
  %v2317 = vadd.f32 0.0, %v2316
  %v2318 = vpop.f32.mrb[0].mxu0
  %v2319 = vadd.f32 0.0, %v2318
  %2320 = vmatprep.mubr.f32.mxu0 0.0
  %2321 = vmatmul.mubr.f32.gmra.mrb[0].mxu0 %v203
  %v2322 = vpop.f32.mrb[0].mxu0
  %v2323 = vadd.f32 0.0, %v2322
  %v2324 = vpop.f32.mrb[0].mxu0
  %v2325 = vadd.f32 0.0, %v2324
  %2326 = vmatprep.mubr.f32.mxu0 0.0
  %2327 = vmatmul.mubr.f32.gmra.mrb[0].mxu0 %v206
  %v2328 = vpop.f32.mrb[0].mxu0
  %v2329 = vadd.f32 0.0, %v2328
  %v2330 = vpop.f32.mrb[0].mxu0
  %v2331 = vadd.f32 0.0, %v2330
  %2332 = vmatprep.mubr.f32.mxu0 0.0
  %2333 = vmatmul.mubr.f32.gmra.mrb[0].mxu0 %v209
  %v2334 = vpop.f32.mrb[0].mxu0
  %v2335 = vadd.f32 0.0, %v2334
  %v2336 = vpop.f32.mrb[0].mxu0
  %v2337 = vadd.f32 0.0, %v2336
  %2338 = vmatprep.mubr.f32.mxu0 0.0
  %2339 = vmatmul.mubr.f32.gmra.mrb[0].mxu0 %v212
  %v2340 = vpop.f32.mrb[0].mxu0
  %v2341 = vadd.f32 0.0, %v2340
  %v2342 = vpop.f32.mrb[0].mxu0
  %v2343 = vadd.f32 0.0, %v2342
  %2344 = vmatprep.mubr.f32.mxu0 0.0
  %2345 = vmatmul.mubr.f32.gmra.mrb[0].mxu0 %v215
  %v2346 = vpop.f32.mrb[0].mxu0
  %v2347 = vadd.f32 0.0, %v2346
  %v2348 = vpop.f32.mrb[0].mxu0
  %v2349 = vadd.f32 0.0, %v2348
  %2350 = vmatprep.mubr.f32.mxu0 0.0
  %2351 = vmatmul.mubr.f32.gmra.mrb[0].mxu0 %v218
  %v2352 = vpop.f32.mrb[0].mxu0
  %v2353 = vadd.f32 0.0, %v2352
  %v2354 = vpop.f32.mrb[0].mxu0
  %v2355 = vadd.f32 0.0, %v2354
  %2356 = vmatprep.mubr.f32.mxu0 0.0
  %2357 = vmatmul.mubr.f32.gmra.mrb[0].mxu0 %v221
  %v2358 = vpop.f32.mrb[0].mxu0
  %v2359 = vadd.f32 0.0, %v2358
  %v2360 = vpop.f32.mrb[0].mxu0
  %v2361 = vadd.f32 0.0, %v2360
  %2362 = vmatprep.mubr.f32.mxu0 0.0
  %2363 = vmatmul.mubr.f32.gmra.mrb[0].mxu0 %v224
  %v2364 = vpop.f32.mrb[0].mxu0
  %v2365 = vadd.f32 0.0, %v2364
  %v2366 = vpop.f32.mrb[0].mxu0
  %v2367 = vadd.f32 0.0, %v2366
  %2368 = vmatprep.mubr.f32.mxu0 0.0
  %2369 = vmatmul.mubr.f32.gmra.mrb[0].mxu0 %v227
  %v2370 = vpop.f32.mrb[0].mxu0
  %v2371 = vadd.f32 0.0, %v2370
  %v2372 = vpop.f32.mrb[0].mxu0
  %v2373 = vadd.f32 0.0, %v2372
  %2374 = vmatprep.mubr.f32.mxu0 0.0
  %2375 = vmatmul.mubr.f32.gmra.mrb[0].mxu0 %v230
  %v2376 = vpop.f32.mrb[0].mxu0
  %v2377 = vadd.f32 0.0, %v2376
  %v2378 = vpop.f32.mrb[0].mxu0
  %v2379 = vadd.f32 0.0, %v2378
  %2380 = vmatprep.mubr.f32.mxu0 0.0
  %2381 = vmatmul.mubr.f32.gmra.mrb[0].mxu0 %v233
  %v2382 = vpop.f32.mrb[0].mxu0
  %v2383 = vadd.f32 0.0, %v2382
  %v2384 = vpop.f32.mrb[0].mxu0
  %v2385 = vadd.f32 0.0, %v2384
  %2386 = vmatprep.mubr.f32.mxu0 0.0
  %2387 = vmatmul.mubr.f32.gmra.mrb[0].mxu0 %v236
  %v2388 = vpop.f32.mrb[0].mxu0
  %v2389 = vadd.f32 0.0, %v2388
  %v2390 = vpop.f32.mrb[0].mxu0
  %v2391 = vadd.f32 0.0, %v2390
  %2392 = vmatprep.mubr.f32.mxu0 0.0
  %2393 = vmatmul.mubr.f32.gmra.mrb[0].mxu0 %v239
  %v2394 = vpop.f32.mrb[0].mxu0
  %v2395 = vadd.f32 0.0, %v2394
  %v2396 = vpop.f32.mrb[0].mxu0
  %v2397 = vadd.f32 0.0, %v2396
  %2398 = vdwg.mxu0
  %2399 = vmatprep.subr.mxu0 %v296
  %2400 = vmatpush1.msra.mxu0 %v294
  %2401 = vmatprep.subr.mxu0 0.0
  %2402 = vmatpush1.msra.mxu0 0.0
  %2403 = vmatprep.subr.mxu0 0.0
  %2404 = vmatpush1.msra.mxu0 0.0
  %2405 = vmatprep.subr.mxu0 0.0
  %2406 = vmatpush1.msra.mxu0 0.0
  %2407 = vmatprep.subr.mxu0 0.0
  %2408 = vmatpush1.msra.mxu0 0.0
  %2409 = vmatprep.subr.mxu0 0.0
  %2410 = vmatpush1.msra.mxu0 0.0
  %2411 = vmatprep.subr.mxu0 0.0
  %2412 = vmatpush1.msra.mxu0 0.0
  %2413 = vmatprep.subr.mxu0 0.0
  %2414 = vmatpush1.msra.mxu0 0.0
  %2415 = vmatprep.subr.mxu0 0.0
  %2416 = vmatpush1.msra.mxu0 0.0
  %2417 = vmatprep.subr.mxu0 0.0
  %2418 = vmatpush1.msra.mxu0 0.0
  %2419 = vmatprep.subr.mxu0 0.0
  %2420 = vmatpush1.msra.mxu0 0.0
  %2421 = vmatprep.subr.mxu0 0.0
  %2422 = vmatpush1.msra.mxu0 0.0
  %2423 = vmatprep.subr.mxu0 0.0
  %2424 = vmatpush1.msra.mxu0 0.0
  %2425 = vmatprep.subr.mxu0 0.0
  %2426 = vmatpush1.msra.mxu0 0.0
  %2427 = vmatprep.subr.mxu0 0.0
  %2428 = vmatpush1.msra.mxu0 0.0
  %2429 = vmatprep.subr.mxu0 0.0
  %2430 = vmatpush1.msra.mxu0 0.0
  %2431 = vmatprep.subr.mxu0 0.0
  %2432 = vmatpush1.msra.mxu0 0.0
  %2433 = vmatprep.subr.mxu0 0.0
  %2434 = vmatpush1.msra.mxu0 0.0
  %2435 = vmatprep.subr.mxu0 0.0
  %2436 = vmatpush1.msra.mxu0 0.0
  %2437 = vmatprep.subr.mxu0 0.0
  %2438 = vmatpush1.msra.mxu0 0.0
  %2439 = vmatprep.subr.mxu0 0.0
  %2440 = vmatpush1.msra.mxu0 0.0
  %2441 = vmatprep.subr.mxu0 0.0
  %2442 = vmatpush1.msra.mxu0 0.0
  %2443 = vmatprep.subr.mxu0 0.0
  %2444 = vmatpush1.msra.mxu0 0.0
  %2445 = vmatprep.subr.mxu0 0.0
  %2446 = vmatpush1.msra.mxu0 0.0
  %2447 = vmatprep.subr.mxu0 0.0
  %2448 = vmatpush1.msra.mxu0 0.0
  %2449 = vmatprep.subr.mxu0 0.0
  %2450 = vmatpush1.msra.mxu0 0.0
  %2451 = vmatprep.subr.mxu0 0.0
  %2452 = vmatpush1.msra.mxu0 0.0
  %2453 = vmatprep.subr.mxu0 0.0
  %2454 = vmatpush1.msra.mxu0 0.0
  %2455 = vmatprep.subr.mxu0 0.0
  %2456 = vmatpush1.msra.mxu0 0.0
  %2457 = vmatprep.subr.mxu0 0.0
  %2458 = vmatpush1.msra.mxu0 0.0
  %2459 = vmatprep.subr.mxu0 0.0
  %2460 = vmatpush1.msra.mxu0 0.0
  %2461 = vmatprep.subr.mxu0 0.0
  %2462 = vmatpush1.msra.mxu0 0.0
  %2463 = vmatprep.mubr.f32.mxu0 0.0
  %2464 = vmatmul.mubr.f32.gmra.mrb[0].mxu0 %v194
  %v2465 = vpop.f32.mrb[0].mxu0
  %v2466 = vadd.f32 0.0, %v2465
  %v2467 = vpop.f32.mrb[0].mxu0
  %v2468 = vadd.f32 0.0, %v2467
  %2469 = vmatprep.mubr.f32.mxu0 0.0
  %2470 = vmatmul.mubr.f32.gmra.mrb[0].mxu0 %v197
  %v2471 = vpop.f32.mrb[0].mxu0
  %v2472 = vadd.f32 0.0, %v2471
  %v2473 = vpop.f32.mrb[0].mxu0
  %v2474 = vadd.f32 0.0, %v2473
  %2475 = vmatprep.mubr.f32.mxu0 0.0
  %2476 = vmatmul.mubr.f32.gmra.mrb[0].mxu0 %v200
  %v2477 = vpop.f32.mrb[0].mxu0
  %v2478 = vadd.f32 0.0, %v2477
  %v2479 = vpop.f32.mrb[0].mxu0
  %v2480 = vadd.f32 0.0, %v2479
  %2481 = vmatprep.mubr.f32.mxu0 0.0
  %2482 = vmatmul.mubr.f32.gmra.mrb[0].mxu0 %v203
  %v2483 = vpop.f32.mrb[0].mxu0
  %v2484 = vadd.f32 0.0, %v2483
  %v2485 = vpop.f32.mrb[0].mxu0
  %v2486 = vadd.f32 0.0, %v2485
  %2487 = vmatprep.mubr.f32.mxu0 0.0
  %2488 = vmatmul.mubr.f32.gmra.mrb[0].mxu0 %v206
  %v2489 = vpop.f32.mrb[0].mxu0
  %v2490 = vadd.f32 0.0, %v2489
  %v2491 = vpop.f32.mrb[0].mxu0
  %v2492 = vadd.f32 0.0, %v2491
  %2493 = vmatprep.mubr.f32.mxu0 0.0
  %2494 = vmatmul.mubr.f32.gmra.mrb[0].mxu0 %v209
  %v2495 = vpop.f32.mrb[0].mxu0
  %v2496 = vadd.f32 0.0, %v2495
  %v2497 = vpop.f32.mrb[0].mxu0
  %v2498 = vadd.f32 0.0, %v2497
  %2499 = vmatprep.mubr.f32.mxu0 0.0
  %2500 = vmatmul.mubr.f32.gmra.mrb[0].mxu0 %v212
  %v2501 = vpop.f32.mrb[0].mxu0
  %v2502 = vadd.f32 0.0, %v2501
  %v2503 = vpop.f32.mrb[0].mxu0
  %v2504 = vadd.f32 0.0, %v2503
  %2505 = vmatprep.mubr.f32.mxu0 0.0
  %2506 = vmatmul.mubr.f32.gmra.mrb[0].mxu0 %v215
  %v2507 = vpop.f32.mrb[0].mxu0
  %v2508 = vadd.f32 0.0, %v2507
  %v2509 = vpop.f32.mrb[0].mxu0
  %v2510 = vadd.f32 0.0, %v2509
  %2511 = vmatprep.mubr.f32.mxu0 0.0
  %2512 = vmatmul.mubr.f32.gmra.mrb[0].mxu0 %v218
  %v2513 = vpop.f32.mrb[0].mxu0
  %v2514 = vadd.f32 0.0, %v2513
  %v2515 = vpop.f32.mrb[0].mxu0
  %v2516 = vadd.f32 0.0, %v2515
  %2517 = vmatprep.mubr.f32.mxu0 0.0
  %2518 = vmatmul.mubr.f32.gmra.mrb[0].mxu0 %v221
  %v2519 = vpop.f32.mrb[0].mxu0
  %v2520 = vadd.f32 0.0, %v2519
  %v2521 = vpop.f32.mrb[0].mxu0
  %v2522 = vadd.f32 0.0, %v2521
  %2523 = vmatprep.mubr.f32.mxu0 0.0
  %2524 = vmatmul.mubr.f32.gmra.mrb[0].mxu0 %v224
  %v2525 = vpop.f32.mrb[0].mxu0
  %v2526 = vadd.f32 0.0, %v2525
  %v2527 = vpop.f32.mrb[0].mxu0
  %v2528 = vadd.f32 0.0, %v2527
  %2529 = vmatprep.mubr.f32.mxu0 0.0
  %2530 = vmatmul.mubr.f32.gmra.mrb[0].mxu0 %v227
  %v2531 = vpop.f32.mrb[0].mxu0
  %v2532 = vadd.f32 0.0, %v2531
  %v2533 = vpop.f32.mrb[0].mxu0
  %v2534 = vadd.f32 0.0, %v2533
  %2535 = vmatprep.mubr.f32.mxu0 0.0
  %2536 = vmatmul.mubr.f32.gmra.mrb[0].mxu0 %v230
  %v2537 = vpop.f32.mrb[0].mxu0
  %v2538 = vadd.f32 0.0, %v2537
  %v2539 = vpop.f32.mrb[0].mxu0
  %v2540 = vadd.f32 0.0, %v2539
  %2541 = vmatprep.mubr.f32.mxu0 0.0
  %2542 = vmatmul.mubr.f32.gmra.mrb[0].mxu0 %v233
  %v2543 = vpop.f32.mrb[0].mxu0
  %v2544 = vadd.f32 0.0, %v2543
  %v2545 = vpop.f32.mrb[0].mxu0
  %v2546 = vadd.f32 0.0, %v2545
  %2547 = vmatprep.mubr.f32.mxu0 0.0
  %2548 = vmatmul.mubr.f32.gmra.mrb[0].mxu0 %v236
  %v2549 = vpop.f32.mrb[0].mxu0
  %v2550 = vadd.f32 0.0, %v2549
  %v2551 = vpop.f32.mrb[0].mxu0
  %v2552 = vadd.f32 0.0, %v2551
  %2553 = vmatprep.mubr.f32.mxu0 0.0
  %2554 = vmatmul.mubr.f32.gmra.mrb[0].mxu0 %v239
  %v2555 = vpop.f32.mrb[0].mxu0
  %v2556 = vadd.f32 0.0, %v2555
  %v2557 = vpop.f32.mrb[0].mxu0
  %v2558 = vadd.f32 0.0, %v2557
  %2559 = vdwg.mxu0
  %2560 = vmatprep.subr.mxu0 %v300
  %2561 = vmatpush1.msra.mxu0 %v298
  %2562 = vmatprep.subr.mxu0 0.0
  %2563 = vmatpush1.msra.mxu0 0.0
  %2564 = vmatprep.subr.mxu0 0.0
  %2565 = vmatpush1.msra.mxu0 0.0
  %2566 = vmatprep.subr.mxu0 0.0
  %2567 = vmatpush1.msra.mxu0 0.0
  %2568 = vmatprep.subr.mxu0 0.0
  %2569 = vmatpush1.msra.mxu0 0.0
  %2570 = vmatprep.subr.mxu0 0.0
  %2571 = vmatpush1.msra.mxu0 0.0
  %2572 = vmatprep.subr.mxu0 0.0
  %2573 = vmatpush1.msra.mxu0 0.0
  %2574 = vmatprep.subr.mxu0 0.0
  %2575 = vmatpush1.msra.mxu0 0.0
  %2576 = vmatprep.subr.mxu0 0.0
  %2577 = vmatpush1.msra.mxu0 0.0
  %2578 = vmatprep.subr.mxu0 0.0
  %2579 = vmatpush1.msra.mxu0 0.0
  %2580 = vmatprep.subr.mxu0 0.0
  %2581 = vmatpush1.msra.mxu0 0.0
  %2582 = vmatprep.subr.mxu0 0.0
  %2583 = vmatpush1.msra.mxu0 0.0
  %2584 = vmatprep.subr.mxu0 0.0
  %2585 = vmatpush1.msra.mxu0 0.0
  %2586 = vmatprep.subr.mxu0 0.0
  %2587 = vmatpush1.msra.mxu0 0.0
  %2588 = vmatprep.subr.mxu0 0.0
  %2589 = vmatpush1.msra.mxu0 0.0
  %2590 = vmatprep.subr.mxu0 0.0
  %2591 = vmatpush1.msra.mxu0 0.0
  %2592 = vmatprep.subr.mxu0 0.0
  %2593 = vmatpush1.msra.mxu0 0.0
  %2594 = vmatprep.subr.mxu0 0.0
  %2595 = vmatpush1.msra.mxu0 0.0
  %2596 = vmatprep.subr.mxu0 0.0
  %2597 = vmatpush1.msra.mxu0 0.0
  %2598 = vmatprep.subr.mxu0 0.0
  %2599 = vmatpush1.msra.mxu0 0.0
  %2600 = vmatprep.subr.mxu0 0.0
  %2601 = vmatpush1.msra.mxu0 0.0
  %2602 = vmatprep.subr.mxu0 0.0
  %2603 = vmatpush1.msra.mxu0 0.0
  %2604 = vmatprep.subr.mxu0 0.0
  %2605 = vmatpush1.msra.mxu0 0.0
  %2606 = vmatprep.subr.mxu0 0.0
  %2607 = vmatpush1.msra.mxu0 0.0
  %2608 = vmatprep.subr.mxu0 0.0
  %2609 = vmatpush1.msra.mxu0 0.0
  %2610 = vmatprep.subr.mxu0 0.0
  %2611 = vmatpush1.msra.mxu0 0.0
  %2612 = vmatprep.subr.mxu0 0.0
  %2613 = vmatpush1.msra.mxu0 0.0
  %2614 = vmatprep.subr.mxu0 0.0
  %2615 = vmatpush1.msra.mxu0 0.0
  %2616 = vmatprep.subr.mxu0 0.0
  %2617 = vmatpush1.msra.mxu0 0.0
  %2618 = vmatprep.subr.mxu0 0.0
  %2619 = vmatpush1.msra.mxu0 0.0
  %2620 = vmatprep.subr.mxu0 0.0
  %2621 = vmatpush1.msra.mxu0 0.0
  %2622 = vmatprep.subr.mxu0 0.0
  %2623 = vmatpush1.msra.mxu0 0.0
  %2624 = vmatprep.mubr.f32.mxu0 0.0
  %2625 = vmatmul.mubr.f32.gmra.mrb[0].mxu0 %v194
  %v2626 = vpop.f32.mrb[0].mxu0
  %v2627 = vadd.f32 0.0, %v2626
  %v2628 = vpop.f32.mrb[0].mxu0
  %v2629 = vadd.f32 0.0, %v2628
  %2630 = vmatprep.mubr.f32.mxu0 0.0
  %2631 = vmatmul.mubr.f32.gmra.mrb[0].mxu0 %v197
  %v2632 = vpop.f32.mrb[0].mxu0
  %v2633 = vadd.f32 0.0, %v2632
  %v2634 = vpop.f32.mrb[0].mxu0
  %v2635 = vadd.f32 0.0, %v2634
  %2636 = vmatprep.mubr.f32.mxu0 0.0
  %2637 = vmatmul.mubr.f32.gmra.mrb[0].mxu0 %v200
  %v2638 = vpop.f32.mrb[0].mxu0
  %v2639 = vadd.f32 0.0, %v2638
  %v2640 = vpop.f32.mrb[0].mxu0
  %v2641 = vadd.f32 0.0, %v2640
  %2642 = vmatprep.mubr.f32.mxu0 0.0
  %2643 = vmatmul.mubr.f32.gmra.mrb[0].mxu0 %v203
  %v2644 = vpop.f32.mrb[0].mxu0
  %v2645 = vadd.f32 0.0, %v2644
  %v2646 = vpop.f32.mrb[0].mxu0
  %v2647 = vadd.f32 0.0, %v2646
  %2648 = vmatprep.mubr.f32.mxu0 0.0
  %2649 = vmatmul.mubr.f32.gmra.mrb[0].mxu0 %v206
  %v2650 = vpop.f32.mrb[0].mxu0
  %v2651 = vadd.f32 0.0, %v2650
  %v2652 = vpop.f32.mrb[0].mxu0
  %v2653 = vadd.f32 0.0, %v2652
  %2654 = vmatprep.mubr.f32.mxu0 0.0
  %2655 = vmatmul.mubr.f32.gmra.mrb[0].mxu0 %v209
  %v2656 = vpop.f32.mrb[0].mxu0
  %v2657 = vadd.f32 0.0, %v2656
  %v2658 = vpop.f32.mrb[0].mxu0
  %v2659 = vadd.f32 0.0, %v2658
  %2660 = vmatprep.mubr.f32.mxu0 0.0
  %2661 = vmatmul.mubr.f32.gmra.mrb[0].mxu0 %v212
  %v2662 = vpop.f32.mrb[0].mxu0
  %v2663 = vadd.f32 0.0, %v2662
  %v2664 = vpop.f32.mrb[0].mxu0
  %v2665 = vadd.f32 0.0, %v2664
  %2666 = vmatprep.mubr.f32.mxu0 0.0
  %2667 = vmatmul.mubr.f32.gmra.mrb[0].mxu0 %v215
  %v2668 = vpop.f32.mrb[0].mxu0
  %v2669 = vadd.f32 0.0, %v2668
  %v2670 = vpop.f32.mrb[0].mxu0
  %v2671 = vadd.f32 0.0, %v2670
  %2672 = vmatprep.mubr.f32.mxu0 0.0
  %2673 = vmatmul.mubr.f32.gmra.mrb[0].mxu0 %v218
  %v2674 = vpop.f32.mrb[0].mxu0
  %v2675 = vadd.f32 0.0, %v2674
  %v2676 = vpop.f32.mrb[0].mxu0
  %v2677 = vadd.f32 0.0, %v2676
  %2678 = vmatprep.mubr.f32.mxu0 0.0
  %2679 = vmatmul.mubr.f32.gmra.mrb[0].mxu0 %v221
  %v2680 = vpop.f32.mrb[0].mxu0
  %v2681 = vadd.f32 0.0, %v2680
  %v2682 = vpop.f32.mrb[0].mxu0
  %v2683 = vadd.f32 0.0, %v2682
  %2684 = vmatprep.mubr.f32.mxu0 0.0
  %2685 = vmatmul.mubr.f32.gmra.mrb[0].mxu0 %v224
  %v2686 = vpop.f32.mrb[0].mxu0
  %v2687 = vadd.f32 0.0, %v2686
  %v2688 = vpop.f32.mrb[0].mxu0
  %v2689 = vadd.f32 0.0, %v2688
  %2690 = vmatprep.mubr.f32.mxu0 0.0
  %2691 = vmatmul.mubr.f32.gmra.mrb[0].mxu0 %v227
  %v2692 = vpop.f32.mrb[0].mxu0
  %v2693 = vadd.f32 0.0, %v2692
  %v2694 = vpop.f32.mrb[0].mxu0
  %v2695 = vadd.f32 0.0, %v2694
  %2696 = vmatprep.mubr.f32.mxu0 0.0
  %2697 = vmatmul.mubr.f32.gmra.mrb[0].mxu0 %v230
  %v2698 = vpop.f32.mrb[0].mxu0
  %v2699 = vadd.f32 0.0, %v2698
  %v2700 = vpop.f32.mrb[0].mxu0
  %v2701 = vadd.f32 0.0, %v2700
  %2702 = vmatprep.mubr.f32.mxu0 0.0
  %2703 = vmatmul.mubr.f32.gmra.mrb[0].mxu0 %v233
  %v2704 = vpop.f32.mrb[0].mxu0
  %v2705 = vadd.f32 0.0, %v2704
  %v2706 = vpop.f32.mrb[0].mxu0
  %v2707 = vadd.f32 0.0, %v2706
  %2708 = vmatprep.mubr.f32.mxu0 0.0
  %2709 = vmatmul.mubr.f32.gmra.mrb[0].mxu0 %v236
  %v2710 = vpop.f32.mrb[0].mxu0
  %v2711 = vadd.f32 0.0, %v2710
  %v2712 = vpop.f32.mrb[0].mxu0
  %v2713 = vadd.f32 0.0, %v2712
  %2714 = vmatprep.mubr.f32.mxu0 0.0
  %2715 = vmatmul.mubr.f32.gmra.mrb[0].mxu0 %v239
  %v2716 = vpop.f32.mrb[0].mxu0
  %v2717 = vadd.f32 0.0, %v2716
  %v2718 = vpop.f32.mrb[0].mxu0
  %v2719 = vadd.f32 0.0, %v2718
  %2720 = vdwg.mxu0
  %2721 = vmatprep.subr.mxu0 %v304
  %2722 = vmatpush1.msra.mxu0 %v302
  %2723 = vmatprep.subr.mxu0 0.0
  %2724 = vmatpush1.msra.mxu0 0.0
  %2725 = vmatprep.subr.mxu0 0.0
  %2726 = vmatpush1.msra.mxu0 0.0
  %2727 = vmatprep.subr.mxu0 0.0
  %2728 = vmatpush1.msra.mxu0 0.0
  %2729 = vmatprep.subr.mxu0 0.0
  %2730 = vmatpush1.msra.mxu0 0.0
  %2731 = vmatprep.subr.mxu0 0.0
  %2732 = vmatpush1.msra.mxu0 0.0
  %2733 = vmatprep.subr.mxu0 0.0
  %2734 = vmatpush1.msra.mxu0 0.0
  %2735 = vmatprep.subr.mxu0 0.0
  %2736 = vmatpush1.msra.mxu0 0.0
  %2737 = vmatprep.subr.mxu0 0.0
  %2738 = vmatpush1.msra.mxu0 0.0
  %2739 = vmatprep.subr.mxu0 0.0
  %2740 = vmatpush1.msra.mxu0 0.0
  %2741 = vmatprep.subr.mxu0 0.0
  %2742 = vmatpush1.msra.mxu0 0.0
  %2743 = vmatprep.subr.mxu0 0.0
  %2744 = vmatpush1.msra.mxu0 0.0
  %2745 = vmatprep.subr.mxu0 0.0
  %2746 = vmatpush1.msra.mxu0 0.0
  %2747 = vmatprep.subr.mxu0 0.0
  %2748 = vmatpush1.msra.mxu0 0.0
  %2749 = vmatprep.subr.mxu0 0.0
  %2750 = vmatpush1.msra.mxu0 0.0
  %2751 = vmatprep.subr.mxu0 0.0
  %2752 = vmatpush1.msra.mxu0 0.0
  %2753 = vmatprep.subr.mxu0 0.0
  %2754 = vmatpush1.msra.mxu0 0.0
  %2755 = vmatprep.subr.mxu0 0.0
  %2756 = vmatpush1.msra.mxu0 0.0
  %2757 = vmatprep.subr.mxu0 0.0
  %2758 = vmatpush1.msra.mxu0 0.0
  %2759 = vmatprep.subr.mxu0 0.0
  %2760 = vmatpush1.msra.mxu0 0.0
  %2761 = vmatprep.subr.mxu0 0.0
  %2762 = vmatpush1.msra.mxu0 0.0
  %2763 = vmatprep.subr.mxu0 0.0
  %2764 = vmatpush1.msra.mxu0 0.0
  %2765 = vmatprep.subr.mxu0 0.0
  %2766 = vmatpush1.msra.mxu0 0.0
  %2767 = vmatprep.subr.mxu0 0.0
  %2768 = vmatpush1.msra.mxu0 0.0
  %2769 = vmatprep.subr.mxu0 0.0
  %2770 = vmatpush1.msra.mxu0 0.0
  %2771 = vmatprep.subr.mxu0 0.0
  %2772 = vmatpush1.msra.mxu0 0.0
  %2773 = vmatprep.subr.mxu0 0.0
  %2774 = vmatpush1.msra.mxu0 0.0
  %2775 = vmatprep.subr.mxu0 0.0
  %2776 = vmatpush1.msra.mxu0 0.0
  %2777 = vmatprep.subr.mxu0 0.0
  %2778 = vmatpush1.msra.mxu0 0.0
  %2779 = vmatprep.subr.mxu0 0.0
  %2780 = vmatpush1.msra.mxu0 0.0
  %2781 = vmatprep.subr.mxu0 0.0
  %2782 = vmatpush1.msra.mxu0 0.0
  %2783 = vmatprep.subr.mxu0 0.0
  %2784 = vmatpush1.msra.mxu0 0.0
  %2785 = vmatprep.mubr.f32.mxu0 0.0
  %2786 = vmatmul.mubr.f32.gmra.mrb[0].mxu0 %v194
  %v2787 = vpop.f32.mrb[0].mxu0
  %v2788 = vadd.f32 0.0, %v2787
  %v2789 = vpop.f32.mrb[0].mxu0
  %v2790 = vadd.f32 0.0, %v2789
  %2791 = vmatprep.mubr.f32.mxu0 0.0
  %2792 = vmatmul.mubr.f32.gmra.mrb[0].mxu0 %v197
  %v2793 = vpop.f32.mrb[0].mxu0
  %v2794 = vadd.f32 0.0, %v2793
  %v2795 = vpop.f32.mrb[0].mxu0
  %v2796 = vadd.f32 0.0, %v2795
  %2797 = vmatprep.mubr.f32.mxu0 0.0
  %2798 = vmatmul.mubr.f32.gmra.mrb[0].mxu0 %v200
  %v2799 = vpop.f32.mrb[0].mxu0
  %v2800 = vadd.f32 0.0, %v2799
  %v2801 = vpop.f32.mrb[0].mxu0
  %v2802 = vadd.f32 0.0, %v2801
  %2803 = vmatprep.mubr.f32.mxu0 0.0
  %2804 = vmatmul.mubr.f32.gmra.mrb[0].mxu0 %v203
  %v2805 = vpop.f32.mrb[0].mxu0
  %v2806 = vadd.f32 0.0, %v2805
  %v2807 = vpop.f32.mrb[0].mxu0
  %v2808 = vadd.f32 0.0, %v2807
  %2809 = vmatprep.mubr.f32.mxu0 0.0
  %2810 = vmatmul.mubr.f32.gmra.mrb[0].mxu0 %v206
  %v2811 = vpop.f32.mrb[0].mxu0
  %v2812 = vadd.f32 0.0, %v2811
  %v2813 = vpop.f32.mrb[0].mxu0
  %v2814 = vadd.f32 0.0, %v2813
  %2815 = vmatprep.mubr.f32.mxu0 0.0
  %2816 = vmatmul.mubr.f32.gmra.mrb[0].mxu0 %v209
  %v2817 = vpop.f32.mrb[0].mxu0
  %v2818 = vadd.f32 0.0, %v2817
  %v2819 = vpop.f32.mrb[0].mxu0
  %v2820 = vadd.f32 0.0, %v2819
  %2821 = vmatprep.mubr.f32.mxu0 0.0
  %2822 = vmatmul.mubr.f32.gmra.mrb[0].mxu0 %v212
  %v2823 = vpop.f32.mrb[0].mxu0
  %v2824 = vadd.f32 0.0, %v2823
  %v2825 = vpop.f32.mrb[0].mxu0
  %v2826 = vadd.f32 0.0, %v2825
  %2827 = vmatprep.mubr.f32.mxu0 0.0
  %2828 = vmatmul.mubr.f32.gmra.mrb[0].mxu0 %v215
  %v2829 = vpop.f32.mrb[0].mxu0
  %v2830 = vadd.f32 0.0, %v2829
  %v2831 = vpop.f32.mrb[0].mxu0
  %v2832 = vadd.f32 0.0, %v2831
  %2833 = vmatprep.mubr.f32.mxu0 0.0
  %2834 = vmatmul.mubr.f32.gmra.mrb[0].mxu0 %v218
  %v2835 = vpop.f32.mrb[0].mxu0
  %v2836 = vadd.f32 0.0, %v2835
  %v2837 = vpop.f32.mrb[0].mxu0
  %v2838 = vadd.f32 0.0, %v2837
  %2839 = vmatprep.mubr.f32.mxu0 0.0
  %2840 = vmatmul.mubr.f32.gmra.mrb[0].mxu0 %v221
  %v2841 = vpop.f32.mrb[0].mxu0
  %v2842 = vadd.f32 0.0, %v2841
  %v2843 = vpop.f32.mrb[0].mxu0
  %v2844 = vadd.f32 0.0, %v2843
  %2845 = vmatprep.mubr.f32.mxu0 0.0
  %2846 = vmatmul.mubr.f32.gmra.mrb[0].mxu0 %v224
  %v2847 = vpop.f32.mrb[0].mxu0
  %v2848 = vadd.f32 0.0, %v2847
  %v2849 = vpop.f32.mrb[0].mxu0
  %v2850 = vadd.f32 0.0, %v2849
  %2851 = vmatprep.mubr.f32.mxu0 0.0
  %2852 = vmatmul.mubr.f32.gmra.mrb[0].mxu0 %v227
  %v2853 = vpop.f32.mrb[0].mxu0
  %v2854 = vadd.f32 0.0, %v2853
  %v2855 = vpop.f32.mrb[0].mxu0
  %v2856 = vadd.f32 0.0, %v2855
  %2857 = vmatprep.mubr.f32.mxu0 0.0
  %2858 = vmatmul.mubr.f32.gmra.mrb[0].mxu0 %v230
  %v2859 = vpop.f32.mrb[0].mxu0
  %v2860 = vadd.f32 0.0, %v2859
  %v2861 = vpop.f32.mrb[0].mxu0
  %v2862 = vadd.f32 0.0, %v2861
  %2863 = vmatprep.mubr.f32.mxu0 0.0
  %2864 = vmatmul.mubr.f32.gmra.mrb[0].mxu0 %v233
  %v2865 = vpop.f32.mrb[0].mxu0
  %v2866 = vadd.f32 0.0, %v2865
  %v2867 = vpop.f32.mrb[0].mxu0
  %v2868 = vadd.f32 0.0, %v2867
  %2869 = vmatprep.mubr.f32.mxu0 0.0
  %2870 = vmatmul.mubr.f32.gmra.mrb[0].mxu0 %v236
  %v2871 = vpop.f32.mrb[0].mxu0
  %v2872 = vadd.f32 0.0, %v2871
  %v2873 = vpop.f32.mrb[0].mxu0
  %v2874 = vadd.f32 0.0, %v2873
  %2875 = vmatprep.mubr.f32.mxu0 0.0
  %2876 = vmatmul.mubr.f32.gmra.mrb[0].mxu0 %v239
  %v2877 = vpop.f32.mrb[0].mxu0
  %v2878 = vadd.f32 0.0, %v2877
  %v2879 = vpop.f32.mrb[0].mxu0
  %v2880 = vadd.f32 0.0, %v2879
  %2881 = vdwg.mxu0
  %v2882 = vmul.f32 %v373, 0.5
  %v2883 = vmul.f32 %v375, 0.5
  %v2884 = vmul.f32 %v534, 0.5
  %v2885 = vmul.f32 %v536, 0.5
  %v2886 = vmul.f32 %v695, 0.5
  %v2887 = vmul.f32 %v697, 0.5
  %v2888 = vmul.f32 %v856, 0.5
  %v2889 = vmul.f32 %v858, 0.5
  %v2890 = vmul.f32 %v1017, 0.5
  %v2891 = vmul.f32 %v1019, 0.5
  %v2892 = vmul.f32 %v1178, 0.5
  %v2893 = vmul.f32 %v1180, 0.5
  %v2894 = vmul.f32 %v1339, 0.5
  %v2895 = vmul.f32 %v1341, 0.5
  %v2896 = vmul.f32 %v1500, 0.5
  %v2897 = vmul.f32 %v1502, 0.5
  %v2898 = vmul.f32 %v1661, 0.5
  %v2899 = vmul.f32 %v1663, 0.5
  %v2900 = vmul.f32 %v1822, 0.5
  %v2901 = vmul.f32 %v1824, 0.5
  %v2902 = vmul.f32 %v1983, 0.5
  %v2903 = vmul.f32 %v1985, 0.5
  %v2904 = vmul.f32 %v2144, 0.5
  %v2905 = vmul.f32 %v2146, 0.5
  %v2906 = vmul.f32 %v2305, 0.5
  %v2907 = vmul.f32 %v2307, 0.5
  %v2908 = vmul.f32 %v2466, 0.5
  %v2909 = vmul.f32 %v2468, 0.5
  %v2910 = vmul.f32 %v2627, 0.5
  %v2911 = vmul.f32 %v2629, 0.5
  %v2912 = vmul.f32 %v2788, 0.5
  %v2913 = vmul.f32 %v2790, 0.5
  %v2914 = vmul.f32 %v379, 0.5
  %v2915 = vmul.f32 %v381, 0.5
  %v2916 = vmul.f32 %v540, 0.5
  %v2917 = vmul.f32 %v542, 0.5
  %v2918 = vmul.f32 %v701, 0.5
  %v2919 = vmul.f32 %v703, 0.5
  %v2920 = vmul.f32 %v862, 0.5
  %v2921 = vmul.f32 %v864, 0.5
  %v2922 = vmul.f32 %v1023, 0.5
  %v2923 = vmul.f32 %v1025, 0.5
  %v2924 = vmul.f32 %v1184, 0.5
  %v2925 = vmul.f32 %v1186, 0.5
  %v2926 = vmul.f32 %v1345, 0.5
  %v2927 = vmul.f32 %v1347, 0.5
  %v2928 = vmul.f32 %v1506, 0.5
  %v2929 = vmul.f32 %v1508, 0.5
  %v2930 = vmul.f32 %v1667, 0.5
  %v2931 = vmul.f32 %v1669, 0.5
  %v2932 = vmul.f32 %v1828, 0.5
  %v2933 = vmul.f32 %v1830, 0.5
  %v2934 = vmul.f32 %v1989, 0.5
  %v2935 = vmul.f32 %v1991, 0.5
  %v2936 = vmul.f32 %v2150, 0.5
  %v2937 = vmul.f32 %v2152, 0.5
  %v2938 = vmul.f32 %v2311, 0.5
  %v2939 = vmul.f32 %v2313, 0.5
  %v2940 = vmul.f32 %v2472, 0.5
  %v2941 = vmul.f32 %v2474, 0.5
  %v2942 = vmul.f32 %v2633, 0.5
  %v2943 = vmul.f32 %v2635, 0.5
  %v2944 = vmul.f32 %v2794, 0.5
  %v2945 = vmul.f32 %v2796, 0.5
  %v2946 = vmul.f32 %v385, 0.5
  %v2947 = vmul.f32 %v387, 0.5
  %v2948 = vmul.f32 %v546, 0.5
  %v2949 = vmul.f32 %v548, 0.5
  %v2950 = vmul.f32 %v707, 0.5
  %v2951 = vmul.f32 %v709, 0.5
  %v2952 = vmul.f32 %v868, 0.5
  %v2953 = vmul.f32 %v870, 0.5
  %v2954 = vmul.f32 %v1029, 0.5
  %v2955 = vmul.f32 %v1031, 0.5
  %v2956 = vmul.f32 %v1190, 0.5
  %v2957 = vmul.f32 %v1192, 0.5
  %v2958 = vmul.f32 %v1351, 0.5
  %v2959 = vmul.f32 %v1353, 0.5
  %v2960 = vmul.f32 %v1512, 0.5
  %v2961 = vmul.f32 %v1514, 0.5
  %v2962 = vmul.f32 %v1673, 0.5
  %v2963 = vmul.f32 %v1675, 0.5
  %v2964 = vmul.f32 %v1834, 0.5
  %v2965 = vmul.f32 %v1836, 0.5
  %v2966 = vmul.f32 %v1995, 0.5
  %v2967 = vmul.f32 %v1997, 0.5
  %v2968 = vmul.f32 %v2156, 0.5
  %v2969 = vmul.f32 %v2158, 0.5
  %v2970 = vmul.f32 %v2317, 0.5
  %v2971 = vmul.f32 %v2319, 0.5
  %v2972 = vmul.f32 %v2478, 0.5
  %v2973 = vmul.f32 %v2480, 0.5
  %v2974 = vmul.f32 %v2639, 0.5
  %v2975 = vmul.f32 %v2641, 0.5
  %v2976 = vmul.f32 %v2800, 0.5
  %v2977 = vmul.f32 %v2802, 0.5
  %v2978 = vmul.f32 %v391, 0.5
  %v2979 = vmul.f32 %v393, 0.5
  %v2980 = vmul.f32 %v552, 0.5
  %v2981 = vmul.f32 %v554, 0.5
  %v2982 = vmul.f32 %v713, 0.5
  %v2983 = vmul.f32 %v715, 0.5
  %v2984 = vmul.f32 %v874, 0.5
  %v2985 = vmul.f32 %v876, 0.5
  %v2986 = vmul.f32 %v1035, 0.5
  %v2987 = vmul.f32 %v1037, 0.5
  %v2988 = vmul.f32 %v1196, 0.5
  %v2989 = vmul.f32 %v1198, 0.5
  %v2990 = vmul.f32 %v1357, 0.5
  %v2991 = vmul.f32 %v1359, 0.5
  %v2992 = vmul.f32 %v1518, 0.5
  %v2993 = vmul.f32 %v1520, 0.5
  %v2994 = vmul.f32 %v1679, 0.5
  %v2995 = vmul.f32 %v1681, 0.5
  %v2996 = vmul.f32 %v1840, 0.5
  %v2997 = vmul.f32 %v1842, 0.5
  %v2998 = vmul.f32 %v2001, 0.5
  %v2999 = vmul.f32 %v2003, 0.5
  %v3000 = vmul.f32 %v2162, 0.5
  %v3001 = vmul.f32 %v2164, 0.5
  %v3002 = vmul.f32 %v2323, 0.5
  %v3003 = vmul.f32 %v2325, 0.5
  %v3004 = vmul.f32 %v2484, 0.5
  %v3005 = vmul.f32 %v2486, 0.5
  %v3006 = vmul.f32 %v2645, 0.5
  %v3007 = vmul.f32 %v2647, 0.5
  %v3008 = vmul.f32 %v2806, 0.5
  %v3009 = vmul.f32 %v2808, 0.5
  %v3010 = vmul.f32 %v397, 0.5
  %v3011 = vmul.f32 %v399, 0.5
  %v3012 = vmul.f32 %v558, 0.5
  %v3013 = vmul.f32 %v560, 0.5
  %v3014 = vmul.f32 %v719, 0.5
  %v3015 = vmul.f32 %v721, 0.5
  %v3016 = vmul.f32 %v880, 0.5
  %v3017 = vmul.f32 %v882, 0.5
  %v3018 = vmul.f32 %v1041, 0.5
  %v3019 = vmul.f32 %v1043, 0.5
  %v3020 = vmul.f32 %v1202, 0.5
  %v3021 = vmul.f32 %v1204, 0.5
  %v3022 = vmul.f32 %v1363, 0.5
  %v3023 = vmul.f32 %v1365, 0.5
  %v3024 = vmul.f32 %v1524, 0.5
  %v3025 = vmul.f32 %v1526, 0.5
  %v3026 = vmul.f32 %v1685, 0.5
  %v3027 = vmul.f32 %v1687, 0.5
  %v3028 = vmul.f32 %v1846, 0.5
  %v3029 = vmul.f32 %v1848, 0.5
  %v3030 = vmul.f32 %v2007, 0.5
  %v3031 = vmul.f32 %v2009, 0.5
  %v3032 = vmul.f32 %v2168, 0.5
  %v3033 = vmul.f32 %v2170, 0.5
  %v3034 = vmul.f32 %v2329, 0.5
  %v3035 = vmul.f32 %v2331, 0.5
  %v3036 = vmul.f32 %v2490, 0.5
  %v3037 = vmul.f32 %v2492, 0.5
  %v3038 = vmul.f32 %v2651, 0.5
  %v3039 = vmul.f32 %v2653, 0.5
  %v3040 = vmul.f32 %v2812, 0.5
  %v3041 = vmul.f32 %v2814, 0.5
  %v3042 = vmul.f32 %v403, 0.5
  %v3043 = vmul.f32 %v405, 0.5
  %v3044 = vmul.f32 %v564, 0.5
  %v3045 = vmul.f32 %v566, 0.5
  %v3046 = vmul.f32 %v725, 0.5
  %v3047 = vmul.f32 %v727, 0.5
  %v3048 = vmul.f32 %v886, 0.5
  %v3049 = vmul.f32 %v888, 0.5
  %v3050 = vmul.f32 %v1047, 0.5
  %v3051 = vmul.f32 %v1049, 0.5
  %v3052 = vmul.f32 %v1208, 0.5
  %v3053 = vmul.f32 %v1210, 0.5
  %v3054 = vmul.f32 %v1369, 0.5
  %v3055 = vmul.f32 %v1371, 0.5
  %v3056 = vmul.f32 %v1530, 0.5
  %v3057 = vmul.f32 %v1532, 0.5
  %v3058 = vmul.f32 %v1691, 0.5
  %v3059 = vmul.f32 %v1693, 0.5
  %v3060 = vmul.f32 %v1852, 0.5
  %v3061 = vmul.f32 %v1854, 0.5
  %v3062 = vmul.f32 %v2013, 0.5
  %v3063 = vmul.f32 %v2015, 0.5
  %v3064 = vmul.f32 %v2174, 0.5
  %v3065 = vmul.f32 %v2176, 0.5
  %v3066 = vmul.f32 %v2335, 0.5
  %v3067 = vmul.f32 %v2337, 0.5
  %v3068 = vmul.f32 %v2496, 0.5
  %v3069 = vmul.f32 %v2498, 0.5
  %v3070 = vmul.f32 %v2657, 0.5
  %v3071 = vmul.f32 %v2659, 0.5
  %v3072 = vmul.f32 %v2818, 0.5
  %v3073 = vmul.f32 %v2820, 0.5
  %v3074 = vmul.f32 %v409, 0.5
  %v3075 = vmul.f32 %v411, 0.5
  %v3076 = vmul.f32 %v570, 0.5
  %v3077 = vmul.f32 %v572, 0.5
  %v3078 = vmul.f32 %v731, 0.5
  %v3079 = vmul.f32 %v733, 0.5
  %v3080 = vmul.f32 %v892, 0.5
  %v3081 = vmul.f32 %v894, 0.5
  %v3082 = vmul.f32 %v1053, 0.5
  %v3083 = vmul.f32 %v1055, 0.5
  %v3084 = vmul.f32 %v1214, 0.5
  %v3085 = vmul.f32 %v1216, 0.5
  %v3086 = vmul.f32 %v1375, 0.5
  %v3087 = vmul.f32 %v1377, 0.5
  %v3088 = vmul.f32 %v1536, 0.5
  %v3089 = vmul.f32 %v1538, 0.5
  %v3090 = vmul.f32 %v1697, 0.5
  %v3091 = vmul.f32 %v1699, 0.5
  %v3092 = vmul.f32 %v1858, 0.5
  %v3093 = vmul.f32 %v1860, 0.5
  %v3094 = vmul.f32 %v2019, 0.5
  %v3095 = vmul.f32 %v2021, 0.5
  %v3096 = vmul.f32 %v2180, 0.5
  %v3097 = vmul.f32 %v2182, 0.5
  %v3098 = vmul.f32 %v2341, 0.5
  %v3099 = vmul.f32 %v2343, 0.5
  %v3100 = vmul.f32 %v2502, 0.5
  %v3101 = vmul.f32 %v2504, 0.5
  %v3102 = vmul.f32 %v2663, 0.5
  %v3103 = vmul.f32 %v2665, 0.5
  %v3104 = vmul.f32 %v2824, 0.5
  %v3105 = vmul.f32 %v2826, 0.5
  %v3106 = vmul.f32 %v415, 0.5
  %v3107 = vmul.f32 %v417, 0.5
  %v3108 = vmul.f32 %v576, 0.5
  %v3109 = vmul.f32 %v578, 0.5
  %v3110 = vmul.f32 %v737, 0.5
  %v3111 = vmul.f32 %v739, 0.5
  %v3112 = vmul.f32 %v898, 0.5
  %v3113 = vmul.f32 %v900, 0.5
  %v3114 = vmul.f32 %v1059, 0.5
  %v3115 = vmul.f32 %v1061, 0.5
  %v3116 = vmul.f32 %v1220, 0.5
  %v3117 = vmul.f32 %v1222, 0.5
  %v3118 = vmul.f32 %v1381, 0.5
  %v3119 = vmul.f32 %v1383, 0.5
  %v3120 = vmul.f32 %v1542, 0.5
  %v3121 = vmul.f32 %v1544, 0.5
  %v3122 = vmul.f32 %v1703, 0.5
  %v3123 = vmul.f32 %v1705, 0.5
  %v3124 = vmul.f32 %v1864, 0.5
  %v3125 = vmul.f32 %v1866, 0.5
  %v3126 = vmul.f32 %v2025, 0.5
  %v3127 = vmul.f32 %v2027, 0.5
  %v3128 = vmul.f32 %v2186, 0.5
  %v3129 = vmul.f32 %v2188, 0.5
  %v3130 = vmul.f32 %v2347, 0.5
  %v3131 = vmul.f32 %v2349, 0.5
  %v3132 = vmul.f32 %v2508, 0.5
  %v3133 = vmul.f32 %v2510, 0.5
  %v3134 = vmul.f32 %v2669, 0.5
  %v3135 = vmul.f32 %v2671, 0.5
  %v3136 = vmul.f32 %v2830, 0.5
  %v3137 = vmul.f32 %v2832, 0.5
  %v3138 = vmul.f32 %v421, 0.5
  %v3139 = vmul.f32 %v423, 0.5
  %v3140 = vmul.f32 %v582, 0.5
  %v3141 = vmul.f32 %v584, 0.5
  %v3142 = vmul.f32 %v743, 0.5
  %v3143 = vmul.f32 %v745, 0.5
  %v3144 = vmul.f32 %v904, 0.5
  %v3145 = vmul.f32 %v906, 0.5
  %v3146 = vmul.f32 %v1065, 0.5
  %v3147 = vmul.f32 %v1067, 0.5
  %v3148 = vmul.f32 %v1226, 0.5
  %v3149 = vmul.f32 %v1228, 0.5
  %v3150 = vmul.f32 %v1387, 0.5
  %v3151 = vmul.f32 %v1389, 0.5
  %v3152 = vmul.f32 %v1548, 0.5
  %v3153 = vmul.f32 %v1550, 0.5
  %v3154 = vmul.f32 %v1709, 0.5
  %v3155 = vmul.f32 %v1711, 0.5
  %v3156 = vmul.f32 %v1870, 0.5
  %v3157 = vmul.f32 %v1872, 0.5
  %v3158 = vmul.f32 %v2031, 0.5
  %v3159 = vmul.f32 %v2033, 0.5
  %v3160 = vmul.f32 %v2192, 0.5
  %v3161 = vmul.f32 %v2194, 0.5
  %v3162 = vmul.f32 %v2353, 0.5
  %v3163 = vmul.f32 %v2355, 0.5
  %v3164 = vmul.f32 %v2514, 0.5
  %v3165 = vmul.f32 %v2516, 0.5
  %v3166 = vmul.f32 %v2675, 0.5
  %v3167 = vmul.f32 %v2677, 0.5
  %v3168 = vmul.f32 %v2836, 0.5
  %v3169 = vmul.f32 %v2838, 0.5
  %v3170 = vmul.f32 %v427, 0.5
  %v3171 = vmul.f32 %v429, 0.5
  %v3172 = vmul.f32 %v588, 0.5
  %v3173 = vmul.f32 %v590, 0.5
  %v3174 = vmul.f32 %v749, 0.5
  %v3175 = vmul.f32 %v751, 0.5
  %v3176 = vmul.f32 %v910, 0.5
  %v3177 = vmul.f32 %v912, 0.5
  %v3178 = vmul.f32 %v1071, 0.5
  %v3179 = vmul.f32 %v1073, 0.5
  %v3180 = vmul.f32 %v1232, 0.5
  %v3181 = vmul.f32 %v1234, 0.5
  %v3182 = vmul.f32 %v1393, 0.5
  %v3183 = vmul.f32 %v1395, 0.5
  %v3184 = vmul.f32 %v1554, 0.5
  %v3185 = vmul.f32 %v1556, 0.5
  %v3186 = vmul.f32 %v1715, 0.5
  %v3187 = vmul.f32 %v1717, 0.5
  %v3188 = vmul.f32 %v1876, 0.5
  %v3189 = vmul.f32 %v1878, 0.5
  %v3190 = vmul.f32 %v2037, 0.5
  %v3191 = vmul.f32 %v2039, 0.5
  %v3192 = vmul.f32 %v2198, 0.5
  %v3193 = vmul.f32 %v2200, 0.5
  %v3194 = vmul.f32 %v2359, 0.5
  %v3195 = vmul.f32 %v2361, 0.5
  %v3196 = vmul.f32 %v2520, 0.5
  %v3197 = vmul.f32 %v2522, 0.5
  %v3198 = vmul.f32 %v2681, 0.5
  %v3199 = vmul.f32 %v2683, 0.5
  %v3200 = vmul.f32 %v2842, 0.5
  %v3201 = vmul.f32 %v2844, 0.5
  %v3202 = vmul.f32 %v433, 0.5
  %v3203 = vmul.f32 %v435, 0.5
  %v3204 = vmul.f32 %v594, 0.5
  %v3205 = vmul.f32 %v596, 0.5
  %v3206 = vmul.f32 %v755, 0.5
  %v3207 = vmul.f32 %v757, 0.5
  %v3208 = vmul.f32 %v916, 0.5
  %v3209 = vmul.f32 %v918, 0.5
  %v3210 = vmul.f32 %v1077, 0.5
  %v3211 = vmul.f32 %v1079, 0.5
  %v3212 = vmul.f32 %v1238, 0.5
  %v3213 = vmul.f32 %v1240, 0.5
  %v3214 = vmul.f32 %v1399, 0.5
  %v3215 = vmul.f32 %v1401, 0.5
  %v3216 = vmul.f32 %v1560, 0.5
  %v3217 = vmul.f32 %v1562, 0.5
  %v3218 = vmul.f32 %v1721, 0.5
  %v3219 = vmul.f32 %v1723, 0.5
  %v3220 = vmul.f32 %v1882, 0.5
  %v3221 = vmul.f32 %v1884, 0.5
  %v3222 = vmul.f32 %v2043, 0.5
  %v3223 = vmul.f32 %v2045, 0.5
  %v3224 = vmul.f32 %v2204, 0.5
  %v3225 = vmul.f32 %v2206, 0.5
  %v3226 = vmul.f32 %v2365, 0.5
  %v3227 = vmul.f32 %v2367, 0.5
  %v3228 = vmul.f32 %v2526, 0.5
  %v3229 = vmul.f32 %v2528, 0.5
  %v3230 = vmul.f32 %v2687, 0.5
  %v3231 = vmul.f32 %v2689, 0.5
  %v3232 = vmul.f32 %v2848, 0.5
  %v3233 = vmul.f32 %v2850, 0.5
  %v3234 = vmul.f32 %v439, 0.5
  %v3235 = vmul.f32 %v441, 0.5
  %v3236 = vmul.f32 %v600, 0.5
  %v3237 = vmul.f32 %v602, 0.5
  %v3238 = vmul.f32 %v761, 0.5
  %v3239 = vmul.f32 %v763, 0.5
  %v3240 = vmul.f32 %v922, 0.5
  %v3241 = vmul.f32 %v924, 0.5
  %v3242 = vmul.f32 %v1083, 0.5
  %v3243 = vmul.f32 %v1085, 0.5
  %v3244 = vmul.f32 %v1244, 0.5
  %v3245 = vmul.f32 %v1246, 0.5
  %v3246 = vmul.f32 %v1405, 0.5
  %v3247 = vmul.f32 %v1407, 0.5
  %v3248 = vmul.f32 %v1566, 0.5
  %v3249 = vmul.f32 %v1568, 0.5
  %v3250 = vmul.f32 %v1727, 0.5
  %v3251 = vmul.f32 %v1729, 0.5
  %v3252 = vmul.f32 %v1888, 0.5
  %v3253 = vmul.f32 %v1890, 0.5
  %v3254 = vmul.f32 %v2049, 0.5
  %v3255 = vmul.f32 %v2051, 0.5
  %v3256 = vmul.f32 %v2210, 0.5
  %v3257 = vmul.f32 %v2212, 0.5
  %v3258 = vmul.f32 %v2371, 0.5
  %v3259 = vmul.f32 %v2373, 0.5
  %v3260 = vmul.f32 %v2532, 0.5
  %v3261 = vmul.f32 %v2534, 0.5
  %v3262 = vmul.f32 %v2693, 0.5
  %v3263 = vmul.f32 %v2695, 0.5
  %v3264 = vmul.f32 %v2854, 0.5
  %v3265 = vmul.f32 %v2856, 0.5
  %v3266 = vmul.f32 %v445, 0.5
  %v3267 = vmul.f32 %v447, 0.5
  %v3268 = vmul.f32 %v606, 0.5
  %v3269 = vmul.f32 %v608, 0.5
  %v3270 = vmul.f32 %v767, 0.5
  %v3271 = vmul.f32 %v769, 0.5
  %v3272 = vmul.f32 %v928, 0.5
  %v3273 = vmul.f32 %v930, 0.5
  %v3274 = vmul.f32 %v1089, 0.5
  %v3275 = vmul.f32 %v1091, 0.5
  %v3276 = vmul.f32 %v1250, 0.5
  %v3277 = vmul.f32 %v1252, 0.5
  %v3278 = vmul.f32 %v1411, 0.5
  %v3279 = vmul.f32 %v1413, 0.5
  %v3280 = vmul.f32 %v1572, 0.5
  %v3281 = vmul.f32 %v1574, 0.5
  %v3282 = vmul.f32 %v1733, 0.5
  %v3283 = vmul.f32 %v1735, 0.5
  %v3284 = vmul.f32 %v1894, 0.5
  %v3285 = vmul.f32 %v1896, 0.5
  %v3286 = vmul.f32 %v2055, 0.5
  %v3287 = vmul.f32 %v2057, 0.5
  %v3288 = vmul.f32 %v2216, 0.5
  %v3289 = vmul.f32 %v2218, 0.5
  %v3290 = vmul.f32 %v2377, 0.5
  %v3291 = vmul.f32 %v2379, 0.5
  %v3292 = vmul.f32 %v2538, 0.5
  %v3293 = vmul.f32 %v2540, 0.5
  %v3294 = vmul.f32 %v2699, 0.5
  %v3295 = vmul.f32 %v2701, 0.5
  %v3296 = vmul.f32 %v2860, 0.5
  %v3297 = vmul.f32 %v2862, 0.5
  %v3298 = vmul.f32 %v451, 0.5
  %v3299 = vmul.f32 %v453, 0.5
  %v3300 = vmul.f32 %v612, 0.5
  %v3301 = vmul.f32 %v614, 0.5
  %v3302 = vmul.f32 %v773, 0.5
  %v3303 = vmul.f32 %v775, 0.5
  %v3304 = vmul.f32 %v934, 0.5
  %v3305 = vmul.f32 %v936, 0.5
  %v3306 = vmul.f32 %v1095, 0.5
  %v3307 = vmul.f32 %v1097, 0.5
  %v3308 = vmul.f32 %v1256, 0.5
  %v3309 = vmul.f32 %v1258, 0.5
  %v3310 = vmul.f32 %v1417, 0.5
  %v3311 = vmul.f32 %v1419, 0.5
  %v3312 = vmul.f32 %v1578, 0.5
  %v3313 = vmul.f32 %v1580, 0.5
  %v3314 = vmul.f32 %v1739, 0.5
  %v3315 = vmul.f32 %v1741, 0.5
  %v3316 = vmul.f32 %v1900, 0.5
  %v3317 = vmul.f32 %v1902, 0.5
  %v3318 = vmul.f32 %v2061, 0.5
  %v3319 = vmul.f32 %v2063, 0.5
  %v3320 = vmul.f32 %v2222, 0.5
  %v3321 = vmul.f32 %v2224, 0.5
  %v3322 = vmul.f32 %v2383, 0.5
  %v3323 = vmul.f32 %v2385, 0.5
  %v3324 = vmul.f32 %v2544, 0.5
  %v3325 = vmul.f32 %v2546, 0.5
  %v3326 = vmul.f32 %v2705, 0.5
  %v3327 = vmul.f32 %v2707, 0.5
  %v3328 = vmul.f32 %v2866, 0.5
  %v3329 = vmul.f32 %v2868, 0.5
  %v3330 = vmul.f32 %v457, 0.5
  %v3331 = vmul.f32 %v459, 0.5
  %v3332 = vmul.f32 %v618, 0.5
  %v3333 = vmul.f32 %v620, 0.5
  %v3334 = vmul.f32 %v779, 0.5
  %v3335 = vmul.f32 %v781, 0.5
  %v3336 = vmul.f32 %v940, 0.5
  %v3337 = vmul.f32 %v942, 0.5
  %v3338 = vmul.f32 %v1101, 0.5
  %v3339 = vmul.f32 %v1103, 0.5
  %v3340 = vmul.f32 %v1262, 0.5
  %v3341 = vmul.f32 %v1264, 0.5
  %v3342 = vmul.f32 %v1423, 0.5
  %v3343 = vmul.f32 %v1425, 0.5
  %v3344 = vmul.f32 %v1584, 0.5
  %v3345 = vmul.f32 %v1586, 0.5
  %v3346 = vmul.f32 %v1745, 0.5
  %v3347 = vmul.f32 %v1747, 0.5
  %v3348 = vmul.f32 %v1906, 0.5
  %v3349 = vmul.f32 %v1908, 0.5
  %v3350 = vmul.f32 %v2067, 0.5
  %v3351 = vmul.f32 %v2069, 0.5
  %v3352 = vmul.f32 %v2228, 0.5
  %v3353 = vmul.f32 %v2230, 0.5
  %v3354 = vmul.f32 %v2389, 0.5
  %v3355 = vmul.f32 %v2391, 0.5
  %v3356 = vmul.f32 %v2550, 0.5
  %v3357 = vmul.f32 %v2552, 0.5
  %v3358 = vmul.f32 %v2711, 0.5
  %v3359 = vmul.f32 %v2713, 0.5
  %v3360 = vmul.f32 %v2872, 0.5
  %v3361 = vmul.f32 %v2874, 0.5
  %v3362 = vmul.f32 %v463, 0.5
  %v3363 = vmul.f32 %v465, 0.5
  %v3364 = vmul.f32 %v624, 0.5
  %v3365 = vmul.f32 %v626, 0.5
  %v3366 = vmul.f32 %v785, 0.5
  %v3367 = vmul.f32 %v787, 0.5
  %v3368 = vmul.f32 %v946, 0.5
  %v3369 = vmul.f32 %v948, 0.5
  %v3370 = vmul.f32 %v1107, 0.5
  %v3371 = vmul.f32 %v1109, 0.5
  %v3372 = vmul.f32 %v1268, 0.5
  %v3373 = vmul.f32 %v1270, 0.5
  %v3374 = vmul.f32 %v1429, 0.5
  %v3375 = vmul.f32 %v1431, 0.5
  %v3376 = vmul.f32 %v1590, 0.5
  %v3377 = vmul.f32 %v1592, 0.5
  %v3378 = vmul.f32 %v1751, 0.5
  %v3379 = vmul.f32 %v1753, 0.5
  %v3380 = vmul.f32 %v1912, 0.5
  %v3381 = vmul.f32 %v1914, 0.5
  %v3382 = vmul.f32 %v2073, 0.5
  %v3383 = vmul.f32 %v2075, 0.5
  %v3384 = vmul.f32 %v2234, 0.5
  %v3385 = vmul.f32 %v2236, 0.5
  %v3386 = vmul.f32 %v2395, 0.5
  %v3387 = vmul.f32 %v2397, 0.5
  %v3388 = vmul.f32 %v2556, 0.5
  %v3389 = vmul.f32 %v2558, 0.5
  %v3390 = vmul.f32 %v2717, 0.5
  %v3391 = vmul.f32 %v2719, 0.5
  %v3392 = vmul.f32 %v2878, 0.5
  %v3393 = vmul.f32 %v2880, 0.5
  %v3394 = vmul.f32 %v373, 0.70710677
  %v3395 = vmul.f32 %v375, 0.70710677
  %v3396 = vmul.f32 %v534, 0.70710677
  %v3397 = vmul.f32 %v536, 0.70710677
  %v3398 = vmul.f32 %v695, 0.70710677
  %v3399 = vmul.f32 %v697, 0.70710677
  %v3400 = vmul.f32 %v856, 0.70710677
  %v3401 = vmul.f32 %v858, 0.70710677
  %v3402 = vmul.f32 %v1017, 0.70710677
  %v3403 = vmul.f32 %v1019, 0.70710677
  %v3404 = vmul.f32 %v1178, 0.70710677
  %v3405 = vmul.f32 %v1180, 0.70710677
  %v3406 = vmul.f32 %v1339, 0.70710677
  %v3407 = vmul.f32 %v1341, 0.70710677
  %v3408 = vmul.f32 %v1500, 0.70710677
  %v3409 = vmul.f32 %v1502, 0.70710677
  %v3410 = vmul.f32 %v1661, 0.70710677
  %v3411 = vmul.f32 %v1663, 0.70710677
  %v3412 = vmul.f32 %v1822, 0.70710677
  %v3413 = vmul.f32 %v1824, 0.70710677
  %v3414 = vmul.f32 %v1983, 0.70710677
  %v3415 = vmul.f32 %v1985, 0.70710677
  %v3416 = vmul.f32 %v2144, 0.70710677
  %v3417 = vmul.f32 %v2146, 0.70710677
  %v3418 = vmul.f32 %v2305, 0.70710677
  %v3419 = vmul.f32 %v2307, 0.70710677
  %v3420 = vmul.f32 %v2466, 0.70710677
  %v3421 = vmul.f32 %v2468, 0.70710677
  %v3422 = vmul.f32 %v2627, 0.70710677
  %v3423 = vmul.f32 %v2629, 0.70710677
  %v3424 = vmul.f32 %v2788, 0.70710677
  %v3425 = vmul.f32 %v2790, 0.70710677
  %v3426 = vmul.f32 %v379, 0.70710677
  %v3427 = vmul.f32 %v381, 0.70710677
  %v3428 = vmul.f32 %v540, 0.70710677
  %v3429 = vmul.f32 %v542, 0.70710677
  %v3430 = vmul.f32 %v701, 0.70710677
  %v3431 = vmul.f32 %v703, 0.70710677
  %v3432 = vmul.f32 %v862, 0.70710677
  %v3433 = vmul.f32 %v864, 0.70710677
  %v3434 = vmul.f32 %v1023, 0.70710677
  %v3435 = vmul.f32 %v1025, 0.70710677
  %v3436 = vmul.f32 %v1184, 0.70710677
  %v3437 = vmul.f32 %v1186, 0.70710677
  %v3438 = vmul.f32 %v1345, 0.70710677
  %v3439 = vmul.f32 %v1347, 0.70710677
  %v3440 = vmul.f32 %v1506, 0.70710677
  %v3441 = vmul.f32 %v1508, 0.70710677
  %v3442 = vmul.f32 %v1667, 0.70710677
  %v3443 = vmul.f32 %v1669, 0.70710677
  %v3444 = vmul.f32 %v1828, 0.70710677
  %v3445 = vmul.f32 %v1830, 0.70710677
  %v3446 = vmul.f32 %v1989, 0.70710677
  %v3447 = vmul.f32 %v1991, 0.70710677
  %v3448 = vmul.f32 %v2150, 0.70710677
  %v3449 = vmul.f32 %v2152, 0.70710677
  %v3450 = vmul.f32 %v2311, 0.70710677
  %v3451 = vmul.f32 %v2313, 0.70710677
  %v3452 = vmul.f32 %v2472, 0.70710677
  %v3453 = vmul.f32 %v2474, 0.70710677
  %v3454 = vmul.f32 %v2633, 0.70710677
  %v3455 = vmul.f32 %v2635, 0.70710677
  %v3456 = vmul.f32 %v2794, 0.70710677
  %v3457 = vmul.f32 %v2796, 0.70710677
  %v3458 = vmul.f32 %v385, 0.70710677
  %v3459 = vmul.f32 %v387, 0.70710677
  %v3460 = vmul.f32 %v546, 0.70710677
  %v3461 = vmul.f32 %v548, 0.70710677
  %v3462 = vmul.f32 %v707, 0.70710677
  %v3463 = vmul.f32 %v709, 0.70710677
  %v3464 = vmul.f32 %v868, 0.70710677
  %v3465 = vmul.f32 %v870, 0.70710677
  %v3466 = vmul.f32 %v1029, 0.70710677
  %v3467 = vmul.f32 %v1031, 0.70710677
  %v3468 = vmul.f32 %v1190, 0.70710677
  %v3469 = vmul.f32 %v1192, 0.70710677
  %v3470 = vmul.f32 %v1351, 0.70710677
  %v3471 = vmul.f32 %v1353, 0.70710677
  %v3472 = vmul.f32 %v1512, 0.70710677
  %v3473 = vmul.f32 %v1514, 0.70710677
  %v3474 = vmul.f32 %v1673, 0.70710677
  %v3475 = vmul.f32 %v1675, 0.70710677
  %v3476 = vmul.f32 %v1834, 0.70710677
  %v3477 = vmul.f32 %v1836, 0.70710677
  %v3478 = vmul.f32 %v1995, 0.70710677
  %v3479 = vmul.f32 %v1997, 0.70710677
  %v3480 = vmul.f32 %v2156, 0.70710677
  %v3481 = vmul.f32 %v2158, 0.70710677
  %v3482 = vmul.f32 %v2317, 0.70710677
  %v3483 = vmul.f32 %v2319, 0.70710677
  %v3484 = vmul.f32 %v2478, 0.70710677
  %v3485 = vmul.f32 %v2480, 0.70710677
  %v3486 = vmul.f32 %v2639, 0.70710677
  %v3487 = vmul.f32 %v2641, 0.70710677
  %v3488 = vmul.f32 %v2800, 0.70710677
  %v3489 = vmul.f32 %v2802, 0.70710677
  %v3490 = vmul.f32 %v391, 0.70710677
  %v3491 = vmul.f32 %v393, 0.70710677
  %v3492 = vmul.f32 %v552, 0.70710677
  %v3493 = vmul.f32 %v554, 0.70710677
  %v3494 = vmul.f32 %v713, 0.70710677
  %v3495 = vmul.f32 %v715, 0.70710677
  %v3496 = vmul.f32 %v874, 0.70710677
  %v3497 = vmul.f32 %v876, 0.70710677
  %v3498 = vmul.f32 %v1035, 0.70710677
  %v3499 = vmul.f32 %v1037, 0.70710677
  %v3500 = vmul.f32 %v1196, 0.70710677
  %v3501 = vmul.f32 %v1198, 0.70710677
  %v3502 = vmul.f32 %v1357, 0.70710677
  %v3503 = vmul.f32 %v1359, 0.70710677
  %v3504 = vmul.f32 %v1518, 0.70710677
  %v3505 = vmul.f32 %v1520, 0.70710677
  %v3506 = vmul.f32 %v1679, 0.70710677
  %v3507 = vmul.f32 %v1681, 0.70710677
  %v3508 = vmul.f32 %v1840, 0.70710677
  %v3509 = vmul.f32 %v1842, 0.70710677
  %v3510 = vmul.f32 %v2001, 0.70710677
  %v3511 = vmul.f32 %v2003, 0.70710677
  %v3512 = vmul.f32 %v2162, 0.70710677
  %v3513 = vmul.f32 %v2164, 0.70710677
  %v3514 = vmul.f32 %v2323, 0.70710677
  %v3515 = vmul.f32 %v2325, 0.70710677
  %v3516 = vmul.f32 %v2484, 0.70710677
  %v3517 = vmul.f32 %v2486, 0.70710677
  %v3518 = vmul.f32 %v2645, 0.70710677
  %v3519 = vmul.f32 %v2647, 0.70710677
  %v3520 = vmul.f32 %v2806, 0.70710677
  %v3521 = vmul.f32 %v2808, 0.70710677
  %v3522 = vmul.f32 %v397, 0.70710677
  %v3523 = vmul.f32 %v399, 0.70710677
  %v3524 = vmul.f32 %v558, 0.70710677
  %v3525 = vmul.f32 %v560, 0.70710677
  %v3526 = vmul.f32 %v719, 0.70710677
  %v3527 = vmul.f32 %v721, 0.70710677
  %v3528 = vmul.f32 %v880, 0.70710677
  %v3529 = vmul.f32 %v882, 0.70710677
  %v3530 = vmul.f32 %v1041, 0.70710677
  %v3531 = vmul.f32 %v1043, 0.70710677
  %v3532 = vmul.f32 %v1202, 0.70710677
  %v3533 = vmul.f32 %v1204, 0.70710677
  %v3534 = vmul.f32 %v1363, 0.70710677
  %v3535 = vmul.f32 %v1365, 0.70710677
  %v3536 = vmul.f32 %v1524, 0.70710677
  %v3537 = vmul.f32 %v1526, 0.70710677
  %v3538 = vmul.f32 %v1685, 0.70710677
  %v3539 = vmul.f32 %v1687, 0.70710677
  %v3540 = vmul.f32 %v1846, 0.70710677
  %v3541 = vmul.f32 %v1848, 0.70710677
  %v3542 = vmul.f32 %v2007, 0.70710677
  %v3543 = vmul.f32 %v2009, 0.70710677
  %v3544 = vmul.f32 %v2168, 0.70710677
  %v3545 = vmul.f32 %v2170, 0.70710677
  %v3546 = vmul.f32 %v2329, 0.70710677
  %v3547 = vmul.f32 %v2331, 0.70710677
  %v3548 = vmul.f32 %v2490, 0.70710677
  %v3549 = vmul.f32 %v2492, 0.70710677
  %v3550 = vmul.f32 %v2651, 0.70710677
  %v3551 = vmul.f32 %v2653, 0.70710677
  %v3552 = vmul.f32 %v2812, 0.70710677
  %v3553 = vmul.f32 %v2814, 0.70710677
  %v3554 = vmul.f32 %v403, 0.70710677
  %v3555 = vmul.f32 %v405, 0.70710677
  %v3556 = vmul.f32 %v564, 0.70710677
  %v3557 = vmul.f32 %v566, 0.70710677
  %v3558 = vmul.f32 %v725, 0.70710677
  %v3559 = vmul.f32 %v727, 0.70710677
  %v3560 = vmul.f32 %v886, 0.70710677
  %v3561 = vmul.f32 %v888, 0.70710677
  %v3562 = vmul.f32 %v1047, 0.70710677
  %v3563 = vmul.f32 %v1049, 0.70710677
  %v3564 = vmul.f32 %v1208, 0.70710677
  %v3565 = vmul.f32 %v1210, 0.70710677
  %v3566 = vmul.f32 %v1369, 0.70710677
  %v3567 = vmul.f32 %v1371, 0.70710677
  %v3568 = vmul.f32 %v1530, 0.70710677
  %v3569 = vmul.f32 %v1532, 0.70710677
  %v3570 = vmul.f32 %v1691, 0.70710677
  %v3571 = vmul.f32 %v1693, 0.70710677
  %v3572 = vmul.f32 %v1852, 0.70710677
  %v3573 = vmul.f32 %v1854, 0.70710677
  %v3574 = vmul.f32 %v2013, 0.70710677
  %v3575 = vmul.f32 %v2015, 0.70710677
  %v3576 = vmul.f32 %v2174, 0.70710677
  %v3577 = vmul.f32 %v2176, 0.70710677
  %v3578 = vmul.f32 %v2335, 0.70710677
  %v3579 = vmul.f32 %v2337, 0.70710677
  %v3580 = vmul.f32 %v2496, 0.70710677
  %v3581 = vmul.f32 %v2498, 0.70710677
  %v3582 = vmul.f32 %v2657, 0.70710677
  %v3583 = vmul.f32 %v2659, 0.70710677
  %v3584 = vmul.f32 %v2818, 0.70710677
  %v3585 = vmul.f32 %v2820, 0.70710677
  %v3586 = vmul.f32 %v409, 0.70710677
  %v3587 = vmul.f32 %v411, 0.70710677
  %v3588 = vmul.f32 %v570, 0.70710677
  %v3589 = vmul.f32 %v572, 0.70710677
  %v3590 = vmul.f32 %v731, 0.70710677
  %v3591 = vmul.f32 %v733, 0.70710677
  %v3592 = vmul.f32 %v892, 0.70710677
  %v3593 = vmul.f32 %v894, 0.70710677
  %v3594 = vmul.f32 %v1053, 0.70710677
  %v3595 = vmul.f32 %v1055, 0.70710677
  %v3596 = vmul.f32 %v1214, 0.70710677
  %v3597 = vmul.f32 %v1216, 0.70710677
  %v3598 = vmul.f32 %v1375, 0.70710677
  %v3599 = vmul.f32 %v1377, 0.70710677
  %v3600 = vmul.f32 %v1536, 0.70710677
  %v3601 = vmul.f32 %v1538, 0.70710677
  %v3602 = vmul.f32 %v1697, 0.70710677
  %v3603 = vmul.f32 %v1699, 0.70710677
  %v3604 = vmul.f32 %v1858, 0.70710677
  %v3605 = vmul.f32 %v1860, 0.70710677
  %v3606 = vmul.f32 %v2019, 0.70710677
  %v3607 = vmul.f32 %v2021, 0.70710677
  %v3608 = vmul.f32 %v2180, 0.70710677
  %v3609 = vmul.f32 %v2182, 0.70710677
  %v3610 = vmul.f32 %v2341, 0.70710677
  %v3611 = vmul.f32 %v2343, 0.70710677
  %v3612 = vmul.f32 %v2502, 0.70710677
  %v3613 = vmul.f32 %v2504, 0.70710677
  %v3614 = vmul.f32 %v2663, 0.70710677
  %v3615 = vmul.f32 %v2665, 0.70710677
  %v3616 = vmul.f32 %v2824, 0.70710677
  %v3617 = vmul.f32 %v2826, 0.70710677
  %v3618 = vmul.f32 %v415, 0.70710677
  %v3619 = vmul.f32 %v417, 0.70710677
  %v3620 = vmul.f32 %v576, 0.70710677
  %v3621 = vmul.f32 %v578, 0.70710677
  %v3622 = vmul.f32 %v737, 0.70710677
  %v3623 = vmul.f32 %v739, 0.70710677
  %v3624 = vmul.f32 %v898, 0.70710677
  %v3625 = vmul.f32 %v900, 0.70710677
  %v3626 = vmul.f32 %v1059, 0.70710677
  %v3627 = vmul.f32 %v1061, 0.70710677
  %v3628 = vmul.f32 %v1220, 0.70710677
  %v3629 = vmul.f32 %v1222, 0.70710677
  %v3630 = vmul.f32 %v1381, 0.70710677
  %v3631 = vmul.f32 %v1383, 0.70710677
  %v3632 = vmul.f32 %v1542, 0.70710677
  %v3633 = vmul.f32 %v1544, 0.70710677
  %v3634 = vmul.f32 %v1703, 0.70710677
  %v3635 = vmul.f32 %v1705, 0.70710677
  %v3636 = vmul.f32 %v1864, 0.70710677
  %v3637 = vmul.f32 %v1866, 0.70710677
  %v3638 = vmul.f32 %v2025, 0.70710677
  %v3639 = vmul.f32 %v2027, 0.70710677
  %v3640 = vmul.f32 %v2186, 0.70710677
  %v3641 = vmul.f32 %v2188, 0.70710677
  %v3642 = vmul.f32 %v2347, 0.70710677
  %v3643 = vmul.f32 %v2349, 0.70710677
  %v3644 = vmul.f32 %v2508, 0.70710677
  %v3645 = vmul.f32 %v2510, 0.70710677
  %v3646 = vmul.f32 %v2669, 0.70710677
  %v3647 = vmul.f32 %v2671, 0.70710677
  %v3648 = vmul.f32 %v2830, 0.70710677
  %v3649 = vmul.f32 %v2832, 0.70710677
  %v3650 = vmul.f32 %v421, 0.70710677
  %v3651 = vmul.f32 %v423, 0.70710677
  %v3652 = vmul.f32 %v582, 0.70710677
  %v3653 = vmul.f32 %v584, 0.70710677
  %v3654 = vmul.f32 %v743, 0.70710677
  %v3655 = vmul.f32 %v745, 0.70710677
  %v3656 = vmul.f32 %v904, 0.70710677
  %v3657 = vmul.f32 %v906, 0.70710677
  %v3658 = vmul.f32 %v1065, 0.70710677
  %v3659 = vmul.f32 %v1067, 0.70710677
  %v3660 = vmul.f32 %v1226, 0.70710677
  %v3661 = vmul.f32 %v1228, 0.70710677
  %v3662 = vmul.f32 %v1387, 0.70710677
  %v3663 = vmul.f32 %v1389, 0.70710677
  %v3664 = vmul.f32 %v1548, 0.70710677
  %v3665 = vmul.f32 %v1550, 0.70710677
  %v3666 = vmul.f32 %v1709, 0.70710677
  %v3667 = vmul.f32 %v1711, 0.70710677
  %v3668 = vmul.f32 %v1870, 0.70710677
  %v3669 = vmul.f32 %v1872, 0.70710677
  %v3670 = vmul.f32 %v2031, 0.70710677
  %v3671 = vmul.f32 %v2033, 0.70710677
  %v3672 = vmul.f32 %v2192, 0.70710677
  %v3673 = vmul.f32 %v2194, 0.70710677
  %v3674 = vmul.f32 %v2353, 0.70710677
  %v3675 = vmul.f32 %v2355, 0.70710677
  %v3676 = vmul.f32 %v2514, 0.70710677
  %v3677 = vmul.f32 %v2516, 0.70710677
  %v3678 = vmul.f32 %v2675, 0.70710677
  %v3679 = vmul.f32 %v2677, 0.70710677
  %v3680 = vmul.f32 %v2836, 0.70710677
  %v3681 = vmul.f32 %v2838, 0.70710677
  %v3682 = vmul.f32 %v427, 0.70710677
  %v3683 = vmul.f32 %v429, 0.70710677
  %v3684 = vmul.f32 %v588, 0.70710677
  %v3685 = vmul.f32 %v590, 0.70710677
  %v3686 = vmul.f32 %v749, 0.70710677
  %v3687 = vmul.f32 %v751, 0.70710677
  %v3688 = vmul.f32 %v910, 0.70710677
  %v3689 = vmul.f32 %v912, 0.70710677
  %v3690 = vmul.f32 %v1071, 0.70710677
  %v3691 = vmul.f32 %v1073, 0.70710677
  %v3692 = vmul.f32 %v1232, 0.70710677
  %v3693 = vmul.f32 %v1234, 0.70710677
  %v3694 = vmul.f32 %v1393, 0.70710677
  %v3695 = vmul.f32 %v1395, 0.70710677
  %v3696 = vmul.f32 %v1554, 0.70710677
  %v3697 = vmul.f32 %v1556, 0.70710677
  %v3698 = vmul.f32 %v1715, 0.70710677
  %v3699 = vmul.f32 %v1717, 0.70710677
  %v3700 = vmul.f32 %v1876, 0.70710677
  %v3701 = vmul.f32 %v1878, 0.70710677
  %v3702 = vmul.f32 %v2037, 0.70710677
  %v3703 = vmul.f32 %v2039, 0.70710677
  %v3704 = vmul.f32 %v2198, 0.70710677
  %v3705 = vmul.f32 %v2200, 0.70710677
  %v3706 = vmul.f32 %v2359, 0.70710677
  %v3707 = vmul.f32 %v2361, 0.70710677
  %v3708 = vmul.f32 %v2520, 0.70710677
  %v3709 = vmul.f32 %v2522, 0.70710677
  %v3710 = vmul.f32 %v2681, 0.70710677
  %v3711 = vmul.f32 %v2683, 0.70710677
  %v3712 = vmul.f32 %v2842, 0.70710677
  %v3713 = vmul.f32 %v2844, 0.70710677
  %v3714 = vmul.f32 %v433, 0.70710677
  %v3715 = vmul.f32 %v435, 0.70710677
  %v3716 = vmul.f32 %v594, 0.70710677
  %v3717 = vmul.f32 %v596, 0.70710677
  %v3718 = vmul.f32 %v755, 0.70710677
  %v3719 = vmul.f32 %v757, 0.70710677
  %v3720 = vmul.f32 %v916, 0.70710677
  %v3721 = vmul.f32 %v918, 0.70710677
  %v3722 = vmul.f32 %v1077, 0.70710677
  %v3723 = vmul.f32 %v1079, 0.70710677
  %v3724 = vmul.f32 %v1238, 0.70710677
  %v3725 = vmul.f32 %v1240, 0.70710677
  %v3726 = vmul.f32 %v1399, 0.70710677
  %v3727 = vmul.f32 %v1401, 0.70710677
  %v3728 = vmul.f32 %v1560, 0.70710677
  %v3729 = vmul.f32 %v1562, 0.70710677
  %v3730 = vmul.f32 %v1721, 0.70710677
  %v3731 = vmul.f32 %v1723, 0.70710677
  %v3732 = vmul.f32 %v1882, 0.70710677
  %v3733 = vmul.f32 %v1884, 0.70710677
  %v3734 = vmul.f32 %v2043, 0.70710677
  %v3735 = vmul.f32 %v2045, 0.70710677
  %v3736 = vmul.f32 %v2204, 0.70710677
  %v3737 = vmul.f32 %v2206, 0.70710677
  %v3738 = vmul.f32 %v2365, 0.70710677
  %v3739 = vmul.f32 %v2367, 0.70710677
  %v3740 = vmul.f32 %v2526, 0.70710677
  %v3741 = vmul.f32 %v2528, 0.70710677
  %v3742 = vmul.f32 %v2687, 0.70710677
  %v3743 = vmul.f32 %v2689, 0.70710677
  %v3744 = vmul.f32 %v2848, 0.70710677
  %v3745 = vmul.f32 %v2850, 0.70710677
  %v3746 = vmul.f32 %v439, 0.70710677
  %v3747 = vmul.f32 %v441, 0.70710677
  %v3748 = vmul.f32 %v600, 0.70710677
  %v3749 = vmul.f32 %v602, 0.70710677
  %v3750 = vmul.f32 %v761, 0.70710677
  %v3751 = vmul.f32 %v763, 0.70710677
  %v3752 = vmul.f32 %v922, 0.70710677
  %v3753 = vmul.f32 %v924, 0.70710677
  %v3754 = vmul.f32 %v1083, 0.70710677
  %v3755 = vmul.f32 %v1085, 0.70710677
  %v3756 = vmul.f32 %v1244, 0.70710677
  %v3757 = vmul.f32 %v1246, 0.70710677
  %v3758 = vmul.f32 %v1405, 0.70710677
  %v3759 = vmul.f32 %v1407, 0.70710677
  %v3760 = vmul.f32 %v1566, 0.70710677
  %v3761 = vmul.f32 %v1568, 0.70710677
  %v3762 = vmul.f32 %v1727, 0.70710677
  %v3763 = vmul.f32 %v1729, 0.70710677
  %v3764 = vmul.f32 %v1888, 0.70710677
  %v3765 = vmul.f32 %v1890, 0.70710677
  %v3766 = vmul.f32 %v2049, 0.70710677
  %v3767 = vmul.f32 %v2051, 0.70710677
  %v3768 = vmul.f32 %v2210, 0.70710677
  %v3769 = vmul.f32 %v2212, 0.70710677
  %v3770 = vmul.f32 %v2371, 0.70710677
  %v3771 = vmul.f32 %v2373, 0.70710677
  %v3772 = vmul.f32 %v2532, 0.70710677
  %v3773 = vmul.f32 %v2534, 0.70710677
  %v3774 = vmul.f32 %v2693, 0.70710677
  %v3775 = vmul.f32 %v2695, 0.70710677
  %v3776 = vmul.f32 %v2854, 0.70710677
  %v3777 = vmul.f32 %v2856, 0.70710677
  %v3778 = vmul.f32 %v445, 0.70710677
  %v3779 = vmul.f32 %v447, 0.70710677
  %v3780 = vmul.f32 %v606, 0.70710677
  %v3781 = vmul.f32 %v608, 0.70710677
  %v3782 = vmul.f32 %v767, 0.70710677
  %v3783 = vmul.f32 %v769, 0.70710677
  %v3784 = vmul.f32 %v928, 0.70710677
  %v3785 = vmul.f32 %v930, 0.70710677
  %v3786 = vmul.f32 %v1089, 0.70710677
  %v3787 = vmul.f32 %v1091, 0.70710677
  %v3788 = vmul.f32 %v1250, 0.70710677
  %v3789 = vmul.f32 %v1252, 0.70710677
  %v3790 = vmul.f32 %v1411, 0.70710677
  %v3791 = vmul.f32 %v1413, 0.70710677
  %v3792 = vmul.f32 %v1572, 0.70710677
  %v3793 = vmul.f32 %v1574, 0.70710677
  %v3794 = vmul.f32 %v1733, 0.70710677
  %v3795 = vmul.f32 %v1735, 0.70710677
  %v3796 = vmul.f32 %v1894, 0.70710677
  %v3797 = vmul.f32 %v1896, 0.70710677
  %v3798 = vmul.f32 %v2055, 0.70710677
  %v3799 = vmul.f32 %v2057, 0.70710677
  %v3800 = vmul.f32 %v2216, 0.70710677
  %v3801 = vmul.f32 %v2218, 0.70710677
  %v3802 = vmul.f32 %v2377, 0.70710677
  %v3803 = vmul.f32 %v2379, 0.70710677
  %v3804 = vmul.f32 %v2538, 0.70710677
  %v3805 = vmul.f32 %v2540, 0.70710677
  %v3806 = vmul.f32 %v2699, 0.70710677
  %v3807 = vmul.f32 %v2701, 0.70710677
  %v3808 = vmul.f32 %v2860, 0.70710677
  %v3809 = vmul.f32 %v2862, 0.70710677
  %v3810 = vmul.f32 %v451, 0.70710677
  %v3811 = vmul.f32 %v453, 0.70710677
  %v3812 = vmul.f32 %v612, 0.70710677
  %v3813 = vmul.f32 %v614, 0.70710677
  %v3814 = vmul.f32 %v773, 0.70710677
  %v3815 = vmul.f32 %v775, 0.70710677
  %v3816 = vmul.f32 %v934, 0.70710677
  %v3817 = vmul.f32 %v936, 0.70710677
  %v3818 = vmul.f32 %v1095, 0.70710677
  %v3819 = vmul.f32 %v1097, 0.70710677
  %v3820 = vmul.f32 %v1256, 0.70710677
  %v3821 = vmul.f32 %v1258, 0.70710677
  %v3822 = vmul.f32 %v1417, 0.70710677
  %v3823 = vmul.f32 %v1419, 0.70710677
  %v3824 = vmul.f32 %v1578, 0.70710677
  %v3825 = vmul.f32 %v1580, 0.70710677
  %v3826 = vmul.f32 %v1739, 0.70710677
  %v3827 = vmul.f32 %v1741, 0.70710677
  %v3828 = vmul.f32 %v1900, 0.70710677
  %v3829 = vmul.f32 %v1902, 0.70710677
  %v3830 = vmul.f32 %v2061, 0.70710677
  %v3831 = vmul.f32 %v2063, 0.70710677
  %v3832 = vmul.f32 %v2222, 0.70710677
  %v3833 = vmul.f32 %v2224, 0.70710677
  %v3834 = vmul.f32 %v2383, 0.70710677
  %v3835 = vmul.f32 %v2385, 0.70710677
  %v3836 = vmul.f32 %v2544, 0.70710677
  %v3837 = vmul.f32 %v2546, 0.70710677
  %v3838 = vmul.f32 %v2705, 0.70710677
  %v3839 = vmul.f32 %v2707, 0.70710677
  %v3840 = vmul.f32 %v2866, 0.70710677
  %v3841 = vmul.f32 %v2868, 0.70710677
  %v3842 = vmul.f32 %v457, 0.70710677
  %v3843 = vmul.f32 %v459, 0.70710677
  %v3844 = vmul.f32 %v618, 0.70710677
  %v3845 = vmul.f32 %v620, 0.70710677
  %v3846 = vmul.f32 %v779, 0.70710677
  %v3847 = vmul.f32 %v781, 0.70710677
  %v3848 = vmul.f32 %v940, 0.70710677
  %v3849 = vmul.f32 %v942, 0.70710677
  %v3850 = vmul.f32 %v1101, 0.70710677
  %v3851 = vmul.f32 %v1103, 0.70710677
  %v3852 = vmul.f32 %v1262, 0.70710677
  %v3853 = vmul.f32 %v1264, 0.70710677
  %v3854 = vmul.f32 %v1423, 0.70710677
  %v3855 = vmul.f32 %v1425, 0.70710677
  %v3856 = vmul.f32 %v1584, 0.70710677
  %v3857 = vmul.f32 %v1586, 0.70710677
  %v3858 = vmul.f32 %v1745, 0.70710677
  %v3859 = vmul.f32 %v1747, 0.70710677
  %v3860 = vmul.f32 %v1906, 0.70710677
  %v3861 = vmul.f32 %v1908, 0.70710677
  %v3862 = vmul.f32 %v2067, 0.70710677
  %v3863 = vmul.f32 %v2069, 0.70710677
  %v3864 = vmul.f32 %v2228, 0.70710677
  %v3865 = vmul.f32 %v2230, 0.70710677
  %v3866 = vmul.f32 %v2389, 0.70710677
  %v3867 = vmul.f32 %v2391, 0.70710677
  %v3868 = vmul.f32 %v2550, 0.70710677
  %v3869 = vmul.f32 %v2552, 0.70710677
  %v3870 = vmul.f32 %v2711, 0.70710677
  %v3871 = vmul.f32 %v2713, 0.70710677
  %v3872 = vmul.f32 %v2872, 0.70710677
  %v3873 = vmul.f32 %v2874, 0.70710677
  %v3874 = vmul.f32 %v463, 0.70710677
  %v3875 = vmul.f32 %v465, 0.70710677
  %v3876 = vmul.f32 %v624, 0.70710677
  %v3877 = vmul.f32 %v626, 0.70710677
  %v3878 = vmul.f32 %v785, 0.70710677
  %v3879 = vmul.f32 %v787, 0.70710677
  %v3880 = vmul.f32 %v946, 0.70710677
  %v3881 = vmul.f32 %v948, 0.70710677
  %v3882 = vmul.f32 %v1107, 0.70710677
  %v3883 = vmul.f32 %v1109, 0.70710677
  %v3884 = vmul.f32 %v1268, 0.70710677
  %v3885 = vmul.f32 %v1270, 0.70710677
  %v3886 = vmul.f32 %v1429, 0.70710677
  %v3887 = vmul.f32 %v1431, 0.70710677
  %v3888 = vmul.f32 %v1590, 0.70710677
  %v3889 = vmul.f32 %v1592, 0.70710677
  %v3890 = vmul.f32 %v1751, 0.70710677
  %v3891 = vmul.f32 %v1753, 0.70710677
  %v3892 = vmul.f32 %v1912, 0.70710677
  %v3893 = vmul.f32 %v1914, 0.70710677
  %v3894 = vmul.f32 %v2073, 0.70710677
  %v3895 = vmul.f32 %v2075, 0.70710677
  %v3896 = vmul.f32 %v2234, 0.70710677
  %v3897 = vmul.f32 %v2236, 0.70710677
  %v3898 = vmul.f32 %v2395, 0.70710677
  %v3899 = vmul.f32 %v2397, 0.70710677
  %v3900 = vmul.f32 %v2556, 0.70710677
  %v3901 = vmul.f32 %v2558, 0.70710677
  %v3902 = vmul.f32 %v2717, 0.70710677
  %v3903 = vmul.f32 %v2719, 0.70710677
  %v3904 = vmul.f32 %v2878, 0.70710677
  %v3905 = vmul.f32 %v2880, 0.70710677
  %v3906 = verf.f32.pop %v3394
  %v3907 = verf.f32.pop %v3395
  %v3908 = verf.f32.pop %v3396
  %v3909 = verf.f32.pop %v3397
  %v3910 = verf.f32.pop %v3398
  %v3911 = verf.f32.pop %v3399
  %v3912 = verf.f32.pop %v3400
  %v3913 = verf.f32.pop %v3401
  %v3914 = verf.f32.pop %v3402
  %v3915 = verf.f32.pop %v3403
  %v3916 = verf.f32.pop %v3404
  %v3917 = verf.f32.pop %v3405
  %v3918 = verf.f32.pop %v3406
  %v3919 = verf.f32.pop %v3407
  %v3920 = verf.f32.pop %v3408
  %v3921 = verf.f32.pop %v3409
  %v3922 = verf.f32.pop %v3410
  %v3923 = verf.f32.pop %v3411
  %v3924 = verf.f32.pop %v3412
  %v3925 = verf.f32.pop %v3413
  %v3926 = verf.f32.pop %v3414
  %v3927 = verf.f32.pop %v3415
  %v3928 = verf.f32.pop %v3416
  %v3929 = verf.f32.pop %v3417
  %v3930 = verf.f32.pop %v3418
  %v3931 = verf.f32.pop %v3419
  %v3932 = verf.f32.pop %v3420
  %v3933 = verf.f32.pop %v3421
  %v3934 = verf.f32.pop %v3422
  %v3935 = verf.f32.pop %v3423
  %v3936 = verf.f32.pop %v3424
  %v3937 = verf.f32.pop %v3425
  %v3938 = verf.f32.pop %v3426
  %v3939 = verf.f32.pop %v3427
  %v3940 = verf.f32.pop %v3428
  %v3941 = verf.f32.pop %v3429
  %v3942 = verf.f32.pop %v3430
  %v3943 = verf.f32.pop %v3431
  %v3944 = verf.f32.pop %v3432
  %v3945 = verf.f32.pop %v3433
  %v3946 = verf.f32.pop %v3434
  %v3947 = verf.f32.pop %v3435
  %v3948 = verf.f32.pop %v3436
  %v3949 = verf.f32.pop %v3437
  %v3950 = verf.f32.pop %v3438
  %v3951 = verf.f32.pop %v3439
  %v3952 = verf.f32.pop %v3440
  %v3953 = verf.f32.pop %v3441
  %v3954 = verf.f32.pop %v3442
  %v3955 = verf.f32.pop %v3443
  %v3956 = verf.f32.pop %v3444
  %v3957 = verf.f32.pop %v3445
  %v3958 = verf.f32.pop %v3446
  %v3959 = verf.f32.pop %v3447
  %v3960 = verf.f32.pop %v3448
  %v3961 = verf.f32.pop %v3449
  %v3962 = verf.f32.pop %v3450
  %v3963 = verf.f32.pop %v3451
  %v3964 = verf.f32.pop %v3452
  %v3965 = verf.f32.pop %v3453
  %v3966 = verf.f32.pop %v3454
  %v3967 = verf.f32.pop %v3455
  %v3968 = verf.f32.pop %v3456
  %v3969 = verf.f32.pop %v3457
  %v3970 = verf.f32.pop %v3458
  %v3971 = verf.f32.pop %v3459
  %v3972 = verf.f32.pop %v3460
  %v3973 = verf.f32.pop %v3461
  %v3974 = verf.f32.pop %v3462
  %v3975 = verf.f32.pop %v3463
  %v3976 = verf.f32.pop %v3464
  %v3977 = verf.f32.pop %v3465
  %v3978 = verf.f32.pop %v3466
  %v3979 = verf.f32.pop %v3467
  %v3980 = verf.f32.pop %v3468
  %v3981 = verf.f32.pop %v3469
  %v3982 = verf.f32.pop %v3470
  %v3983 = verf.f32.pop %v3471
  %v3984 = verf.f32.pop %v3472
  %v3985 = verf.f32.pop %v3473
  %v3986 = verf.f32.pop %v3474
  %v3987 = verf.f32.pop %v3475
  %v3988 = verf.f32.pop %v3476
  %v3989 = verf.f32.pop %v3477
  %v3990 = verf.f32.pop %v3478
  %v3991 = verf.f32.pop %v3479
  %v3992 = verf.f32.pop %v3480
  %v3993 = verf.f32.pop %v3481
  %v3994 = verf.f32.pop %v3482
  %v3995 = verf.f32.pop %v3483
  %v3996 = verf.f32.pop %v3484
  %v3997 = verf.f32.pop %v3485
  %v3998 = verf.f32.pop %v3486
  %v3999 = verf.f32.pop %v3487
  %v4000 = verf.f32.pop %v3488
  %v4001 = verf.f32.pop %v3489
  %v4002 = verf.f32.pop %v3490
  %v4003 = verf.f32.pop %v3491
  %v4004 = verf.f32.pop %v3492
  %v4005 = verf.f32.pop %v3493
  %v4006 = verf.f32.pop %v3494
  %v4007 = verf.f32.pop %v3495
  %v4008 = verf.f32.pop %v3496
  %v4009 = verf.f32.pop %v3497
  %v4010 = verf.f32.pop %v3498
  %v4011 = verf.f32.pop %v3499
  %v4012 = verf.f32.pop %v3500
  %v4013 = verf.f32.pop %v3501
  %v4014 = verf.f32.pop %v3502
  %v4015 = verf.f32.pop %v3503
  %v4016 = verf.f32.pop %v3504
  %v4017 = verf.f32.pop %v3505
  %v4018 = verf.f32.pop %v3506
  %v4019 = verf.f32.pop %v3507
  %v4020 = verf.f32.pop %v3508
  %v4021 = verf.f32.pop %v3509
  %v4022 = verf.f32.pop %v3510
  %v4023 = verf.f32.pop %v3511
  %v4024 = verf.f32.pop %v3512
  %v4025 = verf.f32.pop %v3513
  %v4026 = verf.f32.pop %v3514
  %v4027 = verf.f32.pop %v3515
  %v4028 = verf.f32.pop %v3516
  %v4029 = verf.f32.pop %v3517
  %v4030 = verf.f32.pop %v3518
  %v4031 = verf.f32.pop %v3519
  %v4032 = verf.f32.pop %v3520
  %v4033 = verf.f32.pop %v3521
  %v4034 = verf.f32.pop %v3522
  %v4035 = verf.f32.pop %v3523
  %v4036 = verf.f32.pop %v3524
  %v4037 = verf.f32.pop %v3525
  %v4038 = verf.f32.pop %v3526
  %v4039 = verf.f32.pop %v3527
  %v4040 = verf.f32.pop %v3528
  %v4041 = verf.f32.pop %v3529
  %v4042 = verf.f32.pop %v3530
  %v4043 = verf.f32.pop %v3531
  %v4044 = verf.f32.pop %v3532
  %v4045 = verf.f32.pop %v3533
  %v4046 = verf.f32.pop %v3534
  %v4047 = verf.f32.pop %v3535
  %v4048 = verf.f32.pop %v3536
  %v4049 = verf.f32.pop %v3537
  %v4050 = verf.f32.pop %v3538
  %v4051 = verf.f32.pop %v3539
  %v4052 = verf.f32.pop %v3540
  %v4053 = verf.f32.pop %v3541
  %v4054 = verf.f32.pop %v3542
  %v4055 = verf.f32.pop %v3543
  %v4056 = verf.f32.pop %v3544
  %v4057 = verf.f32.pop %v3545
  %v4058 = verf.f32.pop %v3546
  %v4059 = verf.f32.pop %v3547
  %v4060 = verf.f32.pop %v3548
  %v4061 = verf.f32.pop %v3549
  %v4062 = verf.f32.pop %v3550
  %v4063 = verf.f32.pop %v3551
  %v4064 = verf.f32.pop %v3552
  %v4065 = verf.f32.pop %v3553
  %v4066 = verf.f32.pop %v3554
  %v4067 = verf.f32.pop %v3555
  %v4068 = verf.f32.pop %v3556
  %v4069 = verf.f32.pop %v3557
  %v4070 = verf.f32.pop %v3558
  %v4071 = verf.f32.pop %v3559
  %v4072 = verf.f32.pop %v3560
  %v4073 = verf.f32.pop %v3561
  %v4074 = verf.f32.pop %v3562
  %v4075 = verf.f32.pop %v3563
  %v4076 = verf.f32.pop %v3564
  %v4077 = verf.f32.pop %v3565
  %v4078 = verf.f32.pop %v3566
  %v4079 = verf.f32.pop %v3567
  %v4080 = verf.f32.pop %v3568
  %v4081 = verf.f32.pop %v3569
  %v4082 = verf.f32.pop %v3570
  %v4083 = verf.f32.pop %v3571
  %v4084 = verf.f32.pop %v3572
  %v4085 = verf.f32.pop %v3573
  %v4086 = verf.f32.pop %v3574
  %v4087 = verf.f32.pop %v3575
  %v4088 = verf.f32.pop %v3576
  %v4089 = verf.f32.pop %v3577
  %v4090 = verf.f32.pop %v3578
  %v4091 = verf.f32.pop %v3579
  %v4092 = verf.f32.pop %v3580
  %v4093 = verf.f32.pop %v3581
  %v4094 = verf.f32.pop %v3582
  %v4095 = verf.f32.pop %v3583
  %v4096 = verf.f32.pop %v3584
  %v4097 = verf.f32.pop %v3585
  %v4098 = verf.f32.pop %v3586
  %v4099 = verf.f32.pop %v3587
  %v4100 = verf.f32.pop %v3588
  %v4101 = verf.f32.pop %v3589
  %v4102 = verf.f32.pop %v3590
  %v4103 = verf.f32.pop %v3591
  %v4104 = verf.f32.pop %v3592
  %v4105 = verf.f32.pop %v3593
  %v4106 = verf.f32.pop %v3594
  %v4107 = verf.f32.pop %v3595
  %v4108 = verf.f32.pop %v3596
  %v4109 = verf.f32.pop %v3597
  %v4110 = verf.f32.pop %v3598
  %v4111 = verf.f32.pop %v3599
  %v4112 = verf.f32.pop %v3600
  %v4113 = verf.f32.pop %v3601
  %v4114 = verf.f32.pop %v3602
  %v4115 = verf.f32.pop %v3603
  %v4116 = verf.f32.pop %v3604
  %v4117 = verf.f32.pop %v3605
  %v4118 = verf.f32.pop %v3606
  %v4119 = verf.f32.pop %v3607
  %v4120 = verf.f32.pop %v3608
  %v4121 = verf.f32.pop %v3609
  %v4122 = verf.f32.pop %v3610
  %v4123 = verf.f32.pop %v3611
  %v4124 = verf.f32.pop %v3612
  %v4125 = verf.f32.pop %v3613
  %v4126 = verf.f32.pop %v3614
  %v4127 = verf.f32.pop %v3615
  %v4128 = verf.f32.pop %v3616
  %v4129 = verf.f32.pop %v3617
  %v4130 = verf.f32.pop %v3618
  %v4131 = verf.f32.pop %v3619
  %v4132 = verf.f32.pop %v3620
  %v4133 = verf.f32.pop %v3621
  %v4134 = verf.f32.pop %v3622
  %v4135 = verf.f32.pop %v3623
  %v4136 = verf.f32.pop %v3624
  %v4137 = verf.f32.pop %v3625
  %v4138 = verf.f32.pop %v3626
  %v4139 = verf.f32.pop %v3627
  %v4140 = verf.f32.pop %v3628
  %v4141 = verf.f32.pop %v3629
  %v4142 = verf.f32.pop %v3630
  %v4143 = verf.f32.pop %v3631
  %v4144 = verf.f32.pop %v3632
  %v4145 = verf.f32.pop %v3633
  %v4146 = verf.f32.pop %v3634
  %v4147 = verf.f32.pop %v3635
  %v4148 = verf.f32.pop %v3636
  %v4149 = verf.f32.pop %v3637
  %v4150 = verf.f32.pop %v3638
  %v4151 = verf.f32.pop %v3639
  %v4152 = verf.f32.pop %v3640
  %v4153 = verf.f32.pop %v3641
  %v4154 = verf.f32.pop %v3642
  %v4155 = verf.f32.pop %v3643
  %v4156 = verf.f32.pop %v3644
  %v4157 = verf.f32.pop %v3645
  %v4158 = verf.f32.pop %v3646
  %v4159 = verf.f32.pop %v3647
  %v4160 = verf.f32.pop %v3648
  %v4161 = verf.f32.pop %v3649
  %v4162 = verf.f32.pop %v3650
  %v4163 = verf.f32.pop %v3651
  %v4164 = verf.f32.pop %v3652
  %v4165 = verf.f32.pop %v3653
  %v4166 = verf.f32.pop %v3654
  %v4167 = verf.f32.pop %v3655
  %v4168 = verf.f32.pop %v3656
  %v4169 = verf.f32.pop %v3657
  %v4170 = verf.f32.pop %v3658
  %v4171 = verf.f32.pop %v3659
  %v4172 = verf.f32.pop %v3660
  %v4173 = verf.f32.pop %v3661
  %v4174 = verf.f32.pop %v3662
  %v4175 = verf.f32.pop %v3663
  %v4176 = verf.f32.pop %v3664
  %v4177 = verf.f32.pop %v3665
  %v4178 = verf.f32.pop %v3666
  %v4179 = verf.f32.pop %v3667
  %v4180 = verf.f32.pop %v3668
  %v4181 = verf.f32.pop %v3669
  %v4182 = verf.f32.pop %v3670
  %v4183 = verf.f32.pop %v3671
  %v4184 = verf.f32.pop %v3672
  %v4185 = verf.f32.pop %v3673
  %v4186 = verf.f32.pop %v3674
  %v4187 = verf.f32.pop %v3675
  %v4188 = verf.f32.pop %v3676
  %v4189 = verf.f32.pop %v3677
  %v4190 = verf.f32.pop %v3678
  %v4191 = verf.f32.pop %v3679
  %v4192 = verf.f32.pop %v3680
  %v4193 = verf.f32.pop %v3681
  %v4194 = verf.f32.pop %v3682
  %v4195 = verf.f32.pop %v3683
  %v4196 = verf.f32.pop %v3684
  %v4197 = verf.f32.pop %v3685
  %v4198 = verf.f32.pop %v3686
  %v4199 = verf.f32.pop %v3687
  %v4200 = verf.f32.pop %v3688
  %v4201 = verf.f32.pop %v3689
  %v4202 = verf.f32.pop %v3690
  %v4203 = verf.f32.pop %v3691
  %v4204 = verf.f32.pop %v3692
  %v4205 = verf.f32.pop %v3693
  %v4206 = verf.f32.pop %v3694
  %v4207 = verf.f32.pop %v3695
  %v4208 = verf.f32.pop %v3696
  %v4209 = verf.f32.pop %v3697
  %v4210 = verf.f32.pop %v3698
  %v4211 = verf.f32.pop %v3699
  %v4212 = verf.f32.pop %v3700
  %v4213 = verf.f32.pop %v3701
  %v4214 = verf.f32.pop %v3702
  %v4215 = verf.f32.pop %v3703
  %v4216 = verf.f32.pop %v3704
  %v4217 = verf.f32.pop %v3705
  %v4218 = verf.f32.pop %v3706
  %v4219 = verf.f32.pop %v3707
  %v4220 = verf.f32.pop %v3708
  %v4221 = verf.f32.pop %v3709
  %v4222 = verf.f32.pop %v3710
  %v4223 = verf.f32.pop %v3711
  %v4224 = verf.f32.pop %v3712
  %v4225 = verf.f32.pop %v3713
  %v4226 = verf.f32.pop %v3714
  %v4227 = verf.f32.pop %v3715
  %v4228 = verf.f32.pop %v3716
  %v4229 = verf.f32.pop %v3717
  %v4230 = verf.f32.pop %v3718
  %v4231 = verf.f32.pop %v3719
  %v4232 = verf.f32.pop %v3720
  %v4233 = verf.f32.pop %v3721
  %v4234 = verf.f32.pop %v3722
  %v4235 = verf.f32.pop %v3723
  %v4236 = verf.f32.pop %v3724
  %v4237 = verf.f32.pop %v3725
  %v4238 = verf.f32.pop %v3726
  %v4239 = verf.f32.pop %v3727
  %v4240 = verf.f32.pop %v3728
  %v4241 = verf.f32.pop %v3729
  %v4242 = verf.f32.pop %v3730
  %v4243 = verf.f32.pop %v3731
  %v4244 = verf.f32.pop %v3732
  %v4245 = verf.f32.pop %v3733
  %v4246 = verf.f32.pop %v3734
  %v4247 = verf.f32.pop %v3735
  %v4248 = verf.f32.pop %v3736
  %v4249 = verf.f32.pop %v3737
  %v4250 = verf.f32.pop %v3738
  %v4251 = verf.f32.pop %v3739
  %v4252 = verf.f32.pop %v3740
  %v4253 = verf.f32.pop %v3741
  %v4254 = verf.f32.pop %v3742
  %v4255 = verf.f32.pop %v3743
  %v4256 = verf.f32.pop %v3744
  %v4257 = verf.f32.pop %v3745
  %v4258 = verf.f32.pop %v3746
  %v4259 = verf.f32.pop %v3747
  %v4260 = verf.f32.pop %v3748
  %v4261 = verf.f32.pop %v3749
  %v4262 = verf.f32.pop %v3750
  %v4263 = verf.f32.pop %v3751
  %v4264 = verf.f32.pop %v3752
  %v4265 = verf.f32.pop %v3753
  %v4266 = verf.f32.pop %v3754
  %v4267 = verf.f32.pop %v3755
  %v4268 = verf.f32.pop %v3756
  %v4269 = verf.f32.pop %v3757
  %v4270 = verf.f32.pop %v3758
  %v4271 = verf.f32.pop %v3759
  %v4272 = verf.f32.pop %v3760
  %v4273 = verf.f32.pop %v3761
  %v4274 = verf.f32.pop %v3762
  %v4275 = verf.f32.pop %v3763
  %v4276 = verf.f32.pop %v3764
  %v4277 = verf.f32.pop %v3765
  %v4278 = verf.f32.pop %v3766
  %v4279 = verf.f32.pop %v3767
  %v4280 = verf.f32.pop %v3768
  %v4281 = verf.f32.pop %v3769
  %v4282 = verf.f32.pop %v3770
  %v4283 = verf.f32.pop %v3771
  %v4284 = verf.f32.pop %v3772
  %v4285 = verf.f32.pop %v3773
  %v4286 = verf.f32.pop %v3774
  %v4287 = verf.f32.pop %v3775
  %v4288 = verf.f32.pop %v3776
  %v4289 = verf.f32.pop %v3777
  %v4290 = verf.f32.pop %v3778
  %v4291 = verf.f32.pop %v3779
  %v4292 = verf.f32.pop %v3780
  %v4293 = verf.f32.pop %v3781
  %v4294 = verf.f32.pop %v3782
  %v4295 = verf.f32.pop %v3783
  %v4296 = verf.f32.pop %v3784
  %v4297 = verf.f32.pop %v3785
  %v4298 = verf.f32.pop %v3786
  %v4299 = verf.f32.pop %v3787
  %v4300 = verf.f32.pop %v3788
  %v4301 = verf.f32.pop %v3789
  %v4302 = verf.f32.pop %v3790
  %v4303 = verf.f32.pop %v3791
  %v4304 = verf.f32.pop %v3792
  %v4305 = verf.f32.pop %v3793
  %v4306 = verf.f32.pop %v3794
  %v4307 = verf.f32.pop %v3795
  %v4308 = verf.f32.pop %v3796
  %v4309 = verf.f32.pop %v3797
  %v4310 = verf.f32.pop %v3798
  %v4311 = verf.f32.pop %v3799
  %v4312 = verf.f32.pop %v3800
  %v4313 = verf.f32.pop %v3801
  %v4314 = verf.f32.pop %v3802
  %v4315 = verf.f32.pop %v3803
  %v4316 = verf.f32.pop %v3804
  %v4317 = verf.f32.pop %v3805
  %v4318 = verf.f32.pop %v3806
  %v4319 = verf.f32.pop %v3807
  %v4320 = verf.f32.pop %v3808
  %v4321 = verf.f32.pop %v3809
  %v4322 = verf.f32.pop %v3810
  %v4323 = verf.f32.pop %v3811
  %v4324 = verf.f32.pop %v3812
  %v4325 = verf.f32.pop %v3813
  %v4326 = verf.f32.pop %v3814
  %v4327 = verf.f32.pop %v3815
  %v4328 = verf.f32.pop %v3816
  %v4329 = verf.f32.pop %v3817
  %v4330 = verf.f32.pop %v3818
  %v4331 = verf.f32.pop %v3819
  %v4332 = verf.f32.pop %v3820
  %v4333 = verf.f32.pop %v3821
  %v4334 = verf.f32.pop %v3822
  %v4335 = verf.f32.pop %v3823
  %v4336 = verf.f32.pop %v3824
  %v4337 = verf.f32.pop %v3825
  %v4338 = verf.f32.pop %v3826
  %v4339 = verf.f32.pop %v3827
  %v4340 = verf.f32.pop %v3828
  %v4341 = verf.f32.pop %v3829
  %v4342 = verf.f32.pop %v3830
  %v4343 = verf.f32.pop %v3831
  %v4344 = verf.f32.pop %v3832
  %v4345 = verf.f32.pop %v3833
  %v4346 = verf.f32.pop %v3834
  %v4347 = verf.f32.pop %v3835
  %v4348 = verf.f32.pop %v3836
  %v4349 = verf.f32.pop %v3837
  %v4350 = verf.f32.pop %v3838
  %v4351 = verf.f32.pop %v3839
  %v4352 = verf.f32.pop %v3840
  %v4353 = verf.f32.pop %v3841
  %v4354 = verf.f32.pop %v3842
  %v4355 = verf.f32.pop %v3843
  %v4356 = verf.f32.pop %v3844
  %v4357 = verf.f32.pop %v3845
  %v4358 = verf.f32.pop %v3846
  %v4359 = verf.f32.pop %v3847
  %v4360 = verf.f32.pop %v3848
  %v4361 = verf.f32.pop %v3849
  %v4362 = verf.f32.pop %v3850
  %v4363 = verf.f32.pop %v3851
  %v4364 = verf.f32.pop %v3852
  %v4365 = verf.f32.pop %v3853
  %v4366 = verf.f32.pop %v3854
  %v4367 = verf.f32.pop %v3855
  %v4368 = verf.f32.pop %v3856
  %v4369 = verf.f32.pop %v3857
  %v4370 = verf.f32.pop %v3858
  %v4371 = verf.f32.pop %v3859
  %v4372 = verf.f32.pop %v3860
  %v4373 = verf.f32.pop %v3861
  %v4374 = verf.f32.pop %v3862
  %v4375 = verf.f32.pop %v3863
  %v4376 = verf.f32.pop %v3864
  %v4377 = verf.f32.pop %v3865
  %v4378 = verf.f32.pop %v3866
  %v4379 = verf.f32.pop %v3867
  %v4380 = verf.f32.pop %v3868
  %v4381 = verf.f32.pop %v3869
  %v4382 = verf.f32.pop %v3870
  %v4383 = verf.f32.pop %v3871
  %v4384 = verf.f32.pop %v3872
  %v4385 = verf.f32.pop %v3873
  %v4386 = verf.f32.pop %v3874
  %v4387 = verf.f32.pop %v3875
  %v4388 = verf.f32.pop %v3876
  %v4389 = verf.f32.pop %v3877
  %v4390 = verf.f32.pop %v3878
  %v4391 = verf.f32.pop %v3879
  %v4392 = verf.f32.pop %v3880
  %v4393 = verf.f32.pop %v3881
  %v4394 = verf.f32.pop %v3882
  %v4395 = verf.f32.pop %v3883
  %v4396 = verf.f32.pop %v3884
  %v4397 = verf.f32.pop %v3885
  %v4398 = verf.f32.pop %v3886
  %v4399 = verf.f32.pop %v3887
  %v4400 = verf.f32.pop %v3888
  %v4401 = verf.f32.pop %v3889
  %v4402 = verf.f32.pop %v3890
  %v4403 = verf.f32.pop %v3891
  %v4404 = verf.f32.pop %v3892
  %v4405 = verf.f32.pop %v3893
  %v4406 = verf.f32.pop %v3894
  %v4407 = verf.f32.pop %v3895
  %v4408 = verf.f32.pop %v3896
  %v4409 = verf.f32.pop %v3897
  %v4410 = verf.f32.pop %v3898
  %v4411 = verf.f32.pop %v3899
  %v4412 = verf.f32.pop %v3900
  %v4413 = verf.f32.pop %v3901
  %v4414 = verf.f32.pop %v3902
  %v4415 = verf.f32.pop %v3903
  %v4416 = verf.f32.pop %v3904
  %v4417 = verf.f32.pop %v3905
  %v4418 = vadd.f32 %v3906, 1.0
  %v4419 = vadd.f32 %v3907, 1.0
  %v4420 = vadd.f32 %v3908, 1.0
  %v4421 = vadd.f32 %v3909, 1.0
  %v4422 = vadd.f32 %v3910, 1.0
  %v4423 = vadd.f32 %v3911, 1.0
  %v4424 = vadd.f32 %v3912, 1.0
  %v4425 = vadd.f32 %v3913, 1.0
  %v4426 = vadd.f32 %v3914, 1.0
  %v4427 = vadd.f32 %v3915, 1.0
  %v4428 = vadd.f32 %v3916, 1.0
  %v4429 = vadd.f32 %v3917, 1.0
  %v4430 = vadd.f32 %v3918, 1.0
  %v4431 = vadd.f32 %v3919, 1.0
  %v4432 = vadd.f32 %v3920, 1.0
  %v4433 = vadd.f32 %v3921, 1.0
  %v4434 = vadd.f32 %v3922, 1.0
  %v4435 = vadd.f32 %v3923, 1.0
  %v4436 = vadd.f32 %v3924, 1.0
  %v4437 = vadd.f32 %v3925, 1.0
  %v4438 = vadd.f32 %v3926, 1.0
  %v4439 = vadd.f32 %v3927, 1.0
  %v4440 = vadd.f32 %v3928, 1.0
  %v4441 = vadd.f32 %v3929, 1.0
  %v4442 = vadd.f32 %v3930, 1.0
  %v4443 = vadd.f32 %v3931, 1.0
  %v4444 = vadd.f32 %v3932, 1.0
  %v4445 = vadd.f32 %v3933, 1.0
  %v4446 = vadd.f32 %v3934, 1.0
  %v4447 = vadd.f32 %v3935, 1.0
  %v4448 = vadd.f32 %v3936, 1.0
  %v4449 = vadd.f32 %v3937, 1.0
  %v4450 = vadd.f32 %v3938, 1.0
  %v4451 = vadd.f32 %v3939, 1.0
  %v4452 = vadd.f32 %v3940, 1.0
  %v4453 = vadd.f32 %v3941, 1.0
  %v4454 = vadd.f32 %v3942, 1.0
  %v4455 = vadd.f32 %v3943, 1.0
  %v4456 = vadd.f32 %v3944, 1.0
  %v4457 = vadd.f32 %v3945, 1.0
  %v4458 = vadd.f32 %v3946, 1.0
  %v4459 = vadd.f32 %v3947, 1.0
  %v4460 = vadd.f32 %v3948, 1.0
  %v4461 = vadd.f32 %v3949, 1.0
  %v4462 = vadd.f32 %v3950, 1.0
  %v4463 = vadd.f32 %v3951, 1.0
  %v4464 = vadd.f32 %v3952, 1.0
  %v4465 = vadd.f32 %v3953, 1.0
  %v4466 = vadd.f32 %v3954, 1.0
  %v4467 = vadd.f32 %v3955, 1.0
  %v4468 = vadd.f32 %v3956, 1.0
  %v4469 = vadd.f32 %v3957, 1.0
  %v4470 = vadd.f32 %v3958, 1.0
  %v4471 = vadd.f32 %v3959, 1.0
  %v4472 = vadd.f32 %v3960, 1.0
  %v4473 = vadd.f32 %v3961, 1.0
  %v4474 = vadd.f32 %v3962, 1.0
  %v4475 = vadd.f32 %v3963, 1.0
  %v4476 = vadd.f32 %v3964, 1.0
  %v4477 = vadd.f32 %v3965, 1.0
  %v4478 = vadd.f32 %v3966, 1.0
  %v4479 = vadd.f32 %v3967, 1.0
  %v4480 = vadd.f32 %v3968, 1.0
  %v4481 = vadd.f32 %v3969, 1.0
  %v4482 = vadd.f32 %v3970, 1.0
  %v4483 = vadd.f32 %v3971, 1.0
  %v4484 = vadd.f32 %v3972, 1.0
  %v4485 = vadd.f32 %v3973, 1.0
  %v4486 = vadd.f32 %v3974, 1.0
  %v4487 = vadd.f32 %v3975, 1.0
  %v4488 = vadd.f32 %v3976, 1.0
  %v4489 = vadd.f32 %v3977, 1.0
  %v4490 = vadd.f32 %v3978, 1.0
  %v4491 = vadd.f32 %v3979, 1.0
  %v4492 = vadd.f32 %v3980, 1.0
  %v4493 = vadd.f32 %v3981, 1.0
  %v4494 = vadd.f32 %v3982, 1.0
  %v4495 = vadd.f32 %v3983, 1.0
  %v4496 = vadd.f32 %v3984, 1.0
  %v4497 = vadd.f32 %v3985, 1.0
  %v4498 = vadd.f32 %v3986, 1.0
  %v4499 = vadd.f32 %v3987, 1.0
  %v4500 = vadd.f32 %v3988, 1.0
  %v4501 = vadd.f32 %v3989, 1.0
  %v4502 = vadd.f32 %v3990, 1.0
  %v4503 = vadd.f32 %v3991, 1.0
  %v4504 = vadd.f32 %v3992, 1.0
  %v4505 = vadd.f32 %v3993, 1.0
  %v4506 = vadd.f32 %v3994, 1.0
  %v4507 = vadd.f32 %v3995, 1.0
  %v4508 = vadd.f32 %v3996, 1.0
  %v4509 = vadd.f32 %v3997, 1.0
  %v4510 = vadd.f32 %v3998, 1.0
  %v4511 = vadd.f32 %v3999, 1.0
  %v4512 = vadd.f32 %v4000, 1.0
  %v4513 = vadd.f32 %v4001, 1.0
  %v4514 = vadd.f32 %v4002, 1.0
  %v4515 = vadd.f32 %v4003, 1.0
  %v4516 = vadd.f32 %v4004, 1.0
  %v4517 = vadd.f32 %v4005, 1.0
  %v4518 = vadd.f32 %v4006, 1.0
  %v4519 = vadd.f32 %v4007, 1.0
  %v4520 = vadd.f32 %v4008, 1.0
  %v4521 = vadd.f32 %v4009, 1.0
  %v4522 = vadd.f32 %v4010, 1.0
  %v4523 = vadd.f32 %v4011, 1.0
  %v4524 = vadd.f32 %v4012, 1.0
  %v4525 = vadd.f32 %v4013, 1.0
  %v4526 = vadd.f32 %v4014, 1.0
  %v4527 = vadd.f32 %v4015, 1.0
  %v4528 = vadd.f32 %v4016, 1.0
  %v4529 = vadd.f32 %v4017, 1.0
  %v4530 = vadd.f32 %v4018, 1.0
  %v4531 = vadd.f32 %v4019, 1.0
  %v4532 = vadd.f32 %v4020, 1.0
  %v4533 = vadd.f32 %v4021, 1.0
  %v4534 = vadd.f32 %v4022, 1.0
  %v4535 = vadd.f32 %v4023, 1.0
  %v4536 = vadd.f32 %v4024, 1.0
  %v4537 = vadd.f32 %v4025, 1.0
  %v4538 = vadd.f32 %v4026, 1.0
  %v4539 = vadd.f32 %v4027, 1.0
  %v4540 = vadd.f32 %v4028, 1.0
  %v4541 = vadd.f32 %v4029, 1.0
  %v4542 = vadd.f32 %v4030, 1.0
  %v4543 = vadd.f32 %v4031, 1.0
  %v4544 = vadd.f32 %v4032, 1.0
  %v4545 = vadd.f32 %v4033, 1.0
  %v4546 = vadd.f32 %v4034, 1.0
  %v4547 = vadd.f32 %v4035, 1.0
  %v4548 = vadd.f32 %v4036, 1.0
  %v4549 = vadd.f32 %v4037, 1.0
  %v4550 = vadd.f32 %v4038, 1.0
  %v4551 = vadd.f32 %v4039, 1.0
  %v4552 = vadd.f32 %v4040, 1.0
  %v4553 = vadd.f32 %v4041, 1.0
  %v4554 = vadd.f32 %v4042, 1.0
  %v4555 = vadd.f32 %v4043, 1.0
  %v4556 = vadd.f32 %v4044, 1.0
  %v4557 = vadd.f32 %v4045, 1.0
  %v4558 = vadd.f32 %v4046, 1.0
  %v4559 = vadd.f32 %v4047, 1.0
  %v4560 = vadd.f32 %v4048, 1.0
  %v4561 = vadd.f32 %v4049, 1.0
  %v4562 = vadd.f32 %v4050, 1.0
  %v4563 = vadd.f32 %v4051, 1.0
  %v4564 = vadd.f32 %v4052, 1.0
  %v4565 = vadd.f32 %v4053, 1.0
  %v4566 = vadd.f32 %v4054, 1.0
  %v4567 = vadd.f32 %v4055, 1.0
  %v4568 = vadd.f32 %v4056, 1.0
  %v4569 = vadd.f32 %v4057, 1.0
  %v4570 = vadd.f32 %v4058, 1.0
  %v4571 = vadd.f32 %v4059, 1.0
  %v4572 = vadd.f32 %v4060, 1.0
  %v4573 = vadd.f32 %v4061, 1.0
  %v4574 = vadd.f32 %v4062, 1.0
  %v4575 = vadd.f32 %v4063, 1.0
  %v4576 = vadd.f32 %v4064, 1.0
  %v4577 = vadd.f32 %v4065, 1.0
  %v4578 = vadd.f32 %v4066, 1.0
  %v4579 = vadd.f32 %v4067, 1.0
  %v4580 = vadd.f32 %v4068, 1.0
  %v4581 = vadd.f32 %v4069, 1.0
  %v4582 = vadd.f32 %v4070, 1.0
  %v4583 = vadd.f32 %v4071, 1.0
  %v4584 = vadd.f32 %v4072, 1.0
  %v4585 = vadd.f32 %v4073, 1.0
  %v4586 = vadd.f32 %v4074, 1.0
  %v4587 = vadd.f32 %v4075, 1.0
  %v4588 = vadd.f32 %v4076, 1.0
  %v4589 = vadd.f32 %v4077, 1.0
  %v4590 = vadd.f32 %v4078, 1.0
  %v4591 = vadd.f32 %v4079, 1.0
  %v4592 = vadd.f32 %v4080, 1.0
  %v4593 = vadd.f32 %v4081, 1.0
  %v4594 = vadd.f32 %v4082, 1.0
  %v4595 = vadd.f32 %v4083, 1.0
  %v4596 = vadd.f32 %v4084, 1.0
  %v4597 = vadd.f32 %v4085, 1.0
  %v4598 = vadd.f32 %v4086, 1.0
  %v4599 = vadd.f32 %v4087, 1.0
  %v4600 = vadd.f32 %v4088, 1.0
  %v4601 = vadd.f32 %v4089, 1.0
  %v4602 = vadd.f32 %v4090, 1.0
  %v4603 = vadd.f32 %v4091, 1.0
  %v4604 = vadd.f32 %v4092, 1.0
  %v4605 = vadd.f32 %v4093, 1.0
  %v4606 = vadd.f32 %v4094, 1.0
  %v4607 = vadd.f32 %v4095, 1.0
  %v4608 = vadd.f32 %v4096, 1.0
  %v4609 = vadd.f32 %v4097, 1.0
  %v4610 = vadd.f32 %v4098, 1.0
  %v4611 = vadd.f32 %v4099, 1.0
  %v4612 = vadd.f32 %v4100, 1.0
  %v4613 = vadd.f32 %v4101, 1.0
  %v4614 = vadd.f32 %v4102, 1.0
  %v4615 = vadd.f32 %v4103, 1.0
  %v4616 = vadd.f32 %v4104, 1.0
  %v4617 = vadd.f32 %v4105, 1.0
  %v4618 = vadd.f32 %v4106, 1.0
  %v4619 = vadd.f32 %v4107, 1.0
  %v4620 = vadd.f32 %v4108, 1.0
  %v4621 = vadd.f32 %v4109, 1.0
  %v4622 = vadd.f32 %v4110, 1.0
  %v4623 = vadd.f32 %v4111, 1.0
  %v4624 = vadd.f32 %v4112, 1.0
  %v4625 = vadd.f32 %v4113, 1.0
  %v4626 = vadd.f32 %v4114, 1.0
  %v4627 = vadd.f32 %v4115, 1.0
  %v4628 = vadd.f32 %v4116, 1.0
  %v4629 = vadd.f32 %v4117, 1.0
  %v4630 = vadd.f32 %v4118, 1.0
  %v4631 = vadd.f32 %v4119, 1.0
  %v4632 = vadd.f32 %v4120, 1.0
  %v4633 = vadd.f32 %v4121, 1.0
  %v4634 = vadd.f32 %v4122, 1.0
  %v4635 = vadd.f32 %v4123, 1.0
  %v4636 = vadd.f32 %v4124, 1.0
  %v4637 = vadd.f32 %v4125, 1.0
  %v4638 = vadd.f32 %v4126, 1.0
  %v4639 = vadd.f32 %v4127, 1.0
  %v4640 = vadd.f32 %v4128, 1.0
  %v4641 = vadd.f32 %v4129, 1.0
  %v4642 = vadd.f32 %v4130, 1.0
  %v4643 = vadd.f32 %v4131, 1.0
  %v4644 = vadd.f32 %v4132, 1.0
  %v4645 = vadd.f32 %v4133, 1.0
  %v4646 = vadd.f32 %v4134, 1.0
  %v4647 = vadd.f32 %v4135, 1.0
  %v4648 = vadd.f32 %v4136, 1.0
  %v4649 = vadd.f32 %v4137, 1.0
  %v4650 = vadd.f32 %v4138, 1.0
  %v4651 = vadd.f32 %v4139, 1.0
  %v4652 = vadd.f32 %v4140, 1.0
  %v4653 = vadd.f32 %v4141, 1.0
  %v4654 = vadd.f32 %v4142, 1.0
  %v4655 = vadd.f32 %v4143, 1.0
  %v4656 = vadd.f32 %v4144, 1.0
  %v4657 = vadd.f32 %v4145, 1.0
  %v4658 = vadd.f32 %v4146, 1.0
  %v4659 = vadd.f32 %v4147, 1.0
  %v4660 = vadd.f32 %v4148, 1.0
  %v4661 = vadd.f32 %v4149, 1.0
  %v4662 = vadd.f32 %v4150, 1.0
  %v4663 = vadd.f32 %v4151, 1.0
  %v4664 = vadd.f32 %v4152, 1.0
  %v4665 = vadd.f32 %v4153, 1.0
  %v4666 = vadd.f32 %v4154, 1.0
  %v4667 = vadd.f32 %v4155, 1.0
  %v4668 = vadd.f32 %v4156, 1.0
  %v4669 = vadd.f32 %v4157, 1.0
  %v4670 = vadd.f32 %v4158, 1.0
  %v4671 = vadd.f32 %v4159, 1.0
  %v4672 = vadd.f32 %v4160, 1.0
  %v4673 = vadd.f32 %v4161, 1.0
  %v4674 = vadd.f32 %v4162, 1.0
  %v4675 = vadd.f32 %v4163, 1.0
  %v4676 = vadd.f32 %v4164, 1.0
  %v4677 = vadd.f32 %v4165, 1.0
  %v4678 = vadd.f32 %v4166, 1.0
  %v4679 = vadd.f32 %v4167, 1.0
  %v4680 = vadd.f32 %v4168, 1.0
  %v4681 = vadd.f32 %v4169, 1.0
  %v4682 = vadd.f32 %v4170, 1.0
  %v4683 = vadd.f32 %v4171, 1.0
  %v4684 = vadd.f32 %v4172, 1.0
  %v4685 = vadd.f32 %v4173, 1.0
  %v4686 = vadd.f32 %v4174, 1.0
  %v4687 = vadd.f32 %v4175, 1.0
  %v4688 = vadd.f32 %v4176, 1.0
  %v4689 = vadd.f32 %v4177, 1.0
  %v4690 = vadd.f32 %v4178, 1.0
  %v4691 = vadd.f32 %v4179, 1.0
  %v4692 = vadd.f32 %v4180, 1.0
  %v4693 = vadd.f32 %v4181, 1.0
  %v4694 = vadd.f32 %v4182, 1.0
  %v4695 = vadd.f32 %v4183, 1.0
  %v4696 = vadd.f32 %v4184, 1.0
  %v4697 = vadd.f32 %v4185, 1.0
  %v4698 = vadd.f32 %v4186, 1.0
  %v4699 = vadd.f32 %v4187, 1.0
  %v4700 = vadd.f32 %v4188, 1.0
  %v4701 = vadd.f32 %v4189, 1.0
  %v4702 = vadd.f32 %v4190, 1.0
  %v4703 = vadd.f32 %v4191, 1.0
  %v4704 = vadd.f32 %v4192, 1.0
  %v4705 = vadd.f32 %v4193, 1.0
  %v4706 = vadd.f32 %v4194, 1.0
  %v4707 = vadd.f32 %v4195, 1.0
  %v4708 = vadd.f32 %v4196, 1.0
  %v4709 = vadd.f32 %v4197, 1.0
  %v4710 = vadd.f32 %v4198, 1.0
  %v4711 = vadd.f32 %v4199, 1.0
  %v4712 = vadd.f32 %v4200, 1.0
  %v4713 = vadd.f32 %v4201, 1.0
  %v4714 = vadd.f32 %v4202, 1.0
  %v4715 = vadd.f32 %v4203, 1.0
  %v4716 = vadd.f32 %v4204, 1.0
  %v4717 = vadd.f32 %v4205, 1.0
  %v4718 = vadd.f32 %v4206, 1.0
  %v4719 = vadd.f32 %v4207, 1.0
  %v4720 = vadd.f32 %v4208, 1.0
  %v4721 = vadd.f32 %v4209, 1.0
  %v4722 = vadd.f32 %v4210, 1.0
  %v4723 = vadd.f32 %v4211, 1.0
  %v4724 = vadd.f32 %v4212, 1.0
  %v4725 = vadd.f32 %v4213, 1.0
  %v4726 = vadd.f32 %v4214, 1.0
  %v4727 = vadd.f32 %v4215, 1.0
  %v4728 = vadd.f32 %v4216, 1.0
  %v4729 = vadd.f32 %v4217, 1.0
  %v4730 = vadd.f32 %v4218, 1.0
  %v4731 = vadd.f32 %v4219, 1.0
  %v4732 = vadd.f32 %v4220, 1.0
  %v4733 = vadd.f32 %v4221, 1.0
  %v4734 = vadd.f32 %v4222, 1.0
  %v4735 = vadd.f32 %v4223, 1.0
  %v4736 = vadd.f32 %v4224, 1.0
  %v4737 = vadd.f32 %v4225, 1.0
  %v4738 = vadd.f32 %v4226, 1.0
  %v4739 = vadd.f32 %v4227, 1.0
  %v4740 = vadd.f32 %v4228, 1.0
  %v4741 = vadd.f32 %v4229, 1.0
  %v4742 = vadd.f32 %v4230, 1.0
  %v4743 = vadd.f32 %v4231, 1.0
  %v4744 = vadd.f32 %v4232, 1.0
  %v4745 = vadd.f32 %v4233, 1.0
  %v4746 = vadd.f32 %v4234, 1.0
  %v4747 = vadd.f32 %v4235, 1.0
  %v4748 = vadd.f32 %v4236, 1.0
  %v4749 = vadd.f32 %v4237, 1.0
  %v4750 = vadd.f32 %v4238, 1.0
  %v4751 = vadd.f32 %v4239, 1.0
  %v4752 = vadd.f32 %v4240, 1.0
  %v4753 = vadd.f32 %v4241, 1.0
  %v4754 = vadd.f32 %v4242, 1.0
  %v4755 = vadd.f32 %v4243, 1.0
  %v4756 = vadd.f32 %v4244, 1.0
  %v4757 = vadd.f32 %v4245, 1.0
  %v4758 = vadd.f32 %v4246, 1.0
  %v4759 = vadd.f32 %v4247, 1.0
  %v4760 = vadd.f32 %v4248, 1.0
  %v4761 = vadd.f32 %v4249, 1.0
  %v4762 = vadd.f32 %v4250, 1.0
  %v4763 = vadd.f32 %v4251, 1.0
  %v4764 = vadd.f32 %v4252, 1.0
  %v4765 = vadd.f32 %v4253, 1.0
  %v4766 = vadd.f32 %v4254, 1.0
  %v4767 = vadd.f32 %v4255, 1.0
  %v4768 = vadd.f32 %v4256, 1.0
  %v4769 = vadd.f32 %v4257, 1.0
  %v4770 = vadd.f32 %v4258, 1.0
  %v4771 = vadd.f32 %v4259, 1.0
  %v4772 = vadd.f32 %v4260, 1.0
  %v4773 = vadd.f32 %v4261, 1.0
  %v4774 = vadd.f32 %v4262, 1.0
  %v4775 = vadd.f32 %v4263, 1.0
  %v4776 = vadd.f32 %v4264, 1.0
  %v4777 = vadd.f32 %v4265, 1.0
  %v4778 = vadd.f32 %v4266, 1.0
  %v4779 = vadd.f32 %v4267, 1.0
  %v4780 = vadd.f32 %v4268, 1.0
  %v4781 = vadd.f32 %v4269, 1.0
  %v4782 = vadd.f32 %v4270, 1.0
  %v4783 = vadd.f32 %v4271, 1.0
  %v4784 = vadd.f32 %v4272, 1.0
  %v4785 = vadd.f32 %v4273, 1.0
  %v4786 = vadd.f32 %v4274, 1.0
  %v4787 = vadd.f32 %v4275, 1.0
  %v4788 = vadd.f32 %v4276, 1.0
  %v4789 = vadd.f32 %v4277, 1.0
  %v4790 = vadd.f32 %v4278, 1.0
  %v4791 = vadd.f32 %v4279, 1.0
  %v4792 = vadd.f32 %v4280, 1.0
  %v4793 = vadd.f32 %v4281, 1.0
  %v4794 = vadd.f32 %v4282, 1.0
  %v4795 = vadd.f32 %v4283, 1.0
  %v4796 = vadd.f32 %v4284, 1.0
  %v4797 = vadd.f32 %v4285, 1.0
  %v4798 = vadd.f32 %v4286, 1.0
  %v4799 = vadd.f32 %v4287, 1.0
  %v4800 = vadd.f32 %v4288, 1.0
  %v4801 = vadd.f32 %v4289, 1.0
  %v4802 = vadd.f32 %v4290, 1.0
  %v4803 = vadd.f32 %v4291, 1.0
  %v4804 = vadd.f32 %v4292, 1.0
  %v4805 = vadd.f32 %v4293, 1.0
  %v4806 = vadd.f32 %v4294, 1.0
  %v4807 = vadd.f32 %v4295, 1.0
  %v4808 = vadd.f32 %v4296, 1.0
  %v4809 = vadd.f32 %v4297, 1.0
  %v4810 = vadd.f32 %v4298, 1.0
  %v4811 = vadd.f32 %v4299, 1.0
  %v4812 = vadd.f32 %v4300, 1.0
  %v4813 = vadd.f32 %v4301, 1.0
  %v4814 = vadd.f32 %v4302, 1.0
  %v4815 = vadd.f32 %v4303, 1.0
  %v4816 = vadd.f32 %v4304, 1.0
  %v4817 = vadd.f32 %v4305, 1.0
  %v4818 = vadd.f32 %v4306, 1.0
  %v4819 = vadd.f32 %v4307, 1.0
  %v4820 = vadd.f32 %v4308, 1.0
  %v4821 = vadd.f32 %v4309, 1.0
  %v4822 = vadd.f32 %v4310, 1.0
  %v4823 = vadd.f32 %v4311, 1.0
  %v4824 = vadd.f32 %v4312, 1.0
  %v4825 = vadd.f32 %v4313, 1.0
  %v4826 = vadd.f32 %v4314, 1.0
  %v4827 = vadd.f32 %v4315, 1.0
  %v4828 = vadd.f32 %v4316, 1.0
  %v4829 = vadd.f32 %v4317, 1.0
  %v4830 = vadd.f32 %v4318, 1.0
  %v4831 = vadd.f32 %v4319, 1.0
  %v4832 = vadd.f32 %v4320, 1.0
  %v4833 = vadd.f32 %v4321, 1.0
  %v4834 = vadd.f32 %v4322, 1.0
  %v4835 = vadd.f32 %v4323, 1.0
  %v4836 = vadd.f32 %v4324, 1.0
  %v4837 = vadd.f32 %v4325, 1.0
  %v4838 = vadd.f32 %v4326, 1.0
  %v4839 = vadd.f32 %v4327, 1.0
  %v4840 = vadd.f32 %v4328, 1.0
  %v4841 = vadd.f32 %v4329, 1.0
  %v4842 = vadd.f32 %v4330, 1.0
  %v4843 = vadd.f32 %v4331, 1.0
  %v4844 = vadd.f32 %v4332, 1.0
  %v4845 = vadd.f32 %v4333, 1.0
  %v4846 = vadd.f32 %v4334, 1.0
  %v4847 = vadd.f32 %v4335, 1.0
  %v4848 = vadd.f32 %v4336, 1.0
  %v4849 = vadd.f32 %v4337, 1.0
  %v4850 = vadd.f32 %v4338, 1.0
  %v4851 = vadd.f32 %v4339, 1.0
  %v4852 = vadd.f32 %v4340, 1.0
  %v4853 = vadd.f32 %v4341, 1.0
  %v4854 = vadd.f32 %v4342, 1.0
  %v4855 = vadd.f32 %v4343, 1.0
  %v4856 = vadd.f32 %v4344, 1.0
  %v4857 = vadd.f32 %v4345, 1.0
  %v4858 = vadd.f32 %v4346, 1.0
  %v4859 = vadd.f32 %v4347, 1.0
  %v4860 = vadd.f32 %v4348, 1.0
  %v4861 = vadd.f32 %v4349, 1.0
  %v4862 = vadd.f32 %v4350, 1.0
  %v4863 = vadd.f32 %v4351, 1.0
  %v4864 = vadd.f32 %v4352, 1.0
  %v4865 = vadd.f32 %v4353, 1.0
  %v4866 = vadd.f32 %v4354, 1.0
  %v4867 = vadd.f32 %v4355, 1.0
  %v4868 = vadd.f32 %v4356, 1.0
  %v4869 = vadd.f32 %v4357, 1.0
  %v4870 = vadd.f32 %v4358, 1.0
  %v4871 = vadd.f32 %v4359, 1.0
  %v4872 = vadd.f32 %v4360, 1.0
  %v4873 = vadd.f32 %v4361, 1.0
  %v4874 = vadd.f32 %v4362, 1.0
  %v4875 = vadd.f32 %v4363, 1.0
  %v4876 = vadd.f32 %v4364, 1.0
  %v4877 = vadd.f32 %v4365, 1.0
  %v4878 = vadd.f32 %v4366, 1.0
  %v4879 = vadd.f32 %v4367, 1.0
  %v4880 = vadd.f32 %v4368, 1.0
  %v4881 = vadd.f32 %v4369, 1.0
  %v4882 = vadd.f32 %v4370, 1.0
  %v4883 = vadd.f32 %v4371, 1.0
  %v4884 = vadd.f32 %v4372, 1.0
  %v4885 = vadd.f32 %v4373, 1.0
  %v4886 = vadd.f32 %v4374, 1.0
  %v4887 = vadd.f32 %v4375, 1.0
  %v4888 = vadd.f32 %v4376, 1.0
  %v4889 = vadd.f32 %v4377, 1.0
  %v4890 = vadd.f32 %v4378, 1.0
  %v4891 = vadd.f32 %v4379, 1.0
  %v4892 = vadd.f32 %v4380, 1.0
  %v4893 = vadd.f32 %v4381, 1.0
  %v4894 = vadd.f32 %v4382, 1.0
  %v4895 = vadd.f32 %v4383, 1.0
  %v4896 = vadd.f32 %v4384, 1.0
  %v4897 = vadd.f32 %v4385, 1.0
  %v4898 = vadd.f32 %v4386, 1.0
  %v4899 = vadd.f32 %v4387, 1.0
  %v4900 = vadd.f32 %v4388, 1.0
  %v4901 = vadd.f32 %v4389, 1.0
  %v4902 = vadd.f32 %v4390, 1.0
  %v4903 = vadd.f32 %v4391, 1.0
  %v4904 = vadd.f32 %v4392, 1.0
  %v4905 = vadd.f32 %v4393, 1.0
  %v4906 = vadd.f32 %v4394, 1.0
  %v4907 = vadd.f32 %v4395, 1.0
  %v4908 = vadd.f32 %v4396, 1.0
  %v4909 = vadd.f32 %v4397, 1.0
  %v4910 = vadd.f32 %v4398, 1.0
  %v4911 = vadd.f32 %v4399, 1.0
  %v4912 = vadd.f32 %v4400, 1.0
  %v4913 = vadd.f32 %v4401, 1.0
  %v4914 = vadd.f32 %v4402, 1.0
  %v4915 = vadd.f32 %v4403, 1.0
  %v4916 = vadd.f32 %v4404, 1.0
  %v4917 = vadd.f32 %v4405, 1.0
  %v4918 = vadd.f32 %v4406, 1.0
  %v4919 = vadd.f32 %v4407, 1.0
  %v4920 = vadd.f32 %v4408, 1.0
  %v4921 = vadd.f32 %v4409, 1.0
  %v4922 = vadd.f32 %v4410, 1.0
  %v4923 = vadd.f32 %v4411, 1.0
  %v4924 = vadd.f32 %v4412, 1.0
  %v4925 = vadd.f32 %v4413, 1.0
  %v4926 = vadd.f32 %v4414, 1.0
  %v4927 = vadd.f32 %v4415, 1.0
  %v4928 = vadd.f32 %v4416, 1.0
  %v4929 = vadd.f32 %v4417, 1.0
  %v4930 = vmul.f32 %v2882, %v4418
  %v4931 = vmul.f32 %v2883, %v4419
  %v4932 = vmul.f32 %v2884, %v4420
  %v4933 = vmul.f32 %v2885, %v4421
  %v4934 = vmul.f32 %v2886, %v4422
  %v4935 = vmul.f32 %v2887, %v4423
  %v4936 = vmul.f32 %v2888, %v4424
  %v4937 = vmul.f32 %v2889, %v4425
  %v4938 = vmul.f32 %v2890, %v4426
  %v4939 = vmul.f32 %v2891, %v4427
  %v4940 = vmul.f32 %v2892, %v4428
  %v4941 = vmul.f32 %v2893, %v4429
  %v4942 = vmul.f32 %v2894, %v4430
  %v4943 = vmul.f32 %v2895, %v4431
  %v4944 = vmul.f32 %v2896, %v4432
  %v4945 = vmul.f32 %v2897, %v4433
  %v4946 = vmul.f32 %v2898, %v4434
  %v4947 = vmul.f32 %v2899, %v4435
  %v4948 = vmul.f32 %v2900, %v4436
  %v4949 = vmul.f32 %v2901, %v4437
  %v4950 = vmul.f32 %v2902, %v4438
  %v4951 = vmul.f32 %v2903, %v4439
  %v4952 = vmul.f32 %v2904, %v4440
  %v4953 = vmul.f32 %v2905, %v4441
  %v4954 = vmul.f32 %v2906, %v4442
  %v4955 = vmul.f32 %v2907, %v4443
  %v4956 = vmul.f32 %v2908, %v4444
  %v4957 = vmul.f32 %v2909, %v4445
  %v4958 = vmul.f32 %v2910, %v4446
  %v4959 = vmul.f32 %v2911, %v4447
  %v4960 = vmul.f32 %v2912, %v4448
  %v4961 = vmul.f32 %v2913, %v4449
  %v4962 = vmul.f32 %v2914, %v4450
  %v4963 = vmul.f32 %v2915, %v4451
  %v4964 = vmul.f32 %v2916, %v4452
  %v4965 = vmul.f32 %v2917, %v4453
  %v4966 = vmul.f32 %v2918, %v4454
  %v4967 = vmul.f32 %v2919, %v4455
  %v4968 = vmul.f32 %v2920, %v4456
  %v4969 = vmul.f32 %v2921, %v4457
  %v4970 = vmul.f32 %v2922, %v4458
  %v4971 = vmul.f32 %v2923, %v4459
  %v4972 = vmul.f32 %v2924, %v4460
  %v4973 = vmul.f32 %v2925, %v4461
  %v4974 = vmul.f32 %v2926, %v4462
  %v4975 = vmul.f32 %v2927, %v4463
  %v4976 = vmul.f32 %v2928, %v4464
  %v4977 = vmul.f32 %v2929, %v4465
  %v4978 = vmul.f32 %v2930, %v4466
  %v4979 = vmul.f32 %v2931, %v4467
  %v4980 = vmul.f32 %v2932, %v4468
  %v4981 = vmul.f32 %v2933, %v4469
  %v4982 = vmul.f32 %v2934, %v4470
  %v4983 = vmul.f32 %v2935, %v4471
  %v4984 = vmul.f32 %v2936, %v4472
  %v4985 = vmul.f32 %v2937, %v4473
  %v4986 = vmul.f32 %v2938, %v4474
  %v4987 = vmul.f32 %v2939, %v4475
  %v4988 = vmul.f32 %v2940, %v4476
  %v4989 = vmul.f32 %v2941, %v4477
  %v4990 = vmul.f32 %v2942, %v4478
  %v4991 = vmul.f32 %v2943, %v4479
  %v4992 = vmul.f32 %v2944, %v4480
  %v4993 = vmul.f32 %v2945, %v4481
  %v4994 = vmul.f32 %v2946, %v4482
  %v4995 = vmul.f32 %v2947, %v4483
  %v4996 = vmul.f32 %v2948, %v4484
  %v4997 = vmul.f32 %v2949, %v4485
  %v4998 = vmul.f32 %v2950, %v4486
  %v4999 = vmul.f32 %v2951, %v4487
  %v5000 = vmul.f32 %v2952, %v4488
  %v5001 = vmul.f32 %v2953, %v4489
  %v5002 = vmul.f32 %v2954, %v4490
  %v5003 = vmul.f32 %v2955, %v4491
  %v5004 = vmul.f32 %v2956, %v4492
  %v5005 = vmul.f32 %v2957, %v4493
  %v5006 = vmul.f32 %v2958, %v4494
  %v5007 = vmul.f32 %v2959, %v4495
  %v5008 = vmul.f32 %v2960, %v4496
  %v5009 = vmul.f32 %v2961, %v4497
  %v5010 = vmul.f32 %v2962, %v4498
  %v5011 = vmul.f32 %v2963, %v4499
  %v5012 = vmul.f32 %v2964, %v4500
  %v5013 = vmul.f32 %v2965, %v4501
  %v5014 = vmul.f32 %v2966, %v4502
  %v5015 = vmul.f32 %v2967, %v4503
  %v5016 = vmul.f32 %v2968, %v4504
  %v5017 = vmul.f32 %v2969, %v4505
  %v5018 = vmul.f32 %v2970, %v4506
  %v5019 = vmul.f32 %v2971, %v4507
  %v5020 = vmul.f32 %v2972, %v4508
  %v5021 = vmul.f32 %v2973, %v4509
  %v5022 = vmul.f32 %v2974, %v4510
  %v5023 = vmul.f32 %v2975, %v4511
  %v5024 = vmul.f32 %v2976, %v4512
  %v5025 = vmul.f32 %v2977, %v4513
  %v5026 = vmul.f32 %v2978, %v4514
  %v5027 = vmul.f32 %v2979, %v4515
  %v5028 = vmul.f32 %v2980, %v4516
  %v5029 = vmul.f32 %v2981, %v4517
  %v5030 = vmul.f32 %v2982, %v4518
  %v5031 = vmul.f32 %v2983, %v4519
  %v5032 = vmul.f32 %v2984, %v4520
  %v5033 = vmul.f32 %v2985, %v4521
  %v5034 = vmul.f32 %v2986, %v4522
  %v5035 = vmul.f32 %v2987, %v4523
  %v5036 = vmul.f32 %v2988, %v4524
  %v5037 = vmul.f32 %v2989, %v4525
  %v5038 = vmul.f32 %v2990, %v4526
  %v5039 = vmul.f32 %v2991, %v4527
  %v5040 = vmul.f32 %v2992, %v4528
  %v5041 = vmul.f32 %v2993, %v4529
  %v5042 = vmul.f32 %v2994, %v4530
  %v5043 = vmul.f32 %v2995, %v4531
  %v5044 = vmul.f32 %v2996, %v4532
  %v5045 = vmul.f32 %v2997, %v4533
  %v5046 = vmul.f32 %v2998, %v4534
  %v5047 = vmul.f32 %v2999, %v4535
  %v5048 = vmul.f32 %v3000, %v4536
  %v5049 = vmul.f32 %v3001, %v4537
  %v5050 = vmul.f32 %v3002, %v4538
  %v5051 = vmul.f32 %v3003, %v4539
  %v5052 = vmul.f32 %v3004, %v4540
  %v5053 = vmul.f32 %v3005, %v4541
  %v5054 = vmul.f32 %v3006, %v4542
  %v5055 = vmul.f32 %v3007, %v4543
  %v5056 = vmul.f32 %v3008, %v4544
  %v5057 = vmul.f32 %v3009, %v4545
  %v5058 = vmul.f32 %v3010, %v4546
  %v5059 = vmul.f32 %v3011, %v4547
  %v5060 = vmul.f32 %v3012, %v4548
  %v5061 = vmul.f32 %v3013, %v4549
  %v5062 = vmul.f32 %v3014, %v4550
  %v5063 = vmul.f32 %v3015, %v4551
  %v5064 = vmul.f32 %v3016, %v4552
  %v5065 = vmul.f32 %v3017, %v4553
  %v5066 = vmul.f32 %v3018, %v4554
  %v5067 = vmul.f32 %v3019, %v4555
  %v5068 = vmul.f32 %v3020, %v4556
  %v5069 = vmul.f32 %v3021, %v4557
  %v5070 = vmul.f32 %v3022, %v4558
  %v5071 = vmul.f32 %v3023, %v4559
  %v5072 = vmul.f32 %v3024, %v4560
  %v5073 = vmul.f32 %v3025, %v4561
  %v5074 = vmul.f32 %v3026, %v4562
  %v5075 = vmul.f32 %v3027, %v4563
  %v5076 = vmul.f32 %v3028, %v4564
  %v5077 = vmul.f32 %v3029, %v4565
  %v5078 = vmul.f32 %v3030, %v4566
  %v5079 = vmul.f32 %v3031, %v4567
  %v5080 = vmul.f32 %v3032, %v4568
  %v5081 = vmul.f32 %v3033, %v4569
  %v5082 = vmul.f32 %v3034, %v4570
  %v5083 = vmul.f32 %v3035, %v4571
  %v5084 = vmul.f32 %v3036, %v4572
  %v5085 = vmul.f32 %v3037, %v4573
  %v5086 = vmul.f32 %v3038, %v4574
  %v5087 = vmul.f32 %v3039, %v4575
  %v5088 = vmul.f32 %v3040, %v4576
  %v5089 = vmul.f32 %v3041, %v4577
  %v5090 = vmul.f32 %v3042, %v4578
  %v5091 = vmul.f32 %v3043, %v4579
  %v5092 = vmul.f32 %v3044, %v4580
  %v5093 = vmul.f32 %v3045, %v4581
  %v5094 = vmul.f32 %v3046, %v4582
  %v5095 = vmul.f32 %v3047, %v4583
  %v5096 = vmul.f32 %v3048, %v4584
  %v5097 = vmul.f32 %v3049, %v4585
  %v5098 = vmul.f32 %v3050, %v4586
  %v5099 = vmul.f32 %v3051, %v4587
  %v5100 = vmul.f32 %v3052, %v4588
  %v5101 = vmul.f32 %v3053, %v4589
  %v5102 = vmul.f32 %v3054, %v4590
  %v5103 = vmul.f32 %v3055, %v4591
  %v5104 = vmul.f32 %v3056, %v4592
  %v5105 = vmul.f32 %v3057, %v4593
  %v5106 = vmul.f32 %v3058, %v4594
  %v5107 = vmul.f32 %v3059, %v4595
  %v5108 = vmul.f32 %v3060, %v4596
  %v5109 = vmul.f32 %v3061, %v4597
  %v5110 = vmul.f32 %v3062, %v4598
  %v5111 = vmul.f32 %v3063, %v4599
  %v5112 = vmul.f32 %v3064, %v4600
  %v5113 = vmul.f32 %v3065, %v4601
  %v5114 = vmul.f32 %v3066, %v4602
  %v5115 = vmul.f32 %v3067, %v4603
  %v5116 = vmul.f32 %v3068, %v4604
  %v5117 = vmul.f32 %v3069, %v4605
  %v5118 = vmul.f32 %v3070, %v4606
  %v5119 = vmul.f32 %v3071, %v4607
  %v5120 = vmul.f32 %v3072, %v4608
  %v5121 = vmul.f32 %v3073, %v4609
  %v5122 = vmul.f32 %v3074, %v4610
  %v5123 = vmul.f32 %v3075, %v4611
  %v5124 = vmul.f32 %v3076, %v4612
  %v5125 = vmul.f32 %v3077, %v4613
  %v5126 = vmul.f32 %v3078, %v4614
  %v5127 = vmul.f32 %v3079, %v4615
  %v5128 = vmul.f32 %v3080, %v4616
  %v5129 = vmul.f32 %v3081, %v4617
  %v5130 = vmul.f32 %v3082, %v4618
  %v5131 = vmul.f32 %v3083, %v4619
  %v5132 = vmul.f32 %v3084, %v4620
  %v5133 = vmul.f32 %v3085, %v4621
  %v5134 = vmul.f32 %v3086, %v4622
  %v5135 = vmul.f32 %v3087, %v4623
  %v5136 = vmul.f32 %v3088, %v4624
  %v5137 = vmul.f32 %v3089, %v4625
  %v5138 = vmul.f32 %v3090, %v4626
  %v5139 = vmul.f32 %v3091, %v4627
  %v5140 = vmul.f32 %v3092, %v4628
  %v5141 = vmul.f32 %v3093, %v4629
  %v5142 = vmul.f32 %v3094, %v4630
  %v5143 = vmul.f32 %v3095, %v4631
  %v5144 = vmul.f32 %v3096, %v4632
  %v5145 = vmul.f32 %v3097, %v4633
  %v5146 = vmul.f32 %v3098, %v4634
  %v5147 = vmul.f32 %v3099, %v4635
  %v5148 = vmul.f32 %v3100, %v4636
  %v5149 = vmul.f32 %v3101, %v4637
  %v5150 = vmul.f32 %v3102, %v4638
  %v5151 = vmul.f32 %v3103, %v4639
  %v5152 = vmul.f32 %v3104, %v4640
  %v5153 = vmul.f32 %v3105, %v4641
  %v5154 = vmul.f32 %v3106, %v4642
  %v5155 = vmul.f32 %v3107, %v4643
  %v5156 = vmul.f32 %v3108, %v4644
  %v5157 = vmul.f32 %v3109, %v4645
  %v5158 = vmul.f32 %v3110, %v4646
  %v5159 = vmul.f32 %v3111, %v4647
  %v5160 = vmul.f32 %v3112, %v4648
  %v5161 = vmul.f32 %v3113, %v4649
  %v5162 = vmul.f32 %v3114, %v4650
  %v5163 = vmul.f32 %v3115, %v4651
  %v5164 = vmul.f32 %v3116, %v4652
  %v5165 = vmul.f32 %v3117, %v4653
  %v5166 = vmul.f32 %v3118, %v4654
  %v5167 = vmul.f32 %v3119, %v4655
  %v5168 = vmul.f32 %v3120, %v4656
  %v5169 = vmul.f32 %v3121, %v4657
  %v5170 = vmul.f32 %v3122, %v4658
  %v5171 = vmul.f32 %v3123, %v4659
  %v5172 = vmul.f32 %v3124, %v4660
  %v5173 = vmul.f32 %v3125, %v4661
  %v5174 = vmul.f32 %v3126, %v4662
  %v5175 = vmul.f32 %v3127, %v4663
  %v5176 = vmul.f32 %v3128, %v4664
  %v5177 = vmul.f32 %v3129, %v4665
  %v5178 = vmul.f32 %v3130, %v4666
  %v5179 = vmul.f32 %v3131, %v4667
  %v5180 = vmul.f32 %v3132, %v4668
  %v5181 = vmul.f32 %v3133, %v4669
  %v5182 = vmul.f32 %v3134, %v4670
  %v5183 = vmul.f32 %v3135, %v4671
  %v5184 = vmul.f32 %v3136, %v4672
  %v5185 = vmul.f32 %v3137, %v4673
  %v5186 = vmul.f32 %v3138, %v4674
  %v5187 = vmul.f32 %v3139, %v4675
  %v5188 = vmul.f32 %v3140, %v4676
  %v5189 = vmul.f32 %v3141, %v4677
  %v5190 = vmul.f32 %v3142, %v4678
  %v5191 = vmul.f32 %v3143, %v4679
  %v5192 = vmul.f32 %v3144, %v4680
  %v5193 = vmul.f32 %v3145, %v4681
  %v5194 = vmul.f32 %v3146, %v4682
  %v5195 = vmul.f32 %v3147, %v4683
  %v5196 = vmul.f32 %v3148, %v4684
  %v5197 = vmul.f32 %v3149, %v4685
  %v5198 = vmul.f32 %v3150, %v4686
  %v5199 = vmul.f32 %v3151, %v4687
  %v5200 = vmul.f32 %v3152, %v4688
  %v5201 = vmul.f32 %v3153, %v4689
  %v5202 = vmul.f32 %v3154, %v4690
  %v5203 = vmul.f32 %v3155, %v4691
  %v5204 = vmul.f32 %v3156, %v4692
  %v5205 = vmul.f32 %v3157, %v4693
  %v5206 = vmul.f32 %v3158, %v4694
  %v5207 = vmul.f32 %v3159, %v4695
  %v5208 = vmul.f32 %v3160, %v4696
  %v5209 = vmul.f32 %v3161, %v4697
  %v5210 = vmul.f32 %v3162, %v4698
  %v5211 = vmul.f32 %v3163, %v4699
  %v5212 = vmul.f32 %v3164, %v4700
  %v5213 = vmul.f32 %v3165, %v4701
  %v5214 = vmul.f32 %v3166, %v4702
  %v5215 = vmul.f32 %v3167, %v4703
  %v5216 = vmul.f32 %v3168, %v4704
  %v5217 = vmul.f32 %v3169, %v4705
  %v5218 = vmul.f32 %v3170, %v4706
  %v5219 = vmul.f32 %v3171, %v4707
  %v5220 = vmul.f32 %v3172, %v4708
  %v5221 = vmul.f32 %v3173, %v4709
  %v5222 = vmul.f32 %v3174, %v4710
  %v5223 = vmul.f32 %v3175, %v4711
  %v5224 = vmul.f32 %v3176, %v4712
  %v5225 = vmul.f32 %v3177, %v4713
  %v5226 = vmul.f32 %v3178, %v4714
  %v5227 = vmul.f32 %v3179, %v4715
  %v5228 = vmul.f32 %v3180, %v4716
  %v5229 = vmul.f32 %v3181, %v4717
  %v5230 = vmul.f32 %v3182, %v4718
  %v5231 = vmul.f32 %v3183, %v4719
  %v5232 = vmul.f32 %v3184, %v4720
  %v5233 = vmul.f32 %v3185, %v4721
  %v5234 = vmul.f32 %v3186, %v4722
  %v5235 = vmul.f32 %v3187, %v4723
  %v5236 = vmul.f32 %v3188, %v4724
  %v5237 = vmul.f32 %v3189, %v4725
  %v5238 = vmul.f32 %v3190, %v4726
  %v5239 = vmul.f32 %v3191, %v4727
  %v5240 = vmul.f32 %v3192, %v4728
  %v5241 = vmul.f32 %v3193, %v4729
  %v5242 = vmul.f32 %v3194, %v4730
  %v5243 = vmul.f32 %v3195, %v4731
  %v5244 = vmul.f32 %v3196, %v4732
  %v5245 = vmul.f32 %v3197, %v4733
  %v5246 = vmul.f32 %v3198, %v4734
  %v5247 = vmul.f32 %v3199, %v4735
  %v5248 = vmul.f32 %v3200, %v4736
  %v5249 = vmul.f32 %v3201, %v4737
  %v5250 = vmul.f32 %v3202, %v4738
  %v5251 = vmul.f32 %v3203, %v4739
  %v5252 = vmul.f32 %v3204, %v4740
  %v5253 = vmul.f32 %v3205, %v4741
  %v5254 = vmul.f32 %v3206, %v4742
  %v5255 = vmul.f32 %v3207, %v4743
  %v5256 = vmul.f32 %v3208, %v4744
  %v5257 = vmul.f32 %v3209, %v4745
  %v5258 = vmul.f32 %v3210, %v4746
  %v5259 = vmul.f32 %v3211, %v4747
  %v5260 = vmul.f32 %v3212, %v4748
  %v5261 = vmul.f32 %v3213, %v4749
  %v5262 = vmul.f32 %v3214, %v4750
  %v5263 = vmul.f32 %v3215, %v4751
  %v5264 = vmul.f32 %v3216, %v4752
  %v5265 = vmul.f32 %v3217, %v4753
  %v5266 = vmul.f32 %v3218, %v4754
  %v5267 = vmul.f32 %v3219, %v4755
  %v5268 = vmul.f32 %v3220, %v4756
  %v5269 = vmul.f32 %v3221, %v4757
  %v5270 = vmul.f32 %v3222, %v4758
  %v5271 = vmul.f32 %v3223, %v4759
  %v5272 = vmul.f32 %v3224, %v4760
  %v5273 = vmul.f32 %v3225, %v4761
  %v5274 = vmul.f32 %v3226, %v4762
  %v5275 = vmul.f32 %v3227, %v4763
  %v5276 = vmul.f32 %v3228, %v4764
  %v5277 = vmul.f32 %v3229, %v4765
  %v5278 = vmul.f32 %v3230, %v4766
  %v5279 = vmul.f32 %v3231, %v4767
  %v5280 = vmul.f32 %v3232, %v4768
  %v5281 = vmul.f32 %v3233, %v4769
  %v5282 = vmul.f32 %v3234, %v4770
  %v5283 = vmul.f32 %v3235, %v4771
  %v5284 = vmul.f32 %v3236, %v4772
  %v5285 = vmul.f32 %v3237, %v4773
  %v5286 = vmul.f32 %v3238, %v4774
  %v5287 = vmul.f32 %v3239, %v4775
  %v5288 = vmul.f32 %v3240, %v4776
  %v5289 = vmul.f32 %v3241, %v4777
  %v5290 = vmul.f32 %v3242, %v4778
  %v5291 = vmul.f32 %v3243, %v4779
  %v5292 = vmul.f32 %v3244, %v4780
  %v5293 = vmul.f32 %v3245, %v4781
  %v5294 = vmul.f32 %v3246, %v4782
  %v5295 = vmul.f32 %v3247, %v4783
  %v5296 = vmul.f32 %v3248, %v4784
  %v5297 = vmul.f32 %v3249, %v4785
  %v5298 = vmul.f32 %v3250, %v4786
  %v5299 = vmul.f32 %v3251, %v4787
  %v5300 = vmul.f32 %v3252, %v4788
  %v5301 = vmul.f32 %v3253, %v4789
  %v5302 = vmul.f32 %v3254, %v4790
  %v5303 = vmul.f32 %v3255, %v4791
  %v5304 = vmul.f32 %v3256, %v4792
  %v5305 = vmul.f32 %v3257, %v4793
  %v5306 = vmul.f32 %v3258, %v4794
  %v5307 = vmul.f32 %v3259, %v4795
  %v5308 = vmul.f32 %v3260, %v4796
  %v5309 = vmul.f32 %v3261, %v4797
  %v5310 = vmul.f32 %v3262, %v4798
  %v5311 = vmul.f32 %v3263, %v4799
  %v5312 = vmul.f32 %v3264, %v4800
  %v5313 = vmul.f32 %v3265, %v4801
  %v5314 = vmul.f32 %v3266, %v4802
  %v5315 = vmul.f32 %v3267, %v4803
  %v5316 = vmul.f32 %v3268, %v4804
  %v5317 = vmul.f32 %v3269, %v4805
  %v5318 = vmul.f32 %v3270, %v4806
  %v5319 = vmul.f32 %v3271, %v4807
  %v5320 = vmul.f32 %v3272, %v4808
  %v5321 = vmul.f32 %v3273, %v4809
  %v5322 = vmul.f32 %v3274, %v4810
  %v5323 = vmul.f32 %v3275, %v4811
  %v5324 = vmul.f32 %v3276, %v4812
  %v5325 = vmul.f32 %v3277, %v4813
  %v5326 = vmul.f32 %v3278, %v4814
  %v5327 = vmul.f32 %v3279, %v4815
  %v5328 = vmul.f32 %v3280, %v4816
  %v5329 = vmul.f32 %v3281, %v4817
  %v5330 = vmul.f32 %v3282, %v4818
  %v5331 = vmul.f32 %v3283, %v4819
  %v5332 = vmul.f32 %v3284, %v4820
  %v5333 = vmul.f32 %v3285, %v4821
  %v5334 = vmul.f32 %v3286, %v4822
  %v5335 = vmul.f32 %v3287, %v4823
  %v5336 = vmul.f32 %v3288, %v4824
  %v5337 = vmul.f32 %v3289, %v4825
  %v5338 = vmul.f32 %v3290, %v4826
  %v5339 = vmul.f32 %v3291, %v4827
  %v5340 = vmul.f32 %v3292, %v4828
  %v5341 = vmul.f32 %v3293, %v4829
  %v5342 = vmul.f32 %v3294, %v4830
  %v5343 = vmul.f32 %v3295, %v4831
  %v5344 = vmul.f32 %v3296, %v4832
  %v5345 = vmul.f32 %v3297, %v4833
  %v5346 = vmul.f32 %v3298, %v4834
  %v5347 = vmul.f32 %v3299, %v4835
  %v5348 = vmul.f32 %v3300, %v4836
  %v5349 = vmul.f32 %v3301, %v4837
  %v5350 = vmul.f32 %v3302, %v4838
  %v5351 = vmul.f32 %v3303, %v4839
  %v5352 = vmul.f32 %v3304, %v4840
  %v5353 = vmul.f32 %v3305, %v4841
  %v5354 = vmul.f32 %v3306, %v4842
  %v5355 = vmul.f32 %v3307, %v4843
  %v5356 = vmul.f32 %v3308, %v4844
  %v5357 = vmul.f32 %v3309, %v4845
  %v5358 = vmul.f32 %v3310, %v4846
  %v5359 = vmul.f32 %v3311, %v4847
  %v5360 = vmul.f32 %v3312, %v4848
  %v5361 = vmul.f32 %v3313, %v4849
  %v5362 = vmul.f32 %v3314, %v4850
  %v5363 = vmul.f32 %v3315, %v4851
  %v5364 = vmul.f32 %v3316, %v4852
  %v5365 = vmul.f32 %v3317, %v4853
  %v5366 = vmul.f32 %v3318, %v4854
  %v5367 = vmul.f32 %v3319, %v4855
  %v5368 = vmul.f32 %v3320, %v4856
  %v5369 = vmul.f32 %v3321, %v4857
  %v5370 = vmul.f32 %v3322, %v4858
  %v5371 = vmul.f32 %v3323, %v4859
  %v5372 = vmul.f32 %v3324, %v4860
  %v5373 = vmul.f32 %v3325, %v4861
  %v5374 = vmul.f32 %v3326, %v4862
  %v5375 = vmul.f32 %v3327, %v4863
  %v5376 = vmul.f32 %v3328, %v4864
  %v5377 = vmul.f32 %v3329, %v4865
  %v5378 = vmul.f32 %v3330, %v4866
  %v5379 = vmul.f32 %v3331, %v4867
  %v5380 = vmul.f32 %v3332, %v4868
  %v5381 = vmul.f32 %v3333, %v4869
  %v5382 = vmul.f32 %v3334, %v4870
  %v5383 = vmul.f32 %v3335, %v4871
  %v5384 = vmul.f32 %v3336, %v4872
  %v5385 = vmul.f32 %v3337, %v4873
  %v5386 = vmul.f32 %v3338, %v4874
  %v5387 = vmul.f32 %v3339, %v4875
  %v5388 = vmul.f32 %v3340, %v4876
  %v5389 = vmul.f32 %v3341, %v4877
  %v5390 = vmul.f32 %v3342, %v4878
  %v5391 = vmul.f32 %v3343, %v4879
  %v5392 = vmul.f32 %v3344, %v4880
  %v5393 = vmul.f32 %v3345, %v4881
  %v5394 = vmul.f32 %v3346, %v4882
  %v5395 = vmul.f32 %v3347, %v4883
  %v5396 = vmul.f32 %v3348, %v4884
  %v5397 = vmul.f32 %v3349, %v4885
  %v5398 = vmul.f32 %v3350, %v4886
  %v5399 = vmul.f32 %v3351, %v4887
  %v5400 = vmul.f32 %v3352, %v4888
  %v5401 = vmul.f32 %v3353, %v4889
  %v5402 = vmul.f32 %v3354, %v4890
  %v5403 = vmul.f32 %v3355, %v4891
  %v5404 = vmul.f32 %v3356, %v4892
  %v5405 = vmul.f32 %v3357, %v4893
  %v5406 = vmul.f32 %v3358, %v4894
  %v5407 = vmul.f32 %v3359, %v4895
  %v5408 = vmul.f32 %v3360, %v4896
  %v5409 = vmul.f32 %v3361, %v4897
  %v5410 = vmul.f32 %v3362, %v4898
  %v5411 = vmul.f32 %v3363, %v4899
  %v5412 = vmul.f32 %v3364, %v4900
  %v5413 = vmul.f32 %v3365, %v4901
  %v5414 = vmul.f32 %v3366, %v4902
  %v5415 = vmul.f32 %v3367, %v4903
  %v5416 = vmul.f32 %v3368, %v4904
  %v5417 = vmul.f32 %v3369, %v4905
  %v5418 = vmul.f32 %v3370, %v4906
  %v5419 = vmul.f32 %v3371, %v4907
  %v5420 = vmul.f32 %v3372, %v4908
  %v5421 = vmul.f32 %v3373, %v4909
  %v5422 = vmul.f32 %v3374, %v4910
  %v5423 = vmul.f32 %v3375, %v4911
  %v5424 = vmul.f32 %v3376, %v4912
  %v5425 = vmul.f32 %v3377, %v4913
  %v5426 = vmul.f32 %v3378, %v4914
  %v5427 = vmul.f32 %v3379, %v4915
  %v5428 = vmul.f32 %v3380, %v4916
  %v5429 = vmul.f32 %v3381, %v4917
  %v5430 = vmul.f32 %v3382, %v4918
  %v5431 = vmul.f32 %v3383, %v4919
  %v5432 = vmul.f32 %v3384, %v4920
  %v5433 = vmul.f32 %v3385, %v4921
  %v5434 = vmul.f32 %v3386, %v4922
  %v5435 = vmul.f32 %v3387, %v4923
  %v5436 = vmul.f32 %v3388, %v4924
  %v5437 = vmul.f32 %v3389, %v4925
  %v5438 = vmul.f32 %v3390, %v4926
  %v5439 = vmul.f32 %v3391, %v4927
  %v5440 = vmul.f32 %v3392, %v4928
  %v5441 = vmul.f32 %v3393, %v4929
  %v5442 = vld [vmem:[%s2] sm:$0xff]
  %v5443 = vld [vmem:[%s2 + $0x8] sm:$0xff]
  %v5444 = vld [vmem:[%s2 + $0x10] sm:$0xff]
  %v5445 = vld [vmem:[%s2 + $0x18] sm:$0xff]
  %v5446 = vld [vmem:[%s2 + $0x20] sm:$0xff]
  %v5447 = vld [vmem:[%s2 + $0x28] sm:$0xff]
  %v5448 = vld [vmem:[%s2 + $0x30] sm:$0xff]
  %v5449 = vld [vmem:[%s2 + $0x38] sm:$0xff]
  %v5450 = vld [vmem:[%s2 + $0x40] sm:$0xff]
  %v5451 = vld [vmem:[%s2 + $0x48] sm:$0xff]
  %v5452 = vld [vmem:[%s2 + $0x50] sm:$0xff]
  %v5453 = vld [vmem:[%s2 + $0x58] sm:$0xff]
  %v5454 = vld [vmem:[%s2 + $0x60] sm:$0xff]
  %v5455 = vld [vmem:[%s2 + $0x68] sm:$0xff]
  %v5456 = vld [vmem:[%s2 + $0x70] sm:$0xff]
  %v5457 = vld [vmem:[%s2 + $0x78] sm:$0xff]
  %v5458 = vld [vmem:[%s3] sm:$0xff]
  %v5459 = vld [vmem:[%s3 + $0x8] sm:$0xff]
  %v5460 = vld [vmem:[%s3 + $0x10] sm:$0xff]
  %v5461 = vld [vmem:[%s3 + $0x18] sm:$0xff]
  %v5462 = vld [vmem:[%s3 + $0x20] sm:$0xff]
  %v5463 = vld [vmem:[%s3 + $0x28] sm:$0xff]
  %v5464 = vld [vmem:[%s3 + $0x30] sm:$0xff]
  %v5465 = vld [vmem:[%s3 + $0x38] sm:$0xff]
  %v5466 = vld [vmem:[%s3 + $0x40] sm:$0xff]
  %v5467 = vld [vmem:[%s3 + $0x48] sm:$0xff]
  %v5468 = vld [vmem:[%s3 + $0x50] sm:$0xff]
  %v5469 = vld [vmem:[%s3 + $0x58] sm:$0xff]
  %v5470 = vld [vmem:[%s3 + $0x60] sm:$0xff]
  %v5471 = vld [vmem:[%s3 + $0x68] sm:$0xff]
  %v5472 = vld [vmem:[%s3 + $0x70] sm:$0xff]
  %v5473 = vld [vmem:[%s3 + $0x78] sm:$0xff]
  %5475 = vset.pattern.permute.xlu0 0
  %5476 = vperm.xlu0 %5475, %v5458
  %v5477 = vpop.permute.xlu0 %5476
  %5480 = vset.pattern.permute.xlu0 0
  %5481 = vperm.xlu0 %5480, %v5459
  %v5482 = vpop.permute.xlu0 %5481
  %5485 = vset.pattern.permute.xlu0 0
  %5486 = vperm.xlu0 %5485, %v5460
  %v5487 = vpop.permute.xlu0 %5486
  %5490 = vset.pattern.permute.xlu0 0
  %5491 = vperm.xlu0 %5490, %v5461
  %v5492 = vpop.permute.xlu0 %5491
  %5495 = vset.pattern.permute.xlu0 0
  %5496 = vperm.xlu0 %5495, %v5462
  %v5497 = vpop.permute.xlu0 %5496
  %5500 = vset.pattern.permute.xlu0 0
  %5501 = vperm.xlu0 %5500, %v5463
  %v5502 = vpop.permute.xlu0 %5501
  %5505 = vset.pattern.permute.xlu0 0
  %5506 = vperm.xlu0 %5505, %v5464
  %v5507 = vpop.permute.xlu0 %5506
  %5510 = vset.pattern.permute.xlu0 0
  %5511 = vperm.xlu0 %5510, %v5465
  %v5512 = vpop.permute.xlu0 %5511
  %5515 = vset.pattern.permute.xlu0 0
  %5516 = vperm.xlu0 %5515, %v5466
  %v5517 = vpop.permute.xlu0 %5516
  %5520 = vset.pattern.permute.xlu0 0
  %5521 = vperm.xlu0 %5520, %v5467
  %v5522 = vpop.permute.xlu0 %5521
  %5525 = vset.pattern.permute.xlu0 0
  %5526 = vperm.xlu0 %5525, %v5468
  %v5527 = vpop.permute.xlu0 %5526
  %5530 = vset.pattern.permute.xlu0 0
  %5531 = vperm.xlu0 %5530, %v5469
  %v5532 = vpop.permute.xlu0 %5531
  %5535 = vset.pattern.permute.xlu0 0
  %5536 = vperm.xlu0 %5535, %v5470
  %v5537 = vpop.permute.xlu0 %5536
  %5540 = vset.pattern.permute.xlu0 0
  %5541 = vperm.xlu0 %5540, %v5471
  %v5542 = vpop.permute.xlu0 %5541
  %5545 = vset.pattern.permute.xlu0 0
  %5546 = vperm.xlu0 %5545, %v5472
  %v5547 = vpop.permute.xlu0 %5546
  %5550 = vset.pattern.permute.xlu0 0
  %5551 = vperm.xlu0 %5550, %v5473
  %v5552 = vpop.permute.xlu0 %5551
  %5554 = vmatprep.subr.mxu0 %v4931
  %5555 = vmatpush1.msra.mxu0 %v4930
  %5556 = vmatprep.subr.mxu0 %v4963
  %5557 = vmatpush1.msra.mxu0 %v4962
  %5558 = vmatprep.subr.mxu0 %v4995
  %5559 = vmatpush1.msra.mxu0 %v4994
  %5560 = vmatprep.subr.mxu0 %v5027
  %5561 = vmatpush1.msra.mxu0 %v5026
  %5562 = vmatprep.subr.mxu0 %v5059
  %5563 = vmatpush1.msra.mxu0 %v5058
  %5564 = vmatprep.subr.mxu0 %v5091
  %5565 = vmatpush1.msra.mxu0 %v5090
  %5566 = vmatprep.subr.mxu0 %v5123
  %5567 = vmatpush1.msra.mxu0 %v5122
  %5568 = vmatprep.subr.mxu0 %v5155
  %5569 = vmatpush1.msra.mxu0 %v5154
  %5570 = vmatprep.subr.mxu0 %v5187
  %5571 = vmatpush1.msra.mxu0 %v5186
  %5572 = vmatprep.subr.mxu0 %v5219
  %5573 = vmatpush1.msra.mxu0 %v5218
  %5574 = vmatprep.subr.mxu0 %v5251
  %5575 = vmatpush1.msra.mxu0 %v5250
  %5576 = vmatprep.subr.mxu0 %v5283
  %5577 = vmatpush1.msra.mxu0 %v5282
  %5578 = vmatprep.subr.mxu0 %v5315
  %5579 = vmatpush1.msra.mxu0 %v5314
  %5580 = vmatprep.subr.mxu0 %v5347
  %5581 = vmatpush1.msra.mxu0 %v5346
  %5582 = vmatprep.subr.mxu0 %v5379
  %5583 = vmatpush1.msra.mxu0 %v5378
  %5584 = vmatprep.subr.mxu0 %v5411
  %5585 = vmatpush1.msra.mxu0 %v5410
  %5586 = vmatprep.subr.mxu0 0.0
  %5587 = vmatpush1.msra.mxu0 0.0
  %5588 = vmatprep.subr.mxu0 0.0
  %5589 = vmatpush1.msra.mxu0 0.0
  %5590 = vmatprep.subr.mxu0 0.0
  %5591 = vmatpush1.msra.mxu0 0.0
  %5592 = vmatprep.subr.mxu0 0.0
  %5593 = vmatpush1.msra.mxu0 0.0
  %5594 = vmatprep.subr.mxu0 0.0
  %5595 = vmatpush1.msra.mxu0 0.0
  %5596 = vmatprep.subr.mxu0 0.0
  %5597 = vmatpush1.msra.mxu0 0.0
  %5598 = vmatprep.subr.mxu0 0.0
  %5599 = vmatpush1.msra.mxu0 0.0
  %5600 = vmatprep.subr.mxu0 0.0
  %5601 = vmatpush1.msra.mxu0 0.0
  %5602 = vmatprep.subr.mxu0 0.0
  %5603 = vmatpush1.msra.mxu0 0.0
  %5604 = vmatprep.subr.mxu0 0.0
  %5605 = vmatpush1.msra.mxu0 0.0
  %5606 = vmatprep.subr.mxu0 0.0
  %5607 = vmatpush1.msra.mxu0 0.0
  %5608 = vmatprep.subr.mxu0 0.0
  %5609 = vmatpush1.msra.mxu0 0.0
  %5610 = vmatprep.subr.mxu0 0.0
  %5611 = vmatpush1.msra.mxu0 0.0
  %5612 = vmatprep.subr.mxu0 0.0
  %5613 = vmatpush1.msra.mxu0 0.0
  %5614 = vmatprep.subr.mxu0 0.0
  %5615 = vmatpush1.msra.mxu0 0.0
  %5616 = vmatprep.subr.mxu0 0.0
  %5617 = vmatpush1.msra.mxu0 0.0
  %5618 = vmatprep.mubr.f32.mxu0 0.0
  %5619 = vmatmul.mubr.f32.gmra.mrb[0].mxu0 %v5442
  %v5620 = vpop.f32.mrb[0].mxu0
  %v5621 = vadd.f32 %v5477, %v5620
  %v5622 = vpop.f32.mrb[0].mxu0
  %v5623 = vadd.f32 %v5477, %v5622
  %5624 = vmatprep.mubr.f32.mxu0 0.0
  %5625 = vmatmul.mubr.f32.gmra.mrb[0].mxu0 %v5443
  %v5626 = vpop.f32.mrb[0].mxu0
  %v5627 = vadd.f32 %v5482, %v5626
  %v5628 = vpop.f32.mrb[0].mxu0
  %v5629 = vadd.f32 %v5482, %v5628
  %5630 = vmatprep.mubr.f32.mxu0 0.0
  %5631 = vmatmul.mubr.f32.gmra.mrb[0].mxu0 %v5444
  %v5632 = vpop.f32.mrb[0].mxu0
  %v5633 = vadd.f32 %v5487, %v5632
  %v5634 = vpop.f32.mrb[0].mxu0
  %v5635 = vadd.f32 %v5487, %v5634
  %5636 = vmatprep.mubr.f32.mxu0 0.0
  %5637 = vmatmul.mubr.f32.gmra.mrb[0].mxu0 %v5445
  %v5638 = vpop.f32.mrb[0].mxu0
  %v5639 = vadd.f32 %v5492, %v5638
  %v5640 = vpop.f32.mrb[0].mxu0
  %v5641 = vadd.f32 %v5492, %v5640
  %5642 = vmatprep.mubr.f32.mxu0 0.0
  %5643 = vmatmul.mubr.f32.gmra.mrb[0].mxu0 %v5446
  %v5644 = vpop.f32.mrb[0].mxu0
  %v5645 = vadd.f32 %v5497, %v5644
  %v5646 = vpop.f32.mrb[0].mxu0
  %v5647 = vadd.f32 %v5497, %v5646
  %5648 = vmatprep.mubr.f32.mxu0 0.0
  %5649 = vmatmul.mubr.f32.gmra.mrb[0].mxu0 %v5447
  %v5650 = vpop.f32.mrb[0].mxu0
  %v5651 = vadd.f32 %v5502, %v5650
  %v5652 = vpop.f32.mrb[0].mxu0
  %v5653 = vadd.f32 %v5502, %v5652
  %5654 = vmatprep.mubr.f32.mxu0 0.0
  %5655 = vmatmul.mubr.f32.gmra.mrb[0].mxu0 %v5448
  %v5656 = vpop.f32.mrb[0].mxu0
  %v5657 = vadd.f32 %v5507, %v5656
  %v5658 = vpop.f32.mrb[0].mxu0
  %v5659 = vadd.f32 %v5507, %v5658
  %5660 = vmatprep.mubr.f32.mxu0 0.0
  %5661 = vmatmul.mubr.f32.gmra.mrb[0].mxu0 %v5449
  %v5662 = vpop.f32.mrb[0].mxu0
  %v5663 = vadd.f32 %v5512, %v5662
  %v5664 = vpop.f32.mrb[0].mxu0
  %v5665 = vadd.f32 %v5512, %v5664
  %5666 = vmatprep.mubr.f32.mxu0 0.0
  %5667 = vmatmul.mubr.f32.gmra.mrb[0].mxu0 %v5450
  %v5668 = vpop.f32.mrb[0].mxu0
  %v5669 = vadd.f32 %v5517, %v5668
  %v5670 = vpop.f32.mrb[0].mxu0
  %v5671 = vadd.f32 %v5517, %v5670
  %5672 = vmatprep.mubr.f32.mxu0 0.0
  %5673 = vmatmul.mubr.f32.gmra.mrb[0].mxu0 %v5451
  %v5674 = vpop.f32.mrb[0].mxu0
  %v5675 = vadd.f32 %v5522, %v5674
  %v5676 = vpop.f32.mrb[0].mxu0
  %v5677 = vadd.f32 %v5522, %v5676
  %5678 = vmatprep.mubr.f32.mxu0 0.0
  %5679 = vmatmul.mubr.f32.gmra.mrb[0].mxu0 %v5452
  %v5680 = vpop.f32.mrb[0].mxu0
  %v5681 = vadd.f32 %v5527, %v5680
  %v5682 = vpop.f32.mrb[0].mxu0
  %v5683 = vadd.f32 %v5527, %v5682
  %5684 = vmatprep.mubr.f32.mxu0 0.0
  %5685 = vmatmul.mubr.f32.gmra.mrb[0].mxu0 %v5453
  %v5686 = vpop.f32.mrb[0].mxu0
  %v5687 = vadd.f32 %v5532, %v5686
  %v5688 = vpop.f32.mrb[0].mxu0
  %v5689 = vadd.f32 %v5532, %v5688
  %5690 = vmatprep.mubr.f32.mxu0 0.0
  %5691 = vmatmul.mubr.f32.gmra.mrb[0].mxu0 %v5454
  %v5692 = vpop.f32.mrb[0].mxu0
  %v5693 = vadd.f32 %v5537, %v5692
  %v5694 = vpop.f32.mrb[0].mxu0
  %v5695 = vadd.f32 %v5537, %v5694
  %5696 = vmatprep.mubr.f32.mxu0 0.0
  %5697 = vmatmul.mubr.f32.gmra.mrb[0].mxu0 %v5455
  %v5698 = vpop.f32.mrb[0].mxu0
  %v5699 = vadd.f32 %v5542, %v5698
  %v5700 = vpop.f32.mrb[0].mxu0
  %v5701 = vadd.f32 %v5542, %v5700
  %5702 = vmatprep.mubr.f32.mxu0 0.0
  %5703 = vmatmul.mubr.f32.gmra.mrb[0].mxu0 %v5456
  %v5704 = vpop.f32.mrb[0].mxu0
  %v5705 = vadd.f32 %v5547, %v5704
  %v5706 = vpop.f32.mrb[0].mxu0
  %v5707 = vadd.f32 %v5547, %v5706
  %5708 = vmatprep.mubr.f32.mxu0 0.0
  %5709 = vmatmul.mubr.f32.gmra.mrb[0].mxu0 %v5457
  %v5710 = vpop.f32.mrb[0].mxu0
  %v5711 = vadd.f32 %v5552, %v5710
  %v5712 = vpop.f32.mrb[0].mxu0
  %v5713 = vadd.f32 %v5552, %v5712
  %5714 = vdwg.mxu0
  %5715 = vmatprep.subr.mxu0 %v4933
  %5716 = vmatpush1.msra.mxu0 %v4932
  %5717 = vmatprep.subr.mxu0 %v4965
  %5718 = vmatpush1.msra.mxu0 %v4964
  %5719 = vmatprep.subr.mxu0 %v4997
  %5720 = vmatpush1.msra.mxu0 %v4996
  %5721 = vmatprep.subr.mxu0 %v5029
  %5722 = vmatpush1.msra.mxu0 %v5028
  %5723 = vmatprep.subr.mxu0 %v5061
  %5724 = vmatpush1.msra.mxu0 %v5060
  %5725 = vmatprep.subr.mxu0 %v5093
  %5726 = vmatpush1.msra.mxu0 %v5092
  %5727 = vmatprep.subr.mxu0 %v5125
  %5728 = vmatpush1.msra.mxu0 %v5124
  %5729 = vmatprep.subr.mxu0 %v5157
  %5730 = vmatpush1.msra.mxu0 %v5156
  %5731 = vmatprep.subr.mxu0 %v5189
  %5732 = vmatpush1.msra.mxu0 %v5188
  %5733 = vmatprep.subr.mxu0 %v5221
  %5734 = vmatpush1.msra.mxu0 %v5220
  %5735 = vmatprep.subr.mxu0 %v5253
  %5736 = vmatpush1.msra.mxu0 %v5252
  %5737 = vmatprep.subr.mxu0 %v5285
  %5738 = vmatpush1.msra.mxu0 %v5284
  %5739 = vmatprep.subr.mxu0 %v5317
  %5740 = vmatpush1.msra.mxu0 %v5316
  %5741 = vmatprep.subr.mxu0 %v5349
  %5742 = vmatpush1.msra.mxu0 %v5348
  %5743 = vmatprep.subr.mxu0 %v5381
  %5744 = vmatpush1.msra.mxu0 %v5380
  %5745 = vmatprep.subr.mxu0 %v5413
  %5746 = vmatpush1.msra.mxu0 %v5412
  %5747 = vmatprep.subr.mxu0 0.0
  %5748 = vmatpush1.msra.mxu0 0.0
  %5749 = vmatprep.subr.mxu0 0.0
  %5750 = vmatpush1.msra.mxu0 0.0
  %5751 = vmatprep.subr.mxu0 0.0
  %5752 = vmatpush1.msra.mxu0 0.0
  %5753 = vmatprep.subr.mxu0 0.0
  %5754 = vmatpush1.msra.mxu0 0.0
  %5755 = vmatprep.subr.mxu0 0.0
  %5756 = vmatpush1.msra.mxu0 0.0
  %5757 = vmatprep.subr.mxu0 0.0
  %5758 = vmatpush1.msra.mxu0 0.0
  %5759 = vmatprep.subr.mxu0 0.0
  %5760 = vmatpush1.msra.mxu0 0.0
  %5761 = vmatprep.subr.mxu0 0.0
  %5762 = vmatpush1.msra.mxu0 0.0
  %5763 = vmatprep.subr.mxu0 0.0
  %5764 = vmatpush1.msra.mxu0 0.0
  %5765 = vmatprep.subr.mxu0 0.0
  %5766 = vmatpush1.msra.mxu0 0.0
  %5767 = vmatprep.subr.mxu0 0.0
  %5768 = vmatpush1.msra.mxu0 0.0
  %5769 = vmatprep.subr.mxu0 0.0
  %5770 = vmatpush1.msra.mxu0 0.0
  %5771 = vmatprep.subr.mxu0 0.0
  %5772 = vmatpush1.msra.mxu0 0.0
  %5773 = vmatprep.subr.mxu0 0.0
  %5774 = vmatpush1.msra.mxu0 0.0
  %5775 = vmatprep.subr.mxu0 0.0
  %5776 = vmatpush1.msra.mxu0 0.0
  %5777 = vmatprep.subr.mxu0 0.0
  %5778 = vmatpush1.msra.mxu0 0.0
  %5779 = vmatprep.mubr.f32.mxu0 0.0
  %5780 = vmatmul.mubr.f32.gmra.mrb[0].mxu0 %v5442
  %v5781 = vpop.f32.mrb[0].mxu0
  %v5782 = vadd.f32 %v5477, %v5781
  %v5783 = vpop.f32.mrb[0].mxu0
  %v5784 = vadd.f32 %v5477, %v5783
  %5785 = vmatprep.mubr.f32.mxu0 0.0
  %5786 = vmatmul.mubr.f32.gmra.mrb[0].mxu0 %v5443
  %v5787 = vpop.f32.mrb[0].mxu0
  %v5788 = vadd.f32 %v5482, %v5787
  %v5789 = vpop.f32.mrb[0].mxu0
  %v5790 = vadd.f32 %v5482, %v5789
  %5791 = vmatprep.mubr.f32.mxu0 0.0
  %5792 = vmatmul.mubr.f32.gmra.mrb[0].mxu0 %v5444
  %v5793 = vpop.f32.mrb[0].mxu0
  %v5794 = vadd.f32 %v5487, %v5793
  %v5795 = vpop.f32.mrb[0].mxu0
  %v5796 = vadd.f32 %v5487, %v5795
  %5797 = vmatprep.mubr.f32.mxu0 0.0
  %5798 = vmatmul.mubr.f32.gmra.mrb[0].mxu0 %v5445
  %v5799 = vpop.f32.mrb[0].mxu0
  %v5800 = vadd.f32 %v5492, %v5799
  %v5801 = vpop.f32.mrb[0].mxu0
  %v5802 = vadd.f32 %v5492, %v5801
  %5803 = vmatprep.mubr.f32.mxu0 0.0
  %5804 = vmatmul.mubr.f32.gmra.mrb[0].mxu0 %v5446
  %v5805 = vpop.f32.mrb[0].mxu0
  %v5806 = vadd.f32 %v5497, %v5805
  %v5807 = vpop.f32.mrb[0].mxu0
  %v5808 = vadd.f32 %v5497, %v5807
  %5809 = vmatprep.mubr.f32.mxu0 0.0
  %5810 = vmatmul.mubr.f32.gmra.mrb[0].mxu0 %v5447
  %v5811 = vpop.f32.mrb[0].mxu0
  %v5812 = vadd.f32 %v5502, %v5811
  %v5813 = vpop.f32.mrb[0].mxu0
  %v5814 = vadd.f32 %v5502, %v5813
  %5815 = vmatprep.mubr.f32.mxu0 0.0
  %5816 = vmatmul.mubr.f32.gmra.mrb[0].mxu0 %v5448
  %v5817 = vpop.f32.mrb[0].mxu0
  %v5818 = vadd.f32 %v5507, %v5817
  %v5819 = vpop.f32.mrb[0].mxu0
  %v5820 = vadd.f32 %v5507, %v5819
  %5821 = vmatprep.mubr.f32.mxu0 0.0
  %5822 = vmatmul.mubr.f32.gmra.mrb[0].mxu0 %v5449
  %v5823 = vpop.f32.mrb[0].mxu0
  %v5824 = vadd.f32 %v5512, %v5823
  %v5825 = vpop.f32.mrb[0].mxu0
  %v5826 = vadd.f32 %v5512, %v5825
  %5827 = vmatprep.mubr.f32.mxu0 0.0
  %5828 = vmatmul.mubr.f32.gmra.mrb[0].mxu0 %v5450
  %v5829 = vpop.f32.mrb[0].mxu0
  %v5830 = vadd.f32 %v5517, %v5829
  %v5831 = vpop.f32.mrb[0].mxu0
  %v5832 = vadd.f32 %v5517, %v5831
  %5833 = vmatprep.mubr.f32.mxu0 0.0
  %5834 = vmatmul.mubr.f32.gmra.mrb[0].mxu0 %v5451
  %v5835 = vpop.f32.mrb[0].mxu0
  %v5836 = vadd.f32 %v5522, %v5835
  %v5837 = vpop.f32.mrb[0].mxu0
  %v5838 = vadd.f32 %v5522, %v5837
  %5839 = vmatprep.mubr.f32.mxu0 0.0
  %5840 = vmatmul.mubr.f32.gmra.mrb[0].mxu0 %v5452
  %v5841 = vpop.f32.mrb[0].mxu0
  %v5842 = vadd.f32 %v5527, %v5841
  %v5843 = vpop.f32.mrb[0].mxu0
  %v5844 = vadd.f32 %v5527, %v5843
  %5845 = vmatprep.mubr.f32.mxu0 0.0
  %5846 = vmatmul.mubr.f32.gmra.mrb[0].mxu0 %v5453
  %v5847 = vpop.f32.mrb[0].mxu0
  %v5848 = vadd.f32 %v5532, %v5847
  %v5849 = vpop.f32.mrb[0].mxu0
  %v5850 = vadd.f32 %v5532, %v5849
  %5851 = vmatprep.mubr.f32.mxu0 0.0
  %5852 = vmatmul.mubr.f32.gmra.mrb[0].mxu0 %v5454
  %v5853 = vpop.f32.mrb[0].mxu0
  %v5854 = vadd.f32 %v5537, %v5853
  %v5855 = vpop.f32.mrb[0].mxu0
  %v5856 = vadd.f32 %v5537, %v5855
  %5857 = vmatprep.mubr.f32.mxu0 0.0
  %5858 = vmatmul.mubr.f32.gmra.mrb[0].mxu0 %v5455
  %v5859 = vpop.f32.mrb[0].mxu0
  %v5860 = vadd.f32 %v5542, %v5859
  %v5861 = vpop.f32.mrb[0].mxu0
  %v5862 = vadd.f32 %v5542, %v5861
  %5863 = vmatprep.mubr.f32.mxu0 0.0
  %5864 = vmatmul.mubr.f32.gmra.mrb[0].mxu0 %v5456
  %v5865 = vpop.f32.mrb[0].mxu0
  %v5866 = vadd.f32 %v5547, %v5865
  %v5867 = vpop.f32.mrb[0].mxu0
  %v5868 = vadd.f32 %v5547, %v5867
  %5869 = vmatprep.mubr.f32.mxu0 0.0
  %5870 = vmatmul.mubr.f32.gmra.mrb[0].mxu0 %v5457
  %v5871 = vpop.f32.mrb[0].mxu0
  %v5872 = vadd.f32 %v5552, %v5871
  %v5873 = vpop.f32.mrb[0].mxu0
  %v5874 = vadd.f32 %v5552, %v5873
  %5875 = vdwg.mxu0
  %5876 = vmatprep.subr.mxu0 %v4935
  %5877 = vmatpush1.msra.mxu0 %v4934
  %5878 = vmatprep.subr.mxu0 %v4967
  %5879 = vmatpush1.msra.mxu0 %v4966
  %5880 = vmatprep.subr.mxu0 %v4999
  %5881 = vmatpush1.msra.mxu0 %v4998
  %5882 = vmatprep.subr.mxu0 %v5031
  %5883 = vmatpush1.msra.mxu0 %v5030
  %5884 = vmatprep.subr.mxu0 %v5063
  %5885 = vmatpush1.msra.mxu0 %v5062
  %5886 = vmatprep.subr.mxu0 %v5095
  %5887 = vmatpush1.msra.mxu0 %v5094
  %5888 = vmatprep.subr.mxu0 %v5127
  %5889 = vmatpush1.msra.mxu0 %v5126
  %5890 = vmatprep.subr.mxu0 %v5159
  %5891 = vmatpush1.msra.mxu0 %v5158
  %5892 = vmatprep.subr.mxu0 %v5191
  %5893 = vmatpush1.msra.mxu0 %v5190
  %5894 = vmatprep.subr.mxu0 %v5223
  %5895 = vmatpush1.msra.mxu0 %v5222
  %5896 = vmatprep.subr.mxu0 %v5255
  %5897 = vmatpush1.msra.mxu0 %v5254
  %5898 = vmatprep.subr.mxu0 %v5287
  %5899 = vmatpush1.msra.mxu0 %v5286
  %5900 = vmatprep.subr.mxu0 %v5319
  %5901 = vmatpush1.msra.mxu0 %v5318
  %5902 = vmatprep.subr.mxu0 %v5351
  %5903 = vmatpush1.msra.mxu0 %v5350
  %5904 = vmatprep.subr.mxu0 %v5383
  %5905 = vmatpush1.msra.mxu0 %v5382
  %5906 = vmatprep.subr.mxu0 %v5415
  %5907 = vmatpush1.msra.mxu0 %v5414
  %5908 = vmatprep.subr.mxu0 0.0
  %5909 = vmatpush1.msra.mxu0 0.0
  %5910 = vmatprep.subr.mxu0 0.0
  %5911 = vmatpush1.msra.mxu0 0.0
  %5912 = vmatprep.subr.mxu0 0.0
  %5913 = vmatpush1.msra.mxu0 0.0
  %5914 = vmatprep.subr.mxu0 0.0
  %5915 = vmatpush1.msra.mxu0 0.0
  %5916 = vmatprep.subr.mxu0 0.0
  %5917 = vmatpush1.msra.mxu0 0.0
  %5918 = vmatprep.subr.mxu0 0.0
  %5919 = vmatpush1.msra.mxu0 0.0
  %5920 = vmatprep.subr.mxu0 0.0
  %5921 = vmatpush1.msra.mxu0 0.0
  %5922 = vmatprep.subr.mxu0 0.0
  %5923 = vmatpush1.msra.mxu0 0.0
  %5924 = vmatprep.subr.mxu0 0.0
  %5925 = vmatpush1.msra.mxu0 0.0
  %5926 = vmatprep.subr.mxu0 0.0
  %5927 = vmatpush1.msra.mxu0 0.0
  %5928 = vmatprep.subr.mxu0 0.0
  %5929 = vmatpush1.msra.mxu0 0.0
  %5930 = vmatprep.subr.mxu0 0.0
  %5931 = vmatpush1.msra.mxu0 0.0
  %5932 = vmatprep.subr.mxu0 0.0
  %5933 = vmatpush1.msra.mxu0 0.0
  %5934 = vmatprep.subr.mxu0 0.0
  %5935 = vmatpush1.msra.mxu0 0.0
  %5936 = vmatprep.subr.mxu0 0.0
  %5937 = vmatpush1.msra.mxu0 0.0
  %5938 = vmatprep.subr.mxu0 0.0
  %5939 = vmatpush1.msra.mxu0 0.0
  %5940 = vmatprep.mubr.f32.mxu0 0.0
  %5941 = vmatmul.mubr.f32.gmra.mrb[0].mxu0 %v5442
  %v5942 = vpop.f32.mrb[0].mxu0
  %v5943 = vadd.f32 %v5477, %v5942
  %v5944 = vpop.f32.mrb[0].mxu0
  %v5945 = vadd.f32 %v5477, %v5944
  %5946 = vmatprep.mubr.f32.mxu0 0.0
  %5947 = vmatmul.mubr.f32.gmra.mrb[0].mxu0 %v5443
  %v5948 = vpop.f32.mrb[0].mxu0
  %v5949 = vadd.f32 %v5482, %v5948
  %v5950 = vpop.f32.mrb[0].mxu0
  %v5951 = vadd.f32 %v5482, %v5950
  %5952 = vmatprep.mubr.f32.mxu0 0.0
  %5953 = vmatmul.mubr.f32.gmra.mrb[0].mxu0 %v5444
  %v5954 = vpop.f32.mrb[0].mxu0
  %v5955 = vadd.f32 %v5487, %v5954
  %v5956 = vpop.f32.mrb[0].mxu0
  %v5957 = vadd.f32 %v5487, %v5956
  %5958 = vmatprep.mubr.f32.mxu0 0.0
  %5959 = vmatmul.mubr.f32.gmra.mrb[0].mxu0 %v5445
  %v5960 = vpop.f32.mrb[0].mxu0
  %v5961 = vadd.f32 %v5492, %v5960
  %v5962 = vpop.f32.mrb[0].mxu0
  %v5963 = vadd.f32 %v5492, %v5962
  %5964 = vmatprep.mubr.f32.mxu0 0.0
  %5965 = vmatmul.mubr.f32.gmra.mrb[0].mxu0 %v5446
  %v5966 = vpop.f32.mrb[0].mxu0
  %v5967 = vadd.f32 %v5497, %v5966
  %v5968 = vpop.f32.mrb[0].mxu0
  %v5969 = vadd.f32 %v5497, %v5968
  %5970 = vmatprep.mubr.f32.mxu0 0.0
  %5971 = vmatmul.mubr.f32.gmra.mrb[0].mxu0 %v5447
  %v5972 = vpop.f32.mrb[0].mxu0
  %v5973 = vadd.f32 %v5502, %v5972
  %v5974 = vpop.f32.mrb[0].mxu0
  %v5975 = vadd.f32 %v5502, %v5974
  %5976 = vmatprep.mubr.f32.mxu0 0.0
  %5977 = vmatmul.mubr.f32.gmra.mrb[0].mxu0 %v5448
  %v5978 = vpop.f32.mrb[0].mxu0
  %v5979 = vadd.f32 %v5507, %v5978
  %v5980 = vpop.f32.mrb[0].mxu0
  %v5981 = vadd.f32 %v5507, %v5980
  %5982 = vmatprep.mubr.f32.mxu0 0.0
  %5983 = vmatmul.mubr.f32.gmra.mrb[0].mxu0 %v5449
  %v5984 = vpop.f32.mrb[0].mxu0
  %v5985 = vadd.f32 %v5512, %v5984
  %v5986 = vpop.f32.mrb[0].mxu0
  %v5987 = vadd.f32 %v5512, %v5986
  %5988 = vmatprep.mubr.f32.mxu0 0.0
  %5989 = vmatmul.mubr.f32.gmra.mrb[0].mxu0 %v5450
  %v5990 = vpop.f32.mrb[0].mxu0
  %v5991 = vadd.f32 %v5517, %v5990
  %v5992 = vpop.f32.mrb[0].mxu0
  %v5993 = vadd.f32 %v5517, %v5992
  %5994 = vmatprep.mubr.f32.mxu0 0.0
  %5995 = vmatmul.mubr.f32.gmra.mrb[0].mxu0 %v5451
  %v5996 = vpop.f32.mrb[0].mxu0
  %v5997 = vadd.f32 %v5522, %v5996
  %v5998 = vpop.f32.mrb[0].mxu0
  %v5999 = vadd.f32 %v5522, %v5998
  %6000 = vmatprep.mubr.f32.mxu0 0.0
  %6001 = vmatmul.mubr.f32.gmra.mrb[0].mxu0 %v5452
  %v6002 = vpop.f32.mrb[0].mxu0
  %v6003 = vadd.f32 %v5527, %v6002
  %v6004 = vpop.f32.mrb[0].mxu0
  %v6005 = vadd.f32 %v5527, %v6004
  %6006 = vmatprep.mubr.f32.mxu0 0.0
  %6007 = vmatmul.mubr.f32.gmra.mrb[0].mxu0 %v5453
  %v6008 = vpop.f32.mrb[0].mxu0
  %v6009 = vadd.f32 %v5532, %v6008
  %v6010 = vpop.f32.mrb[0].mxu0
  %v6011 = vadd.f32 %v5532, %v6010
  %6012 = vmatprep.mubr.f32.mxu0 0.0
  %6013 = vmatmul.mubr.f32.gmra.mrb[0].mxu0 %v5454
  %v6014 = vpop.f32.mrb[0].mxu0
  %v6015 = vadd.f32 %v5537, %v6014
  %v6016 = vpop.f32.mrb[0].mxu0
  %v6017 = vadd.f32 %v5537, %v6016
  %6018 = vmatprep.mubr.f32.mxu0 0.0
  %6019 = vmatmul.mubr.f32.gmra.mrb[0].mxu0 %v5455
  %v6020 = vpop.f32.mrb[0].mxu0
  %v6021 = vadd.f32 %v5542, %v6020
  %v6022 = vpop.f32.mrb[0].mxu0
  %v6023 = vadd.f32 %v5542, %v6022
  %6024 = vmatprep.mubr.f32.mxu0 0.0
  %6025 = vmatmul.mubr.f32.gmra.mrb[0].mxu0 %v5456
  %v6026 = vpop.f32.mrb[0].mxu0
  %v6027 = vadd.f32 %v5547, %v6026
  %v6028 = vpop.f32.mrb[0].mxu0
  %v6029 = vadd.f32 %v5547, %v6028
  %6030 = vmatprep.mubr.f32.mxu0 0.0
  %6031 = vmatmul.mubr.f32.gmra.mrb[0].mxu0 %v5457
  %v6032 = vpop.f32.mrb[0].mxu0
  %v6033 = vadd.f32 %v5552, %v6032
  %v6034 = vpop.f32.mrb[0].mxu0
  %v6035 = vadd.f32 %v5552, %v6034
  %6036 = vdwg.mxu0
  %6037 = vmatprep.subr.mxu0 %v4937
  %6038 = vmatpush1.msra.mxu0 %v4936
  %6039 = vmatprep.subr.mxu0 %v4969
  %6040 = vmatpush1.msra.mxu0 %v4968
  %6041 = vmatprep.subr.mxu0 %v5001
  %6042 = vmatpush1.msra.mxu0 %v5000
  %6043 = vmatprep.subr.mxu0 %v5033
  %6044 = vmatpush1.msra.mxu0 %v5032
  %6045 = vmatprep.subr.mxu0 %v5065
  %6046 = vmatpush1.msra.mxu0 %v5064
  %6047 = vmatprep.subr.mxu0 %v5097
  %6048 = vmatpush1.msra.mxu0 %v5096
  %6049 = vmatprep.subr.mxu0 %v5129
  %6050 = vmatpush1.msra.mxu0 %v5128
  %6051 = vmatprep.subr.mxu0 %v5161
  %6052 = vmatpush1.msra.mxu0 %v5160
  %6053 = vmatprep.subr.mxu0 %v5193
  %6054 = vmatpush1.msra.mxu0 %v5192
  %6055 = vmatprep.subr.mxu0 %v5225
  %6056 = vmatpush1.msra.mxu0 %v5224
  %6057 = vmatprep.subr.mxu0 %v5257
  %6058 = vmatpush1.msra.mxu0 %v5256
  %6059 = vmatprep.subr.mxu0 %v5289
  %6060 = vmatpush1.msra.mxu0 %v5288
  %6061 = vmatprep.subr.mxu0 %v5321
  %6062 = vmatpush1.msra.mxu0 %v5320
  %6063 = vmatprep.subr.mxu0 %v5353
  %6064 = vmatpush1.msra.mxu0 %v5352
  %6065 = vmatprep.subr.mxu0 %v5385
  %6066 = vmatpush1.msra.mxu0 %v5384
  %6067 = vmatprep.subr.mxu0 %v5417
  %6068 = vmatpush1.msra.mxu0 %v5416
  %6069 = vmatprep.subr.mxu0 0.0
  %6070 = vmatpush1.msra.mxu0 0.0
  %6071 = vmatprep.subr.mxu0 0.0
  %6072 = vmatpush1.msra.mxu0 0.0
  %6073 = vmatprep.subr.mxu0 0.0
  %6074 = vmatpush1.msra.mxu0 0.0
  %6075 = vmatprep.subr.mxu0 0.0
  %6076 = vmatpush1.msra.mxu0 0.0
  %6077 = vmatprep.subr.mxu0 0.0
  %6078 = vmatpush1.msra.mxu0 0.0
  %6079 = vmatprep.subr.mxu0 0.0
  %6080 = vmatpush1.msra.mxu0 0.0
  %6081 = vmatprep.subr.mxu0 0.0
  %6082 = vmatpush1.msra.mxu0 0.0
  %6083 = vmatprep.subr.mxu0 0.0
  %6084 = vmatpush1.msra.mxu0 0.0
  %6085 = vmatprep.subr.mxu0 0.0
  %6086 = vmatpush1.msra.mxu0 0.0
  %6087 = vmatprep.subr.mxu0 0.0
  %6088 = vmatpush1.msra.mxu0 0.0
  %6089 = vmatprep.subr.mxu0 0.0
  %6090 = vmatpush1.msra.mxu0 0.0
  %6091 = vmatprep.subr.mxu0 0.0
  %6092 = vmatpush1.msra.mxu0 0.0
  %6093 = vmatprep.subr.mxu0 0.0
  %6094 = vmatpush1.msra.mxu0 0.0
  %6095 = vmatprep.subr.mxu0 0.0
  %6096 = vmatpush1.msra.mxu0 0.0
  %6097 = vmatprep.subr.mxu0 0.0
  %6098 = vmatpush1.msra.mxu0 0.0
  %6099 = vmatprep.subr.mxu0 0.0
  %6100 = vmatpush1.msra.mxu0 0.0
  %6101 = vmatprep.mubr.f32.mxu0 0.0
  %6102 = vmatmul.mubr.f32.gmra.mrb[0].mxu0 %v5442
  %v6103 = vpop.f32.mrb[0].mxu0
  %v6104 = vadd.f32 %v5477, %v6103
  %v6105 = vpop.f32.mrb[0].mxu0
  %v6106 = vadd.f32 %v5477, %v6105
  %6107 = vmatprep.mubr.f32.mxu0 0.0
  %6108 = vmatmul.mubr.f32.gmra.mrb[0].mxu0 %v5443
  %v6109 = vpop.f32.mrb[0].mxu0
  %v6110 = vadd.f32 %v5482, %v6109
  %v6111 = vpop.f32.mrb[0].mxu0
  %v6112 = vadd.f32 %v5482, %v6111
  %6113 = vmatprep.mubr.f32.mxu0 0.0
  %6114 = vmatmul.mubr.f32.gmra.mrb[0].mxu0 %v5444
  %v6115 = vpop.f32.mrb[0].mxu0
  %v6116 = vadd.f32 %v5487, %v6115
  %v6117 = vpop.f32.mrb[0].mxu0
  %v6118 = vadd.f32 %v5487, %v6117
  %6119 = vmatprep.mubr.f32.mxu0 0.0
  %6120 = vmatmul.mubr.f32.gmra.mrb[0].mxu0 %v5445
  %v6121 = vpop.f32.mrb[0].mxu0
  %v6122 = vadd.f32 %v5492, %v6121
  %v6123 = vpop.f32.mrb[0].mxu0
  %v6124 = vadd.f32 %v5492, %v6123
  %6125 = vmatprep.mubr.f32.mxu0 0.0
  %6126 = vmatmul.mubr.f32.gmra.mrb[0].mxu0 %v5446
  %v6127 = vpop.f32.mrb[0].mxu0
  %v6128 = vadd.f32 %v5497, %v6127
  %v6129 = vpop.f32.mrb[0].mxu0
  %v6130 = vadd.f32 %v5497, %v6129
  %6131 = vmatprep.mubr.f32.mxu0 0.0
  %6132 = vmatmul.mubr.f32.gmra.mrb[0].mxu0 %v5447
  %v6133 = vpop.f32.mrb[0].mxu0
  %v6134 = vadd.f32 %v5502, %v6133
  %v6135 = vpop.f32.mrb[0].mxu0
  %v6136 = vadd.f32 %v5502, %v6135
  %6137 = vmatprep.mubr.f32.mxu0 0.0
  %6138 = vmatmul.mubr.f32.gmra.mrb[0].mxu0 %v5448
  %v6139 = vpop.f32.mrb[0].mxu0
  %v6140 = vadd.f32 %v5507, %v6139
  %v6141 = vpop.f32.mrb[0].mxu0
  %v6142 = vadd.f32 %v5507, %v6141
  %6143 = vmatprep.mubr.f32.mxu0 0.0
  %6144 = vmatmul.mubr.f32.gmra.mrb[0].mxu0 %v5449
  %v6145 = vpop.f32.mrb[0].mxu0
  %v6146 = vadd.f32 %v5512, %v6145
  %v6147 = vpop.f32.mrb[0].mxu0
  %v6148 = vadd.f32 %v5512, %v6147
  %6149 = vmatprep.mubr.f32.mxu0 0.0
  %6150 = vmatmul.mubr.f32.gmra.mrb[0].mxu0 %v5450
  %v6151 = vpop.f32.mrb[0].mxu0
  %v6152 = vadd.f32 %v5517, %v6151
  %v6153 = vpop.f32.mrb[0].mxu0
  %v6154 = vadd.f32 %v5517, %v6153
  %6155 = vmatprep.mubr.f32.mxu0 0.0
  %6156 = vmatmul.mubr.f32.gmra.mrb[0].mxu0 %v5451
  %v6157 = vpop.f32.mrb[0].mxu0
  %v6158 = vadd.f32 %v5522, %v6157
  %v6159 = vpop.f32.mrb[0].mxu0
  %v6160 = vadd.f32 %v5522, %v6159
  %6161 = vmatprep.mubr.f32.mxu0 0.0
  %6162 = vmatmul.mubr.f32.gmra.mrb[0].mxu0 %v5452
  %v6163 = vpop.f32.mrb[0].mxu0
  %v6164 = vadd.f32 %v5527, %v6163
  %v6165 = vpop.f32.mrb[0].mxu0
  %v6166 = vadd.f32 %v5527, %v6165
  %6167 = vmatprep.mubr.f32.mxu0 0.0
  %6168 = vmatmul.mubr.f32.gmra.mrb[0].mxu0 %v5453
  %v6169 = vpop.f32.mrb[0].mxu0
  %v6170 = vadd.f32 %v5532, %v6169
  %v6171 = vpop.f32.mrb[0].mxu0
  %v6172 = vadd.f32 %v5532, %v6171
  %6173 = vmatprep.mubr.f32.mxu0 0.0
  %6174 = vmatmul.mubr.f32.gmra.mrb[0].mxu0 %v5454
  %v6175 = vpop.f32.mrb[0].mxu0
  %v6176 = vadd.f32 %v5537, %v6175
  %v6177 = vpop.f32.mrb[0].mxu0
  %v6178 = vadd.f32 %v5537, %v6177
  %6179 = vmatprep.mubr.f32.mxu0 0.0
  %6180 = vmatmul.mubr.f32.gmra.mrb[0].mxu0 %v5455
  %v6181 = vpop.f32.mrb[0].mxu0
  %v6182 = vadd.f32 %v5542, %v6181
  %v6183 = vpop.f32.mrb[0].mxu0
  %v6184 = vadd.f32 %v5542, %v6183
  %6185 = vmatprep.mubr.f32.mxu0 0.0
  %6186 = vmatmul.mubr.f32.gmra.mrb[0].mxu0 %v5456
  %v6187 = vpop.f32.mrb[0].mxu0
  %v6188 = vadd.f32 %v5547, %v6187
  %v6189 = vpop.f32.mrb[0].mxu0
  %v6190 = vadd.f32 %v5547, %v6189
  %6191 = vmatprep.mubr.f32.mxu0 0.0
  %6192 = vmatmul.mubr.f32.gmra.mrb[0].mxu0 %v5457
  %v6193 = vpop.f32.mrb[0].mxu0
  %v6194 = vadd.f32 %v5552, %v6193
  %v6195 = vpop.f32.mrb[0].mxu0
  %v6196 = vadd.f32 %v5552, %v6195
  %6197 = vdwg.mxu0
  %6198 = vmatprep.subr.mxu0 %v4939
  %6199 = vmatpush1.msra.mxu0 %v4938
  %6200 = vmatprep.subr.mxu0 %v4971
  %6201 = vmatpush1.msra.mxu0 %v4970
  %6202 = vmatprep.subr.mxu0 %v5003
  %6203 = vmatpush1.msra.mxu0 %v5002
  %6204 = vmatprep.subr.mxu0 %v5035
  %6205 = vmatpush1.msra.mxu0 %v5034
  %6206 = vmatprep.subr.mxu0 %v5067
  %6207 = vmatpush1.msra.mxu0 %v5066
  %6208 = vmatprep.subr.mxu0 %v5099
  %6209 = vmatpush1.msra.mxu0 %v5098
  %6210 = vmatprep.subr.mxu0 %v5131
  %6211 = vmatpush1.msra.mxu0 %v5130
  %6212 = vmatprep.subr.mxu0 %v5163
  %6213 = vmatpush1.msra.mxu0 %v5162
  %6214 = vmatprep.subr.mxu0 %v5195
  %6215 = vmatpush1.msra.mxu0 %v5194
  %6216 = vmatprep.subr.mxu0 %v5227
  %6217 = vmatpush1.msra.mxu0 %v5226
  %6218 = vmatprep.subr.mxu0 %v5259
  %6219 = vmatpush1.msra.mxu0 %v5258
  %6220 = vmatprep.subr.mxu0 %v5291
  %6221 = vmatpush1.msra.mxu0 %v5290
  %6222 = vmatprep.subr.mxu0 %v5323
  %6223 = vmatpush1.msra.mxu0 %v5322
  %6224 = vmatprep.subr.mxu0 %v5355
  %6225 = vmatpush1.msra.mxu0 %v5354
  %6226 = vmatprep.subr.mxu0 %v5387
  %6227 = vmatpush1.msra.mxu0 %v5386
  %6228 = vmatprep.subr.mxu0 %v5419
  %6229 = vmatpush1.msra.mxu0 %v5418
  %6230 = vmatprep.subr.mxu0 0.0
  %6231 = vmatpush1.msra.mxu0 0.0
  %6232 = vmatprep.subr.mxu0 0.0
  %6233 = vmatpush1.msra.mxu0 0.0
  %6234 = vmatprep.subr.mxu0 0.0
  %6235 = vmatpush1.msra.mxu0 0.0
  %6236 = vmatprep.subr.mxu0 0.0
  %6237 = vmatpush1.msra.mxu0 0.0
  %6238 = vmatprep.subr.mxu0 0.0
  %6239 = vmatpush1.msra.mxu0 0.0
  %6240 = vmatprep.subr.mxu0 0.0
  %6241 = vmatpush1.msra.mxu0 0.0
  %6242 = vmatprep.subr.mxu0 0.0
  %6243 = vmatpush1.msra.mxu0 0.0
  %6244 = vmatprep.subr.mxu0 0.0
  %6245 = vmatpush1.msra.mxu0 0.0
  %6246 = vmatprep.subr.mxu0 0.0
  %6247 = vmatpush1.msra.mxu0 0.0
  %6248 = vmatprep.subr.mxu0 0.0
  %6249 = vmatpush1.msra.mxu0 0.0
  %6250 = vmatprep.subr.mxu0 0.0
  %6251 = vmatpush1.msra.mxu0 0.0
  %6252 = vmatprep.subr.mxu0 0.0
  %6253 = vmatpush1.msra.mxu0 0.0
  %6254 = vmatprep.subr.mxu0 0.0
  %6255 = vmatpush1.msra.mxu0 0.0
  %6256 = vmatprep.subr.mxu0 0.0
  %6257 = vmatpush1.msra.mxu0 0.0
  %6258 = vmatprep.subr.mxu0 0.0
  %6259 = vmatpush1.msra.mxu0 0.0
  %6260 = vmatprep.subr.mxu0 0.0
  %6261 = vmatpush1.msra.mxu0 0.0
  %6262 = vmatprep.mubr.f32.mxu0 0.0
  %6263 = vmatmul.mubr.f32.gmra.mrb[0].mxu0 %v5442
  %v6264 = vpop.f32.mrb[0].mxu0
  %v6265 = vadd.f32 %v5477, %v6264
  %v6266 = vpop.f32.mrb[0].mxu0
  %v6267 = vadd.f32 %v5477, %v6266
  %6268 = vmatprep.mubr.f32.mxu0 0.0
  %6269 = vmatmul.mubr.f32.gmra.mrb[0].mxu0 %v5443
  %v6270 = vpop.f32.mrb[0].mxu0
  %v6271 = vadd.f32 %v5482, %v6270
  %v6272 = vpop.f32.mrb[0].mxu0
  %v6273 = vadd.f32 %v5482, %v6272
  %6274 = vmatprep.mubr.f32.mxu0 0.0
  %6275 = vmatmul.mubr.f32.gmra.mrb[0].mxu0 %v5444
  %v6276 = vpop.f32.mrb[0].mxu0
  %v6277 = vadd.f32 %v5487, %v6276
  %v6278 = vpop.f32.mrb[0].mxu0
  %v6279 = vadd.f32 %v5487, %v6278
  %6280 = vmatprep.mubr.f32.mxu0 0.0
  %6281 = vmatmul.mubr.f32.gmra.mrb[0].mxu0 %v5445
  %v6282 = vpop.f32.mrb[0].mxu0
  %v6283 = vadd.f32 %v5492, %v6282
  %v6284 = vpop.f32.mrb[0].mxu0
  %v6285 = vadd.f32 %v5492, %v6284
  %6286 = vmatprep.mubr.f32.mxu0 0.0
  %6287 = vmatmul.mubr.f32.gmra.mrb[0].mxu0 %v5446
  %v6288 = vpop.f32.mrb[0].mxu0
  %v6289 = vadd.f32 %v5497, %v6288
  %v6290 = vpop.f32.mrb[0].mxu0
  %v6291 = vadd.f32 %v5497, %v6290
  %6292 = vmatprep.mubr.f32.mxu0 0.0
  %6293 = vmatmul.mubr.f32.gmra.mrb[0].mxu0 %v5447
  %v6294 = vpop.f32.mrb[0].mxu0
  %v6295 = vadd.f32 %v5502, %v6294
  %v6296 = vpop.f32.mrb[0].mxu0
  %v6297 = vadd.f32 %v5502, %v6296
  %6298 = vmatprep.mubr.f32.mxu0 0.0
  %6299 = vmatmul.mubr.f32.gmra.mrb[0].mxu0 %v5448
  %v6300 = vpop.f32.mrb[0].mxu0
  %v6301 = vadd.f32 %v5507, %v6300
  %v6302 = vpop.f32.mrb[0].mxu0
  %v6303 = vadd.f32 %v5507, %v6302
  %6304 = vmatprep.mubr.f32.mxu0 0.0
  %6305 = vmatmul.mubr.f32.gmra.mrb[0].mxu0 %v5449
  %v6306 = vpop.f32.mrb[0].mxu0
  %v6307 = vadd.f32 %v5512, %v6306
  %v6308 = vpop.f32.mrb[0].mxu0
  %v6309 = vadd.f32 %v5512, %v6308
  %6310 = vmatprep.mubr.f32.mxu0 0.0
  %6311 = vmatmul.mubr.f32.gmra.mrb[0].mxu0 %v5450
  %v6312 = vpop.f32.mrb[0].mxu0
  %v6313 = vadd.f32 %v5517, %v6312
  %v6314 = vpop.f32.mrb[0].mxu0
  %v6315 = vadd.f32 %v5517, %v6314
  %6316 = vmatprep.mubr.f32.mxu0 0.0
  %6317 = vmatmul.mubr.f32.gmra.mrb[0].mxu0 %v5451
  %v6318 = vpop.f32.mrb[0].mxu0
  %v6319 = vadd.f32 %v5522, %v6318
  %v6320 = vpop.f32.mrb[0].mxu0
  %v6321 = vadd.f32 %v5522, %v6320
  %6322 = vmatprep.mubr.f32.mxu0 0.0
  %6323 = vmatmul.mubr.f32.gmra.mrb[0].mxu0 %v5452
  %v6324 = vpop.f32.mrb[0].mxu0
  %v6325 = vadd.f32 %v5527, %v6324
  %v6326 = vpop.f32.mrb[0].mxu0
  %v6327 = vadd.f32 %v5527, %v6326
  %6328 = vmatprep.mubr.f32.mxu0 0.0
  %6329 = vmatmul.mubr.f32.gmra.mrb[0].mxu0 %v5453
  %v6330 = vpop.f32.mrb[0].mxu0
  %v6331 = vadd.f32 %v5532, %v6330
  %v6332 = vpop.f32.mrb[0].mxu0
  %v6333 = vadd.f32 %v5532, %v6332
  %6334 = vmatprep.mubr.f32.mxu0 0.0
  %6335 = vmatmul.mubr.f32.gmra.mrb[0].mxu0 %v5454
  %v6336 = vpop.f32.mrb[0].mxu0
  %v6337 = vadd.f32 %v5537, %v6336
  %v6338 = vpop.f32.mrb[0].mxu0
  %v6339 = vadd.f32 %v5537, %v6338
  %6340 = vmatprep.mubr.f32.mxu0 0.0
  %6341 = vmatmul.mubr.f32.gmra.mrb[0].mxu0 %v5455
  %v6342 = vpop.f32.mrb[0].mxu0
  %v6343 = vadd.f32 %v5542, %v6342
  %v6344 = vpop.f32.mrb[0].mxu0
  %v6345 = vadd.f32 %v5542, %v6344
  %6346 = vmatprep.mubr.f32.mxu0 0.0
  %6347 = vmatmul.mubr.f32.gmra.mrb[0].mxu0 %v5456
  %v6348 = vpop.f32.mrb[0].mxu0
  %v6349 = vadd.f32 %v5547, %v6348
  %v6350 = vpop.f32.mrb[0].mxu0
  %v6351 = vadd.f32 %v5547, %v6350
  %6352 = vmatprep.mubr.f32.mxu0 0.0
  %6353 = vmatmul.mubr.f32.gmra.mrb[0].mxu0 %v5457
  %v6354 = vpop.f32.mrb[0].mxu0
  %v6355 = vadd.f32 %v5552, %v6354
  %v6356 = vpop.f32.mrb[0].mxu0
  %v6357 = vadd.f32 %v5552, %v6356
  %6358 = vdwg.mxu0
  %6359 = vmatprep.subr.mxu0 %v4941
  %6360 = vmatpush1.msra.mxu0 %v4940
  %6361 = vmatprep.subr.mxu0 %v4973
  %6362 = vmatpush1.msra.mxu0 %v4972
  %6363 = vmatprep.subr.mxu0 %v5005
  %6364 = vmatpush1.msra.mxu0 %v5004
  %6365 = vmatprep.subr.mxu0 %v5037
  %6366 = vmatpush1.msra.mxu0 %v5036
  %6367 = vmatprep.subr.mxu0 %v5069
  %6368 = vmatpush1.msra.mxu0 %v5068
  %6369 = vmatprep.subr.mxu0 %v5101
  %6370 = vmatpush1.msra.mxu0 %v5100
  %6371 = vmatprep.subr.mxu0 %v5133
  %6372 = vmatpush1.msra.mxu0 %v5132
  %6373 = vmatprep.subr.mxu0 %v5165
  %6374 = vmatpush1.msra.mxu0 %v5164
  %6375 = vmatprep.subr.mxu0 %v5197
  %6376 = vmatpush1.msra.mxu0 %v5196
  %6377 = vmatprep.subr.mxu0 %v5229
  %6378 = vmatpush1.msra.mxu0 %v5228
  %6379 = vmatprep.subr.mxu0 %v5261
  %6380 = vmatpush1.msra.mxu0 %v5260
  %6381 = vmatprep.subr.mxu0 %v5293
  %6382 = vmatpush1.msra.mxu0 %v5292
  %6383 = vmatprep.subr.mxu0 %v5325
  %6384 = vmatpush1.msra.mxu0 %v5324
  %6385 = vmatprep.subr.mxu0 %v5357
  %6386 = vmatpush1.msra.mxu0 %v5356
  %6387 = vmatprep.subr.mxu0 %v5389
  %6388 = vmatpush1.msra.mxu0 %v5388
  %6389 = vmatprep.subr.mxu0 %v5421
  %6390 = vmatpush1.msra.mxu0 %v5420
  %6391 = vmatprep.subr.mxu0 0.0
  %6392 = vmatpush1.msra.mxu0 0.0
  %6393 = vmatprep.subr.mxu0 0.0
  %6394 = vmatpush1.msra.mxu0 0.0
  %6395 = vmatprep.subr.mxu0 0.0
  %6396 = vmatpush1.msra.mxu0 0.0
  %6397 = vmatprep.subr.mxu0 0.0
  %6398 = vmatpush1.msra.mxu0 0.0
  %6399 = vmatprep.subr.mxu0 0.0
  %6400 = vmatpush1.msra.mxu0 0.0
  %6401 = vmatprep.subr.mxu0 0.0
  %6402 = vmatpush1.msra.mxu0 0.0
  %6403 = vmatprep.subr.mxu0 0.0
  %6404 = vmatpush1.msra.mxu0 0.0
  %6405 = vmatprep.subr.mxu0 0.0
  %6406 = vmatpush1.msra.mxu0 0.0
  %6407 = vmatprep.subr.mxu0 0.0
  %6408 = vmatpush1.msra.mxu0 0.0
  %6409 = vmatprep.subr.mxu0 0.0
  %6410 = vmatpush1.msra.mxu0 0.0
  %6411 = vmatprep.subr.mxu0 0.0
  %6412 = vmatpush1.msra.mxu0 0.0
  %6413 = vmatprep.subr.mxu0 0.0
  %6414 = vmatpush1.msra.mxu0 0.0
  %6415 = vmatprep.subr.mxu0 0.0
  %6416 = vmatpush1.msra.mxu0 0.0
  %6417 = vmatprep.subr.mxu0 0.0
  %6418 = vmatpush1.msra.mxu0 0.0
  %6419 = vmatprep.subr.mxu0 0.0
  %6420 = vmatpush1.msra.mxu0 0.0
  %6421 = vmatprep.subr.mxu0 0.0
  %6422 = vmatpush1.msra.mxu0 0.0
  %6423 = vmatprep.mubr.f32.mxu0 0.0
  %6424 = vmatmul.mubr.f32.gmra.mrb[0].mxu0 %v5442
  %v6425 = vpop.f32.mrb[0].mxu0
  %v6426 = vadd.f32 %v5477, %v6425
  %v6427 = vpop.f32.mrb[0].mxu0
  %v6428 = vadd.f32 %v5477, %v6427
  %6429 = vmatprep.mubr.f32.mxu0 0.0
  %6430 = vmatmul.mubr.f32.gmra.mrb[0].mxu0 %v5443
  %v6431 = vpop.f32.mrb[0].mxu0
  %v6432 = vadd.f32 %v5482, %v6431
  %v6433 = vpop.f32.mrb[0].mxu0
  %v6434 = vadd.f32 %v5482, %v6433
  %6435 = vmatprep.mubr.f32.mxu0 0.0
  %6436 = vmatmul.mubr.f32.gmra.mrb[0].mxu0 %v5444
  %v6437 = vpop.f32.mrb[0].mxu0
  %v6438 = vadd.f32 %v5487, %v6437
  %v6439 = vpop.f32.mrb[0].mxu0
  %v6440 = vadd.f32 %v5487, %v6439
  %6441 = vmatprep.mubr.f32.mxu0 0.0
  %6442 = vmatmul.mubr.f32.gmra.mrb[0].mxu0 %v5445
  %v6443 = vpop.f32.mrb[0].mxu0
  %v6444 = vadd.f32 %v5492, %v6443
  %v6445 = vpop.f32.mrb[0].mxu0
  %v6446 = vadd.f32 %v5492, %v6445
  %6447 = vmatprep.mubr.f32.mxu0 0.0
  %6448 = vmatmul.mubr.f32.gmra.mrb[0].mxu0 %v5446
  %v6449 = vpop.f32.mrb[0].mxu0
  %v6450 = vadd.f32 %v5497, %v6449
  %v6451 = vpop.f32.mrb[0].mxu0
  %v6452 = vadd.f32 %v5497, %v6451
  %6453 = vmatprep.mubr.f32.mxu0 0.0
  %6454 = vmatmul.mubr.f32.gmra.mrb[0].mxu0 %v5447
  %v6455 = vpop.f32.mrb[0].mxu0
  %v6456 = vadd.f32 %v5502, %v6455
  %v6457 = vpop.f32.mrb[0].mxu0
  %v6458 = vadd.f32 %v5502, %v6457
  %6459 = vmatprep.mubr.f32.mxu0 0.0
  %6460 = vmatmul.mubr.f32.gmra.mrb[0].mxu0 %v5448
  %v6461 = vpop.f32.mrb[0].mxu0
  %v6462 = vadd.f32 %v5507, %v6461
  %v6463 = vpop.f32.mrb[0].mxu0
  %v6464 = vadd.f32 %v5507, %v6463
  %6465 = vmatprep.mubr.f32.mxu0 0.0
  %6466 = vmatmul.mubr.f32.gmra.mrb[0].mxu0 %v5449
  %v6467 = vpop.f32.mrb[0].mxu0
  %v6468 = vadd.f32 %v5512, %v6467
  %v6469 = vpop.f32.mrb[0].mxu0
  %v6470 = vadd.f32 %v5512, %v6469
  %6471 = vmatprep.mubr.f32.mxu0 0.0
  %6472 = vmatmul.mubr.f32.gmra.mrb[0].mxu0 %v5450
  %v6473 = vpop.f32.mrb[0].mxu0
  %v6474 = vadd.f32 %v5517, %v6473
  %v6475 = vpop.f32.mrb[0].mxu0
  %v6476 = vadd.f32 %v5517, %v6475
  %6477 = vmatprep.mubr.f32.mxu0 0.0
  %6478 = vmatmul.mubr.f32.gmra.mrb[0].mxu0 %v5451
  %v6479 = vpop.f32.mrb[0].mxu0
  %v6480 = vadd.f32 %v5522, %v6479
  %v6481 = vpop.f32.mrb[0].mxu0
  %v6482 = vadd.f32 %v5522, %v6481
  %6483 = vmatprep.mubr.f32.mxu0 0.0
  %6484 = vmatmul.mubr.f32.gmra.mrb[0].mxu0 %v5452
  %v6485 = vpop.f32.mrb[0].mxu0
  %v6486 = vadd.f32 %v5527, %v6485
  %v6487 = vpop.f32.mrb[0].mxu0
  %v6488 = vadd.f32 %v5527, %v6487
  %6489 = vmatprep.mubr.f32.mxu0 0.0
  %6490 = vmatmul.mubr.f32.gmra.mrb[0].mxu0 %v5453
  %v6491 = vpop.f32.mrb[0].mxu0
  %v6492 = vadd.f32 %v5532, %v6491
  %v6493 = vpop.f32.mrb[0].mxu0
  %v6494 = vadd.f32 %v5532, %v6493
  %6495 = vmatprep.mubr.f32.mxu0 0.0
  %6496 = vmatmul.mubr.f32.gmra.mrb[0].mxu0 %v5454
  %v6497 = vpop.f32.mrb[0].mxu0
  %v6498 = vadd.f32 %v5537, %v6497
  %v6499 = vpop.f32.mrb[0].mxu0
  %v6500 = vadd.f32 %v5537, %v6499
  %6501 = vmatprep.mubr.f32.mxu0 0.0
  %6502 = vmatmul.mubr.f32.gmra.mrb[0].mxu0 %v5455
  %v6503 = vpop.f32.mrb[0].mxu0
  %v6504 = vadd.f32 %v5542, %v6503
  %v6505 = vpop.f32.mrb[0].mxu0
  %v6506 = vadd.f32 %v5542, %v6505
  %6507 = vmatprep.mubr.f32.mxu0 0.0
  %6508 = vmatmul.mubr.f32.gmra.mrb[0].mxu0 %v5456
  %v6509 = vpop.f32.mrb[0].mxu0
  %v6510 = vadd.f32 %v5547, %v6509
  %v6511 = vpop.f32.mrb[0].mxu0
  %v6512 = vadd.f32 %v5547, %v6511
  %6513 = vmatprep.mubr.f32.mxu0 0.0
  %6514 = vmatmul.mubr.f32.gmra.mrb[0].mxu0 %v5457
  %v6515 = vpop.f32.mrb[0].mxu0
  %v6516 = vadd.f32 %v5552, %v6515
  %v6517 = vpop.f32.mrb[0].mxu0
  %v6518 = vadd.f32 %v5552, %v6517
  %6519 = vdwg.mxu0
  %6520 = vmatprep.subr.mxu0 %v4943
  %6521 = vmatpush1.msra.mxu0 %v4942
  %6522 = vmatprep.subr.mxu0 %v4975
  %6523 = vmatpush1.msra.mxu0 %v4974
  %6524 = vmatprep.subr.mxu0 %v5007
  %6525 = vmatpush1.msra.mxu0 %v5006
  %6526 = vmatprep.subr.mxu0 %v5039
  %6527 = vmatpush1.msra.mxu0 %v5038
  %6528 = vmatprep.subr.mxu0 %v5071
  %6529 = vmatpush1.msra.mxu0 %v5070
  %6530 = vmatprep.subr.mxu0 %v5103
  %6531 = vmatpush1.msra.mxu0 %v5102
  %6532 = vmatprep.subr.mxu0 %v5135
  %6533 = vmatpush1.msra.mxu0 %v5134
  %6534 = vmatprep.subr.mxu0 %v5167
  %6535 = vmatpush1.msra.mxu0 %v5166
  %6536 = vmatprep.subr.mxu0 %v5199
  %6537 = vmatpush1.msra.mxu0 %v5198
  %6538 = vmatprep.subr.mxu0 %v5231
  %6539 = vmatpush1.msra.mxu0 %v5230
  %6540 = vmatprep.subr.mxu0 %v5263
  %6541 = vmatpush1.msra.mxu0 %v5262
  %6542 = vmatprep.subr.mxu0 %v5295
  %6543 = vmatpush1.msra.mxu0 %v5294
  %6544 = vmatprep.subr.mxu0 %v5327
  %6545 = vmatpush1.msra.mxu0 %v5326
  %6546 = vmatprep.subr.mxu0 %v5359
  %6547 = vmatpush1.msra.mxu0 %v5358
  %6548 = vmatprep.subr.mxu0 %v5391
  %6549 = vmatpush1.msra.mxu0 %v5390
  %6550 = vmatprep.subr.mxu0 %v5423
  %6551 = vmatpush1.msra.mxu0 %v5422
  %6552 = vmatprep.subr.mxu0 0.0
  %6553 = vmatpush1.msra.mxu0 0.0
  %6554 = vmatprep.subr.mxu0 0.0
  %6555 = vmatpush1.msra.mxu0 0.0
  %6556 = vmatprep.subr.mxu0 0.0
  %6557 = vmatpush1.msra.mxu0 0.0
  %6558 = vmatprep.subr.mxu0 0.0
  %6559 = vmatpush1.msra.mxu0 0.0
  %6560 = vmatprep.subr.mxu0 0.0
  %6561 = vmatpush1.msra.mxu0 0.0
  %6562 = vmatprep.subr.mxu0 0.0
  %6563 = vmatpush1.msra.mxu0 0.0
  %6564 = vmatprep.subr.mxu0 0.0
  %6565 = vmatpush1.msra.mxu0 0.0
  %6566 = vmatprep.subr.mxu0 0.0
  %6567 = vmatpush1.msra.mxu0 0.0
  %6568 = vmatprep.subr.mxu0 0.0
  %6569 = vmatpush1.msra.mxu0 0.0
  %6570 = vmatprep.subr.mxu0 0.0
  %6571 = vmatpush1.msra.mxu0 0.0
  %6572 = vmatprep.subr.mxu0 0.0
  %6573 = vmatpush1.msra.mxu0 0.0
  %6574 = vmatprep.subr.mxu0 0.0
  %6575 = vmatpush1.msra.mxu0 0.0
  %6576 = vmatprep.subr.mxu0 0.0
  %6577 = vmatpush1.msra.mxu0 0.0
  %6578 = vmatprep.subr.mxu0 0.0
  %6579 = vmatpush1.msra.mxu0 0.0
  %6580 = vmatprep.subr.mxu0 0.0
  %6581 = vmatpush1.msra.mxu0 0.0
  %6582 = vmatprep.subr.mxu0 0.0
  %6583 = vmatpush1.msra.mxu0 0.0
  %6584 = vmatprep.mubr.f32.mxu0 0.0
  %6585 = vmatmul.mubr.f32.gmra.mrb[0].mxu0 %v5442
  %v6586 = vpop.f32.mrb[0].mxu0
  %v6587 = vadd.f32 %v5477, %v6586
  %v6588 = vpop.f32.mrb[0].mxu0
  %v6589 = vadd.f32 %v5477, %v6588
  %6590 = vmatprep.mubr.f32.mxu0 0.0
  %6591 = vmatmul.mubr.f32.gmra.mrb[0].mxu0 %v5443
  %v6592 = vpop.f32.mrb[0].mxu0
  %v6593 = vadd.f32 %v5482, %v6592
  %v6594 = vpop.f32.mrb[0].mxu0
  %v6595 = vadd.f32 %v5482, %v6594
  %6596 = vmatprep.mubr.f32.mxu0 0.0
  %6597 = vmatmul.mubr.f32.gmra.mrb[0].mxu0 %v5444
  %v6598 = vpop.f32.mrb[0].mxu0
  %v6599 = vadd.f32 %v5487, %v6598
  %v6600 = vpop.f32.mrb[0].mxu0
  %v6601 = vadd.f32 %v5487, %v6600
  %6602 = vmatprep.mubr.f32.mxu0 0.0
  %6603 = vmatmul.mubr.f32.gmra.mrb[0].mxu0 %v5445
  %v6604 = vpop.f32.mrb[0].mxu0
  %v6605 = vadd.f32 %v5492, %v6604
  %v6606 = vpop.f32.mrb[0].mxu0
  %v6607 = vadd.f32 %v5492, %v6606
  %6608 = vmatprep.mubr.f32.mxu0 0.0
  %6609 = vmatmul.mubr.f32.gmra.mrb[0].mxu0 %v5446
  %v6610 = vpop.f32.mrb[0].mxu0
  %v6611 = vadd.f32 %v5497, %v6610
  %v6612 = vpop.f32.mrb[0].mxu0
  %v6613 = vadd.f32 %v5497, %v6612
  %6614 = vmatprep.mubr.f32.mxu0 0.0
  %6615 = vmatmul.mubr.f32.gmra.mrb[0].mxu0 %v5447
  %v6616 = vpop.f32.mrb[0].mxu0
  %v6617 = vadd.f32 %v5502, %v6616
  %v6618 = vpop.f32.mrb[0].mxu0
  %v6619 = vadd.f32 %v5502, %v6618
  %6620 = vmatprep.mubr.f32.mxu0 0.0
  %6621 = vmatmul.mubr.f32.gmra.mrb[0].mxu0 %v5448
  %v6622 = vpop.f32.mrb[0].mxu0
  %v6623 = vadd.f32 %v5507, %v6622
  %v6624 = vpop.f32.mrb[0].mxu0
  %v6625 = vadd.f32 %v5507, %v6624
  %6626 = vmatprep.mubr.f32.mxu0 0.0
  %6627 = vmatmul.mubr.f32.gmra.mrb[0].mxu0 %v5449
  %v6628 = vpop.f32.mrb[0].mxu0
  %v6629 = vadd.f32 %v5512, %v6628
  %v6630 = vpop.f32.mrb[0].mxu0
  %v6631 = vadd.f32 %v5512, %v6630
  %6632 = vmatprep.mubr.f32.mxu0 0.0
  %6633 = vmatmul.mubr.f32.gmra.mrb[0].mxu0 %v5450
  %v6634 = vpop.f32.mrb[0].mxu0
  %v6635 = vadd.f32 %v5517, %v6634
  %v6636 = vpop.f32.mrb[0].mxu0
  %v6637 = vadd.f32 %v5517, %v6636
  %6638 = vmatprep.mubr.f32.mxu0 0.0
  %6639 = vmatmul.mubr.f32.gmra.mrb[0].mxu0 %v5451
  %v6640 = vpop.f32.mrb[0].mxu0
  %v6641 = vadd.f32 %v5522, %v6640
  %v6642 = vpop.f32.mrb[0].mxu0
  %v6643 = vadd.f32 %v5522, %v6642
  %6644 = vmatprep.mubr.f32.mxu0 0.0
  %6645 = vmatmul.mubr.f32.gmra.mrb[0].mxu0 %v5452
  %v6646 = vpop.f32.mrb[0].mxu0
  %v6647 = vadd.f32 %v5527, %v6646
  %v6648 = vpop.f32.mrb[0].mxu0
  %v6649 = vadd.f32 %v5527, %v6648
  %6650 = vmatprep.mubr.f32.mxu0 0.0
  %6651 = vmatmul.mubr.f32.gmra.mrb[0].mxu0 %v5453
  %v6652 = vpop.f32.mrb[0].mxu0
  %v6653 = vadd.f32 %v5532, %v6652
  %v6654 = vpop.f32.mrb[0].mxu0
  %v6655 = vadd.f32 %v5532, %v6654
  %6656 = vmatprep.mubr.f32.mxu0 0.0
  %6657 = vmatmul.mubr.f32.gmra.mrb[0].mxu0 %v5454
  %v6658 = vpop.f32.mrb[0].mxu0
  %v6659 = vadd.f32 %v5537, %v6658
  %v6660 = vpop.f32.mrb[0].mxu0
  %v6661 = vadd.f32 %v5537, %v6660
  %6662 = vmatprep.mubr.f32.mxu0 0.0
  %6663 = vmatmul.mubr.f32.gmra.mrb[0].mxu0 %v5455
  %v6664 = vpop.f32.mrb[0].mxu0
  %v6665 = vadd.f32 %v5542, %v6664
  %v6666 = vpop.f32.mrb[0].mxu0
  %v6667 = vadd.f32 %v5542, %v6666
  %6668 = vmatprep.mubr.f32.mxu0 0.0
  %6669 = vmatmul.mubr.f32.gmra.mrb[0].mxu0 %v5456
  %v6670 = vpop.f32.mrb[0].mxu0
  %v6671 = vadd.f32 %v5547, %v6670
  %v6672 = vpop.f32.mrb[0].mxu0
  %v6673 = vadd.f32 %v5547, %v6672
  %6674 = vmatprep.mubr.f32.mxu0 0.0
  %6675 = vmatmul.mubr.f32.gmra.mrb[0].mxu0 %v5457
  %v6676 = vpop.f32.mrb[0].mxu0
  %v6677 = vadd.f32 %v5552, %v6676
  %v6678 = vpop.f32.mrb[0].mxu0
  %v6679 = vadd.f32 %v5552, %v6678
  %6680 = vdwg.mxu0
  %6681 = vmatprep.subr.mxu0 %v4945
  %6682 = vmatpush1.msra.mxu0 %v4944
  %6683 = vmatprep.subr.mxu0 %v4977
  %6684 = vmatpush1.msra.mxu0 %v4976
  %6685 = vmatprep.subr.mxu0 %v5009
  %6686 = vmatpush1.msra.mxu0 %v5008
  %6687 = vmatprep.subr.mxu0 %v5041
  %6688 = vmatpush1.msra.mxu0 %v5040
  %6689 = vmatprep.subr.mxu0 %v5073
  %6690 = vmatpush1.msra.mxu0 %v5072
  %6691 = vmatprep.subr.mxu0 %v5105
  %6692 = vmatpush1.msra.mxu0 %v5104
  %6693 = vmatprep.subr.mxu0 %v5137
  %6694 = vmatpush1.msra.mxu0 %v5136
  %6695 = vmatprep.subr.mxu0 %v5169
  %6696 = vmatpush1.msra.mxu0 %v5168
  %6697 = vmatprep.subr.mxu0 %v5201
  %6698 = vmatpush1.msra.mxu0 %v5200
  %6699 = vmatprep.subr.mxu0 %v5233
  %6700 = vmatpush1.msra.mxu0 %v5232
  %6701 = vmatprep.subr.mxu0 %v5265
  %6702 = vmatpush1.msra.mxu0 %v5264
  %6703 = vmatprep.subr.mxu0 %v5297
  %6704 = vmatpush1.msra.mxu0 %v5296
  %6705 = vmatprep.subr.mxu0 %v5329
  %6706 = vmatpush1.msra.mxu0 %v5328
  %6707 = vmatprep.subr.mxu0 %v5361
  %6708 = vmatpush1.msra.mxu0 %v5360
  %6709 = vmatprep.subr.mxu0 %v5393
  %6710 = vmatpush1.msra.mxu0 %v5392
  %6711 = vmatprep.subr.mxu0 %v5425
  %6712 = vmatpush1.msra.mxu0 %v5424
  %6713 = vmatprep.subr.mxu0 0.0
  %6714 = vmatpush1.msra.mxu0 0.0
  %6715 = vmatprep.subr.mxu0 0.0
  %6716 = vmatpush1.msra.mxu0 0.0
  %6717 = vmatprep.subr.mxu0 0.0
  %6718 = vmatpush1.msra.mxu0 0.0
  %6719 = vmatprep.subr.mxu0 0.0
  %6720 = vmatpush1.msra.mxu0 0.0
  %6721 = vmatprep.subr.mxu0 0.0
  %6722 = vmatpush1.msra.mxu0 0.0
  %6723 = vmatprep.subr.mxu0 0.0
  %6724 = vmatpush1.msra.mxu0 0.0
  %6725 = vmatprep.subr.mxu0 0.0
  %6726 = vmatpush1.msra.mxu0 0.0
  %6727 = vmatprep.subr.mxu0 0.0
  %6728 = vmatpush1.msra.mxu0 0.0
  %6729 = vmatprep.subr.mxu0 0.0
  %6730 = vmatpush1.msra.mxu0 0.0
  %6731 = vmatprep.subr.mxu0 0.0
  %6732 = vmatpush1.msra.mxu0 0.0
  %6733 = vmatprep.subr.mxu0 0.0
  %6734 = vmatpush1.msra.mxu0 0.0
  %6735 = vmatprep.subr.mxu0 0.0
  %6736 = vmatpush1.msra.mxu0 0.0
  %6737 = vmatprep.subr.mxu0 0.0
  %6738 = vmatpush1.msra.mxu0 0.0
  %6739 = vmatprep.subr.mxu0 0.0
  %6740 = vmatpush1.msra.mxu0 0.0
  %6741 = vmatprep.subr.mxu0 0.0
  %6742 = vmatpush1.msra.mxu0 0.0
  %6743 = vmatprep.subr.mxu0 0.0
  %6744 = vmatpush1.msra.mxu0 0.0
  %6745 = vmatprep.mubr.f32.mxu0 0.0
  %6746 = vmatmul.mubr.f32.gmra.mrb[0].mxu0 %v5442
  %v6747 = vpop.f32.mrb[0].mxu0
  %v6748 = vadd.f32 %v5477, %v6747
  %v6749 = vpop.f32.mrb[0].mxu0
  %v6750 = vadd.f32 %v5477, %v6749
  %6751 = vmatprep.mubr.f32.mxu0 0.0
  %6752 = vmatmul.mubr.f32.gmra.mrb[0].mxu0 %v5443
  %v6753 = vpop.f32.mrb[0].mxu0
  %v6754 = vadd.f32 %v5482, %v6753
  %v6755 = vpop.f32.mrb[0].mxu0
  %v6756 = vadd.f32 %v5482, %v6755
  %6757 = vmatprep.mubr.f32.mxu0 0.0
  %6758 = vmatmul.mubr.f32.gmra.mrb[0].mxu0 %v5444
  %v6759 = vpop.f32.mrb[0].mxu0
  %v6760 = vadd.f32 %v5487, %v6759
  %v6761 = vpop.f32.mrb[0].mxu0
  %v6762 = vadd.f32 %v5487, %v6761
  %6763 = vmatprep.mubr.f32.mxu0 0.0
  %6764 = vmatmul.mubr.f32.gmra.mrb[0].mxu0 %v5445
  %v6765 = vpop.f32.mrb[0].mxu0
  %v6766 = vadd.f32 %v5492, %v6765
  %v6767 = vpop.f32.mrb[0].mxu0
  %v6768 = vadd.f32 %v5492, %v6767
  %6769 = vmatprep.mubr.f32.mxu0 0.0
  %6770 = vmatmul.mubr.f32.gmra.mrb[0].mxu0 %v5446
  %v6771 = vpop.f32.mrb[0].mxu0
  %v6772 = vadd.f32 %v5497, %v6771
  %v6773 = vpop.f32.mrb[0].mxu0
  %v6774 = vadd.f32 %v5497, %v6773
  %6775 = vmatprep.mubr.f32.mxu0 0.0
  %6776 = vmatmul.mubr.f32.gmra.mrb[0].mxu0 %v5447
  %v6777 = vpop.f32.mrb[0].mxu0
  %v6778 = vadd.f32 %v5502, %v6777
  %v6779 = vpop.f32.mrb[0].mxu0
  %v6780 = vadd.f32 %v5502, %v6779
  %6781 = vmatprep.mubr.f32.mxu0 0.0
  %6782 = vmatmul.mubr.f32.gmra.mrb[0].mxu0 %v5448
  %v6783 = vpop.f32.mrb[0].mxu0
  %v6784 = vadd.f32 %v5507, %v6783
  %v6785 = vpop.f32.mrb[0].mxu0
  %v6786 = vadd.f32 %v5507, %v6785
  %6787 = vmatprep.mubr.f32.mxu0 0.0
  %6788 = vmatmul.mubr.f32.gmra.mrb[0].mxu0 %v5449
  %v6789 = vpop.f32.mrb[0].mxu0
  %v6790 = vadd.f32 %v5512, %v6789
  %v6791 = vpop.f32.mrb[0].mxu0
  %v6792 = vadd.f32 %v5512, %v6791
  %6793 = vmatprep.mubr.f32.mxu0 0.0
  %6794 = vmatmul.mubr.f32.gmra.mrb[0].mxu0 %v5450
  %v6795 = vpop.f32.mrb[0].mxu0
  %v6796 = vadd.f32 %v5517, %v6795
  %v6797 = vpop.f32.mrb[0].mxu0
  %v6798 = vadd.f32 %v5517, %v6797
  %6799 = vmatprep.mubr.f32.mxu0 0.0
  %6800 = vmatmul.mubr.f32.gmra.mrb[0].mxu0 %v5451
  %v6801 = vpop.f32.mrb[0].mxu0
  %v6802 = vadd.f32 %v5522, %v6801
  %v6803 = vpop.f32.mrb[0].mxu0
  %v6804 = vadd.f32 %v5522, %v6803
  %6805 = vmatprep.mubr.f32.mxu0 0.0
  %6806 = vmatmul.mubr.f32.gmra.mrb[0].mxu0 %v5452
  %v6807 = vpop.f32.mrb[0].mxu0
  %v6808 = vadd.f32 %v5527, %v6807
  %v6809 = vpop.f32.mrb[0].mxu0
  %v6810 = vadd.f32 %v5527, %v6809
  %6811 = vmatprep.mubr.f32.mxu0 0.0
  %6812 = vmatmul.mubr.f32.gmra.mrb[0].mxu0 %v5453
  %v6813 = vpop.f32.mrb[0].mxu0
  %v6814 = vadd.f32 %v5532, %v6813
  %v6815 = vpop.f32.mrb[0].mxu0
  %v6816 = vadd.f32 %v5532, %v6815
  %6817 = vmatprep.mubr.f32.mxu0 0.0
  %6818 = vmatmul.mubr.f32.gmra.mrb[0].mxu0 %v5454
  %v6819 = vpop.f32.mrb[0].mxu0
  %v6820 = vadd.f32 %v5537, %v6819
  %v6821 = vpop.f32.mrb[0].mxu0
  %v6822 = vadd.f32 %v5537, %v6821
  %6823 = vmatprep.mubr.f32.mxu0 0.0
  %6824 = vmatmul.mubr.f32.gmra.mrb[0].mxu0 %v5455
  %v6825 = vpop.f32.mrb[0].mxu0
  %v6826 = vadd.f32 %v5542, %v6825
  %v6827 = vpop.f32.mrb[0].mxu0
  %v6828 = vadd.f32 %v5542, %v6827
  %6829 = vmatprep.mubr.f32.mxu0 0.0
  %6830 = vmatmul.mubr.f32.gmra.mrb[0].mxu0 %v5456
  %v6831 = vpop.f32.mrb[0].mxu0
  %v6832 = vadd.f32 %v5547, %v6831
  %v6833 = vpop.f32.mrb[0].mxu0
  %v6834 = vadd.f32 %v5547, %v6833
  %6835 = vmatprep.mubr.f32.mxu0 0.0
  %6836 = vmatmul.mubr.f32.gmra.mrb[0].mxu0 %v5457
  %v6837 = vpop.f32.mrb[0].mxu0
  %v6838 = vadd.f32 %v5552, %v6837
  %v6839 = vpop.f32.mrb[0].mxu0
  %v6840 = vadd.f32 %v5552, %v6839
  %6841 = vdwg.mxu0
  %6842 = vmatprep.subr.mxu0 %v4947
  %6843 = vmatpush1.msra.mxu0 %v4946
  %6844 = vmatprep.subr.mxu0 %v4979
  %6845 = vmatpush1.msra.mxu0 %v4978
  %6846 = vmatprep.subr.mxu0 %v5011
  %6847 = vmatpush1.msra.mxu0 %v5010
  %6848 = vmatprep.subr.mxu0 %v5043
  %6849 = vmatpush1.msra.mxu0 %v5042
  %6850 = vmatprep.subr.mxu0 %v5075
  %6851 = vmatpush1.msra.mxu0 %v5074
  %6852 = vmatprep.subr.mxu0 %v5107
  %6853 = vmatpush1.msra.mxu0 %v5106
  %6854 = vmatprep.subr.mxu0 %v5139
  %6855 = vmatpush1.msra.mxu0 %v5138
  %6856 = vmatprep.subr.mxu0 %v5171
  %6857 = vmatpush1.msra.mxu0 %v5170
  %6858 = vmatprep.subr.mxu0 %v5203
  %6859 = vmatpush1.msra.mxu0 %v5202
  %6860 = vmatprep.subr.mxu0 %v5235
  %6861 = vmatpush1.msra.mxu0 %v5234
  %6862 = vmatprep.subr.mxu0 %v5267
  %6863 = vmatpush1.msra.mxu0 %v5266
  %6864 = vmatprep.subr.mxu0 %v5299
  %6865 = vmatpush1.msra.mxu0 %v5298
  %6866 = vmatprep.subr.mxu0 %v5331
  %6867 = vmatpush1.msra.mxu0 %v5330
  %6868 = vmatprep.subr.mxu0 %v5363
  %6869 = vmatpush1.msra.mxu0 %v5362
  %6870 = vmatprep.subr.mxu0 %v5395
  %6871 = vmatpush1.msra.mxu0 %v5394
  %6872 = vmatprep.subr.mxu0 %v5427
  %6873 = vmatpush1.msra.mxu0 %v5426
  %6874 = vmatprep.subr.mxu0 0.0
  %6875 = vmatpush1.msra.mxu0 0.0
  %6876 = vmatprep.subr.mxu0 0.0
  %6877 = vmatpush1.msra.mxu0 0.0
  %6878 = vmatprep.subr.mxu0 0.0
  %6879 = vmatpush1.msra.mxu0 0.0
  %6880 = vmatprep.subr.mxu0 0.0
  %6881 = vmatpush1.msra.mxu0 0.0
  %6882 = vmatprep.subr.mxu0 0.0
  %6883 = vmatpush1.msra.mxu0 0.0
  %6884 = vmatprep.subr.mxu0 0.0
  %6885 = vmatpush1.msra.mxu0 0.0
  %6886 = vmatprep.subr.mxu0 0.0
  %6887 = vmatpush1.msra.mxu0 0.0
  %6888 = vmatprep.subr.mxu0 0.0
  %6889 = vmatpush1.msra.mxu0 0.0
  %6890 = vmatprep.subr.mxu0 0.0
  %6891 = vmatpush1.msra.mxu0 0.0
  %6892 = vmatprep.subr.mxu0 0.0
  %6893 = vmatpush1.msra.mxu0 0.0
  %6894 = vmatprep.subr.mxu0 0.0
  %6895 = vmatpush1.msra.mxu0 0.0
  %6896 = vmatprep.subr.mxu0 0.0
  %6897 = vmatpush1.msra.mxu0 0.0
  %6898 = vmatprep.subr.mxu0 0.0
  %6899 = vmatpush1.msra.mxu0 0.0
  %6900 = vmatprep.subr.mxu0 0.0
  %6901 = vmatpush1.msra.mxu0 0.0
  %6902 = vmatprep.subr.mxu0 0.0
  %6903 = vmatpush1.msra.mxu0 0.0
  %6904 = vmatprep.subr.mxu0 0.0
  %6905 = vmatpush1.msra.mxu0 0.0
  %6906 = vmatprep.mubr.f32.mxu0 0.0
  %6907 = vmatmul.mubr.f32.gmra.mrb[0].mxu0 %v5442
  %v6908 = vpop.f32.mrb[0].mxu0
  %v6909 = vadd.f32 %v5477, %v6908
  %v6910 = vpop.f32.mrb[0].mxu0
  %v6911 = vadd.f32 %v5477, %v6910
  %6912 = vmatprep.mubr.f32.mxu0 0.0
  %6913 = vmatmul.mubr.f32.gmra.mrb[0].mxu0 %v5443
  %v6914 = vpop.f32.mrb[0].mxu0
  %v6915 = vadd.f32 %v5482, %v6914
  %v6916 = vpop.f32.mrb[0].mxu0
  %v6917 = vadd.f32 %v5482, %v6916
  %6918 = vmatprep.mubr.f32.mxu0 0.0
  %6919 = vmatmul.mubr.f32.gmra.mrb[0].mxu0 %v5444
  %v6920 = vpop.f32.mrb[0].mxu0
  %v6921 = vadd.f32 %v5487, %v6920
  %v6922 = vpop.f32.mrb[0].mxu0
  %v6923 = vadd.f32 %v5487, %v6922
  %6924 = vmatprep.mubr.f32.mxu0 0.0
  %6925 = vmatmul.mubr.f32.gmra.mrb[0].mxu0 %v5445
  %v6926 = vpop.f32.mrb[0].mxu0
  %v6927 = vadd.f32 %v5492, %v6926
  %v6928 = vpop.f32.mrb[0].mxu0
  %v6929 = vadd.f32 %v5492, %v6928
  %6930 = vmatprep.mubr.f32.mxu0 0.0
  %6931 = vmatmul.mubr.f32.gmra.mrb[0].mxu0 %v5446
  %v6932 = vpop.f32.mrb[0].mxu0
  %v6933 = vadd.f32 %v5497, %v6932
  %v6934 = vpop.f32.mrb[0].mxu0
  %v6935 = vadd.f32 %v5497, %v6934
  %6936 = vmatprep.mubr.f32.mxu0 0.0
  %6937 = vmatmul.mubr.f32.gmra.mrb[0].mxu0 %v5447
  %v6938 = vpop.f32.mrb[0].mxu0
  %v6939 = vadd.f32 %v5502, %v6938
  %v6940 = vpop.f32.mrb[0].mxu0
  %v6941 = vadd.f32 %v5502, %v6940
  %6942 = vmatprep.mubr.f32.mxu0 0.0
  %6943 = vmatmul.mubr.f32.gmra.mrb[0].mxu0 %v5448
  %v6944 = vpop.f32.mrb[0].mxu0
  %v6945 = vadd.f32 %v5507, %v6944
  %v6946 = vpop.f32.mrb[0].mxu0
  %v6947 = vadd.f32 %v5507, %v6946
  %6948 = vmatprep.mubr.f32.mxu0 0.0
  %6949 = vmatmul.mubr.f32.gmra.mrb[0].mxu0 %v5449
  %v6950 = vpop.f32.mrb[0].mxu0
  %v6951 = vadd.f32 %v5512, %v6950
  %v6952 = vpop.f32.mrb[0].mxu0
  %v6953 = vadd.f32 %v5512, %v6952
  %6954 = vmatprep.mubr.f32.mxu0 0.0
  %6955 = vmatmul.mubr.f32.gmra.mrb[0].mxu0 %v5450
  %v6956 = vpop.f32.mrb[0].mxu0
  %v6957 = vadd.f32 %v5517, %v6956
  %v6958 = vpop.f32.mrb[0].mxu0
  %v6959 = vadd.f32 %v5517, %v6958
  %6960 = vmatprep.mubr.f32.mxu0 0.0
  %6961 = vmatmul.mubr.f32.gmra.mrb[0].mxu0 %v5451
  %v6962 = vpop.f32.mrb[0].mxu0
  %v6963 = vadd.f32 %v5522, %v6962
  %v6964 = vpop.f32.mrb[0].mxu0
  %v6965 = vadd.f32 %v5522, %v6964
  %6966 = vmatprep.mubr.f32.mxu0 0.0
  %6967 = vmatmul.mubr.f32.gmra.mrb[0].mxu0 %v5452
  %v6968 = vpop.f32.mrb[0].mxu0
  %v6969 = vadd.f32 %v5527, %v6968
  %v6970 = vpop.f32.mrb[0].mxu0
  %v6971 = vadd.f32 %v5527, %v6970
  %6972 = vmatprep.mubr.f32.mxu0 0.0
  %6973 = vmatmul.mubr.f32.gmra.mrb[0].mxu0 %v5453
  %v6974 = vpop.f32.mrb[0].mxu0
  %v6975 = vadd.f32 %v5532, %v6974
  %v6976 = vpop.f32.mrb[0].mxu0
  %v6977 = vadd.f32 %v5532, %v6976
  %6978 = vmatprep.mubr.f32.mxu0 0.0
  %6979 = vmatmul.mubr.f32.gmra.mrb[0].mxu0 %v5454
  %v6980 = vpop.f32.mrb[0].mxu0
  %v6981 = vadd.f32 %v5537, %v6980
  %v6982 = vpop.f32.mrb[0].mxu0
  %v6983 = vadd.f32 %v5537, %v6982
  %6984 = vmatprep.mubr.f32.mxu0 0.0
  %6985 = vmatmul.mubr.f32.gmra.mrb[0].mxu0 %v5455
  %v6986 = vpop.f32.mrb[0].mxu0
  %v6987 = vadd.f32 %v5542, %v6986
  %v6988 = vpop.f32.mrb[0].mxu0
  %v6989 = vadd.f32 %v5542, %v6988
  %6990 = vmatprep.mubr.f32.mxu0 0.0
  %6991 = vmatmul.mubr.f32.gmra.mrb[0].mxu0 %v5456
  %v6992 = vpop.f32.mrb[0].mxu0
  %v6993 = vadd.f32 %v5547, %v6992
  %v6994 = vpop.f32.mrb[0].mxu0
  %v6995 = vadd.f32 %v5547, %v6994
  %6996 = vmatprep.mubr.f32.mxu0 0.0
  %6997 = vmatmul.mubr.f32.gmra.mrb[0].mxu0 %v5457
  %v6998 = vpop.f32.mrb[0].mxu0
  %v6999 = vadd.f32 %v5552, %v6998
  %v7000 = vpop.f32.mrb[0].mxu0
  %v7001 = vadd.f32 %v5552, %v7000
  %7002 = vdwg.mxu0
  %7003 = vmatprep.subr.mxu0 %v4949
  %7004 = vmatpush1.msra.mxu0 %v4948
  %7005 = vmatprep.subr.mxu0 %v4981
  %7006 = vmatpush1.msra.mxu0 %v4980
  %7007 = vmatprep.subr.mxu0 %v5013
  %7008 = vmatpush1.msra.mxu0 %v5012
  %7009 = vmatprep.subr.mxu0 %v5045
  %7010 = vmatpush1.msra.mxu0 %v5044
  %7011 = vmatprep.subr.mxu0 %v5077
  %7012 = vmatpush1.msra.mxu0 %v5076
  %7013 = vmatprep.subr.mxu0 %v5109
  %7014 = vmatpush1.msra.mxu0 %v5108
  %7015 = vmatprep.subr.mxu0 %v5141
  %7016 = vmatpush1.msra.mxu0 %v5140
  %7017 = vmatprep.subr.mxu0 %v5173
  %7018 = vmatpush1.msra.mxu0 %v5172
  %7019 = vmatprep.subr.mxu0 %v5205
  %7020 = vmatpush1.msra.mxu0 %v5204
  %7021 = vmatprep.subr.mxu0 %v5237
  %7022 = vmatpush1.msra.mxu0 %v5236
  %7023 = vmatprep.subr.mxu0 %v5269
  %7024 = vmatpush1.msra.mxu0 %v5268
  %7025 = vmatprep.subr.mxu0 %v5301
  %7026 = vmatpush1.msra.mxu0 %v5300
  %7027 = vmatprep.subr.mxu0 %v5333
  %7028 = vmatpush1.msra.mxu0 %v5332
  %7029 = vmatprep.subr.mxu0 %v5365
  %7030 = vmatpush1.msra.mxu0 %v5364
  %7031 = vmatprep.subr.mxu0 %v5397
  %7032 = vmatpush1.msra.mxu0 %v5396
  %7033 = vmatprep.subr.mxu0 %v5429
  %7034 = vmatpush1.msra.mxu0 %v5428
  %7035 = vmatprep.subr.mxu0 0.0
  %7036 = vmatpush1.msra.mxu0 0.0
  %7037 = vmatprep.subr.mxu0 0.0
  %7038 = vmatpush1.msra.mxu0 0.0
  %7039 = vmatprep.subr.mxu0 0.0
  %7040 = vmatpush1.msra.mxu0 0.0
  %7041 = vmatprep.subr.mxu0 0.0
  %7042 = vmatpush1.msra.mxu0 0.0
  %7043 = vmatprep.subr.mxu0 0.0
  %7044 = vmatpush1.msra.mxu0 0.0
  %7045 = vmatprep.subr.mxu0 0.0
  %7046 = vmatpush1.msra.mxu0 0.0
  %7047 = vmatprep.subr.mxu0 0.0
  %7048 = vmatpush1.msra.mxu0 0.0
  %7049 = vmatprep.subr.mxu0 0.0
  %7050 = vmatpush1.msra.mxu0 0.0
  %7051 = vmatprep.subr.mxu0 0.0
  %7052 = vmatpush1.msra.mxu0 0.0
  %7053 = vmatprep.subr.mxu0 0.0
  %7054 = vmatpush1.msra.mxu0 0.0
  %7055 = vmatprep.subr.mxu0 0.0
  %7056 = vmatpush1.msra.mxu0 0.0
  %7057 = vmatprep.subr.mxu0 0.0
  %7058 = vmatpush1.msra.mxu0 0.0
  %7059 = vmatprep.subr.mxu0 0.0
  %7060 = vmatpush1.msra.mxu0 0.0
  %7061 = vmatprep.subr.mxu0 0.0
  %7062 = vmatpush1.msra.mxu0 0.0
  %7063 = vmatprep.subr.mxu0 0.0
  %7064 = vmatpush1.msra.mxu0 0.0
  %7065 = vmatprep.subr.mxu0 0.0
  %7066 = vmatpush1.msra.mxu0 0.0
  %7067 = vmatprep.mubr.f32.mxu0 0.0
  %7068 = vmatmul.mubr.f32.gmra.mrb[0].mxu0 %v5442
  %v7069 = vpop.f32.mrb[0].mxu0
  %v7070 = vadd.f32 %v5477, %v7069
  %v7071 = vpop.f32.mrb[0].mxu0
  %v7072 = vadd.f32 %v5477, %v7071
  %7073 = vmatprep.mubr.f32.mxu0 0.0
  %7074 = vmatmul.mubr.f32.gmra.mrb[0].mxu0 %v5443
  %v7075 = vpop.f32.mrb[0].mxu0
  %v7076 = vadd.f32 %v5482, %v7075
  %v7077 = vpop.f32.mrb[0].mxu0
  %v7078 = vadd.f32 %v5482, %v7077
  %7079 = vmatprep.mubr.f32.mxu0 0.0
  %7080 = vmatmul.mubr.f32.gmra.mrb[0].mxu0 %v5444
  %v7081 = vpop.f32.mrb[0].mxu0
  %v7082 = vadd.f32 %v5487, %v7081
  %v7083 = vpop.f32.mrb[0].mxu0
  %v7084 = vadd.f32 %v5487, %v7083
  %7085 = vmatprep.mubr.f32.mxu0 0.0
  %7086 = vmatmul.mubr.f32.gmra.mrb[0].mxu0 %v5445
  %v7087 = vpop.f32.mrb[0].mxu0
  %v7088 = vadd.f32 %v5492, %v7087
  %v7089 = vpop.f32.mrb[0].mxu0
  %v7090 = vadd.f32 %v5492, %v7089
  %7091 = vmatprep.mubr.f32.mxu0 0.0
  %7092 = vmatmul.mubr.f32.gmra.mrb[0].mxu0 %v5446
  %v7093 = vpop.f32.mrb[0].mxu0
  %v7094 = vadd.f32 %v5497, %v7093
  %v7095 = vpop.f32.mrb[0].mxu0
  %v7096 = vadd.f32 %v5497, %v7095
  %7097 = vmatprep.mubr.f32.mxu0 0.0
  %7098 = vmatmul.mubr.f32.gmra.mrb[0].mxu0 %v5447
  %v7099 = vpop.f32.mrb[0].mxu0
  %v7100 = vadd.f32 %v5502, %v7099
  %v7101 = vpop.f32.mrb[0].mxu0
  %v7102 = vadd.f32 %v5502, %v7101
  %7103 = vmatprep.mubr.f32.mxu0 0.0
  %7104 = vmatmul.mubr.f32.gmra.mrb[0].mxu0 %v5448
  %v7105 = vpop.f32.mrb[0].mxu0
  %v7106 = vadd.f32 %v5507, %v7105
  %v7107 = vpop.f32.mrb[0].mxu0
  %v7108 = vadd.f32 %v5507, %v7107
  %7109 = vmatprep.mubr.f32.mxu0 0.0
  %7110 = vmatmul.mubr.f32.gmra.mrb[0].mxu0 %v5449
  %v7111 = vpop.f32.mrb[0].mxu0
  %v7112 = vadd.f32 %v5512, %v7111
  %v7113 = vpop.f32.mrb[0].mxu0
  %v7114 = vadd.f32 %v5512, %v7113
  %7115 = vmatprep.mubr.f32.mxu0 0.0
  %7116 = vmatmul.mubr.f32.gmra.mrb[0].mxu0 %v5450
  %v7117 = vpop.f32.mrb[0].mxu0
  %v7118 = vadd.f32 %v5517, %v7117
  %v7119 = vpop.f32.mrb[0].mxu0
  %v7120 = vadd.f32 %v5517, %v7119
  %7121 = vmatprep.mubr.f32.mxu0 0.0
  %7122 = vmatmul.mubr.f32.gmra.mrb[0].mxu0 %v5451
  %v7123 = vpop.f32.mrb[0].mxu0
  %v7124 = vadd.f32 %v5522, %v7123
  %v7125 = vpop.f32.mrb[0].mxu0
  %v7126 = vadd.f32 %v5522, %v7125
  %7127 = vmatprep.mubr.f32.mxu0 0.0
  %7128 = vmatmul.mubr.f32.gmra.mrb[0].mxu0 %v5452
  %v7129 = vpop.f32.mrb[0].mxu0
  %v7130 = vadd.f32 %v5527, %v7129
  %v7131 = vpop.f32.mrb[0].mxu0
  %v7132 = vadd.f32 %v5527, %v7131
  %7133 = vmatprep.mubr.f32.mxu0 0.0
  %7134 = vmatmul.mubr.f32.gmra.mrb[0].mxu0 %v5453
  %v7135 = vpop.f32.mrb[0].mxu0
  %v7136 = vadd.f32 %v5532, %v7135
  %v7137 = vpop.f32.mrb[0].mxu0
  %v7138 = vadd.f32 %v5532, %v7137
  %7139 = vmatprep.mubr.f32.mxu0 0.0
  %7140 = vmatmul.mubr.f32.gmra.mrb[0].mxu0 %v5454
  %v7141 = vpop.f32.mrb[0].mxu0
  %v7142 = vadd.f32 %v5537, %v7141
  %v7143 = vpop.f32.mrb[0].mxu0
  %v7144 = vadd.f32 %v5537, %v7143
  %7145 = vmatprep.mubr.f32.mxu0 0.0
  %7146 = vmatmul.mubr.f32.gmra.mrb[0].mxu0 %v5455
  %v7147 = vpop.f32.mrb[0].mxu0
  %v7148 = vadd.f32 %v5542, %v7147
  %v7149 = vpop.f32.mrb[0].mxu0
  %v7150 = vadd.f32 %v5542, %v7149
  %7151 = vmatprep.mubr.f32.mxu0 0.0
  %7152 = vmatmul.mubr.f32.gmra.mrb[0].mxu0 %v5456
  %v7153 = vpop.f32.mrb[0].mxu0
  %v7154 = vadd.f32 %v5547, %v7153
  %v7155 = vpop.f32.mrb[0].mxu0
  %v7156 = vadd.f32 %v5547, %v7155
  %7157 = vmatprep.mubr.f32.mxu0 0.0
  %7158 = vmatmul.mubr.f32.gmra.mrb[0].mxu0 %v5457
  %v7159 = vpop.f32.mrb[0].mxu0
  %v7160 = vadd.f32 %v5552, %v7159
  %v7161 = vpop.f32.mrb[0].mxu0
  %v7162 = vadd.f32 %v5552, %v7161
  %7163 = vdwg.mxu0
  %7164 = vmatprep.subr.mxu0 %v4951
  %7165 = vmatpush1.msra.mxu0 %v4950
  %7166 = vmatprep.subr.mxu0 %v4983
  %7167 = vmatpush1.msra.mxu0 %v4982
  %7168 = vmatprep.subr.mxu0 %v5015
  %7169 = vmatpush1.msra.mxu0 %v5014
  %7170 = vmatprep.subr.mxu0 %v5047
  %7171 = vmatpush1.msra.mxu0 %v5046
  %7172 = vmatprep.subr.mxu0 %v5079
  %7173 = vmatpush1.msra.mxu0 %v5078
  %7174 = vmatprep.subr.mxu0 %v5111
  %7175 = vmatpush1.msra.mxu0 %v5110
  %7176 = vmatprep.subr.mxu0 %v5143
  %7177 = vmatpush1.msra.mxu0 %v5142
  %7178 = vmatprep.subr.mxu0 %v5175
  %7179 = vmatpush1.msra.mxu0 %v5174
  %7180 = vmatprep.subr.mxu0 %v5207
  %7181 = vmatpush1.msra.mxu0 %v5206
  %7182 = vmatprep.subr.mxu0 %v5239
  %7183 = vmatpush1.msra.mxu0 %v5238
  %7184 = vmatprep.subr.mxu0 %v5271
  %7185 = vmatpush1.msra.mxu0 %v5270
  %7186 = vmatprep.subr.mxu0 %v5303
  %7187 = vmatpush1.msra.mxu0 %v5302
  %7188 = vmatprep.subr.mxu0 %v5335
  %7189 = vmatpush1.msra.mxu0 %v5334
  %7190 = vmatprep.subr.mxu0 %v5367
  %7191 = vmatpush1.msra.mxu0 %v5366
  %7192 = vmatprep.subr.mxu0 %v5399
  %7193 = vmatpush1.msra.mxu0 %v5398
  %7194 = vmatprep.subr.mxu0 %v5431
  %7195 = vmatpush1.msra.mxu0 %v5430
  %7196 = vmatprep.subr.mxu0 0.0
  %7197 = vmatpush1.msra.mxu0 0.0
  %7198 = vmatprep.subr.mxu0 0.0
  %7199 = vmatpush1.msra.mxu0 0.0
  %7200 = vmatprep.subr.mxu0 0.0
  %7201 = vmatpush1.msra.mxu0 0.0
  %7202 = vmatprep.subr.mxu0 0.0
  %7203 = vmatpush1.msra.mxu0 0.0
  %7204 = vmatprep.subr.mxu0 0.0
  %7205 = vmatpush1.msra.mxu0 0.0
  %7206 = vmatprep.subr.mxu0 0.0
  %7207 = vmatpush1.msra.mxu0 0.0
  %7208 = vmatprep.subr.mxu0 0.0
  %7209 = vmatpush1.msra.mxu0 0.0
  %7210 = vmatprep.subr.mxu0 0.0
  %7211 = vmatpush1.msra.mxu0 0.0
  %7212 = vmatprep.subr.mxu0 0.0
  %7213 = vmatpush1.msra.mxu0 0.0
  %7214 = vmatprep.subr.mxu0 0.0
  %7215 = vmatpush1.msra.mxu0 0.0
  %7216 = vmatprep.subr.mxu0 0.0
  %7217 = vmatpush1.msra.mxu0 0.0
  %7218 = vmatprep.subr.mxu0 0.0
  %7219 = vmatpush1.msra.mxu0 0.0
  %7220 = vmatprep.subr.mxu0 0.0
  %7221 = vmatpush1.msra.mxu0 0.0
  %7222 = vmatprep.subr.mxu0 0.0
  %7223 = vmatpush1.msra.mxu0 0.0
  %7224 = vmatprep.subr.mxu0 0.0
  %7225 = vmatpush1.msra.mxu0 0.0
  %7226 = vmatprep.subr.mxu0 0.0
  %7227 = vmatpush1.msra.mxu0 0.0
  %7228 = vmatprep.mubr.f32.mxu0 0.0
  %7229 = vmatmul.mubr.f32.gmra.mrb[0].mxu0 %v5442
  %v7230 = vpop.f32.mrb[0].mxu0
  %v7231 = vadd.f32 %v5477, %v7230
  %v7232 = vpop.f32.mrb[0].mxu0
  %v7233 = vadd.f32 %v5477, %v7232
  %7234 = vmatprep.mubr.f32.mxu0 0.0
  %7235 = vmatmul.mubr.f32.gmra.mrb[0].mxu0 %v5443
  %v7236 = vpop.f32.mrb[0].mxu0
  %v7237 = vadd.f32 %v5482, %v7236
  %v7238 = vpop.f32.mrb[0].mxu0
  %v7239 = vadd.f32 %v5482, %v7238
  %7240 = vmatprep.mubr.f32.mxu0 0.0
  %7241 = vmatmul.mubr.f32.gmra.mrb[0].mxu0 %v5444
  %v7242 = vpop.f32.mrb[0].mxu0
  %v7243 = vadd.f32 %v5487, %v7242
  %v7244 = vpop.f32.mrb[0].mxu0
  %v7245 = vadd.f32 %v5487, %v7244
  %7246 = vmatprep.mubr.f32.mxu0 0.0
  %7247 = vmatmul.mubr.f32.gmra.mrb[0].mxu0 %v5445
  %v7248 = vpop.f32.mrb[0].mxu0
  %v7249 = vadd.f32 %v5492, %v7248
  %v7250 = vpop.f32.mrb[0].mxu0
  %v7251 = vadd.f32 %v5492, %v7250
  %7252 = vmatprep.mubr.f32.mxu0 0.0
  %7253 = vmatmul.mubr.f32.gmra.mrb[0].mxu0 %v5446
  %v7254 = vpop.f32.mrb[0].mxu0
  %v7255 = vadd.f32 %v5497, %v7254
  %v7256 = vpop.f32.mrb[0].mxu0
  %v7257 = vadd.f32 %v5497, %v7256
  %7258 = vmatprep.mubr.f32.mxu0 0.0
  %7259 = vmatmul.mubr.f32.gmra.mrb[0].mxu0 %v5447
  %v7260 = vpop.f32.mrb[0].mxu0
  %v7261 = vadd.f32 %v5502, %v7260
  %v7262 = vpop.f32.mrb[0].mxu0
  %v7263 = vadd.f32 %v5502, %v7262
  %7264 = vmatprep.mubr.f32.mxu0 0.0
  %7265 = vmatmul.mubr.f32.gmra.mrb[0].mxu0 %v5448
  %v7266 = vpop.f32.mrb[0].mxu0
  %v7267 = vadd.f32 %v5507, %v7266
  %v7268 = vpop.f32.mrb[0].mxu0
  %v7269 = vadd.f32 %v5507, %v7268
  %7270 = vmatprep.mubr.f32.mxu0 0.0
  %7271 = vmatmul.mubr.f32.gmra.mrb[0].mxu0 %v5449
  %v7272 = vpop.f32.mrb[0].mxu0
  %v7273 = vadd.f32 %v5512, %v7272
  %v7274 = vpop.f32.mrb[0].mxu0
  %v7275 = vadd.f32 %v5512, %v7274
  %7276 = vmatprep.mubr.f32.mxu0 0.0
  %7277 = vmatmul.mubr.f32.gmra.mrb[0].mxu0 %v5450
  %v7278 = vpop.f32.mrb[0].mxu0
  %v7279 = vadd.f32 %v5517, %v7278
  %v7280 = vpop.f32.mrb[0].mxu0
  %v7281 = vadd.f32 %v5517, %v7280
  %7282 = vmatprep.mubr.f32.mxu0 0.0
  %7283 = vmatmul.mubr.f32.gmra.mrb[0].mxu0 %v5451
  %v7284 = vpop.f32.mrb[0].mxu0
  %v7285 = vadd.f32 %v5522, %v7284
  %v7286 = vpop.f32.mrb[0].mxu0
  %v7287 = vadd.f32 %v5522, %v7286
  %7288 = vmatprep.mubr.f32.mxu0 0.0
  %7289 = vmatmul.mubr.f32.gmra.mrb[0].mxu0 %v5452
  %v7290 = vpop.f32.mrb[0].mxu0
  %v7291 = vadd.f32 %v5527, %v7290
  %v7292 = vpop.f32.mrb[0].mxu0
  %v7293 = vadd.f32 %v5527, %v7292
  %7294 = vmatprep.mubr.f32.mxu0 0.0
  %7295 = vmatmul.mubr.f32.gmra.mrb[0].mxu0 %v5453
  %v7296 = vpop.f32.mrb[0].mxu0
  %v7297 = vadd.f32 %v5532, %v7296
  %v7298 = vpop.f32.mrb[0].mxu0
  %v7299 = vadd.f32 %v5532, %v7298
  %7300 = vmatprep.mubr.f32.mxu0 0.0
  %7301 = vmatmul.mubr.f32.gmra.mrb[0].mxu0 %v5454
  %v7302 = vpop.f32.mrb[0].mxu0
  %v7303 = vadd.f32 %v5537, %v7302
  %v7304 = vpop.f32.mrb[0].mxu0
  %v7305 = vadd.f32 %v5537, %v7304
  %7306 = vmatprep.mubr.f32.mxu0 0.0
  %7307 = vmatmul.mubr.f32.gmra.mrb[0].mxu0 %v5455
  %v7308 = vpop.f32.mrb[0].mxu0
  %v7309 = vadd.f32 %v5542, %v7308
  %v7310 = vpop.f32.mrb[0].mxu0
  %v7311 = vadd.f32 %v5542, %v7310
  %7312 = vmatprep.mubr.f32.mxu0 0.0
  %7313 = vmatmul.mubr.f32.gmra.mrb[0].mxu0 %v5456
  %v7314 = vpop.f32.mrb[0].mxu0
  %v7315 = vadd.f32 %v5547, %v7314
  %v7316 = vpop.f32.mrb[0].mxu0
  %v7317 = vadd.f32 %v5547, %v7316
  %7318 = vmatprep.mubr.f32.mxu0 0.0
  %7319 = vmatmul.mubr.f32.gmra.mrb[0].mxu0 %v5457
  %v7320 = vpop.f32.mrb[0].mxu0
  %v7321 = vadd.f32 %v5552, %v7320
  %v7322 = vpop.f32.mrb[0].mxu0
  %v7323 = vadd.f32 %v5552, %v7322
  %7324 = vdwg.mxu0
  %7325 = vmatprep.subr.mxu0 %v4953
  %7326 = vmatpush1.msra.mxu0 %v4952
  %7327 = vmatprep.subr.mxu0 %v4985
  %7328 = vmatpush1.msra.mxu0 %v4984
  %7329 = vmatprep.subr.mxu0 %v5017
  %7330 = vmatpush1.msra.mxu0 %v5016
  %7331 = vmatprep.subr.mxu0 %v5049
  %7332 = vmatpush1.msra.mxu0 %v5048
  %7333 = vmatprep.subr.mxu0 %v5081
  %7334 = vmatpush1.msra.mxu0 %v5080
  %7335 = vmatprep.subr.mxu0 %v5113
  %7336 = vmatpush1.msra.mxu0 %v5112
  %7337 = vmatprep.subr.mxu0 %v5145
  %7338 = vmatpush1.msra.mxu0 %v5144
  %7339 = vmatprep.subr.mxu0 %v5177
  %7340 = vmatpush1.msra.mxu0 %v5176
  %7341 = vmatprep.subr.mxu0 %v5209
  %7342 = vmatpush1.msra.mxu0 %v5208
  %7343 = vmatprep.subr.mxu0 %v5241
  %7344 = vmatpush1.msra.mxu0 %v5240
  %7345 = vmatprep.subr.mxu0 %v5273
  %7346 = vmatpush1.msra.mxu0 %v5272
  %7347 = vmatprep.subr.mxu0 %v5305
  %7348 = vmatpush1.msra.mxu0 %v5304
  %7349 = vmatprep.subr.mxu0 %v5337
  %7350 = vmatpush1.msra.mxu0 %v5336
  %7351 = vmatprep.subr.mxu0 %v5369
  %7352 = vmatpush1.msra.mxu0 %v5368
  %7353 = vmatprep.subr.mxu0 %v5401
  %7354 = vmatpush1.msra.mxu0 %v5400
  %7355 = vmatprep.subr.mxu0 %v5433
  %7356 = vmatpush1.msra.mxu0 %v5432
  %7357 = vmatprep.subr.mxu0 0.0
  %7358 = vmatpush1.msra.mxu0 0.0
  %7359 = vmatprep.subr.mxu0 0.0
  %7360 = vmatpush1.msra.mxu0 0.0
  %7361 = vmatprep.subr.mxu0 0.0
  %7362 = vmatpush1.msra.mxu0 0.0
  %7363 = vmatprep.subr.mxu0 0.0
  %7364 = vmatpush1.msra.mxu0 0.0
  %7365 = vmatprep.subr.mxu0 0.0
  %7366 = vmatpush1.msra.mxu0 0.0
  %7367 = vmatprep.subr.mxu0 0.0
  %7368 = vmatpush1.msra.mxu0 0.0
  %7369 = vmatprep.subr.mxu0 0.0
  %7370 = vmatpush1.msra.mxu0 0.0
  %7371 = vmatprep.subr.mxu0 0.0
  %7372 = vmatpush1.msra.mxu0 0.0
  %7373 = vmatprep.subr.mxu0 0.0
  %7374 = vmatpush1.msra.mxu0 0.0
  %7375 = vmatprep.subr.mxu0 0.0
  %7376 = vmatpush1.msra.mxu0 0.0
  %7377 = vmatprep.subr.mxu0 0.0
  %7378 = vmatpush1.msra.mxu0 0.0
  %7379 = vmatprep.subr.mxu0 0.0
  %7380 = vmatpush1.msra.mxu0 0.0
  %7381 = vmatprep.subr.mxu0 0.0
  %7382 = vmatpush1.msra.mxu0 0.0
  %7383 = vmatprep.subr.mxu0 0.0
  %7384 = vmatpush1.msra.mxu0 0.0
  %7385 = vmatprep.subr.mxu0 0.0
  %7386 = vmatpush1.msra.mxu0 0.0
  %7387 = vmatprep.subr.mxu0 0.0
  %7388 = vmatpush1.msra.mxu0 0.0
  %7389 = vmatprep.mubr.f32.mxu0 0.0
  %7390 = vmatmul.mubr.f32.gmra.mrb[0].mxu0 %v5442
  %v7391 = vpop.f32.mrb[0].mxu0
  %v7392 = vadd.f32 %v5477, %v7391
  %v7393 = vpop.f32.mrb[0].mxu0
  %v7394 = vadd.f32 %v5477, %v7393
  %7395 = vmatprep.mubr.f32.mxu0 0.0
  %7396 = vmatmul.mubr.f32.gmra.mrb[0].mxu0 %v5443
  %v7397 = vpop.f32.mrb[0].mxu0
  %v7398 = vadd.f32 %v5482, %v7397
  %v7399 = vpop.f32.mrb[0].mxu0
  %v7400 = vadd.f32 %v5482, %v7399
  %7401 = vmatprep.mubr.f32.mxu0 0.0
  %7402 = vmatmul.mubr.f32.gmra.mrb[0].mxu0 %v5444
  %v7403 = vpop.f32.mrb[0].mxu0
  %v7404 = vadd.f32 %v5487, %v7403
  %v7405 = vpop.f32.mrb[0].mxu0
  %v7406 = vadd.f32 %v5487, %v7405
  %7407 = vmatprep.mubr.f32.mxu0 0.0
  %7408 = vmatmul.mubr.f32.gmra.mrb[0].mxu0 %v5445
  %v7409 = vpop.f32.mrb[0].mxu0
  %v7410 = vadd.f32 %v5492, %v7409
  %v7411 = vpop.f32.mrb[0].mxu0
  %v7412 = vadd.f32 %v5492, %v7411
  %7413 = vmatprep.mubr.f32.mxu0 0.0
  %7414 = vmatmul.mubr.f32.gmra.mrb[0].mxu0 %v5446
  %v7415 = vpop.f32.mrb[0].mxu0
  %v7416 = vadd.f32 %v5497, %v7415
  %v7417 = vpop.f32.mrb[0].mxu0
  %v7418 = vadd.f32 %v5497, %v7417
  %7419 = vmatprep.mubr.f32.mxu0 0.0
  %7420 = vmatmul.mubr.f32.gmra.mrb[0].mxu0 %v5447
  %v7421 = vpop.f32.mrb[0].mxu0
  %v7422 = vadd.f32 %v5502, %v7421
  %v7423 = vpop.f32.mrb[0].mxu0
  %v7424 = vadd.f32 %v5502, %v7423
  %7425 = vmatprep.mubr.f32.mxu0 0.0
  %7426 = vmatmul.mubr.f32.gmra.mrb[0].mxu0 %v5448
  %v7427 = vpop.f32.mrb[0].mxu0
  %v7428 = vadd.f32 %v5507, %v7427
  %v7429 = vpop.f32.mrb[0].mxu0
  %v7430 = vadd.f32 %v5507, %v7429
  %7431 = vmatprep.mubr.f32.mxu0 0.0
  %7432 = vmatmul.mubr.f32.gmra.mrb[0].mxu0 %v5449
  %v7433 = vpop.f32.mrb[0].mxu0
  %v7434 = vadd.f32 %v5512, %v7433
  %v7435 = vpop.f32.mrb[0].mxu0
  %v7436 = vadd.f32 %v5512, %v7435
  %7437 = vmatprep.mubr.f32.mxu0 0.0
  %7438 = vmatmul.mubr.f32.gmra.mrb[0].mxu0 %v5450
  %v7439 = vpop.f32.mrb[0].mxu0
  %v7440 = vadd.f32 %v5517, %v7439
  %v7441 = vpop.f32.mrb[0].mxu0
  %v7442 = vadd.f32 %v5517, %v7441
  %7443 = vmatprep.mubr.f32.mxu0 0.0
  %7444 = vmatmul.mubr.f32.gmra.mrb[0].mxu0 %v5451
  %v7445 = vpop.f32.mrb[0].mxu0
  %v7446 = vadd.f32 %v5522, %v7445
  %v7447 = vpop.f32.mrb[0].mxu0
  %v7448 = vadd.f32 %v5522, %v7447
  %7449 = vmatprep.mubr.f32.mxu0 0.0
  %7450 = vmatmul.mubr.f32.gmra.mrb[0].mxu0 %v5452
  %v7451 = vpop.f32.mrb[0].mxu0
  %v7452 = vadd.f32 %v5527, %v7451
  %v7453 = vpop.f32.mrb[0].mxu0
  %v7454 = vadd.f32 %v5527, %v7453
  %7455 = vmatprep.mubr.f32.mxu0 0.0
  %7456 = vmatmul.mubr.f32.gmra.mrb[0].mxu0 %v5453
  %v7457 = vpop.f32.mrb[0].mxu0
  %v7458 = vadd.f32 %v5532, %v7457
  %v7459 = vpop.f32.mrb[0].mxu0
  %v7460 = vadd.f32 %v5532, %v7459
  %7461 = vmatprep.mubr.f32.mxu0 0.0
  %7462 = vmatmul.mubr.f32.gmra.mrb[0].mxu0 %v5454
  %v7463 = vpop.f32.mrb[0].mxu0
  %v7464 = vadd.f32 %v5537, %v7463
  %v7465 = vpop.f32.mrb[0].mxu0
  %v7466 = vadd.f32 %v5537, %v7465
  %7467 = vmatprep.mubr.f32.mxu0 0.0
  %7468 = vmatmul.mubr.f32.gmra.mrb[0].mxu0 %v5455
  %v7469 = vpop.f32.mrb[0].mxu0
  %v7470 = vadd.f32 %v5542, %v7469
  %v7471 = vpop.f32.mrb[0].mxu0
  %v7472 = vadd.f32 %v5542, %v7471
  %7473 = vmatprep.mubr.f32.mxu0 0.0
  %7474 = vmatmul.mubr.f32.gmra.mrb[0].mxu0 %v5456
  %v7475 = vpop.f32.mrb[0].mxu0
  %v7476 = vadd.f32 %v5547, %v7475
  %v7477 = vpop.f32.mrb[0].mxu0
  %v7478 = vadd.f32 %v5547, %v7477
  %7479 = vmatprep.mubr.f32.mxu0 0.0
  %7480 = vmatmul.mubr.f32.gmra.mrb[0].mxu0 %v5457
  %v7481 = vpop.f32.mrb[0].mxu0
  %v7482 = vadd.f32 %v5552, %v7481
  %v7483 = vpop.f32.mrb[0].mxu0
  %v7484 = vadd.f32 %v5552, %v7483
  %7485 = vdwg.mxu0
  %7486 = vmatprep.subr.mxu0 %v4955
  %7487 = vmatpush1.msra.mxu0 %v4954
  %7488 = vmatprep.subr.mxu0 %v4987
  %7489 = vmatpush1.msra.mxu0 %v4986
  %7490 = vmatprep.subr.mxu0 %v5019
  %7491 = vmatpush1.msra.mxu0 %v5018
  %7492 = vmatprep.subr.mxu0 %v5051
  %7493 = vmatpush1.msra.mxu0 %v5050
  %7494 = vmatprep.subr.mxu0 %v5083
  %7495 = vmatpush1.msra.mxu0 %v5082
  %7496 = vmatprep.subr.mxu0 %v5115
  %7497 = vmatpush1.msra.mxu0 %v5114
  %7498 = vmatprep.subr.mxu0 %v5147
  %7499 = vmatpush1.msra.mxu0 %v5146
  %7500 = vmatprep.subr.mxu0 %v5179
  %7501 = vmatpush1.msra.mxu0 %v5178
  %7502 = vmatprep.subr.mxu0 %v5211
  %7503 = vmatpush1.msra.mxu0 %v5210
  %7504 = vmatprep.subr.mxu0 %v5243
  %7505 = vmatpush1.msra.mxu0 %v5242
  %7506 = vmatprep.subr.mxu0 %v5275
  %7507 = vmatpush1.msra.mxu0 %v5274
  %7508 = vmatprep.subr.mxu0 %v5307
  %7509 = vmatpush1.msra.mxu0 %v5306
  %7510 = vmatprep.subr.mxu0 %v5339
  %7511 = vmatpush1.msra.mxu0 %v5338
  %7512 = vmatprep.subr.mxu0 %v5371
  %7513 = vmatpush1.msra.mxu0 %v5370
  %7514 = vmatprep.subr.mxu0 %v5403
  %7515 = vmatpush1.msra.mxu0 %v5402
  %7516 = vmatprep.subr.mxu0 %v5435
  %7517 = vmatpush1.msra.mxu0 %v5434
  %7518 = vmatprep.subr.mxu0 0.0
  %7519 = vmatpush1.msra.mxu0 0.0
  %7520 = vmatprep.subr.mxu0 0.0
  %7521 = vmatpush1.msra.mxu0 0.0
  %7522 = vmatprep.subr.mxu0 0.0
  %7523 = vmatpush1.msra.mxu0 0.0
  %7524 = vmatprep.subr.mxu0 0.0
  %7525 = vmatpush1.msra.mxu0 0.0
  %7526 = vmatprep.subr.mxu0 0.0
  %7527 = vmatpush1.msra.mxu0 0.0
  %7528 = vmatprep.subr.mxu0 0.0
  %7529 = vmatpush1.msra.mxu0 0.0
  %7530 = vmatprep.subr.mxu0 0.0
  %7531 = vmatpush1.msra.mxu0 0.0
  %7532 = vmatprep.subr.mxu0 0.0
  %7533 = vmatpush1.msra.mxu0 0.0
  %7534 = vmatprep.subr.mxu0 0.0
  %7535 = vmatpush1.msra.mxu0 0.0
  %7536 = vmatprep.subr.mxu0 0.0
  %7537 = vmatpush1.msra.mxu0 0.0
  %7538 = vmatprep.subr.mxu0 0.0
  %7539 = vmatpush1.msra.mxu0 0.0
  %7540 = vmatprep.subr.mxu0 0.0
  %7541 = vmatpush1.msra.mxu0 0.0
  %7542 = vmatprep.subr.mxu0 0.0
  %7543 = vmatpush1.msra.mxu0 0.0
  %7544 = vmatprep.subr.mxu0 0.0
  %7545 = vmatpush1.msra.mxu0 0.0
  %7546 = vmatprep.subr.mxu0 0.0
  %7547 = vmatpush1.msra.mxu0 0.0
  %7548 = vmatprep.subr.mxu0 0.0
  %7549 = vmatpush1.msra.mxu0 0.0
  %7550 = vmatprep.mubr.f32.mxu0 0.0
  %7551 = vmatmul.mubr.f32.gmra.mrb[0].mxu0 %v5442
  %v7552 = vpop.f32.mrb[0].mxu0
  %v7553 = vadd.f32 %v5477, %v7552
  %v7554 = vpop.f32.mrb[0].mxu0
  %v7555 = vadd.f32 %v5477, %v7554
  %7556 = vmatprep.mubr.f32.mxu0 0.0
  %7557 = vmatmul.mubr.f32.gmra.mrb[0].mxu0 %v5443
  %v7558 = vpop.f32.mrb[0].mxu0
  %v7559 = vadd.f32 %v5482, %v7558
  %v7560 = vpop.f32.mrb[0].mxu0
  %v7561 = vadd.f32 %v5482, %v7560
  %7562 = vmatprep.mubr.f32.mxu0 0.0
  %7563 = vmatmul.mubr.f32.gmra.mrb[0].mxu0 %v5444
  %v7564 = vpop.f32.mrb[0].mxu0
  %v7565 = vadd.f32 %v5487, %v7564
  %v7566 = vpop.f32.mrb[0].mxu0
  %v7567 = vadd.f32 %v5487, %v7566
  %7568 = vmatprep.mubr.f32.mxu0 0.0
  %7569 = vmatmul.mubr.f32.gmra.mrb[0].mxu0 %v5445
  %v7570 = vpop.f32.mrb[0].mxu0
  %v7571 = vadd.f32 %v5492, %v7570
  %v7572 = vpop.f32.mrb[0].mxu0
  %v7573 = vadd.f32 %v5492, %v7572
  %7574 = vmatprep.mubr.f32.mxu0 0.0
  %7575 = vmatmul.mubr.f32.gmra.mrb[0].mxu0 %v5446
  %v7576 = vpop.f32.mrb[0].mxu0
  %v7577 = vadd.f32 %v5497, %v7576
  %v7578 = vpop.f32.mrb[0].mxu0
  %v7579 = vadd.f32 %v5497, %v7578
  %7580 = vmatprep.mubr.f32.mxu0 0.0
  %7581 = vmatmul.mubr.f32.gmra.mrb[0].mxu0 %v5447
  %v7582 = vpop.f32.mrb[0].mxu0
  %v7583 = vadd.f32 %v5502, %v7582
  %v7584 = vpop.f32.mrb[0].mxu0
  %v7585 = vadd.f32 %v5502, %v7584
  %7586 = vmatprep.mubr.f32.mxu0 0.0
  %7587 = vmatmul.mubr.f32.gmra.mrb[0].mxu0 %v5448
  %v7588 = vpop.f32.mrb[0].mxu0
  %v7589 = vadd.f32 %v5507, %v7588
  %v7590 = vpop.f32.mrb[0].mxu0
  %v7591 = vadd.f32 %v5507, %v7590
  %7592 = vmatprep.mubr.f32.mxu0 0.0
  %7593 = vmatmul.mubr.f32.gmra.mrb[0].mxu0 %v5449
  %v7594 = vpop.f32.mrb[0].mxu0
  %v7595 = vadd.f32 %v5512, %v7594
  %v7596 = vpop.f32.mrb[0].mxu0
  %v7597 = vadd.f32 %v5512, %v7596
  %7598 = vmatprep.mubr.f32.mxu0 0.0
  %7599 = vmatmul.mubr.f32.gmra.mrb[0].mxu0 %v5450
  %v7600 = vpop.f32.mrb[0].mxu0
  %v7601 = vadd.f32 %v5517, %v7600
  %v7602 = vpop.f32.mrb[0].mxu0
  %v7603 = vadd.f32 %v5517, %v7602
  %7604 = vmatprep.mubr.f32.mxu0 0.0
  %7605 = vmatmul.mubr.f32.gmra.mrb[0].mxu0 %v5451
  %v7606 = vpop.f32.mrb[0].mxu0
  %v7607 = vadd.f32 %v5522, %v7606
  %v7608 = vpop.f32.mrb[0].mxu0
  %v7609 = vadd.f32 %v5522, %v7608
  %7610 = vmatprep.mubr.f32.mxu0 0.0
  %7611 = vmatmul.mubr.f32.gmra.mrb[0].mxu0 %v5452
  %v7612 = vpop.f32.mrb[0].mxu0
  %v7613 = vadd.f32 %v5527, %v7612
  %v7614 = vpop.f32.mrb[0].mxu0
  %v7615 = vadd.f32 %v5527, %v7614
  %7616 = vmatprep.mubr.f32.mxu0 0.0
  %7617 = vmatmul.mubr.f32.gmra.mrb[0].mxu0 %v5453
  %v7618 = vpop.f32.mrb[0].mxu0
  %v7619 = vadd.f32 %v5532, %v7618
  %v7620 = vpop.f32.mrb[0].mxu0
  %v7621 = vadd.f32 %v5532, %v7620
  %7622 = vmatprep.mubr.f32.mxu0 0.0
  %7623 = vmatmul.mubr.f32.gmra.mrb[0].mxu0 %v5454
  %v7624 = vpop.f32.mrb[0].mxu0
  %v7625 = vadd.f32 %v5537, %v7624
  %v7626 = vpop.f32.mrb[0].mxu0
  %v7627 = vadd.f32 %v5537, %v7626
  %7628 = vmatprep.mubr.f32.mxu0 0.0
  %7629 = vmatmul.mubr.f32.gmra.mrb[0].mxu0 %v5455
  %v7630 = vpop.f32.mrb[0].mxu0
  %v7631 = vadd.f32 %v5542, %v7630
  %v7632 = vpop.f32.mrb[0].mxu0
  %v7633 = vadd.f32 %v5542, %v7632
  %7634 = vmatprep.mubr.f32.mxu0 0.0
  %7635 = vmatmul.mubr.f32.gmra.mrb[0].mxu0 %v5456
  %v7636 = vpop.f32.mrb[0].mxu0
  %v7637 = vadd.f32 %v5547, %v7636
  %v7638 = vpop.f32.mrb[0].mxu0
  %v7639 = vadd.f32 %v5547, %v7638
  %7640 = vmatprep.mubr.f32.mxu0 0.0
  %7641 = vmatmul.mubr.f32.gmra.mrb[0].mxu0 %v5457
  %v7642 = vpop.f32.mrb[0].mxu0
  %v7643 = vadd.f32 %v5552, %v7642
  %v7644 = vpop.f32.mrb[0].mxu0
  %v7645 = vadd.f32 %v5552, %v7644
  %7646 = vdwg.mxu0
  %7647 = vmatprep.subr.mxu0 %v4957
  %7648 = vmatpush1.msra.mxu0 %v4956
  %7649 = vmatprep.subr.mxu0 %v4989
  %7650 = vmatpush1.msra.mxu0 %v4988
  %7651 = vmatprep.subr.mxu0 %v5021
  %7652 = vmatpush1.msra.mxu0 %v5020
  %7653 = vmatprep.subr.mxu0 %v5053
  %7654 = vmatpush1.msra.mxu0 %v5052
  %7655 = vmatprep.subr.mxu0 %v5085
  %7656 = vmatpush1.msra.mxu0 %v5084
  %7657 = vmatprep.subr.mxu0 %v5117
  %7658 = vmatpush1.msra.mxu0 %v5116
  %7659 = vmatprep.subr.mxu0 %v5149
  %7660 = vmatpush1.msra.mxu0 %v5148
  %7661 = vmatprep.subr.mxu0 %v5181
  %7662 = vmatpush1.msra.mxu0 %v5180
  %7663 = vmatprep.subr.mxu0 %v5213
  %7664 = vmatpush1.msra.mxu0 %v5212
  %7665 = vmatprep.subr.mxu0 %v5245
  %7666 = vmatpush1.msra.mxu0 %v5244
  %7667 = vmatprep.subr.mxu0 %v5277
  %7668 = vmatpush1.msra.mxu0 %v5276
  %7669 = vmatprep.subr.mxu0 %v5309
  %7670 = vmatpush1.msra.mxu0 %v5308
  %7671 = vmatprep.subr.mxu0 %v5341
  %7672 = vmatpush1.msra.mxu0 %v5340
  %7673 = vmatprep.subr.mxu0 %v5373
  %7674 = vmatpush1.msra.mxu0 %v5372
  %7675 = vmatprep.subr.mxu0 %v5405
  %7676 = vmatpush1.msra.mxu0 %v5404
  %7677 = vmatprep.subr.mxu0 %v5437
  %7678 = vmatpush1.msra.mxu0 %v5436
  %7679 = vmatprep.subr.mxu0 0.0
  %7680 = vmatpush1.msra.mxu0 0.0
  %7681 = vmatprep.subr.mxu0 0.0
  %7682 = vmatpush1.msra.mxu0 0.0
  %7683 = vmatprep.subr.mxu0 0.0
  %7684 = vmatpush1.msra.mxu0 0.0
  %7685 = vmatprep.subr.mxu0 0.0
  %7686 = vmatpush1.msra.mxu0 0.0
  %7687 = vmatprep.subr.mxu0 0.0
  %7688 = vmatpush1.msra.mxu0 0.0
  %7689 = vmatprep.subr.mxu0 0.0
  %7690 = vmatpush1.msra.mxu0 0.0
  %7691 = vmatprep.subr.mxu0 0.0
  %7692 = vmatpush1.msra.mxu0 0.0
  %7693 = vmatprep.subr.mxu0 0.0
  %7694 = vmatpush1.msra.mxu0 0.0
  %7695 = vmatprep.subr.mxu0 0.0
  %7696 = vmatpush1.msra.mxu0 0.0
  %7697 = vmatprep.subr.mxu0 0.0
  %7698 = vmatpush1.msra.mxu0 0.0
  %7699 = vmatprep.subr.mxu0 0.0
  %7700 = vmatpush1.msra.mxu0 0.0
  %7701 = vmatprep.subr.mxu0 0.0
  %7702 = vmatpush1.msra.mxu0 0.0
  %7703 = vmatprep.subr.mxu0 0.0
  %7704 = vmatpush1.msra.mxu0 0.0
  %7705 = vmatprep.subr.mxu0 0.0
  %7706 = vmatpush1.msra.mxu0 0.0
  %7707 = vmatprep.subr.mxu0 0.0
  %7708 = vmatpush1.msra.mxu0 0.0
  %7709 = vmatprep.subr.mxu0 0.0
  %7710 = vmatpush1.msra.mxu0 0.0
  %7711 = vmatprep.mubr.f32.mxu0 0.0
  %7712 = vmatmul.mubr.f32.gmra.mrb[0].mxu0 %v5442
  %v7713 = vpop.f32.mrb[0].mxu0
  %v7714 = vadd.f32 %v5477, %v7713
  %v7715 = vpop.f32.mrb[0].mxu0
  %v7716 = vadd.f32 %v5477, %v7715
  %7717 = vmatprep.mubr.f32.mxu0 0.0
  %7718 = vmatmul.mubr.f32.gmra.mrb[0].mxu0 %v5443
  %v7719 = vpop.f32.mrb[0].mxu0
  %v7720 = vadd.f32 %v5482, %v7719
  %v7721 = vpop.f32.mrb[0].mxu0
  %v7722 = vadd.f32 %v5482, %v7721
  %7723 = vmatprep.mubr.f32.mxu0 0.0
  %7724 = vmatmul.mubr.f32.gmra.mrb[0].mxu0 %v5444
  %v7725 = vpop.f32.mrb[0].mxu0
  %v7726 = vadd.f32 %v5487, %v7725
  %v7727 = vpop.f32.mrb[0].mxu0
  %v7728 = vadd.f32 %v5487, %v7727
  %7729 = vmatprep.mubr.f32.mxu0 0.0
  %7730 = vmatmul.mubr.f32.gmra.mrb[0].mxu0 %v5445
  %v7731 = vpop.f32.mrb[0].mxu0
  %v7732 = vadd.f32 %v5492, %v7731
  %v7733 = vpop.f32.mrb[0].mxu0
  %v7734 = vadd.f32 %v5492, %v7733
  %7735 = vmatprep.mubr.f32.mxu0 0.0
  %7736 = vmatmul.mubr.f32.gmra.mrb[0].mxu0 %v5446
  %v7737 = vpop.f32.mrb[0].mxu0
  %v7738 = vadd.f32 %v5497, %v7737
  %v7739 = vpop.f32.mrb[0].mxu0
  %v7740 = vadd.f32 %v5497, %v7739
  %7741 = vmatprep.mubr.f32.mxu0 0.0
  %7742 = vmatmul.mubr.f32.gmra.mrb[0].mxu0 %v5447
  %v7743 = vpop.f32.mrb[0].mxu0
  %v7744 = vadd.f32 %v5502, %v7743
  %v7745 = vpop.f32.mrb[0].mxu0
  %v7746 = vadd.f32 %v5502, %v7745
  %7747 = vmatprep.mubr.f32.mxu0 0.0
  %7748 = vmatmul.mubr.f32.gmra.mrb[0].mxu0 %v5448
  %v7749 = vpop.f32.mrb[0].mxu0
  %v7750 = vadd.f32 %v5507, %v7749
  %v7751 = vpop.f32.mrb[0].mxu0
  %v7752 = vadd.f32 %v5507, %v7751
  %7753 = vmatprep.mubr.f32.mxu0 0.0
  %7754 = vmatmul.mubr.f32.gmra.mrb[0].mxu0 %v5449
  %v7755 = vpop.f32.mrb[0].mxu0
  %v7756 = vadd.f32 %v5512, %v7755
  %v7757 = vpop.f32.mrb[0].mxu0
  %v7758 = vadd.f32 %v5512, %v7757
  %7759 = vmatprep.mubr.f32.mxu0 0.0
  %7760 = vmatmul.mubr.f32.gmra.mrb[0].mxu0 %v5450
  %v7761 = vpop.f32.mrb[0].mxu0
  %v7762 = vadd.f32 %v5517, %v7761
  %v7763 = vpop.f32.mrb[0].mxu0
  %v7764 = vadd.f32 %v5517, %v7763
  %7765 = vmatprep.mubr.f32.mxu0 0.0
  %7766 = vmatmul.mubr.f32.gmra.mrb[0].mxu0 %v5451
  %v7767 = vpop.f32.mrb[0].mxu0
  %v7768 = vadd.f32 %v5522, %v7767
  %v7769 = vpop.f32.mrb[0].mxu0
  %v7770 = vadd.f32 %v5522, %v7769
  %7771 = vmatprep.mubr.f32.mxu0 0.0
  %7772 = vmatmul.mubr.f32.gmra.mrb[0].mxu0 %v5452
  %v7773 = vpop.f32.mrb[0].mxu0
  %v7774 = vadd.f32 %v5527, %v7773
  %v7775 = vpop.f32.mrb[0].mxu0
  %v7776 = vadd.f32 %v5527, %v7775
  %7777 = vmatprep.mubr.f32.mxu0 0.0
  %7778 = vmatmul.mubr.f32.gmra.mrb[0].mxu0 %v5453
  %v7779 = vpop.f32.mrb[0].mxu0
  %v7780 = vadd.f32 %v5532, %v7779
  %v7781 = vpop.f32.mrb[0].mxu0
  %v7782 = vadd.f32 %v5532, %v7781
  %7783 = vmatprep.mubr.f32.mxu0 0.0
  %7784 = vmatmul.mubr.f32.gmra.mrb[0].mxu0 %v5454
  %v7785 = vpop.f32.mrb[0].mxu0
  %v7786 = vadd.f32 %v5537, %v7785
  %v7787 = vpop.f32.mrb[0].mxu0
  %v7788 = vadd.f32 %v5537, %v7787
  %7789 = vmatprep.mubr.f32.mxu0 0.0
  %7790 = vmatmul.mubr.f32.gmra.mrb[0].mxu0 %v5455
  %v7791 = vpop.f32.mrb[0].mxu0
  %v7792 = vadd.f32 %v5542, %v7791
  %v7793 = vpop.f32.mrb[0].mxu0
  %v7794 = vadd.f32 %v5542, %v7793
  %7795 = vmatprep.mubr.f32.mxu0 0.0
  %7796 = vmatmul.mubr.f32.gmra.mrb[0].mxu0 %v5456
  %v7797 = vpop.f32.mrb[0].mxu0
  %v7798 = vadd.f32 %v5547, %v7797
  %v7799 = vpop.f32.mrb[0].mxu0
  %v7800 = vadd.f32 %v5547, %v7799
  %7801 = vmatprep.mubr.f32.mxu0 0.0
  %7802 = vmatmul.mubr.f32.gmra.mrb[0].mxu0 %v5457
  %v7803 = vpop.f32.mrb[0].mxu0
  %v7804 = vadd.f32 %v5552, %v7803
  %v7805 = vpop.f32.mrb[0].mxu0
  %v7806 = vadd.f32 %v5552, %v7805
  %7807 = vdwg.mxu0
  %7808 = vmatprep.subr.mxu0 %v4959
  %7809 = vmatpush1.msra.mxu0 %v4958
  %7810 = vmatprep.subr.mxu0 %v4991
  %7811 = vmatpush1.msra.mxu0 %v4990
  %7812 = vmatprep.subr.mxu0 %v5023
  %7813 = vmatpush1.msra.mxu0 %v5022
  %7814 = vmatprep.subr.mxu0 %v5055
  %7815 = vmatpush1.msra.mxu0 %v5054
  %7816 = vmatprep.subr.mxu0 %v5087
  %7817 = vmatpush1.msra.mxu0 %v5086
  %7818 = vmatprep.subr.mxu0 %v5119
  %7819 = vmatpush1.msra.mxu0 %v5118
  %7820 = vmatprep.subr.mxu0 %v5151
  %7821 = vmatpush1.msra.mxu0 %v5150
  %7822 = vmatprep.subr.mxu0 %v5183
  %7823 = vmatpush1.msra.mxu0 %v5182
  %7824 = vmatprep.subr.mxu0 %v5215
  %7825 = vmatpush1.msra.mxu0 %v5214
  %7826 = vmatprep.subr.mxu0 %v5247
  %7827 = vmatpush1.msra.mxu0 %v5246
  %7828 = vmatprep.subr.mxu0 %v5279
  %7829 = vmatpush1.msra.mxu0 %v5278
  %7830 = vmatprep.subr.mxu0 %v5311
  %7831 = vmatpush1.msra.mxu0 %v5310
  %7832 = vmatprep.subr.mxu0 %v5343
  %7833 = vmatpush1.msra.mxu0 %v5342
  %7834 = vmatprep.subr.mxu0 %v5375
  %7835 = vmatpush1.msra.mxu0 %v5374
  %7836 = vmatprep.subr.mxu0 %v5407
  %7837 = vmatpush1.msra.mxu0 %v5406
  %7838 = vmatprep.subr.mxu0 %v5439
  %7839 = vmatpush1.msra.mxu0 %v5438
  %7840 = vmatprep.subr.mxu0 0.0
  %7841 = vmatpush1.msra.mxu0 0.0
  %7842 = vmatprep.subr.mxu0 0.0
  %7843 = vmatpush1.msra.mxu0 0.0
  %7844 = vmatprep.subr.mxu0 0.0
  %7845 = vmatpush1.msra.mxu0 0.0
  %7846 = vmatprep.subr.mxu0 0.0
  %7847 = vmatpush1.msra.mxu0 0.0
  %7848 = vmatprep.subr.mxu0 0.0
  %7849 = vmatpush1.msra.mxu0 0.0
  %7850 = vmatprep.subr.mxu0 0.0
  %7851 = vmatpush1.msra.mxu0 0.0
  %7852 = vmatprep.subr.mxu0 0.0
  %7853 = vmatpush1.msra.mxu0 0.0
  %7854 = vmatprep.subr.mxu0 0.0
  %7855 = vmatpush1.msra.mxu0 0.0
  %7856 = vmatprep.subr.mxu0 0.0
  %7857 = vmatpush1.msra.mxu0 0.0
  %7858 = vmatprep.subr.mxu0 0.0
  %7859 = vmatpush1.msra.mxu0 0.0
  %7860 = vmatprep.subr.mxu0 0.0
  %7861 = vmatpush1.msra.mxu0 0.0
  %7862 = vmatprep.subr.mxu0 0.0
  %7863 = vmatpush1.msra.mxu0 0.0
  %7864 = vmatprep.subr.mxu0 0.0
  %7865 = vmatpush1.msra.mxu0 0.0
  %7866 = vmatprep.subr.mxu0 0.0
  %7867 = vmatpush1.msra.mxu0 0.0
  %7868 = vmatprep.subr.mxu0 0.0
  %7869 = vmatpush1.msra.mxu0 0.0
  %7870 = vmatprep.subr.mxu0 0.0
  %7871 = vmatpush1.msra.mxu0 0.0
  %7872 = vmatprep.mubr.f32.mxu0 0.0
  %7873 = vmatmul.mubr.f32.gmra.mrb[0].mxu0 %v5442
  %v7874 = vpop.f32.mrb[0].mxu0
  %v7875 = vadd.f32 %v5477, %v7874
  %v7876 = vpop.f32.mrb[0].mxu0
  %v7877 = vadd.f32 %v5477, %v7876
  %7878 = vmatprep.mubr.f32.mxu0 0.0
  %7879 = vmatmul.mubr.f32.gmra.mrb[0].mxu0 %v5443
  %v7880 = vpop.f32.mrb[0].mxu0
  %v7881 = vadd.f32 %v5482, %v7880
  %v7882 = vpop.f32.mrb[0].mxu0
  %v7883 = vadd.f32 %v5482, %v7882
  %7884 = vmatprep.mubr.f32.mxu0 0.0
  %7885 = vmatmul.mubr.f32.gmra.mrb[0].mxu0 %v5444
  %v7886 = vpop.f32.mrb[0].mxu0
  %v7887 = vadd.f32 %v5487, %v7886
  %v7888 = vpop.f32.mrb[0].mxu0
  %v7889 = vadd.f32 %v5487, %v7888
  %7890 = vmatprep.mubr.f32.mxu0 0.0
  %7891 = vmatmul.mubr.f32.gmra.mrb[0].mxu0 %v5445
  %v7892 = vpop.f32.mrb[0].mxu0
  %v7893 = vadd.f32 %v5492, %v7892
  %v7894 = vpop.f32.mrb[0].mxu0
  %v7895 = vadd.f32 %v5492, %v7894
  %7896 = vmatprep.mubr.f32.mxu0 0.0
  %7897 = vmatmul.mubr.f32.gmra.mrb[0].mxu0 %v5446
  %v7898 = vpop.f32.mrb[0].mxu0
  %v7899 = vadd.f32 %v5497, %v7898
  %v7900 = vpop.f32.mrb[0].mxu0
  %v7901 = vadd.f32 %v5497, %v7900
  %7902 = vmatprep.mubr.f32.mxu0 0.0
  %7903 = vmatmul.mubr.f32.gmra.mrb[0].mxu0 %v5447
  %v7904 = vpop.f32.mrb[0].mxu0
  %v7905 = vadd.f32 %v5502, %v7904
  %v7906 = vpop.f32.mrb[0].mxu0
  %v7907 = vadd.f32 %v5502, %v7906
  %7908 = vmatprep.mubr.f32.mxu0 0.0
  %7909 = vmatmul.mubr.f32.gmra.mrb[0].mxu0 %v5448
  %v7910 = vpop.f32.mrb[0].mxu0
  %v7911 = vadd.f32 %v5507, %v7910
  %v7912 = vpop.f32.mrb[0].mxu0
  %v7913 = vadd.f32 %v5507, %v7912
  %7914 = vmatprep.mubr.f32.mxu0 0.0
  %7915 = vmatmul.mubr.f32.gmra.mrb[0].mxu0 %v5449
  %v7916 = vpop.f32.mrb[0].mxu0
  %v7917 = vadd.f32 %v5512, %v7916
  %v7918 = vpop.f32.mrb[0].mxu0
  %v7919 = vadd.f32 %v5512, %v7918
  %7920 = vmatprep.mubr.f32.mxu0 0.0
  %7921 = vmatmul.mubr.f32.gmra.mrb[0].mxu0 %v5450
  %v7922 = vpop.f32.mrb[0].mxu0
  %v7923 = vadd.f32 %v5517, %v7922
  %v7924 = vpop.f32.mrb[0].mxu0
  %v7925 = vadd.f32 %v5517, %v7924
  %7926 = vmatprep.mubr.f32.mxu0 0.0
  %7927 = vmatmul.mubr.f32.gmra.mrb[0].mxu0 %v5451
  %v7928 = vpop.f32.mrb[0].mxu0
  %v7929 = vadd.f32 %v5522, %v7928
  %v7930 = vpop.f32.mrb[0].mxu0
  %v7931 = vadd.f32 %v5522, %v7930
  %7932 = vmatprep.mubr.f32.mxu0 0.0
  %7933 = vmatmul.mubr.f32.gmra.mrb[0].mxu0 %v5452
  %v7934 = vpop.f32.mrb[0].mxu0
  %v7935 = vadd.f32 %v5527, %v7934
  %v7936 = vpop.f32.mrb[0].mxu0
  %v7937 = vadd.f32 %v5527, %v7936
  %7938 = vmatprep.mubr.f32.mxu0 0.0
  %7939 = vmatmul.mubr.f32.gmra.mrb[0].mxu0 %v5453
  %v7940 = vpop.f32.mrb[0].mxu0
  %v7941 = vadd.f32 %v5532, %v7940
  %v7942 = vpop.f32.mrb[0].mxu0
  %v7943 = vadd.f32 %v5532, %v7942
  %7944 = vmatprep.mubr.f32.mxu0 0.0
  %7945 = vmatmul.mubr.f32.gmra.mrb[0].mxu0 %v5454
  %v7946 = vpop.f32.mrb[0].mxu0
  %v7947 = vadd.f32 %v5537, %v7946
  %v7948 = vpop.f32.mrb[0].mxu0
  %v7949 = vadd.f32 %v5537, %v7948
  %7950 = vmatprep.mubr.f32.mxu0 0.0
  %7951 = vmatmul.mubr.f32.gmra.mrb[0].mxu0 %v5455
  %v7952 = vpop.f32.mrb[0].mxu0
  %v7953 = vadd.f32 %v5542, %v7952
  %v7954 = vpop.f32.mrb[0].mxu0
  %v7955 = vadd.f32 %v5542, %v7954
  %7956 = vmatprep.mubr.f32.mxu0 0.0
  %7957 = vmatmul.mubr.f32.gmra.mrb[0].mxu0 %v5456
  %v7958 = vpop.f32.mrb[0].mxu0
  %v7959 = vadd.f32 %v5547, %v7958
  %v7960 = vpop.f32.mrb[0].mxu0
  %v7961 = vadd.f32 %v5547, %v7960
  %7962 = vmatprep.mubr.f32.mxu0 0.0
  %7963 = vmatmul.mubr.f32.gmra.mrb[0].mxu0 %v5457
  %v7964 = vpop.f32.mrb[0].mxu0
  %v7965 = vadd.f32 %v5552, %v7964
  %v7966 = vpop.f32.mrb[0].mxu0
  %v7967 = vadd.f32 %v5552, %v7966
  %7968 = vdwg.mxu0
  %7969 = vmatprep.subr.mxu0 %v4961
  %7970 = vmatpush1.msra.mxu0 %v4960
  %7971 = vmatprep.subr.mxu0 %v4993
  %7972 = vmatpush1.msra.mxu0 %v4992
  %7973 = vmatprep.subr.mxu0 %v5025
  %7974 = vmatpush1.msra.mxu0 %v5024
  %7975 = vmatprep.subr.mxu0 %v5057
  %7976 = vmatpush1.msra.mxu0 %v5056
  %7977 = vmatprep.subr.mxu0 %v5089
  %7978 = vmatpush1.msra.mxu0 %v5088
  %7979 = vmatprep.subr.mxu0 %v5121
  %7980 = vmatpush1.msra.mxu0 %v5120
  %7981 = vmatprep.subr.mxu0 %v5153
  %7982 = vmatpush1.msra.mxu0 %v5152
  %7983 = vmatprep.subr.mxu0 %v5185
  %7984 = vmatpush1.msra.mxu0 %v5184
  %7985 = vmatprep.subr.mxu0 %v5217
  %7986 = vmatpush1.msra.mxu0 %v5216
  %7987 = vmatprep.subr.mxu0 %v5249
  %7988 = vmatpush1.msra.mxu0 %v5248
  %7989 = vmatprep.subr.mxu0 %v5281
  %7990 = vmatpush1.msra.mxu0 %v5280
  %7991 = vmatprep.subr.mxu0 %v5313
  %7992 = vmatpush1.msra.mxu0 %v5312
  %7993 = vmatprep.subr.mxu0 %v5345
  %7994 = vmatpush1.msra.mxu0 %v5344
  %7995 = vmatprep.subr.mxu0 %v5377
  %7996 = vmatpush1.msra.mxu0 %v5376
  %7997 = vmatprep.subr.mxu0 %v5409
  %7998 = vmatpush1.msra.mxu0 %v5408
  %7999 = vmatprep.subr.mxu0 %v5441
  %8000 = vmatpush1.msra.mxu0 %v5440
  %8001 = vmatprep.subr.mxu0 0.0
  %8002 = vmatpush1.msra.mxu0 0.0
  %8003 = vmatprep.subr.mxu0 0.0
  %8004 = vmatpush1.msra.mxu0 0.0
  %8005 = vmatprep.subr.mxu0 0.0
  %8006 = vmatpush1.msra.mxu0 0.0
  %8007 = vmatprep.subr.mxu0 0.0
  %8008 = vmatpush1.msra.mxu0 0.0
  %8009 = vmatprep.subr.mxu0 0.0
  %8010 = vmatpush1.msra.mxu0 0.0
  %8011 = vmatprep.subr.mxu0 0.0
  %8012 = vmatpush1.msra.mxu0 0.0
  %8013 = vmatprep.subr.mxu0 0.0
  %8014 = vmatpush1.msra.mxu0 0.0
  %8015 = vmatprep.subr.mxu0 0.0
  %8016 = vmatpush1.msra.mxu0 0.0
  %8017 = vmatprep.subr.mxu0 0.0
  %8018 = vmatpush1.msra.mxu0 0.0
  %8019 = vmatprep.subr.mxu0 0.0
  %8020 = vmatpush1.msra.mxu0 0.0
  %8021 = vmatprep.subr.mxu0 0.0
  %8022 = vmatpush1.msra.mxu0 0.0
  %8023 = vmatprep.subr.mxu0 0.0
  %8024 = vmatpush1.msra.mxu0 0.0
  %8025 = vmatprep.subr.mxu0 0.0
  %8026 = vmatpush1.msra.mxu0 0.0
  %8027 = vmatprep.subr.mxu0 0.0
  %8028 = vmatpush1.msra.mxu0 0.0
  %8029 = vmatprep.subr.mxu0 0.0
  %8030 = vmatpush1.msra.mxu0 0.0
  %8031 = vmatprep.subr.mxu0 0.0
  %8032 = vmatpush1.msra.mxu0 0.0
  %8033 = vmatprep.mubr.f32.mxu0 0.0
  %8034 = vmatmul.mubr.f32.gmra.mrb[0].mxu0 %v5442
  %v8035 = vpop.f32.mrb[0].mxu0
  %v8036 = vadd.f32 %v5477, %v8035
  %v8037 = vpop.f32.mrb[0].mxu0
  %v8038 = vadd.f32 %v5477, %v8037
  %8039 = vmatprep.mubr.f32.mxu0 0.0
  %8040 = vmatmul.mubr.f32.gmra.mrb[0].mxu0 %v5443
  %v8041 = vpop.f32.mrb[0].mxu0
  %v8042 = vadd.f32 %v5482, %v8041
  %v8043 = vpop.f32.mrb[0].mxu0
  %v8044 = vadd.f32 %v5482, %v8043
  %8045 = vmatprep.mubr.f32.mxu0 0.0
  %8046 = vmatmul.mubr.f32.gmra.mrb[0].mxu0 %v5444
  %v8047 = vpop.f32.mrb[0].mxu0
  %v8048 = vadd.f32 %v5487, %v8047
  %v8049 = vpop.f32.mrb[0].mxu0
  %v8050 = vadd.f32 %v5487, %v8049
  %8051 = vmatprep.mubr.f32.mxu0 0.0
  %8052 = vmatmul.mubr.f32.gmra.mrb[0].mxu0 %v5445
  %v8053 = vpop.f32.mrb[0].mxu0
  %v8054 = vadd.f32 %v5492, %v8053
  %v8055 = vpop.f32.mrb[0].mxu0
  %v8056 = vadd.f32 %v5492, %v8055
  %8057 = vmatprep.mubr.f32.mxu0 0.0
  %8058 = vmatmul.mubr.f32.gmra.mrb[0].mxu0 %v5446
  %v8059 = vpop.f32.mrb[0].mxu0
  %v8060 = vadd.f32 %v5497, %v8059
  %v8061 = vpop.f32.mrb[0].mxu0
  %v8062 = vadd.f32 %v5497, %v8061
  %8063 = vmatprep.mubr.f32.mxu0 0.0
  %8064 = vmatmul.mubr.f32.gmra.mrb[0].mxu0 %v5447
  %v8065 = vpop.f32.mrb[0].mxu0
  %v8066 = vadd.f32 %v5502, %v8065
  %v8067 = vpop.f32.mrb[0].mxu0
  %v8068 = vadd.f32 %v5502, %v8067
  %8069 = vmatprep.mubr.f32.mxu0 0.0
  %8070 = vmatmul.mubr.f32.gmra.mrb[0].mxu0 %v5448
  %v8071 = vpop.f32.mrb[0].mxu0
  %v8072 = vadd.f32 %v5507, %v8071
  %v8073 = vpop.f32.mrb[0].mxu0
  %v8074 = vadd.f32 %v5507, %v8073
  %8075 = vmatprep.mubr.f32.mxu0 0.0
  %8076 = vmatmul.mubr.f32.gmra.mrb[0].mxu0 %v5449
  %v8077 = vpop.f32.mrb[0].mxu0
  %v8078 = vadd.f32 %v5512, %v8077
  %v8079 = vpop.f32.mrb[0].mxu0
  %v8080 = vadd.f32 %v5512, %v8079
  %8081 = vmatprep.mubr.f32.mxu0 0.0
  %8082 = vmatmul.mubr.f32.gmra.mrb[0].mxu0 %v5450
  %v8083 = vpop.f32.mrb[0].mxu0
  %v8084 = vadd.f32 %v5517, %v8083
  %v8085 = vpop.f32.mrb[0].mxu0
  %v8086 = vadd.f32 %v5517, %v8085
  %8087 = vmatprep.mubr.f32.mxu0 0.0
  %8088 = vmatmul.mubr.f32.gmra.mrb[0].mxu0 %v5451
  %v8089 = vpop.f32.mrb[0].mxu0
  %v8090 = vadd.f32 %v5522, %v8089
  %v8091 = vpop.f32.mrb[0].mxu0
  %v8092 = vadd.f32 %v5522, %v8091
  %8093 = vmatprep.mubr.f32.mxu0 0.0
  %8094 = vmatmul.mubr.f32.gmra.mrb[0].mxu0 %v5452
  %v8095 = vpop.f32.mrb[0].mxu0
  %v8096 = vadd.f32 %v5527, %v8095
  %v8097 = vpop.f32.mrb[0].mxu0
  %v8098 = vadd.f32 %v5527, %v8097
  %8099 = vmatprep.mubr.f32.mxu0 0.0
  %8100 = vmatmul.mubr.f32.gmra.mrb[0].mxu0 %v5453
  %v8101 = vpop.f32.mrb[0].mxu0
  %v8102 = vadd.f32 %v5532, %v8101
  %v8103 = vpop.f32.mrb[0].mxu0
  %v8104 = vadd.f32 %v5532, %v8103
  %8105 = vmatprep.mubr.f32.mxu0 0.0
  %8106 = vmatmul.mubr.f32.gmra.mrb[0].mxu0 %v5454
  %v8107 = vpop.f32.mrb[0].mxu0
  %v8108 = vadd.f32 %v5537, %v8107
  %v8109 = vpop.f32.mrb[0].mxu0
  %v8110 = vadd.f32 %v5537, %v8109
  %8111 = vmatprep.mubr.f32.mxu0 0.0
  %8112 = vmatmul.mubr.f32.gmra.mrb[0].mxu0 %v5455
  %v8113 = vpop.f32.mrb[0].mxu0
  %v8114 = vadd.f32 %v5542, %v8113
  %v8115 = vpop.f32.mrb[0].mxu0
  %v8116 = vadd.f32 %v5542, %v8115
  %8117 = vmatprep.mubr.f32.mxu0 0.0
  %8118 = vmatmul.mubr.f32.gmra.mrb[0].mxu0 %v5456
  %v8119 = vpop.f32.mrb[0].mxu0
  %v8120 = vadd.f32 %v5547, %v8119
  %v8121 = vpop.f32.mrb[0].mxu0
  %v8122 = vadd.f32 %v5547, %v8121
  %8123 = vmatprep.mubr.f32.mxu0 0.0
  %8124 = vmatmul.mubr.f32.gmra.mrb[0].mxu0 %v5457
  %v8125 = vpop.f32.mrb[0].mxu0
  %v8126 = vadd.f32 %v5552, %v8125
  %v8127 = vpop.f32.mrb[0].mxu0
  %v8128 = vadd.f32 %v5552, %v8127
  %8129 = vdwg.mxu0
  %v8130 = vmul.f32 %v5621, 0.5
  %v8131 = vmul.f32 %v5623, 0.5
  %v8132 = vmul.f32 %v5782, 0.5
  %v8133 = vmul.f32 %v5784, 0.5
  %v8134 = vmul.f32 %v5943, 0.5
  %v8135 = vmul.f32 %v5945, 0.5
  %v8136 = vmul.f32 %v6104, 0.5
  %v8137 = vmul.f32 %v6106, 0.5
  %v8138 = vmul.f32 %v6265, 0.5
  %v8139 = vmul.f32 %v6267, 0.5
  %v8140 = vmul.f32 %v6426, 0.5
  %v8141 = vmul.f32 %v6428, 0.5
  %v8142 = vmul.f32 %v6587, 0.5
  %v8143 = vmul.f32 %v6589, 0.5
  %v8144 = vmul.f32 %v6748, 0.5
  %v8145 = vmul.f32 %v6750, 0.5
  %v8146 = vmul.f32 %v6909, 0.5
  %v8147 = vmul.f32 %v6911, 0.5
  %v8148 = vmul.f32 %v7070, 0.5
  %v8149 = vmul.f32 %v7072, 0.5
  %v8150 = vmul.f32 %v7231, 0.5
  %v8151 = vmul.f32 %v7233, 0.5
  %v8152 = vmul.f32 %v7392, 0.5
  %v8153 = vmul.f32 %v7394, 0.5
  %v8154 = vmul.f32 %v7553, 0.5
  %v8155 = vmul.f32 %v7555, 0.5
  %v8156 = vmul.f32 %v7714, 0.5
  %v8157 = vmul.f32 %v7716, 0.5
  %v8158 = vmul.f32 %v7875, 0.5
  %v8159 = vmul.f32 %v7877, 0.5
  %v8160 = vmul.f32 %v8036, 0.5
  %v8161 = vmul.f32 %v8038, 0.5
  %v8162 = vmul.f32 %v5627, 0.5
  %v8163 = vmul.f32 %v5629, 0.5
  %v8164 = vmul.f32 %v5788, 0.5
  %v8165 = vmul.f32 %v5790, 0.5
  %v8166 = vmul.f32 %v5949, 0.5
  %v8167 = vmul.f32 %v5951, 0.5
  %v8168 = vmul.f32 %v6110, 0.5
  %v8169 = vmul.f32 %v6112, 0.5
  %v8170 = vmul.f32 %v6271, 0.5
  %v8171 = vmul.f32 %v6273, 0.5
  %v8172 = vmul.f32 %v6432, 0.5
  %v8173 = vmul.f32 %v6434, 0.5
  %v8174 = vmul.f32 %v6593, 0.5
  %v8175 = vmul.f32 %v6595, 0.5
  %v8176 = vmul.f32 %v6754, 0.5
  %v8177 = vmul.f32 %v6756, 0.5
  %v8178 = vmul.f32 %v6915, 0.5
  %v8179 = vmul.f32 %v6917, 0.5
  %v8180 = vmul.f32 %v7076, 0.5
  %v8181 = vmul.f32 %v7078, 0.5
  %v8182 = vmul.f32 %v7237, 0.5
  %v8183 = vmul.f32 %v7239, 0.5
  %v8184 = vmul.f32 %v7398, 0.5
  %v8185 = vmul.f32 %v7400, 0.5
  %v8186 = vmul.f32 %v7559, 0.5
  %v8187 = vmul.f32 %v7561, 0.5
  %v8188 = vmul.f32 %v7720, 0.5
  %v8189 = vmul.f32 %v7722, 0.5
  %v8190 = vmul.f32 %v7881, 0.5
  %v8191 = vmul.f32 %v7883, 0.5
  %v8192 = vmul.f32 %v8042, 0.5
  %v8193 = vmul.f32 %v8044, 0.5
  %v8194 = vmul.f32 %v5633, 0.5
  %v8195 = vmul.f32 %v5635, 0.5
  %v8196 = vmul.f32 %v5794, 0.5
  %v8197 = vmul.f32 %v5796, 0.5
  %v8198 = vmul.f32 %v5955, 0.5
  %v8199 = vmul.f32 %v5957, 0.5
  %v8200 = vmul.f32 %v6116, 0.5
  %v8201 = vmul.f32 %v6118, 0.5
  %v8202 = vmul.f32 %v6277, 0.5
  %v8203 = vmul.f32 %v6279, 0.5
  %v8204 = vmul.f32 %v6438, 0.5
  %v8205 = vmul.f32 %v6440, 0.5
  %v8206 = vmul.f32 %v6599, 0.5
  %v8207 = vmul.f32 %v6601, 0.5
  %v8208 = vmul.f32 %v6760, 0.5
  %v8209 = vmul.f32 %v6762, 0.5
  %v8210 = vmul.f32 %v6921, 0.5
  %v8211 = vmul.f32 %v6923, 0.5
  %v8212 = vmul.f32 %v7082, 0.5
  %v8213 = vmul.f32 %v7084, 0.5
  %v8214 = vmul.f32 %v7243, 0.5
  %v8215 = vmul.f32 %v7245, 0.5
  %v8216 = vmul.f32 %v7404, 0.5
  %v8217 = vmul.f32 %v7406, 0.5
  %v8218 = vmul.f32 %v7565, 0.5
  %v8219 = vmul.f32 %v7567, 0.5
  %v8220 = vmul.f32 %v7726, 0.5
  %v8221 = vmul.f32 %v7728, 0.5
  %v8222 = vmul.f32 %v7887, 0.5
  %v8223 = vmul.f32 %v7889, 0.5
  %v8224 = vmul.f32 %v8048, 0.5
  %v8225 = vmul.f32 %v8050, 0.5
  %v8226 = vmul.f32 %v5639, 0.5
  %v8227 = vmul.f32 %v5641, 0.5
  %v8228 = vmul.f32 %v5800, 0.5
  %v8229 = vmul.f32 %v5802, 0.5
  %v8230 = vmul.f32 %v5961, 0.5
  %v8231 = vmul.f32 %v5963, 0.5
  %v8232 = vmul.f32 %v6122, 0.5
  %v8233 = vmul.f32 %v6124, 0.5
  %v8234 = vmul.f32 %v6283, 0.5
  %v8235 = vmul.f32 %v6285, 0.5
  %v8236 = vmul.f32 %v6444, 0.5
  %v8237 = vmul.f32 %v6446, 0.5
  %v8238 = vmul.f32 %v6605, 0.5
  %v8239 = vmul.f32 %v6607, 0.5
  %v8240 = vmul.f32 %v6766, 0.5
  %v8241 = vmul.f32 %v6768, 0.5
  %v8242 = vmul.f32 %v6927, 0.5
  %v8243 = vmul.f32 %v6929, 0.5
  %v8244 = vmul.f32 %v7088, 0.5
  %v8245 = vmul.f32 %v7090, 0.5
  %v8246 = vmul.f32 %v7249, 0.5
  %v8247 = vmul.f32 %v7251, 0.5
  %v8248 = vmul.f32 %v7410, 0.5
  %v8249 = vmul.f32 %v7412, 0.5
  %v8250 = vmul.f32 %v7571, 0.5
  %v8251 = vmul.f32 %v7573, 0.5
  %v8252 = vmul.f32 %v7732, 0.5
  %v8253 = vmul.f32 %v7734, 0.5
  %v8254 = vmul.f32 %v7893, 0.5
  %v8255 = vmul.f32 %v7895, 0.5
  %v8256 = vmul.f32 %v8054, 0.5
  %v8257 = vmul.f32 %v8056, 0.5
  %v8258 = vmul.f32 %v5645, 0.5
  %v8259 = vmul.f32 %v5647, 0.5
  %v8260 = vmul.f32 %v5806, 0.5
  %v8261 = vmul.f32 %v5808, 0.5
  %v8262 = vmul.f32 %v5967, 0.5
  %v8263 = vmul.f32 %v5969, 0.5
  %v8264 = vmul.f32 %v6128, 0.5
  %v8265 = vmul.f32 %v6130, 0.5
  %v8266 = vmul.f32 %v6289, 0.5
  %v8267 = vmul.f32 %v6291, 0.5
  %v8268 = vmul.f32 %v6450, 0.5
  %v8269 = vmul.f32 %v6452, 0.5
  %v8270 = vmul.f32 %v6611, 0.5
  %v8271 = vmul.f32 %v6613, 0.5
  %v8272 = vmul.f32 %v6772, 0.5
  %v8273 = vmul.f32 %v6774, 0.5
  %v8274 = vmul.f32 %v6933, 0.5
  %v8275 = vmul.f32 %v6935, 0.5
  %v8276 = vmul.f32 %v7094, 0.5
  %v8277 = vmul.f32 %v7096, 0.5
  %v8278 = vmul.f32 %v7255, 0.5
  %v8279 = vmul.f32 %v7257, 0.5
  %v8280 = vmul.f32 %v7416, 0.5
  %v8281 = vmul.f32 %v7418, 0.5
  %v8282 = vmul.f32 %v7577, 0.5
  %v8283 = vmul.f32 %v7579, 0.5
  %v8284 = vmul.f32 %v7738, 0.5
  %v8285 = vmul.f32 %v7740, 0.5
  %v8286 = vmul.f32 %v7899, 0.5
  %v8287 = vmul.f32 %v7901, 0.5
  %v8288 = vmul.f32 %v8060, 0.5
  %v8289 = vmul.f32 %v8062, 0.5
  %v8290 = vmul.f32 %v5651, 0.5
  %v8291 = vmul.f32 %v5653, 0.5
  %v8292 = vmul.f32 %v5812, 0.5
  %v8293 = vmul.f32 %v5814, 0.5
  %v8294 = vmul.f32 %v5973, 0.5
  %v8295 = vmul.f32 %v5975, 0.5
  %v8296 = vmul.f32 %v6134, 0.5
  %v8297 = vmul.f32 %v6136, 0.5
  %v8298 = vmul.f32 %v6295, 0.5
  %v8299 = vmul.f32 %v6297, 0.5
  %v8300 = vmul.f32 %v6456, 0.5
  %v8301 = vmul.f32 %v6458, 0.5
  %v8302 = vmul.f32 %v6617, 0.5
  %v8303 = vmul.f32 %v6619, 0.5
  %v8304 = vmul.f32 %v6778, 0.5
  %v8305 = vmul.f32 %v6780, 0.5
  %v8306 = vmul.f32 %v6939, 0.5
  %v8307 = vmul.f32 %v6941, 0.5
  %v8308 = vmul.f32 %v7100, 0.5
  %v8309 = vmul.f32 %v7102, 0.5
  %v8310 = vmul.f32 %v7261, 0.5
  %v8311 = vmul.f32 %v7263, 0.5
  %v8312 = vmul.f32 %v7422, 0.5
  %v8313 = vmul.f32 %v7424, 0.5
  %v8314 = vmul.f32 %v7583, 0.5
  %v8315 = vmul.f32 %v7585, 0.5
  %v8316 = vmul.f32 %v7744, 0.5
  %v8317 = vmul.f32 %v7746, 0.5
  %v8318 = vmul.f32 %v7905, 0.5
  %v8319 = vmul.f32 %v7907, 0.5
  %v8320 = vmul.f32 %v8066, 0.5
  %v8321 = vmul.f32 %v8068, 0.5
  %v8322 = vmul.f32 %v5657, 0.5
  %v8323 = vmul.f32 %v5659, 0.5
  %v8324 = vmul.f32 %v5818, 0.5
  %v8325 = vmul.f32 %v5820, 0.5
  %v8326 = vmul.f32 %v5979, 0.5
  %v8327 = vmul.f32 %v5981, 0.5
  %v8328 = vmul.f32 %v6140, 0.5
  %v8329 = vmul.f32 %v6142, 0.5
  %v8330 = vmul.f32 %v6301, 0.5
  %v8331 = vmul.f32 %v6303, 0.5
  %v8332 = vmul.f32 %v6462, 0.5
  %v8333 = vmul.f32 %v6464, 0.5
  %v8334 = vmul.f32 %v6623, 0.5
  %v8335 = vmul.f32 %v6625, 0.5
  %v8336 = vmul.f32 %v6784, 0.5
  %v8337 = vmul.f32 %v6786, 0.5
  %v8338 = vmul.f32 %v6945, 0.5
  %v8339 = vmul.f32 %v6947, 0.5
  %v8340 = vmul.f32 %v7106, 0.5
  %v8341 = vmul.f32 %v7108, 0.5
  %v8342 = vmul.f32 %v7267, 0.5
  %v8343 = vmul.f32 %v7269, 0.5
  %v8344 = vmul.f32 %v7428, 0.5
  %v8345 = vmul.f32 %v7430, 0.5
  %v8346 = vmul.f32 %v7589, 0.5
  %v8347 = vmul.f32 %v7591, 0.5
  %v8348 = vmul.f32 %v7750, 0.5
  %v8349 = vmul.f32 %v7752, 0.5
  %v8350 = vmul.f32 %v7911, 0.5
  %v8351 = vmul.f32 %v7913, 0.5
  %v8352 = vmul.f32 %v8072, 0.5
  %v8353 = vmul.f32 %v8074, 0.5
  %v8354 = vmul.f32 %v5663, 0.5
  %v8355 = vmul.f32 %v5665, 0.5
  %v8356 = vmul.f32 %v5824, 0.5
  %v8357 = vmul.f32 %v5826, 0.5
  %v8358 = vmul.f32 %v5985, 0.5
  %v8359 = vmul.f32 %v5987, 0.5
  %v8360 = vmul.f32 %v6146, 0.5
  %v8361 = vmul.f32 %v6148, 0.5
  %v8362 = vmul.f32 %v6307, 0.5
  %v8363 = vmul.f32 %v6309, 0.5
  %v8364 = vmul.f32 %v6468, 0.5
  %v8365 = vmul.f32 %v6470, 0.5
  %v8366 = vmul.f32 %v6629, 0.5
  %v8367 = vmul.f32 %v6631, 0.5
  %v8368 = vmul.f32 %v6790, 0.5
  %v8369 = vmul.f32 %v6792, 0.5
  %v8370 = vmul.f32 %v6951, 0.5
  %v8371 = vmul.f32 %v6953, 0.5
  %v8372 = vmul.f32 %v7112, 0.5
  %v8373 = vmul.f32 %v7114, 0.5
  %v8374 = vmul.f32 %v7273, 0.5
  %v8375 = vmul.f32 %v7275, 0.5
  %v8376 = vmul.f32 %v7434, 0.5
  %v8377 = vmul.f32 %v7436, 0.5
  %v8378 = vmul.f32 %v7595, 0.5
  %v8379 = vmul.f32 %v7597, 0.5
  %v8380 = vmul.f32 %v7756, 0.5
  %v8381 = vmul.f32 %v7758, 0.5
  %v8382 = vmul.f32 %v7917, 0.5
  %v8383 = vmul.f32 %v7919, 0.5
  %v8384 = vmul.f32 %v8078, 0.5
  %v8385 = vmul.f32 %v8080, 0.5
  %v8386 = vmul.f32 %v5669, 0.5
  %v8387 = vmul.f32 %v5671, 0.5
  %v8388 = vmul.f32 %v5830, 0.5
  %v8389 = vmul.f32 %v5832, 0.5
  %v8390 = vmul.f32 %v5991, 0.5
  %v8391 = vmul.f32 %v5993, 0.5
  %v8392 = vmul.f32 %v6152, 0.5
  %v8393 = vmul.f32 %v6154, 0.5
  %v8394 = vmul.f32 %v6313, 0.5
  %v8395 = vmul.f32 %v6315, 0.5
  %v8396 = vmul.f32 %v6474, 0.5
  %v8397 = vmul.f32 %v6476, 0.5
  %v8398 = vmul.f32 %v6635, 0.5
  %v8399 = vmul.f32 %v6637, 0.5
  %v8400 = vmul.f32 %v6796, 0.5
  %v8401 = vmul.f32 %v6798, 0.5
  %v8402 = vmul.f32 %v6957, 0.5
  %v8403 = vmul.f32 %v6959, 0.5
  %v8404 = vmul.f32 %v7118, 0.5
  %v8405 = vmul.f32 %v7120, 0.5
  %v8406 = vmul.f32 %v7279, 0.5
  %v8407 = vmul.f32 %v7281, 0.5
  %v8408 = vmul.f32 %v7440, 0.5
  %v8409 = vmul.f32 %v7442, 0.5
  %v8410 = vmul.f32 %v7601, 0.5
  %v8411 = vmul.f32 %v7603, 0.5
  %v8412 = vmul.f32 %v7762, 0.5
  %v8413 = vmul.f32 %v7764, 0.5
  %v8414 = vmul.f32 %v7923, 0.5
  %v8415 = vmul.f32 %v7925, 0.5
  %v8416 = vmul.f32 %v8084, 0.5
  %v8417 = vmul.f32 %v8086, 0.5
  %v8418 = vmul.f32 %v5675, 0.5
  %v8419 = vmul.f32 %v5677, 0.5
  %v8420 = vmul.f32 %v5836, 0.5
  %v8421 = vmul.f32 %v5838, 0.5
  %v8422 = vmul.f32 %v5997, 0.5
  %v8423 = vmul.f32 %v5999, 0.5
  %v8424 = vmul.f32 %v6158, 0.5
  %v8425 = vmul.f32 %v6160, 0.5
  %v8426 = vmul.f32 %v6319, 0.5
  %v8427 = vmul.f32 %v6321, 0.5
  %v8428 = vmul.f32 %v6480, 0.5
  %v8429 = vmul.f32 %v6482, 0.5
  %v8430 = vmul.f32 %v6641, 0.5
  %v8431 = vmul.f32 %v6643, 0.5
  %v8432 = vmul.f32 %v6802, 0.5
  %v8433 = vmul.f32 %v6804, 0.5
  %v8434 = vmul.f32 %v6963, 0.5
  %v8435 = vmul.f32 %v6965, 0.5
  %v8436 = vmul.f32 %v7124, 0.5
  %v8437 = vmul.f32 %v7126, 0.5
  %v8438 = vmul.f32 %v7285, 0.5
  %v8439 = vmul.f32 %v7287, 0.5
  %v8440 = vmul.f32 %v7446, 0.5
  %v8441 = vmul.f32 %v7448, 0.5
  %v8442 = vmul.f32 %v7607, 0.5
  %v8443 = vmul.f32 %v7609, 0.5
  %v8444 = vmul.f32 %v7768, 0.5
  %v8445 = vmul.f32 %v7770, 0.5
  %v8446 = vmul.f32 %v7929, 0.5
  %v8447 = vmul.f32 %v7931, 0.5
  %v8448 = vmul.f32 %v8090, 0.5
  %v8449 = vmul.f32 %v8092, 0.5
  %v8450 = vmul.f32 %v5681, 0.5
  %v8451 = vmul.f32 %v5683, 0.5
  %v8452 = vmul.f32 %v5842, 0.5
  %v8453 = vmul.f32 %v5844, 0.5
  %v8454 = vmul.f32 %v6003, 0.5
  %v8455 = vmul.f32 %v6005, 0.5
  %v8456 = vmul.f32 %v6164, 0.5
  %v8457 = vmul.f32 %v6166, 0.5
  %v8458 = vmul.f32 %v6325, 0.5
  %v8459 = vmul.f32 %v6327, 0.5
  %v8460 = vmul.f32 %v6486, 0.5
  %v8461 = vmul.f32 %v6488, 0.5
  %v8462 = vmul.f32 %v6647, 0.5
  %v8463 = vmul.f32 %v6649, 0.5
  %v8464 = vmul.f32 %v6808, 0.5
  %v8465 = vmul.f32 %v6810, 0.5
  %v8466 = vmul.f32 %v6969, 0.5
  %v8467 = vmul.f32 %v6971, 0.5
  %v8468 = vmul.f32 %v7130, 0.5
  %v8469 = vmul.f32 %v7132, 0.5
  %v8470 = vmul.f32 %v7291, 0.5
  %v8471 = vmul.f32 %v7293, 0.5
  %v8472 = vmul.f32 %v7452, 0.5
  %v8473 = vmul.f32 %v7454, 0.5
  %v8474 = vmul.f32 %v7613, 0.5
  %v8475 = vmul.f32 %v7615, 0.5
  %v8476 = vmul.f32 %v7774, 0.5
  %v8477 = vmul.f32 %v7776, 0.5
  %v8478 = vmul.f32 %v7935, 0.5
  %v8479 = vmul.f32 %v7937, 0.5
  %v8480 = vmul.f32 %v8096, 0.5
  %v8481 = vmul.f32 %v8098, 0.5
  %v8482 = vmul.f32 %v5687, 0.5
  %v8483 = vmul.f32 %v5689, 0.5
  %v8484 = vmul.f32 %v5848, 0.5
  %v8485 = vmul.f32 %v5850, 0.5
  %v8486 = vmul.f32 %v6009, 0.5
  %v8487 = vmul.f32 %v6011, 0.5
  %v8488 = vmul.f32 %v6170, 0.5
  %v8489 = vmul.f32 %v6172, 0.5
  %v8490 = vmul.f32 %v6331, 0.5
  %v8491 = vmul.f32 %v6333, 0.5
  %v8492 = vmul.f32 %v6492, 0.5
  %v8493 = vmul.f32 %v6494, 0.5
  %v8494 = vmul.f32 %v6653, 0.5
  %v8495 = vmul.f32 %v6655, 0.5
  %v8496 = vmul.f32 %v6814, 0.5
  %v8497 = vmul.f32 %v6816, 0.5
  %v8498 = vmul.f32 %v6975, 0.5
  %v8499 = vmul.f32 %v6977, 0.5
  %v8500 = vmul.f32 %v7136, 0.5
  %v8501 = vmul.f32 %v7138, 0.5
  %v8502 = vmul.f32 %v7297, 0.5
  %v8503 = vmul.f32 %v7299, 0.5
  %v8504 = vmul.f32 %v7458, 0.5
  %v8505 = vmul.f32 %v7460, 0.5
  %v8506 = vmul.f32 %v7619, 0.5
  %v8507 = vmul.f32 %v7621, 0.5
  %v8508 = vmul.f32 %v7780, 0.5
  %v8509 = vmul.f32 %v7782, 0.5
  %v8510 = vmul.f32 %v7941, 0.5
  %v8511 = vmul.f32 %v7943, 0.5
  %v8512 = vmul.f32 %v8102, 0.5
  %v8513 = vmul.f32 %v8104, 0.5
  %v8514 = vmul.f32 %v5693, 0.5
  %v8515 = vmul.f32 %v5695, 0.5
  %v8516 = vmul.f32 %v5854, 0.5
  %v8517 = vmul.f32 %v5856, 0.5
  %v8518 = vmul.f32 %v6015, 0.5
  %v8519 = vmul.f32 %v6017, 0.5
  %v8520 = vmul.f32 %v6176, 0.5
  %v8521 = vmul.f32 %v6178, 0.5
  %v8522 = vmul.f32 %v6337, 0.5
  %v8523 = vmul.f32 %v6339, 0.5
  %v8524 = vmul.f32 %v6498, 0.5
  %v8525 = vmul.f32 %v6500, 0.5
  %v8526 = vmul.f32 %v6659, 0.5
  %v8527 = vmul.f32 %v6661, 0.5
  %v8528 = vmul.f32 %v6820, 0.5
  %v8529 = vmul.f32 %v6822, 0.5
  %v8530 = vmul.f32 %v6981, 0.5
  %v8531 = vmul.f32 %v6983, 0.5
  %v8532 = vmul.f32 %v7142, 0.5
  %v8533 = vmul.f32 %v7144, 0.5
  %v8534 = vmul.f32 %v7303, 0.5
  %v8535 = vmul.f32 %v7305, 0.5
  %v8536 = vmul.f32 %v7464, 0.5
  %v8537 = vmul.f32 %v7466, 0.5
  %v8538 = vmul.f32 %v7625, 0.5
  %v8539 = vmul.f32 %v7627, 0.5
  %v8540 = vmul.f32 %v7786, 0.5
  %v8541 = vmul.f32 %v7788, 0.5
  %v8542 = vmul.f32 %v7947, 0.5
  %v8543 = vmul.f32 %v7949, 0.5
  %v8544 = vmul.f32 %v8108, 0.5
  %v8545 = vmul.f32 %v8110, 0.5
  %v8546 = vmul.f32 %v5699, 0.5
  %v8547 = vmul.f32 %v5701, 0.5
  %v8548 = vmul.f32 %v5860, 0.5
  %v8549 = vmul.f32 %v5862, 0.5
  %v8550 = vmul.f32 %v6021, 0.5
  %v8551 = vmul.f32 %v6023, 0.5
  %v8552 = vmul.f32 %v6182, 0.5
  %v8553 = vmul.f32 %v6184, 0.5
  %v8554 = vmul.f32 %v6343, 0.5
  %v8555 = vmul.f32 %v6345, 0.5
  %v8556 = vmul.f32 %v6504, 0.5
  %v8557 = vmul.f32 %v6506, 0.5
  %v8558 = vmul.f32 %v6665, 0.5
  %v8559 = vmul.f32 %v6667, 0.5
  %v8560 = vmul.f32 %v6826, 0.5
  %v8561 = vmul.f32 %v6828, 0.5
  %v8562 = vmul.f32 %v6987, 0.5
  %v8563 = vmul.f32 %v6989, 0.5
  %v8564 = vmul.f32 %v7148, 0.5
  %v8565 = vmul.f32 %v7150, 0.5
  %v8566 = vmul.f32 %v7309, 0.5
  %v8567 = vmul.f32 %v7311, 0.5
  %v8568 = vmul.f32 %v7470, 0.5
  %v8569 = vmul.f32 %v7472, 0.5
  %v8570 = vmul.f32 %v7631, 0.5
  %v8571 = vmul.f32 %v7633, 0.5
  %v8572 = vmul.f32 %v7792, 0.5
  %v8573 = vmul.f32 %v7794, 0.5
  %v8574 = vmul.f32 %v7953, 0.5
  %v8575 = vmul.f32 %v7955, 0.5
  %v8576 = vmul.f32 %v8114, 0.5
  %v8577 = vmul.f32 %v8116, 0.5
  %v8578 = vmul.f32 %v5705, 0.5
  %v8579 = vmul.f32 %v5707, 0.5
  %v8580 = vmul.f32 %v5866, 0.5
  %v8581 = vmul.f32 %v5868, 0.5
  %v8582 = vmul.f32 %v6027, 0.5
  %v8583 = vmul.f32 %v6029, 0.5
  %v8584 = vmul.f32 %v6188, 0.5
  %v8585 = vmul.f32 %v6190, 0.5
  %v8586 = vmul.f32 %v6349, 0.5
  %v8587 = vmul.f32 %v6351, 0.5
  %v8588 = vmul.f32 %v6510, 0.5
  %v8589 = vmul.f32 %v6512, 0.5
  %v8590 = vmul.f32 %v6671, 0.5
  %v8591 = vmul.f32 %v6673, 0.5
  %v8592 = vmul.f32 %v6832, 0.5
  %v8593 = vmul.f32 %v6834, 0.5
  %v8594 = vmul.f32 %v6993, 0.5
  %v8595 = vmul.f32 %v6995, 0.5
  %v8596 = vmul.f32 %v7154, 0.5
  %v8597 = vmul.f32 %v7156, 0.5
  %v8598 = vmul.f32 %v7315, 0.5
  %v8599 = vmul.f32 %v7317, 0.5
  %v8600 = vmul.f32 %v7476, 0.5
  %v8601 = vmul.f32 %v7478, 0.5
  %v8602 = vmul.f32 %v7637, 0.5
  %v8603 = vmul.f32 %v7639, 0.5
  %v8604 = vmul.f32 %v7798, 0.5
  %v8605 = vmul.f32 %v7800, 0.5
  %v8606 = vmul.f32 %v7959, 0.5
  %v8607 = vmul.f32 %v7961, 0.5
  %v8608 = vmul.f32 %v8120, 0.5
  %v8609 = vmul.f32 %v8122, 0.5
  %v8610 = vmul.f32 %v5711, 0.5
  %v8611 = vmul.f32 %v5713, 0.5
  %v8612 = vmul.f32 %v5872, 0.5
  %v8613 = vmul.f32 %v5874, 0.5
  %v8614 = vmul.f32 %v6033, 0.5
  %v8615 = vmul.f32 %v6035, 0.5
  %v8616 = vmul.f32 %v6194, 0.5
  %v8617 = vmul.f32 %v6196, 0.5
  %v8618 = vmul.f32 %v6355, 0.5
  %v8619 = vmul.f32 %v6357, 0.5
  %v8620 = vmul.f32 %v6516, 0.5
  %v8621 = vmul.f32 %v6518, 0.5
  %v8622 = vmul.f32 %v6677, 0.5
  %v8623 = vmul.f32 %v6679, 0.5
  %v8624 = vmul.f32 %v6838, 0.5
  %v8625 = vmul.f32 %v6840, 0.5
  %v8626 = vmul.f32 %v6999, 0.5
  %v8627 = vmul.f32 %v7001, 0.5
  %v8628 = vmul.f32 %v7160, 0.5
  %v8629 = vmul.f32 %v7162, 0.5
  %v8630 = vmul.f32 %v7321, 0.5
  %v8631 = vmul.f32 %v7323, 0.5
  %v8632 = vmul.f32 %v7482, 0.5
  %v8633 = vmul.f32 %v7484, 0.5
  %v8634 = vmul.f32 %v7643, 0.5
  %v8635 = vmul.f32 %v7645, 0.5
  %v8636 = vmul.f32 %v7804, 0.5
  %v8637 = vmul.f32 %v7806, 0.5
  %v8638 = vmul.f32 %v7965, 0.5
  %v8639 = vmul.f32 %v7967, 0.5
  %v8640 = vmul.f32 %v8126, 0.5
  %v8641 = vmul.f32 %v8128, 0.5
  %v8642 = vmul.f32 %v5621, 0.70710677
  %v8643 = vmul.f32 %v5623, 0.70710677
  %v8644 = vmul.f32 %v5782, 0.70710677
  %v8645 = vmul.f32 %v5784, 0.70710677
  %v8646 = vmul.f32 %v5943, 0.70710677
  %v8647 = vmul.f32 %v5945, 0.70710677
  %v8648 = vmul.f32 %v6104, 0.70710677
  %v8649 = vmul.f32 %v6106, 0.70710677
  %v8650 = vmul.f32 %v6265, 0.70710677
  %v8651 = vmul.f32 %v6267, 0.70710677
  %v8652 = vmul.f32 %v6426, 0.70710677
  %v8653 = vmul.f32 %v6428, 0.70710677
  %v8654 = vmul.f32 %v6587, 0.70710677
  %v8655 = vmul.f32 %v6589, 0.70710677
  %v8656 = vmul.f32 %v6748, 0.70710677
  %v8657 = vmul.f32 %v6750, 0.70710677
  %v8658 = vmul.f32 %v6909, 0.70710677
  %v8659 = vmul.f32 %v6911, 0.70710677
  %v8660 = vmul.f32 %v7070, 0.70710677
  %v8661 = vmul.f32 %v7072, 0.70710677
  %v8662 = vmul.f32 %v7231, 0.70710677
  %v8663 = vmul.f32 %v7233, 0.70710677
  %v8664 = vmul.f32 %v7392, 0.70710677
  %v8665 = vmul.f32 %v7394, 0.70710677
  %v8666 = vmul.f32 %v7553, 0.70710677
  %v8667 = vmul.f32 %v7555, 0.70710677
  %v8668 = vmul.f32 %v7714, 0.70710677
  %v8669 = vmul.f32 %v7716, 0.70710677
  %v8670 = vmul.f32 %v7875, 0.70710677
  %v8671 = vmul.f32 %v7877, 0.70710677
  %v8672 = vmul.f32 %v8036, 0.70710677
  %v8673 = vmul.f32 %v8038, 0.70710677
  %v8674 = vmul.f32 %v5627, 0.70710677
  %v8675 = vmul.f32 %v5629, 0.70710677
  %v8676 = vmul.f32 %v5788, 0.70710677
  %v8677 = vmul.f32 %v5790, 0.70710677
  %v8678 = vmul.f32 %v5949, 0.70710677
  %v8679 = vmul.f32 %v5951, 0.70710677
  %v8680 = vmul.f32 %v6110, 0.70710677
  %v8681 = vmul.f32 %v6112, 0.70710677
  %v8682 = vmul.f32 %v6271, 0.70710677
  %v8683 = vmul.f32 %v6273, 0.70710677
  %v8684 = vmul.f32 %v6432, 0.70710677
  %v8685 = vmul.f32 %v6434, 0.70710677
  %v8686 = vmul.f32 %v6593, 0.70710677
  %v8687 = vmul.f32 %v6595, 0.70710677
  %v8688 = vmul.f32 %v6754, 0.70710677
  %v8689 = vmul.f32 %v6756, 0.70710677
  %v8690 = vmul.f32 %v6915, 0.70710677
  %v8691 = vmul.f32 %v6917, 0.70710677
  %v8692 = vmul.f32 %v7076, 0.70710677
  %v8693 = vmul.f32 %v7078, 0.70710677
  %v8694 = vmul.f32 %v7237, 0.70710677
  %v8695 = vmul.f32 %v7239, 0.70710677
  %v8696 = vmul.f32 %v7398, 0.70710677
  %v8697 = vmul.f32 %v7400, 0.70710677
  %v8698 = vmul.f32 %v7559, 0.70710677
  %v8699 = vmul.f32 %v7561, 0.70710677
  %v8700 = vmul.f32 %v7720, 0.70710677
  %v8701 = vmul.f32 %v7722, 0.70710677
  %v8702 = vmul.f32 %v7881, 0.70710677
  %v8703 = vmul.f32 %v7883, 0.70710677
  %v8704 = vmul.f32 %v8042, 0.70710677
  %v8705 = vmul.f32 %v8044, 0.70710677
  %v8706 = vmul.f32 %v5633, 0.70710677
  %v8707 = vmul.f32 %v5635, 0.70710677
  %v8708 = vmul.f32 %v5794, 0.70710677
  %v8709 = vmul.f32 %v5796, 0.70710677
  %v8710 = vmul.f32 %v5955, 0.70710677
  %v8711 = vmul.f32 %v5957, 0.70710677
  %v8712 = vmul.f32 %v6116, 0.70710677
  %v8713 = vmul.f32 %v6118, 0.70710677
  %v8714 = vmul.f32 %v6277, 0.70710677
  %v8715 = vmul.f32 %v6279, 0.70710677
  %v8716 = vmul.f32 %v6438, 0.70710677
  %v8717 = vmul.f32 %v6440, 0.70710677
  %v8718 = vmul.f32 %v6599, 0.70710677
  %v8719 = vmul.f32 %v6601, 0.70710677
  %v8720 = vmul.f32 %v6760, 0.70710677
  %v8721 = vmul.f32 %v6762, 0.70710677
  %v8722 = vmul.f32 %v6921, 0.70710677
  %v8723 = vmul.f32 %v6923, 0.70710677
  %v8724 = vmul.f32 %v7082, 0.70710677
  %v8725 = vmul.f32 %v7084, 0.70710677
  %v8726 = vmul.f32 %v7243, 0.70710677
  %v8727 = vmul.f32 %v7245, 0.70710677
  %v8728 = vmul.f32 %v7404, 0.70710677
  %v8729 = vmul.f32 %v7406, 0.70710677
  %v8730 = vmul.f32 %v7565, 0.70710677
  %v8731 = vmul.f32 %v7567, 0.70710677
  %v8732 = vmul.f32 %v7726, 0.70710677
  %v8733 = vmul.f32 %v7728, 0.70710677
  %v8734 = vmul.f32 %v7887, 0.70710677
  %v8735 = vmul.f32 %v7889, 0.70710677
  %v8736 = vmul.f32 %v8048, 0.70710677
  %v8737 = vmul.f32 %v8050, 0.70710677
  %v8738 = vmul.f32 %v5639, 0.70710677
  %v8739 = vmul.f32 %v5641, 0.70710677
  %v8740 = vmul.f32 %v5800, 0.70710677
  %v8741 = vmul.f32 %v5802, 0.70710677
  %v8742 = vmul.f32 %v5961, 0.70710677
  %v8743 = vmul.f32 %v5963, 0.70710677
  %v8744 = vmul.f32 %v6122, 0.70710677
  %v8745 = vmul.f32 %v6124, 0.70710677
  %v8746 = vmul.f32 %v6283, 0.70710677
  %v8747 = vmul.f32 %v6285, 0.70710677
  %v8748 = vmul.f32 %v6444, 0.70710677
  %v8749 = vmul.f32 %v6446, 0.70710677
  %v8750 = vmul.f32 %v6605, 0.70710677
  %v8751 = vmul.f32 %v6607, 0.70710677
  %v8752 = vmul.f32 %v6766, 0.70710677
  %v8753 = vmul.f32 %v6768, 0.70710677
  %v8754 = vmul.f32 %v6927, 0.70710677
  %v8755 = vmul.f32 %v6929, 0.70710677
  %v8756 = vmul.f32 %v7088, 0.70710677
  %v8757 = vmul.f32 %v7090, 0.70710677
  %v8758 = vmul.f32 %v7249, 0.70710677
  %v8759 = vmul.f32 %v7251, 0.70710677
  %v8760 = vmul.f32 %v7410, 0.70710677
  %v8761 = vmul.f32 %v7412, 0.70710677
  %v8762 = vmul.f32 %v7571, 0.70710677
  %v8763 = vmul.f32 %v7573, 0.70710677
  %v8764 = vmul.f32 %v7732, 0.70710677
  %v8765 = vmul.f32 %v7734, 0.70710677
  %v8766 = vmul.f32 %v7893, 0.70710677
  %v8767 = vmul.f32 %v7895, 0.70710677
  %v8768 = vmul.f32 %v8054, 0.70710677
  %v8769 = vmul.f32 %v8056, 0.70710677
  %v8770 = vmul.f32 %v5645, 0.70710677
  %v8771 = vmul.f32 %v5647, 0.70710677
  %v8772 = vmul.f32 %v5806, 0.70710677
  %v8773 = vmul.f32 %v5808, 0.70710677
  %v8774 = vmul.f32 %v5967, 0.70710677
  %v8775 = vmul.f32 %v5969, 0.70710677
  %v8776 = vmul.f32 %v6128, 0.70710677
  %v8777 = vmul.f32 %v6130, 0.70710677
  %v8778 = vmul.f32 %v6289, 0.70710677
  %v8779 = vmul.f32 %v6291, 0.70710677
  %v8780 = vmul.f32 %v6450, 0.70710677
  %v8781 = vmul.f32 %v6452, 0.70710677
  %v8782 = vmul.f32 %v6611, 0.70710677
  %v8783 = vmul.f32 %v6613, 0.70710677
  %v8784 = vmul.f32 %v6772, 0.70710677
  %v8785 = vmul.f32 %v6774, 0.70710677
  %v8786 = vmul.f32 %v6933, 0.70710677
  %v8787 = vmul.f32 %v6935, 0.70710677
  %v8788 = vmul.f32 %v7094, 0.70710677
  %v8789 = vmul.f32 %v7096, 0.70710677
  %v8790 = vmul.f32 %v7255, 0.70710677
  %v8791 = vmul.f32 %v7257, 0.70710677
  %v8792 = vmul.f32 %v7416, 0.70710677
  %v8793 = vmul.f32 %v7418, 0.70710677
  %v8794 = vmul.f32 %v7577, 0.70710677
  %v8795 = vmul.f32 %v7579, 0.70710677
  %v8796 = vmul.f32 %v7738, 0.70710677
  %v8797 = vmul.f32 %v7740, 0.70710677
  %v8798 = vmul.f32 %v7899, 0.70710677
  %v8799 = vmul.f32 %v7901, 0.70710677
  %v8800 = vmul.f32 %v8060, 0.70710677
  %v8801 = vmul.f32 %v8062, 0.70710677
  %v8802 = vmul.f32 %v5651, 0.70710677
  %v8803 = vmul.f32 %v5653, 0.70710677
  %v8804 = vmul.f32 %v5812, 0.70710677
  %v8805 = vmul.f32 %v5814, 0.70710677
  %v8806 = vmul.f32 %v5973, 0.70710677
  %v8807 = vmul.f32 %v5975, 0.70710677
  %v8808 = vmul.f32 %v6134, 0.70710677
  %v8809 = vmul.f32 %v6136, 0.70710677
  %v8810 = vmul.f32 %v6295, 0.70710677
  %v8811 = vmul.f32 %v6297, 0.70710677
  %v8812 = vmul.f32 %v6456, 0.70710677
  %v8813 = vmul.f32 %v6458, 0.70710677
  %v8814 = vmul.f32 %v6617, 0.70710677
  %v8815 = vmul.f32 %v6619, 0.70710677
  %v8816 = vmul.f32 %v6778, 0.70710677
  %v8817 = vmul.f32 %v6780, 0.70710677
  %v8818 = vmul.f32 %v6939, 0.70710677
  %v8819 = vmul.f32 %v6941, 0.70710677
  %v8820 = vmul.f32 %v7100, 0.70710677
  %v8821 = vmul.f32 %v7102, 0.70710677
  %v8822 = vmul.f32 %v7261, 0.70710677
  %v8823 = vmul.f32 %v7263, 0.70710677
  %v8824 = vmul.f32 %v7422, 0.70710677
  %v8825 = vmul.f32 %v7424, 0.70710677
  %v8826 = vmul.f32 %v7583, 0.70710677
  %v8827 = vmul.f32 %v7585, 0.70710677
  %v8828 = vmul.f32 %v7744, 0.70710677
  %v8829 = vmul.f32 %v7746, 0.70710677
  %v8830 = vmul.f32 %v7905, 0.70710677
  %v8831 = vmul.f32 %v7907, 0.70710677
  %v8832 = vmul.f32 %v8066, 0.70710677
  %v8833 = vmul.f32 %v8068, 0.70710677
  %v8834 = vmul.f32 %v5657, 0.70710677
  %v8835 = vmul.f32 %v5659, 0.70710677
  %v8836 = vmul.f32 %v5818, 0.70710677
  %v8837 = vmul.f32 %v5820, 0.70710677
  %v8838 = vmul.f32 %v5979, 0.70710677
  %v8839 = vmul.f32 %v5981, 0.70710677
  %v8840 = vmul.f32 %v6140, 0.70710677
  %v8841 = vmul.f32 %v6142, 0.70710677
  %v8842 = vmul.f32 %v6301, 0.70710677
  %v8843 = vmul.f32 %v6303, 0.70710677
  %v8844 = vmul.f32 %v6462, 0.70710677
  %v8845 = vmul.f32 %v6464, 0.70710677
  %v8846 = vmul.f32 %v6623, 0.70710677
  %v8847 = vmul.f32 %v6625, 0.70710677
  %v8848 = vmul.f32 %v6784, 0.70710677
  %v8849 = vmul.f32 %v6786, 0.70710677
  %v8850 = vmul.f32 %v6945, 0.70710677
  %v8851 = vmul.f32 %v6947, 0.70710677
  %v8852 = vmul.f32 %v7106, 0.70710677
  %v8853 = vmul.f32 %v7108, 0.70710677
  %v8854 = vmul.f32 %v7267, 0.70710677
  %v8855 = vmul.f32 %v7269, 0.70710677
  %v8856 = vmul.f32 %v7428, 0.70710677
  %v8857 = vmul.f32 %v7430, 0.70710677
  %v8858 = vmul.f32 %v7589, 0.70710677
  %v8859 = vmul.f32 %v7591, 0.70710677
  %v8860 = vmul.f32 %v7750, 0.70710677
  %v8861 = vmul.f32 %v7752, 0.70710677
  %v8862 = vmul.f32 %v7911, 0.70710677
  %v8863 = vmul.f32 %v7913, 0.70710677
  %v8864 = vmul.f32 %v8072, 0.70710677
  %v8865 = vmul.f32 %v8074, 0.70710677
  %v8866 = vmul.f32 %v5663, 0.70710677
  %v8867 = vmul.f32 %v5665, 0.70710677
  %v8868 = vmul.f32 %v5824, 0.70710677
  %v8869 = vmul.f32 %v5826, 0.70710677
  %v8870 = vmul.f32 %v5985, 0.70710677
  %v8871 = vmul.f32 %v5987, 0.70710677
  %v8872 = vmul.f32 %v6146, 0.70710677
  %v8873 = vmul.f32 %v6148, 0.70710677
  %v8874 = vmul.f32 %v6307, 0.70710677
  %v8875 = vmul.f32 %v6309, 0.70710677
  %v8876 = vmul.f32 %v6468, 0.70710677
  %v8877 = vmul.f32 %v6470, 0.70710677
  %v8878 = vmul.f32 %v6629, 0.70710677
  %v8879 = vmul.f32 %v6631, 0.70710677
  %v8880 = vmul.f32 %v6790, 0.70710677
  %v8881 = vmul.f32 %v6792, 0.70710677
  %v8882 = vmul.f32 %v6951, 0.70710677
  %v8883 = vmul.f32 %v6953, 0.70710677
  %v8884 = vmul.f32 %v7112, 0.70710677
  %v8885 = vmul.f32 %v7114, 0.70710677
  %v8886 = vmul.f32 %v7273, 0.70710677
  %v8887 = vmul.f32 %v7275, 0.70710677
  %v8888 = vmul.f32 %v7434, 0.70710677
  %v8889 = vmul.f32 %v7436, 0.70710677
  %v8890 = vmul.f32 %v7595, 0.70710677
  %v8891 = vmul.f32 %v7597, 0.70710677
  %v8892 = vmul.f32 %v7756, 0.70710677
  %v8893 = vmul.f32 %v7758, 0.70710677
  %v8894 = vmul.f32 %v7917, 0.70710677
  %v8895 = vmul.f32 %v7919, 0.70710677
  %v8896 = vmul.f32 %v8078, 0.70710677
  %v8897 = vmul.f32 %v8080, 0.70710677
  %v8898 = vmul.f32 %v5669, 0.70710677
  %v8899 = vmul.f32 %v5671, 0.70710677
  %v8900 = vmul.f32 %v5830, 0.70710677
  %v8901 = vmul.f32 %v5832, 0.70710677
  %v8902 = vmul.f32 %v5991, 0.70710677
  %v8903 = vmul.f32 %v5993, 0.70710677
  %v8904 = vmul.f32 %v6152, 0.70710677
  %v8905 = vmul.f32 %v6154, 0.70710677
  %v8906 = vmul.f32 %v6313, 0.70710677
  %v8907 = vmul.f32 %v6315, 0.70710677
  %v8908 = vmul.f32 %v6474, 0.70710677
  %v8909 = vmul.f32 %v6476, 0.70710677
  %v8910 = vmul.f32 %v6635, 0.70710677
  %v8911 = vmul.f32 %v6637, 0.70710677
  %v8912 = vmul.f32 %v6796, 0.70710677
  %v8913 = vmul.f32 %v6798, 0.70710677
  %v8914 = vmul.f32 %v6957, 0.70710677
  %v8915 = vmul.f32 %v6959, 0.70710677
  %v8916 = vmul.f32 %v7118, 0.70710677
  %v8917 = vmul.f32 %v7120, 0.70710677
  %v8918 = vmul.f32 %v7279, 0.70710677
  %v8919 = vmul.f32 %v7281, 0.70710677
  %v8920 = vmul.f32 %v7440, 0.70710677
  %v8921 = vmul.f32 %v7442, 0.70710677
  %v8922 = vmul.f32 %v7601, 0.70710677
  %v8923 = vmul.f32 %v7603, 0.70710677
  %v8924 = vmul.f32 %v7762, 0.70710677
  %v8925 = vmul.f32 %v7764, 0.70710677
  %v8926 = vmul.f32 %v7923, 0.70710677
  %v8927 = vmul.f32 %v7925, 0.70710677
  %v8928 = vmul.f32 %v8084, 0.70710677
  %v8929 = vmul.f32 %v8086, 0.70710677
  %v8930 = vmul.f32 %v5675, 0.70710677
  %v8931 = vmul.f32 %v5677, 0.70710677
  %v8932 = vmul.f32 %v5836, 0.70710677
  %v8933 = vmul.f32 %v5838, 0.70710677
  %v8934 = vmul.f32 %v5997, 0.70710677
  %v8935 = vmul.f32 %v5999, 0.70710677
  %v8936 = vmul.f32 %v6158, 0.70710677
  %v8937 = vmul.f32 %v6160, 0.70710677
  %v8938 = vmul.f32 %v6319, 0.70710677
  %v8939 = vmul.f32 %v6321, 0.70710677
  %v8940 = vmul.f32 %v6480, 0.70710677
  %v8941 = vmul.f32 %v6482, 0.70710677
  %v8942 = vmul.f32 %v6641, 0.70710677
  %v8943 = vmul.f32 %v6643, 0.70710677
  %v8944 = vmul.f32 %v6802, 0.70710677
  %v8945 = vmul.f32 %v6804, 0.70710677
  %v8946 = vmul.f32 %v6963, 0.70710677
  %v8947 = vmul.f32 %v6965, 0.70710677
  %v8948 = vmul.f32 %v7124, 0.70710677
  %v8949 = vmul.f32 %v7126, 0.70710677
  %v8950 = vmul.f32 %v7285, 0.70710677
  %v8951 = vmul.f32 %v7287, 0.70710677
  %v8952 = vmul.f32 %v7446, 0.70710677
  %v8953 = vmul.f32 %v7448, 0.70710677
  %v8954 = vmul.f32 %v7607, 0.70710677
  %v8955 = vmul.f32 %v7609, 0.70710677
  %v8956 = vmul.f32 %v7768, 0.70710677
  %v8957 = vmul.f32 %v7770, 0.70710677
  %v8958 = vmul.f32 %v7929, 0.70710677
  %v8959 = vmul.f32 %v7931, 0.70710677
  %v8960 = vmul.f32 %v8090, 0.70710677
  %v8961 = vmul.f32 %v8092, 0.70710677
  %v8962 = vmul.f32 %v5681, 0.70710677
  %v8963 = vmul.f32 %v5683, 0.70710677
  %v8964 = vmul.f32 %v5842, 0.70710677
  %v8965 = vmul.f32 %v5844, 0.70710677
  %v8966 = vmul.f32 %v6003, 0.70710677
  %v8967 = vmul.f32 %v6005, 0.70710677
  %v8968 = vmul.f32 %v6164, 0.70710677
  %v8969 = vmul.f32 %v6166, 0.70710677
  %v8970 = vmul.f32 %v6325, 0.70710677
  %v8971 = vmul.f32 %v6327, 0.70710677
  %v8972 = vmul.f32 %v6486, 0.70710677
  %v8973 = vmul.f32 %v6488, 0.70710677
  %v8974 = vmul.f32 %v6647, 0.70710677
  %v8975 = vmul.f32 %v6649, 0.70710677
  %v8976 = vmul.f32 %v6808, 0.70710677
  %v8977 = vmul.f32 %v6810, 0.70710677
  %v8978 = vmul.f32 %v6969, 0.70710677
  %v8979 = vmul.f32 %v6971, 0.70710677
  %v8980 = vmul.f32 %v7130, 0.70710677
  %v8981 = vmul.f32 %v7132, 0.70710677
  %v8982 = vmul.f32 %v7291, 0.70710677
  %v8983 = vmul.f32 %v7293, 0.70710677
  %v8984 = vmul.f32 %v7452, 0.70710677
  %v8985 = vmul.f32 %v7454, 0.70710677
  %v8986 = vmul.f32 %v7613, 0.70710677
  %v8987 = vmul.f32 %v7615, 0.70710677
  %v8988 = vmul.f32 %v7774, 0.70710677
  %v8989 = vmul.f32 %v7776, 0.70710677
  %v8990 = vmul.f32 %v7935, 0.70710677
  %v8991 = vmul.f32 %v7937, 0.70710677
  %v8992 = vmul.f32 %v8096, 0.70710677
  %v8993 = vmul.f32 %v8098, 0.70710677
  %v8994 = vmul.f32 %v5687, 0.70710677
  %v8995 = vmul.f32 %v5689, 0.70710677
  %v8996 = vmul.f32 %v5848, 0.70710677
  %v8997 = vmul.f32 %v5850, 0.70710677
  %v8998 = vmul.f32 %v6009, 0.70710677
  %v8999 = vmul.f32 %v6011, 0.70710677
  %v9000 = vmul.f32 %v6170, 0.70710677
  %v9001 = vmul.f32 %v6172, 0.70710677
  %v9002 = vmul.f32 %v6331, 0.70710677
  %v9003 = vmul.f32 %v6333, 0.70710677
  %v9004 = vmul.f32 %v6492, 0.70710677
  %v9005 = vmul.f32 %v6494, 0.70710677
  %v9006 = vmul.f32 %v6653, 0.70710677
  %v9007 = vmul.f32 %v6655, 0.70710677
  %v9008 = vmul.f32 %v6814, 0.70710677
  %v9009 = vmul.f32 %v6816, 0.70710677
  %v9010 = vmul.f32 %v6975, 0.70710677
  %v9011 = vmul.f32 %v6977, 0.70710677
  %v9012 = vmul.f32 %v7136, 0.70710677
  %v9013 = vmul.f32 %v7138, 0.70710677
  %v9014 = vmul.f32 %v7297, 0.70710677
  %v9015 = vmul.f32 %v7299, 0.70710677
  %v9016 = vmul.f32 %v7458, 0.70710677
  %v9017 = vmul.f32 %v7460, 0.70710677
  %v9018 = vmul.f32 %v7619, 0.70710677
  %v9019 = vmul.f32 %v7621, 0.70710677
  %v9020 = vmul.f32 %v7780, 0.70710677
  %v9021 = vmul.f32 %v7782, 0.70710677
  %v9022 = vmul.f32 %v7941, 0.70710677
  %v9023 = vmul.f32 %v7943, 0.70710677
  %v9024 = vmul.f32 %v8102, 0.70710677
  %v9025 = vmul.f32 %v8104, 0.70710677
  %v9026 = vmul.f32 %v5693, 0.70710677
  %v9027 = vmul.f32 %v5695, 0.70710677
  %v9028 = vmul.f32 %v5854, 0.70710677
  %v9029 = vmul.f32 %v5856, 0.70710677
  %v9030 = vmul.f32 %v6015, 0.70710677
  %v9031 = vmul.f32 %v6017, 0.70710677
  %v9032 = vmul.f32 %v6176, 0.70710677
  %v9033 = vmul.f32 %v6178, 0.70710677
  %v9034 = vmul.f32 %v6337, 0.70710677
  %v9035 = vmul.f32 %v6339, 0.70710677
  %v9036 = vmul.f32 %v6498, 0.70710677
  %v9037 = vmul.f32 %v6500, 0.70710677
  %v9038 = vmul.f32 %v6659, 0.70710677
  %v9039 = vmul.f32 %v6661, 0.70710677
  %v9040 = vmul.f32 %v6820, 0.70710677
  %v9041 = vmul.f32 %v6822, 0.70710677
  %v9042 = vmul.f32 %v6981, 0.70710677
  %v9043 = vmul.f32 %v6983, 0.70710677
  %v9044 = vmul.f32 %v7142, 0.70710677
  %v9045 = vmul.f32 %v7144, 0.70710677
  %v9046 = vmul.f32 %v7303, 0.70710677
  %v9047 = vmul.f32 %v7305, 0.70710677
  %v9048 = vmul.f32 %v7464, 0.70710677
  %v9049 = vmul.f32 %v7466, 0.70710677
  %v9050 = vmul.f32 %v7625, 0.70710677
  %v9051 = vmul.f32 %v7627, 0.70710677
  %v9052 = vmul.f32 %v7786, 0.70710677
  %v9053 = vmul.f32 %v7788, 0.70710677
  %v9054 = vmul.f32 %v7947, 0.70710677
  %v9055 = vmul.f32 %v7949, 0.70710677
  %v9056 = vmul.f32 %v8108, 0.70710677
  %v9057 = vmul.f32 %v8110, 0.70710677
  %v9058 = vmul.f32 %v5699, 0.70710677
  %v9059 = vmul.f32 %v5701, 0.70710677
  %v9060 = vmul.f32 %v5860, 0.70710677
  %v9061 = vmul.f32 %v5862, 0.70710677
  %v9062 = vmul.f32 %v6021, 0.70710677
  %v9063 = vmul.f32 %v6023, 0.70710677
  %v9064 = vmul.f32 %v6182, 0.70710677
  %v9065 = vmul.f32 %v6184, 0.70710677
  %v9066 = vmul.f32 %v6343, 0.70710677
  %v9067 = vmul.f32 %v6345, 0.70710677
  %v9068 = vmul.f32 %v6504, 0.70710677
  %v9069 = vmul.f32 %v6506, 0.70710677
  %v9070 = vmul.f32 %v6665, 0.70710677
  %v9071 = vmul.f32 %v6667, 0.70710677
  %v9072 = vmul.f32 %v6826, 0.70710677
  %v9073 = vmul.f32 %v6828, 0.70710677
  %v9074 = vmul.f32 %v6987, 0.70710677
  %v9075 = vmul.f32 %v6989, 0.70710677
  %v9076 = vmul.f32 %v7148, 0.70710677
  %v9077 = vmul.f32 %v7150, 0.70710677
  %v9078 = vmul.f32 %v7309, 0.70710677
  %v9079 = vmul.f32 %v7311, 0.70710677
  %v9080 = vmul.f32 %v7470, 0.70710677
  %v9081 = vmul.f32 %v7472, 0.70710677
  %v9082 = vmul.f32 %v7631, 0.70710677
  %v9083 = vmul.f32 %v7633, 0.70710677
  %v9084 = vmul.f32 %v7792, 0.70710677
  %v9085 = vmul.f32 %v7794, 0.70710677
  %v9086 = vmul.f32 %v7953, 0.70710677
  %v9087 = vmul.f32 %v7955, 0.70710677
  %v9088 = vmul.f32 %v8114, 0.70710677
  %v9089 = vmul.f32 %v8116, 0.70710677
  %v9090 = vmul.f32 %v5705, 0.70710677
  %v9091 = vmul.f32 %v5707, 0.70710677
  %v9092 = vmul.f32 %v5866, 0.70710677
  %v9093 = vmul.f32 %v5868, 0.70710677
  %v9094 = vmul.f32 %v6027, 0.70710677
  %v9095 = vmul.f32 %v6029, 0.70710677
  %v9096 = vmul.f32 %v6188, 0.70710677
  %v9097 = vmul.f32 %v6190, 0.70710677
  %v9098 = vmul.f32 %v6349, 0.70710677
  %v9099 = vmul.f32 %v6351, 0.70710677
  %v9100 = vmul.f32 %v6510, 0.70710677
  %v9101 = vmul.f32 %v6512, 0.70710677
  %v9102 = vmul.f32 %v6671, 0.70710677
  %v9103 = vmul.f32 %v6673, 0.70710677
  %v9104 = vmul.f32 %v6832, 0.70710677
  %v9105 = vmul.f32 %v6834, 0.70710677
  %v9106 = vmul.f32 %v6993, 0.70710677
  %v9107 = vmul.f32 %v6995, 0.70710677
  %v9108 = vmul.f32 %v7154, 0.70710677
  %v9109 = vmul.f32 %v7156, 0.70710677
  %v9110 = vmul.f32 %v7315, 0.70710677
  %v9111 = vmul.f32 %v7317, 0.70710677
  %v9112 = vmul.f32 %v7476, 0.70710677
  %v9113 = vmul.f32 %v7478, 0.70710677
  %v9114 = vmul.f32 %v7637, 0.70710677
  %v9115 = vmul.f32 %v7639, 0.70710677
  %v9116 = vmul.f32 %v7798, 0.70710677
  %v9117 = vmul.f32 %v7800, 0.70710677
  %v9118 = vmul.f32 %v7959, 0.70710677
  %v9119 = vmul.f32 %v7961, 0.70710677
  %v9120 = vmul.f32 %v8120, 0.70710677
  %v9121 = vmul.f32 %v8122, 0.70710677
  %v9122 = vmul.f32 %v5711, 0.70710677
  %v9123 = vmul.f32 %v5713, 0.70710677
  %v9124 = vmul.f32 %v5872, 0.70710677
  %v9125 = vmul.f32 %v5874, 0.70710677
  %v9126 = vmul.f32 %v6033, 0.70710677
  %v9127 = vmul.f32 %v6035, 0.70710677
  %v9128 = vmul.f32 %v6194, 0.70710677
  %v9129 = vmul.f32 %v6196, 0.70710677
  %v9130 = vmul.f32 %v6355, 0.70710677
  %v9131 = vmul.f32 %v6357, 0.70710677
  %v9132 = vmul.f32 %v6516, 0.70710677
  %v9133 = vmul.f32 %v6518, 0.70710677
  %v9134 = vmul.f32 %v6677, 0.70710677
  %v9135 = vmul.f32 %v6679, 0.70710677
  %v9136 = vmul.f32 %v6838, 0.70710677
  %v9137 = vmul.f32 %v6840, 0.70710677
  %v9138 = vmul.f32 %v6999, 0.70710677
  %v9139 = vmul.f32 %v7001, 0.70710677
  %v9140 = vmul.f32 %v7160, 0.70710677
  %v9141 = vmul.f32 %v7162, 0.70710677
  %v9142 = vmul.f32 %v7321, 0.70710677
  %v9143 = vmul.f32 %v7323, 0.70710677
  %v9144 = vmul.f32 %v7482, 0.70710677
  %v9145 = vmul.f32 %v7484, 0.70710677
  %v9146 = vmul.f32 %v7643, 0.70710677
  %v9147 = vmul.f32 %v7645, 0.70710677
  %v9148 = vmul.f32 %v7804, 0.70710677
  %v9149 = vmul.f32 %v7806, 0.70710677
  %v9150 = vmul.f32 %v7965, 0.70710677
  %v9151 = vmul.f32 %v7967, 0.70710677
  %v9152 = vmul.f32 %v8126, 0.70710677
  %v9153 = vmul.f32 %v8128, 0.70710677
  %v9154 = verf.f32.pop %v8642
  %v9155 = verf.f32.pop %v8643
  %v9156 = verf.f32.pop %v8644
  %v9157 = verf.f32.pop %v8645
  %v9158 = verf.f32.pop %v8646
  %v9159 = verf.f32.pop %v8647
  %v9160 = verf.f32.pop %v8648
  %v9161 = verf.f32.pop %v8649
  %v9162 = verf.f32.pop %v8650
  %v9163 = verf.f32.pop %v8651
  %v9164 = verf.f32.pop %v8652
  %v9165 = verf.f32.pop %v8653
  %v9166 = verf.f32.pop %v8654
  %v9167 = verf.f32.pop %v8655
  %v9168 = verf.f32.pop %v8656
  %v9169 = verf.f32.pop %v8657
  %v9170 = verf.f32.pop %v8658
  %v9171 = verf.f32.pop %v8659
  %v9172 = verf.f32.pop %v8660
  %v9173 = verf.f32.pop %v8661
  %v9174 = verf.f32.pop %v8662
  %v9175 = verf.f32.pop %v8663
  %v9176 = verf.f32.pop %v8664
  %v9177 = verf.f32.pop %v8665
  %v9178 = verf.f32.pop %v8666
  %v9179 = verf.f32.pop %v8667
  %v9180 = verf.f32.pop %v8668
  %v9181 = verf.f32.pop %v8669
  %v9182 = verf.f32.pop %v8670
  %v9183 = verf.f32.pop %v8671
  %v9184 = verf.f32.pop %v8672
  %v9185 = verf.f32.pop %v8673
  %v9186 = verf.f32.pop %v8674
  %v9187 = verf.f32.pop %v8675
  %v9188 = verf.f32.pop %v8676
  %v9189 = verf.f32.pop %v8677
  %v9190 = verf.f32.pop %v8678
  %v9191 = verf.f32.pop %v8679
  %v9192 = verf.f32.pop %v8680
  %v9193 = verf.f32.pop %v8681
  %v9194 = verf.f32.pop %v8682
  %v9195 = verf.f32.pop %v8683
  %v9196 = verf.f32.pop %v8684
  %v9197 = verf.f32.pop %v8685
  %v9198 = verf.f32.pop %v8686
  %v9199 = verf.f32.pop %v8687
  %v9200 = verf.f32.pop %v8688
  %v9201 = verf.f32.pop %v8689
  %v9202 = verf.f32.pop %v8690
  %v9203 = verf.f32.pop %v8691
  %v9204 = verf.f32.pop %v8692
  %v9205 = verf.f32.pop %v8693
  %v9206 = verf.f32.pop %v8694
  %v9207 = verf.f32.pop %v8695
  %v9208 = verf.f32.pop %v8696
  %v9209 = verf.f32.pop %v8697
  %v9210 = verf.f32.pop %v8698
  %v9211 = verf.f32.pop %v8699
  %v9212 = verf.f32.pop %v8700
  %v9213 = verf.f32.pop %v8701
  %v9214 = verf.f32.pop %v8702
  %v9215 = verf.f32.pop %v8703
  %v9216 = verf.f32.pop %v8704
  %v9217 = verf.f32.pop %v8705
  %v9218 = verf.f32.pop %v8706
  %v9219 = verf.f32.pop %v8707
  %v9220 = verf.f32.pop %v8708
  %v9221 = verf.f32.pop %v8709
  %v9222 = verf.f32.pop %v8710
  %v9223 = verf.f32.pop %v8711
  %v9224 = verf.f32.pop %v8712
  %v9225 = verf.f32.pop %v8713
  %v9226 = verf.f32.pop %v8714
  %v9227 = verf.f32.pop %v8715
  %v9228 = verf.f32.pop %v8716
  %v9229 = verf.f32.pop %v8717
  %v9230 = verf.f32.pop %v8718
  %v9231 = verf.f32.pop %v8719
  %v9232 = verf.f32.pop %v8720
  %v9233 = verf.f32.pop %v8721
  %v9234 = verf.f32.pop %v8722
  %v9235 = verf.f32.pop %v8723
  %v9236 = verf.f32.pop %v8724
  %v9237 = verf.f32.pop %v8725
  %v9238 = verf.f32.pop %v8726
  %v9239 = verf.f32.pop %v8727
  %v9240 = verf.f32.pop %v8728
  %v9241 = verf.f32.pop %v8729
  %v9242 = verf.f32.pop %v8730
  %v9243 = verf.f32.pop %v8731
  %v9244 = verf.f32.pop %v8732
  %v9245 = verf.f32.pop %v8733
  %v9246 = verf.f32.pop %v8734
  %v9247 = verf.f32.pop %v8735
  %v9248 = verf.f32.pop %v8736
  %v9249 = verf.f32.pop %v8737
  %v9250 = verf.f32.pop %v8738
  %v9251 = verf.f32.pop %v8739
  %v9252 = verf.f32.pop %v8740
  %v9253 = verf.f32.pop %v8741
  %v9254 = verf.f32.pop %v8742
  %v9255 = verf.f32.pop %v8743
  %v9256 = verf.f32.pop %v8744
  %v9257 = verf.f32.pop %v8745
  %v9258 = verf.f32.pop %v8746
  %v9259 = verf.f32.pop %v8747
  %v9260 = verf.f32.pop %v8748
  %v9261 = verf.f32.pop %v8749
  %v9262 = verf.f32.pop %v8750
  %v9263 = verf.f32.pop %v8751
  %v9264 = verf.f32.pop %v8752
  %v9265 = verf.f32.pop %v8753
  %v9266 = verf.f32.pop %v8754
  %v9267 = verf.f32.pop %v8755
  %v9268 = verf.f32.pop %v8756
  %v9269 = verf.f32.pop %v8757
  %v9270 = verf.f32.pop %v8758
  %v9271 = verf.f32.pop %v8759
  %v9272 = verf.f32.pop %v8760
  %v9273 = verf.f32.pop %v8761
  %v9274 = verf.f32.pop %v8762
  %v9275 = verf.f32.pop %v8763
  %v9276 = verf.f32.pop %v8764
  %v9277 = verf.f32.pop %v8765
  %v9278 = verf.f32.pop %v8766
  %v9279 = verf.f32.pop %v8767
  %v9280 = verf.f32.pop %v8768
  %v9281 = verf.f32.pop %v8769
  %v9282 = verf.f32.pop %v8770
  %v9283 = verf.f32.pop %v8771
  %v9284 = verf.f32.pop %v8772
  %v9285 = verf.f32.pop %v8773
  %v9286 = verf.f32.pop %v8774
  %v9287 = verf.f32.pop %v8775
  %v9288 = verf.f32.pop %v8776
  %v9289 = verf.f32.pop %v8777
  %v9290 = verf.f32.pop %v8778
  %v9291 = verf.f32.pop %v8779
  %v9292 = verf.f32.pop %v8780
  %v9293 = verf.f32.pop %v8781
  %v9294 = verf.f32.pop %v8782
  %v9295 = verf.f32.pop %v8783
  %v9296 = verf.f32.pop %v8784
  %v9297 = verf.f32.pop %v8785
  %v9298 = verf.f32.pop %v8786
  %v9299 = verf.f32.pop %v8787
  %v9300 = verf.f32.pop %v8788
  %v9301 = verf.f32.pop %v8789
  %v9302 = verf.f32.pop %v8790
  %v9303 = verf.f32.pop %v8791
  %v9304 = verf.f32.pop %v8792
  %v9305 = verf.f32.pop %v8793
  %v9306 = verf.f32.pop %v8794
  %v9307 = verf.f32.pop %v8795
  %v9308 = verf.f32.pop %v8796
  %v9309 = verf.f32.pop %v8797
  %v9310 = verf.f32.pop %v8798
  %v9311 = verf.f32.pop %v8799
  %v9312 = verf.f32.pop %v8800
  %v9313 = verf.f32.pop %v8801
  %v9314 = verf.f32.pop %v8802
  %v9315 = verf.f32.pop %v8803
  %v9316 = verf.f32.pop %v8804
  %v9317 = verf.f32.pop %v8805
  %v9318 = verf.f32.pop %v8806
  %v9319 = verf.f32.pop %v8807
  %v9320 = verf.f32.pop %v8808
  %v9321 = verf.f32.pop %v8809
  %v9322 = verf.f32.pop %v8810
  %v9323 = verf.f32.pop %v8811
  %v9324 = verf.f32.pop %v8812
  %v9325 = verf.f32.pop %v8813
  %v9326 = verf.f32.pop %v8814
  %v9327 = verf.f32.pop %v8815
  %v9328 = verf.f32.pop %v8816
  %v9329 = verf.f32.pop %v8817
  %v9330 = verf.f32.pop %v8818
  %v9331 = verf.f32.pop %v8819
  %v9332 = verf.f32.pop %v8820
  %v9333 = verf.f32.pop %v8821
  %v9334 = verf.f32.pop %v8822
  %v9335 = verf.f32.pop %v8823
  %v9336 = verf.f32.pop %v8824
  %v9337 = verf.f32.pop %v8825
  %v9338 = verf.f32.pop %v8826
  %v9339 = verf.f32.pop %v8827
  %v9340 = verf.f32.pop %v8828
  %v9341 = verf.f32.pop %v8829
  %v9342 = verf.f32.pop %v8830
  %v9343 = verf.f32.pop %v8831
  %v9344 = verf.f32.pop %v8832
  %v9345 = verf.f32.pop %v8833
  %v9346 = verf.f32.pop %v8834
  %v9347 = verf.f32.pop %v8835
  %v9348 = verf.f32.pop %v8836
  %v9349 = verf.f32.pop %v8837
  %v9350 = verf.f32.pop %v8838
  %v9351 = verf.f32.pop %v8839
  %v9352 = verf.f32.pop %v8840
  %v9353 = verf.f32.pop %v8841
  %v9354 = verf.f32.pop %v8842
  %v9355 = verf.f32.pop %v8843
  %v9356 = verf.f32.pop %v8844
  %v9357 = verf.f32.pop %v8845
  %v9358 = verf.f32.pop %v8846
  %v9359 = verf.f32.pop %v8847
  %v9360 = verf.f32.pop %v8848
  %v9361 = verf.f32.pop %v8849
  %v9362 = verf.f32.pop %v8850
  %v9363 = verf.f32.pop %v8851
  %v9364 = verf.f32.pop %v8852
  %v9365 = verf.f32.pop %v8853
  %v9366 = verf.f32.pop %v8854
  %v9367 = verf.f32.pop %v8855
  %v9368 = verf.f32.pop %v8856
  %v9369 = verf.f32.pop %v8857
  %v9370 = verf.f32.pop %v8858
  %v9371 = verf.f32.pop %v8859
  %v9372 = verf.f32.pop %v8860
  %v9373 = verf.f32.pop %v8861
  %v9374 = verf.f32.pop %v8862
  %v9375 = verf.f32.pop %v8863
  %v9376 = verf.f32.pop %v8864
  %v9377 = verf.f32.pop %v8865
  %v9378 = verf.f32.pop %v8866
  %v9379 = verf.f32.pop %v8867
  %v9380 = verf.f32.pop %v8868
  %v9381 = verf.f32.pop %v8869
  %v9382 = verf.f32.pop %v8870
  %v9383 = verf.f32.pop %v8871
  %v9384 = verf.f32.pop %v8872
  %v9385 = verf.f32.pop %v8873
  %v9386 = verf.f32.pop %v8874
  %v9387 = verf.f32.pop %v8875
  %v9388 = verf.f32.pop %v8876
  %v9389 = verf.f32.pop %v8877
  %v9390 = verf.f32.pop %v8878
  %v9391 = verf.f32.pop %v8879
  %v9392 = verf.f32.pop %v8880
  %v9393 = verf.f32.pop %v8881
  %v9394 = verf.f32.pop %v8882
  %v9395 = verf.f32.pop %v8883
  %v9396 = verf.f32.pop %v8884
  %v9397 = verf.f32.pop %v8885
  %v9398 = verf.f32.pop %v8886
  %v9399 = verf.f32.pop %v8887
  %v9400 = verf.f32.pop %v8888
  %v9401 = verf.f32.pop %v8889
  %v9402 = verf.f32.pop %v8890
  %v9403 = verf.f32.pop %v8891
  %v9404 = verf.f32.pop %v8892
  %v9405 = verf.f32.pop %v8893
  %v9406 = verf.f32.pop %v8894
  %v9407 = verf.f32.pop %v8895
  %v9408 = verf.f32.pop %v8896
  %v9409 = verf.f32.pop %v8897
  %v9410 = verf.f32.pop %v8898
  %v9411 = verf.f32.pop %v8899
  %v9412 = verf.f32.pop %v8900
  %v9413 = verf.f32.pop %v8901
  %v9414 = verf.f32.pop %v8902
  %v9415 = verf.f32.pop %v8903
  %v9416 = verf.f32.pop %v8904
  %v9417 = verf.f32.pop %v8905
  %v9418 = verf.f32.pop %v8906
  %v9419 = verf.f32.pop %v8907
  %v9420 = verf.f32.pop %v8908
  %v9421 = verf.f32.pop %v8909
  %v9422 = verf.f32.pop %v8910
  %v9423 = verf.f32.pop %v8911
  %v9424 = verf.f32.pop %v8912
  %v9425 = verf.f32.pop %v8913
  %v9426 = verf.f32.pop %v8914
  %v9427 = verf.f32.pop %v8915
  %v9428 = verf.f32.pop %v8916
  %v9429 = verf.f32.pop %v8917
  %v9430 = verf.f32.pop %v8918
  %v9431 = verf.f32.pop %v8919
  %v9432 = verf.f32.pop %v8920
  %v9433 = verf.f32.pop %v8921
  %v9434 = verf.f32.pop %v8922
  %v9435 = verf.f32.pop %v8923
  %v9436 = verf.f32.pop %v8924
  %v9437 = verf.f32.pop %v8925
  %v9438 = verf.f32.pop %v8926
  %v9439 = verf.f32.pop %v8927
  %v9440 = verf.f32.pop %v8928
  %v9441 = verf.f32.pop %v8929
  %v9442 = verf.f32.pop %v8930
  %v9443 = verf.f32.pop %v8931
  %v9444 = verf.f32.pop %v8932
  %v9445 = verf.f32.pop %v8933
  %v9446 = verf.f32.pop %v8934
  %v9447 = verf.f32.pop %v8935
  %v9448 = verf.f32.pop %v8936
  %v9449 = verf.f32.pop %v8937
  %v9450 = verf.f32.pop %v8938
  %v9451 = verf.f32.pop %v8939
  %v9452 = verf.f32.pop %v8940
  %v9453 = verf.f32.pop %v8941
  %v9454 = verf.f32.pop %v8942
  %v9455 = verf.f32.pop %v8943
  %v9456 = verf.f32.pop %v8944
  %v9457 = verf.f32.pop %v8945
  %v9458 = verf.f32.pop %v8946
  %v9459 = verf.f32.pop %v8947
  %v9460 = verf.f32.pop %v8948
  %v9461 = verf.f32.pop %v8949
  %v9462 = verf.f32.pop %v8950
  %v9463 = verf.f32.pop %v8951
  %v9464 = verf.f32.pop %v8952
  %v9465 = verf.f32.pop %v8953
  %v9466 = verf.f32.pop %v8954
  %v9467 = verf.f32.pop %v8955
  %v9468 = verf.f32.pop %v8956
  %v9469 = verf.f32.pop %v8957
  %v9470 = verf.f32.pop %v8958
  %v9471 = verf.f32.pop %v8959
  %v9472 = verf.f32.pop %v8960
  %v9473 = verf.f32.pop %v8961
  %v9474 = verf.f32.pop %v8962
  %v9475 = verf.f32.pop %v8963
  %v9476 = verf.f32.pop %v8964
  %v9477 = verf.f32.pop %v8965
  %v9478 = verf.f32.pop %v8966
  %v9479 = verf.f32.pop %v8967
  %v9480 = verf.f32.pop %v8968
  %v9481 = verf.f32.pop %v8969
  %v9482 = verf.f32.pop %v8970
  %v9483 = verf.f32.pop %v8971
  %v9484 = verf.f32.pop %v8972
  %v9485 = verf.f32.pop %v8973
  %v9486 = verf.f32.pop %v8974
  %v9487 = verf.f32.pop %v8975
  %v9488 = verf.f32.pop %v8976
  %v9489 = verf.f32.pop %v8977
  %v9490 = verf.f32.pop %v8978
  %v9491 = verf.f32.pop %v8979
  %v9492 = verf.f32.pop %v8980
  %v9493 = verf.f32.pop %v8981
  %v9494 = verf.f32.pop %v8982
  %v9495 = verf.f32.pop %v8983
  %v9496 = verf.f32.pop %v8984
  %v9497 = verf.f32.pop %v8985
  %v9498 = verf.f32.pop %v8986
  %v9499 = verf.f32.pop %v8987
  %v9500 = verf.f32.pop %v8988
  %v9501 = verf.f32.pop %v8989
  %v9502 = verf.f32.pop %v8990
  %v9503 = verf.f32.pop %v8991
  %v9504 = verf.f32.pop %v8992
  %v9505 = verf.f32.pop %v8993
  %v9506 = verf.f32.pop %v8994
  %v9507 = verf.f32.pop %v8995
  %v9508 = verf.f32.pop %v8996
  %v9509 = verf.f32.pop %v8997
  %v9510 = verf.f32.pop %v8998
  %v9511 = verf.f32.pop %v8999
  %v9512 = verf.f32.pop %v9000
  %v9513 = verf.f32.pop %v9001
  %v9514 = verf.f32.pop %v9002
  %v9515 = verf.f32.pop %v9003
  %v9516 = verf.f32.pop %v9004
  %v9517 = verf.f32.pop %v9005
  %v9518 = verf.f32.pop %v9006
  %v9519 = verf.f32.pop %v9007
  %v9520 = verf.f32.pop %v9008
  %v9521 = verf.f32.pop %v9009
  %v9522 = verf.f32.pop %v9010
  %v9523 = verf.f32.pop %v9011
  %v9524 = verf.f32.pop %v9012
  %v9525 = verf.f32.pop %v9013
  %v9526 = verf.f32.pop %v9014
  %v9527 = verf.f32.pop %v9015
  %v9528 = verf.f32.pop %v9016
  %v9529 = verf.f32.pop %v9017
  %v9530 = verf.f32.pop %v9018
  %v9531 = verf.f32.pop %v9019
  %v9532 = verf.f32.pop %v9020
  %v9533 = verf.f32.pop %v9021
  %v9534 = verf.f32.pop %v9022
  %v9535 = verf.f32.pop %v9023
  %v9536 = verf.f32.pop %v9024
  %v9537 = verf.f32.pop %v9025
  %v9538 = verf.f32.pop %v9026
  %v9539 = verf.f32.pop %v9027
  %v9540 = verf.f32.pop %v9028
  %v9541 = verf.f32.pop %v9029
  %v9542 = verf.f32.pop %v9030
  %v9543 = verf.f32.pop %v9031
  %v9544 = verf.f32.pop %v9032
  %v9545 = verf.f32.pop %v9033
  %v9546 = verf.f32.pop %v9034
  %v9547 = verf.f32.pop %v9035
  %v9548 = verf.f32.pop %v9036
  %v9549 = verf.f32.pop %v9037
  %v9550 = verf.f32.pop %v9038
  %v9551 = verf.f32.pop %v9039
  %v9552 = verf.f32.pop %v9040
  %v9553 = verf.f32.pop %v9041
  %v9554 = verf.f32.pop %v9042
  %v9555 = verf.f32.pop %v9043
  %v9556 = verf.f32.pop %v9044
  %v9557 = verf.f32.pop %v9045
  %v9558 = verf.f32.pop %v9046
  %v9559 = verf.f32.pop %v9047
  %v9560 = verf.f32.pop %v9048
  %v9561 = verf.f32.pop %v9049
  %v9562 = verf.f32.pop %v9050
  %v9563 = verf.f32.pop %v9051
  %v9564 = verf.f32.pop %v9052
  %v9565 = verf.f32.pop %v9053
  %v9566 = verf.f32.pop %v9054
  %v9567 = verf.f32.pop %v9055
  %v9568 = verf.f32.pop %v9056
  %v9569 = verf.f32.pop %v9057
  %v9570 = verf.f32.pop %v9058
  %v9571 = verf.f32.pop %v9059
  %v9572 = verf.f32.pop %v9060
  %v9573 = verf.f32.pop %v9061
  %v9574 = verf.f32.pop %v9062
  %v9575 = verf.f32.pop %v9063
  %v9576 = verf.f32.pop %v9064
  %v9577 = verf.f32.pop %v9065
  %v9578 = verf.f32.pop %v9066
  %v9579 = verf.f32.pop %v9067
  %v9580 = verf.f32.pop %v9068
  %v9581 = verf.f32.pop %v9069
  %v9582 = verf.f32.pop %v9070
  %v9583 = verf.f32.pop %v9071
  %v9584 = verf.f32.pop %v9072
  %v9585 = verf.f32.pop %v9073
  %v9586 = verf.f32.pop %v9074
  %v9587 = verf.f32.pop %v9075
  %v9588 = verf.f32.pop %v9076
  %v9589 = verf.f32.pop %v9077
  %v9590 = verf.f32.pop %v9078
  %v9591 = verf.f32.pop %v9079
  %v9592 = verf.f32.pop %v9080
  %v9593 = verf.f32.pop %v9081
  %v9594 = verf.f32.pop %v9082
  %v9595 = verf.f32.pop %v9083
  %v9596 = verf.f32.pop %v9084
  %v9597 = verf.f32.pop %v9085
  %v9598 = verf.f32.pop %v9086
  %v9599 = verf.f32.pop %v9087
  %v9600 = verf.f32.pop %v9088
  %v9601 = verf.f32.pop %v9089
  %v9602 = verf.f32.pop %v9090
  %v9603 = verf.f32.pop %v9091
  %v9604 = verf.f32.pop %v9092
  %v9605 = verf.f32.pop %v9093
  %v9606 = verf.f32.pop %v9094
  %v9607 = verf.f32.pop %v9095
  %v9608 = verf.f32.pop %v9096
  %v9609 = verf.f32.pop %v9097
  %v9610 = verf.f32.pop %v9098
  %v9611 = verf.f32.pop %v9099
  %v9612 = verf.f32.pop %v9100
  %v9613 = verf.f32.pop %v9101
  %v9614 = verf.f32.pop %v9102
  %v9615 = verf.f32.pop %v9103
  %v9616 = verf.f32.pop %v9104
  %v9617 = verf.f32.pop %v9105
  %v9618 = verf.f32.pop %v9106
  %v9619 = verf.f32.pop %v9107
  %v9620 = verf.f32.pop %v9108
  %v9621 = verf.f32.pop %v9109
  %v9622 = verf.f32.pop %v9110
  %v9623 = verf.f32.pop %v9111
  %v9624 = verf.f32.pop %v9112
  %v9625 = verf.f32.pop %v9113
  %v9626 = verf.f32.pop %v9114
  %v9627 = verf.f32.pop %v9115
  %v9628 = verf.f32.pop %v9116
  %v9629 = verf.f32.pop %v9117
  %v9630 = verf.f32.pop %v9118
  %v9631 = verf.f32.pop %v9119
  %v9632 = verf.f32.pop %v9120
  %v9633 = verf.f32.pop %v9121
  %v9634 = verf.f32.pop %v9122
  %v9635 = verf.f32.pop %v9123
  %v9636 = verf.f32.pop %v9124
  %v9637 = verf.f32.pop %v9125
  %v9638 = verf.f32.pop %v9126
  %v9639 = verf.f32.pop %v9127
  %v9640 = verf.f32.pop %v9128
  %v9641 = verf.f32.pop %v9129
  %v9642 = verf.f32.pop %v9130
  %v9643 = verf.f32.pop %v9131
  %v9644 = verf.f32.pop %v9132
  %v9645 = verf.f32.pop %v9133
  %v9646 = verf.f32.pop %v9134
  %v9647 = verf.f32.pop %v9135
  %v9648 = verf.f32.pop %v9136
  %v9649 = verf.f32.pop %v9137
  %v9650 = verf.f32.pop %v9138
  %v9651 = verf.f32.pop %v9139
  %v9652 = verf.f32.pop %v9140
  %v9653 = verf.f32.pop %v9141
  %v9654 = verf.f32.pop %v9142
  %v9655 = verf.f32.pop %v9143
  %v9656 = verf.f32.pop %v9144
  %v9657 = verf.f32.pop %v9145
  %v9658 = verf.f32.pop %v9146
  %v9659 = verf.f32.pop %v9147
  %v9660 = verf.f32.pop %v9148
  %v9661 = verf.f32.pop %v9149
  %v9662 = verf.f32.pop %v9150
  %v9663 = verf.f32.pop %v9151
  %v9664 = verf.f32.pop %v9152
  %v9665 = verf.f32.pop %v9153
  %v9666 = vadd.f32 %v9154, 1.0
  %v9667 = vadd.f32 %v9155, 1.0
  %v9668 = vadd.f32 %v9156, 1.0
  %v9669 = vadd.f32 %v9157, 1.0
  %v9670 = vadd.f32 %v9158, 1.0
  %v9671 = vadd.f32 %v9159, 1.0
  %v9672 = vadd.f32 %v9160, 1.0
  %v9673 = vadd.f32 %v9161, 1.0
  %v9674 = vadd.f32 %v9162, 1.0
  %v9675 = vadd.f32 %v9163, 1.0
  %v9676 = vadd.f32 %v9164, 1.0
  %v9677 = vadd.f32 %v9165, 1.0
  %v9678 = vadd.f32 %v9166, 1.0
  %v9679 = vadd.f32 %v9167, 1.0
  %v9680 = vadd.f32 %v9168, 1.0
  %v9681 = vadd.f32 %v9169, 1.0
  %v9682 = vadd.f32 %v9170, 1.0
  %v9683 = vadd.f32 %v9171, 1.0
  %v9684 = vadd.f32 %v9172, 1.0
  %v9685 = vadd.f32 %v9173, 1.0
  %v9686 = vadd.f32 %v9174, 1.0
  %v9687 = vadd.f32 %v9175, 1.0
  %v9688 = vadd.f32 %v9176, 1.0
  %v9689 = vadd.f32 %v9177, 1.0
  %v9690 = vadd.f32 %v9178, 1.0
  %v9691 = vadd.f32 %v9179, 1.0
  %v9692 = vadd.f32 %v9180, 1.0
  %v9693 = vadd.f32 %v9181, 1.0
  %v9694 = vadd.f32 %v9182, 1.0
  %v9695 = vadd.f32 %v9183, 1.0
  %v9696 = vadd.f32 %v9184, 1.0
  %v9697 = vadd.f32 %v9185, 1.0
  %v9698 = vadd.f32 %v9186, 1.0
  %v9699 = vadd.f32 %v9187, 1.0
  %v9700 = vadd.f32 %v9188, 1.0
  %v9701 = vadd.f32 %v9189, 1.0
  %v9702 = vadd.f32 %v9190, 1.0
  %v9703 = vadd.f32 %v9191, 1.0
  %v9704 = vadd.f32 %v9192, 1.0
  %v9705 = vadd.f32 %v9193, 1.0
  %v9706 = vadd.f32 %v9194, 1.0
  %v9707 = vadd.f32 %v9195, 1.0
  %v9708 = vadd.f32 %v9196, 1.0
  %v9709 = vadd.f32 %v9197, 1.0
  %v9710 = vadd.f32 %v9198, 1.0
  %v9711 = vadd.f32 %v9199, 1.0
  %v9712 = vadd.f32 %v9200, 1.0
  %v9713 = vadd.f32 %v9201, 1.0
  %v9714 = vadd.f32 %v9202, 1.0
  %v9715 = vadd.f32 %v9203, 1.0
  %v9716 = vadd.f32 %v9204, 1.0
  %v9717 = vadd.f32 %v9205, 1.0
  %v9718 = vadd.f32 %v9206, 1.0
  %v9719 = vadd.f32 %v9207, 1.0
  %v9720 = vadd.f32 %v9208, 1.0
  %v9721 = vadd.f32 %v9209, 1.0
  %v9722 = vadd.f32 %v9210, 1.0
  %v9723 = vadd.f32 %v9211, 1.0
  %v9724 = vadd.f32 %v9212, 1.0
  %v9725 = vadd.f32 %v9213, 1.0
  %v9726 = vadd.f32 %v9214, 1.0
  %v9727 = vadd.f32 %v9215, 1.0
  %v9728 = vadd.f32 %v9216, 1.0
  %v9729 = vadd.f32 %v9217, 1.0
  %v9730 = vadd.f32 %v9218, 1.0
  %v9731 = vadd.f32 %v9219, 1.0
  %v9732 = vadd.f32 %v9220, 1.0
  %v9733 = vadd.f32 %v9221, 1.0
  %v9734 = vadd.f32 %v9222, 1.0
  %v9735 = vadd.f32 %v9223, 1.0
  %v9736 = vadd.f32 %v9224, 1.0
  %v9737 = vadd.f32 %v9225, 1.0
  %v9738 = vadd.f32 %v9226, 1.0
  %v9739 = vadd.f32 %v9227, 1.0
  %v9740 = vadd.f32 %v9228, 1.0
  %v9741 = vadd.f32 %v9229, 1.0
  %v9742 = vadd.f32 %v9230, 1.0
  %v9743 = vadd.f32 %v9231, 1.0
  %v9744 = vadd.f32 %v9232, 1.0
  %v9745 = vadd.f32 %v9233, 1.0
  %v9746 = vadd.f32 %v9234, 1.0
  %v9747 = vadd.f32 %v9235, 1.0
  %v9748 = vadd.f32 %v9236, 1.0
  %v9749 = vadd.f32 %v9237, 1.0
  %v9750 = vadd.f32 %v9238, 1.0
  %v9751 = vadd.f32 %v9239, 1.0
  %v9752 = vadd.f32 %v9240, 1.0
  %v9753 = vadd.f32 %v9241, 1.0
  %v9754 = vadd.f32 %v9242, 1.0
  %v9755 = vadd.f32 %v9243, 1.0
  %v9756 = vadd.f32 %v9244, 1.0
  %v9757 = vadd.f32 %v9245, 1.0
  %v9758 = vadd.f32 %v9246, 1.0
  %v9759 = vadd.f32 %v9247, 1.0
  %v9760 = vadd.f32 %v9248, 1.0
  %v9761 = vadd.f32 %v9249, 1.0
  %v9762 = vadd.f32 %v9250, 1.0
  %v9763 = vadd.f32 %v9251, 1.0
  %v9764 = vadd.f32 %v9252, 1.0
  %v9765 = vadd.f32 %v9253, 1.0
  %v9766 = vadd.f32 %v9254, 1.0
  %v9767 = vadd.f32 %v9255, 1.0
  %v9768 = vadd.f32 %v9256, 1.0
  %v9769 = vadd.f32 %v9257, 1.0
  %v9770 = vadd.f32 %v9258, 1.0
  %v9771 = vadd.f32 %v9259, 1.0
  %v9772 = vadd.f32 %v9260, 1.0
  %v9773 = vadd.f32 %v9261, 1.0
  %v9774 = vadd.f32 %v9262, 1.0
  %v9775 = vadd.f32 %v9263, 1.0
  %v9776 = vadd.f32 %v9264, 1.0
  %v9777 = vadd.f32 %v9265, 1.0
  %v9778 = vadd.f32 %v9266, 1.0
  %v9779 = vadd.f32 %v9267, 1.0
  %v9780 = vadd.f32 %v9268, 1.0
  %v9781 = vadd.f32 %v9269, 1.0
  %v9782 = vadd.f32 %v9270, 1.0
  %v9783 = vadd.f32 %v9271, 1.0
  %v9784 = vadd.f32 %v9272, 1.0
  %v9785 = vadd.f32 %v9273, 1.0
  %v9786 = vadd.f32 %v9274, 1.0
  %v9787 = vadd.f32 %v9275, 1.0
  %v9788 = vadd.f32 %v9276, 1.0
  %v9789 = vadd.f32 %v9277, 1.0
  %v9790 = vadd.f32 %v9278, 1.0
  %v9791 = vadd.f32 %v9279, 1.0
  %v9792 = vadd.f32 %v9280, 1.0
  %v9793 = vadd.f32 %v9281, 1.0
  %v9794 = vadd.f32 %v9282, 1.0
  %v9795 = vadd.f32 %v9283, 1.0
  %v9796 = vadd.f32 %v9284, 1.0
  %v9797 = vadd.f32 %v9285, 1.0
  %v9798 = vadd.f32 %v9286, 1.0
  %v9799 = vadd.f32 %v9287, 1.0
  %v9800 = vadd.f32 %v9288, 1.0
  %v9801 = vadd.f32 %v9289, 1.0
  %v9802 = vadd.f32 %v9290, 1.0
  %v9803 = vadd.f32 %v9291, 1.0
  %v9804 = vadd.f32 %v9292, 1.0
  %v9805 = vadd.f32 %v9293, 1.0
  %v9806 = vadd.f32 %v9294, 1.0
  %v9807 = vadd.f32 %v9295, 1.0
  %v9808 = vadd.f32 %v9296, 1.0
  %v9809 = vadd.f32 %v9297, 1.0
  %v9810 = vadd.f32 %v9298, 1.0
  %v9811 = vadd.f32 %v9299, 1.0
  %v9812 = vadd.f32 %v9300, 1.0
  %v9813 = vadd.f32 %v9301, 1.0
  %v9814 = vadd.f32 %v9302, 1.0
  %v9815 = vadd.f32 %v9303, 1.0
  %v9816 = vadd.f32 %v9304, 1.0
  %v9817 = vadd.f32 %v9305, 1.0
  %v9818 = vadd.f32 %v9306, 1.0
  %v9819 = vadd.f32 %v9307, 1.0
  %v9820 = vadd.f32 %v9308, 1.0
  %v9821 = vadd.f32 %v9309, 1.0
  %v9822 = vadd.f32 %v9310, 1.0
  %v9823 = vadd.f32 %v9311, 1.0
  %v9824 = vadd.f32 %v9312, 1.0
  %v9825 = vadd.f32 %v9313, 1.0
  %v9826 = vadd.f32 %v9314, 1.0
  %v9827 = vadd.f32 %v9315, 1.0
  %v9828 = vadd.f32 %v9316, 1.0
  %v9829 = vadd.f32 %v9317, 1.0
  %v9830 = vadd.f32 %v9318, 1.0
  %v9831 = vadd.f32 %v9319, 1.0
  %v9832 = vadd.f32 %v9320, 1.0
  %v9833 = vadd.f32 %v9321, 1.0
  %v9834 = vadd.f32 %v9322, 1.0
  %v9835 = vadd.f32 %v9323, 1.0
  %v9836 = vadd.f32 %v9324, 1.0
  %v9837 = vadd.f32 %v9325, 1.0
  %v9838 = vadd.f32 %v9326, 1.0
  %v9839 = vadd.f32 %v9327, 1.0
  %v9840 = vadd.f32 %v9328, 1.0
  %v9841 = vadd.f32 %v9329, 1.0
  %v9842 = vadd.f32 %v9330, 1.0
  %v9843 = vadd.f32 %v9331, 1.0
  %v9844 = vadd.f32 %v9332, 1.0
  %v9845 = vadd.f32 %v9333, 1.0
  %v9846 = vadd.f32 %v9334, 1.0
  %v9847 = vadd.f32 %v9335, 1.0
  %v9848 = vadd.f32 %v9336, 1.0
  %v9849 = vadd.f32 %v9337, 1.0
  %v9850 = vadd.f32 %v9338, 1.0
  %v9851 = vadd.f32 %v9339, 1.0
  %v9852 = vadd.f32 %v9340, 1.0
  %v9853 = vadd.f32 %v9341, 1.0
  %v9854 = vadd.f32 %v9342, 1.0
  %v9855 = vadd.f32 %v9343, 1.0
  %v9856 = vadd.f32 %v9344, 1.0
  %v9857 = vadd.f32 %v9345, 1.0
  %v9858 = vadd.f32 %v9346, 1.0
  %v9859 = vadd.f32 %v9347, 1.0
  %v9860 = vadd.f32 %v9348, 1.0
  %v9861 = vadd.f32 %v9349, 1.0
  %v9862 = vadd.f32 %v9350, 1.0
  %v9863 = vadd.f32 %v9351, 1.0
  %v9864 = vadd.f32 %v9352, 1.0
  %v9865 = vadd.f32 %v9353, 1.0
  %v9866 = vadd.f32 %v9354, 1.0
  %v9867 = vadd.f32 %v9355, 1.0
  %v9868 = vadd.f32 %v9356, 1.0
  %v9869 = vadd.f32 %v9357, 1.0
  %v9870 = vadd.f32 %v9358, 1.0
  %v9871 = vadd.f32 %v9359, 1.0
  %v9872 = vadd.f32 %v9360, 1.0
  %v9873 = vadd.f32 %v9361, 1.0
  %v9874 = vadd.f32 %v9362, 1.0
  %v9875 = vadd.f32 %v9363, 1.0
  %v9876 = vadd.f32 %v9364, 1.0
  %v9877 = vadd.f32 %v9365, 1.0
  %v9878 = vadd.f32 %v9366, 1.0
  %v9879 = vadd.f32 %v9367, 1.0
  %v9880 = vadd.f32 %v9368, 1.0
  %v9881 = vadd.f32 %v9369, 1.0
  %v9882 = vadd.f32 %v9370, 1.0
  %v9883 = vadd.f32 %v9371, 1.0
  %v9884 = vadd.f32 %v9372, 1.0
  %v9885 = vadd.f32 %v9373, 1.0
  %v9886 = vadd.f32 %v9374, 1.0
  %v9887 = vadd.f32 %v9375, 1.0
  %v9888 = vadd.f32 %v9376, 1.0
  %v9889 = vadd.f32 %v9377, 1.0
  %v9890 = vadd.f32 %v9378, 1.0
  %v9891 = vadd.f32 %v9379, 1.0
  %v9892 = vadd.f32 %v9380, 1.0
  %v9893 = vadd.f32 %v9381, 1.0
  %v9894 = vadd.f32 %v9382, 1.0
  %v9895 = vadd.f32 %v9383, 1.0
  %v9896 = vadd.f32 %v9384, 1.0
  %v9897 = vadd.f32 %v9385, 1.0
  %v9898 = vadd.f32 %v9386, 1.0
  %v9899 = vadd.f32 %v9387, 1.0
  %v9900 = vadd.f32 %v9388, 1.0
  %v9901 = vadd.f32 %v9389, 1.0
  %v9902 = vadd.f32 %v9390, 1.0
  %v9903 = vadd.f32 %v9391, 1.0
  %v9904 = vadd.f32 %v9392, 1.0
  %v9905 = vadd.f32 %v9393, 1.0
  %v9906 = vadd.f32 %v9394, 1.0
  %v9907 = vadd.f32 %v9395, 1.0
  %v9908 = vadd.f32 %v9396, 1.0
  %v9909 = vadd.f32 %v9397, 1.0
  %v9910 = vadd.f32 %v9398, 1.0
  %v9911 = vadd.f32 %v9399, 1.0
  %v9912 = vadd.f32 %v9400, 1.0
  %v9913 = vadd.f32 %v9401, 1.0
  %v9914 = vadd.f32 %v9402, 1.0
  %v9915 = vadd.f32 %v9403, 1.0
  %v9916 = vadd.f32 %v9404, 1.0
  %v9917 = vadd.f32 %v9405, 1.0
  %v9918 = vadd.f32 %v9406, 1.0
  %v9919 = vadd.f32 %v9407, 1.0
  %v9920 = vadd.f32 %v9408, 1.0
  %v9921 = vadd.f32 %v9409, 1.0
  %v9922 = vadd.f32 %v9410, 1.0
  %v9923 = vadd.f32 %v9411, 1.0
  %v9924 = vadd.f32 %v9412, 1.0
  %v9925 = vadd.f32 %v9413, 1.0
  %v9926 = vadd.f32 %v9414, 1.0
  %v9927 = vadd.f32 %v9415, 1.0
  %v9928 = vadd.f32 %v9416, 1.0
  %v9929 = vadd.f32 %v9417, 1.0
  %v9930 = vadd.f32 %v9418, 1.0
  %v9931 = vadd.f32 %v9419, 1.0
  %v9932 = vadd.f32 %v9420, 1.0
  %v9933 = vadd.f32 %v9421, 1.0
  %v9934 = vadd.f32 %v9422, 1.0
  %v9935 = vadd.f32 %v9423, 1.0
  %v9936 = vadd.f32 %v9424, 1.0
  %v9937 = vadd.f32 %v9425, 1.0
  %v9938 = vadd.f32 %v9426, 1.0
  %v9939 = vadd.f32 %v9427, 1.0
  %v9940 = vadd.f32 %v9428, 1.0
  %v9941 = vadd.f32 %v9429, 1.0
  %v9942 = vadd.f32 %v9430, 1.0
  %v9943 = vadd.f32 %v9431, 1.0
  %v9944 = vadd.f32 %v9432, 1.0
  %v9945 = vadd.f32 %v9433, 1.0
  %v9946 = vadd.f32 %v9434, 1.0
  %v9947 = vadd.f32 %v9435, 1.0
  %v9948 = vadd.f32 %v9436, 1.0
  %v9949 = vadd.f32 %v9437, 1.0
  %v9950 = vadd.f32 %v9438, 1.0
  %v9951 = vadd.f32 %v9439, 1.0
  %v9952 = vadd.f32 %v9440, 1.0
  %v9953 = vadd.f32 %v9441, 1.0
  %v9954 = vadd.f32 %v9442, 1.0
  %v9955 = vadd.f32 %v9443, 1.0
  %v9956 = vadd.f32 %v9444, 1.0
  %v9957 = vadd.f32 %v9445, 1.0
  %v9958 = vadd.f32 %v9446, 1.0
  %v9959 = vadd.f32 %v9447, 1.0
  %v9960 = vadd.f32 %v9448, 1.0
  %v9961 = vadd.f32 %v9449, 1.0
  %v9962 = vadd.f32 %v9450, 1.0
  %v9963 = vadd.f32 %v9451, 1.0
  %v9964 = vadd.f32 %v9452, 1.0
  %v9965 = vadd.f32 %v9453, 1.0
  %v9966 = vadd.f32 %v9454, 1.0
  %v9967 = vadd.f32 %v9455, 1.0
  %v9968 = vadd.f32 %v9456, 1.0
  %v9969 = vadd.f32 %v9457, 1.0
  %v9970 = vadd.f32 %v9458, 1.0
  %v9971 = vadd.f32 %v9459, 1.0
  %v9972 = vadd.f32 %v9460, 1.0
  %v9973 = vadd.f32 %v9461, 1.0
  %v9974 = vadd.f32 %v9462, 1.0
  %v9975 = vadd.f32 %v9463, 1.0
  %v9976 = vadd.f32 %v9464, 1.0
  %v9977 = vadd.f32 %v9465, 1.0
  %v9978 = vadd.f32 %v9466, 1.0
  %v9979 = vadd.f32 %v9467, 1.0
  %v9980 = vadd.f32 %v9468, 1.0
  %v9981 = vadd.f32 %v9469, 1.0
  %v9982 = vadd.f32 %v9470, 1.0
  %v9983 = vadd.f32 %v9471, 1.0
  %v9984 = vadd.f32 %v9472, 1.0
  %v9985 = vadd.f32 %v9473, 1.0
  %v9986 = vadd.f32 %v9474, 1.0
  %v9987 = vadd.f32 %v9475, 1.0
  %v9988 = vadd.f32 %v9476, 1.0
  %v9989 = vadd.f32 %v9477, 1.0
  %v9990 = vadd.f32 %v9478, 1.0
  %v9991 = vadd.f32 %v9479, 1.0
  %v9992 = vadd.f32 %v9480, 1.0
  %v9993 = vadd.f32 %v9481, 1.0
  %v9994 = vadd.f32 %v9482, 1.0
  %v9995 = vadd.f32 %v9483, 1.0
  %v9996 = vadd.f32 %v9484, 1.0
  %v9997 = vadd.f32 %v9485, 1.0
  %v9998 = vadd.f32 %v9486, 1.0
  %v9999 = vadd.f32 %v9487, 1.0
  %v10000 = vadd.f32 %v9488, 1.0
  %v10001 = vadd.f32 %v9489, 1.0
  %v10002 = vadd.f32 %v9490, 1.0
  %v10003 = vadd.f32 %v9491, 1.0
  %v10004 = vadd.f32 %v9492, 1.0
  %v10005 = vadd.f32 %v9493, 1.0
  %v10006 = vadd.f32 %v9494, 1.0
  %v10007 = vadd.f32 %v9495, 1.0
  %v10008 = vadd.f32 %v9496, 1.0
  %v10009 = vadd.f32 %v9497, 1.0
  %v10010 = vadd.f32 %v9498, 1.0
  %v10011 = vadd.f32 %v9499, 1.0
  %v10012 = vadd.f32 %v9500, 1.0
  %v10013 = vadd.f32 %v9501, 1.0
  %v10014 = vadd.f32 %v9502, 1.0
  %v10015 = vadd.f32 %v9503, 1.0
  %v10016 = vadd.f32 %v9504, 1.0
  %v10017 = vadd.f32 %v9505, 1.0
  %v10018 = vadd.f32 %v9506, 1.0
  %v10019 = vadd.f32 %v9507, 1.0
  %v10020 = vadd.f32 %v9508, 1.0
  %v10021 = vadd.f32 %v9509, 1.0
  %v10022 = vadd.f32 %v9510, 1.0
  %v10023 = vadd.f32 %v9511, 1.0
  %v10024 = vadd.f32 %v9512, 1.0
  %v10025 = vadd.f32 %v9513, 1.0
  %v10026 = vadd.f32 %v9514, 1.0
  %v10027 = vadd.f32 %v9515, 1.0
  %v10028 = vadd.f32 %v9516, 1.0
  %v10029 = vadd.f32 %v9517, 1.0
  %v10030 = vadd.f32 %v9518, 1.0
  %v10031 = vadd.f32 %v9519, 1.0
  %v10032 = vadd.f32 %v9520, 1.0
  %v10033 = vadd.f32 %v9521, 1.0
  %v10034 = vadd.f32 %v9522, 1.0
  %v10035 = vadd.f32 %v9523, 1.0
  %v10036 = vadd.f32 %v9524, 1.0
  %v10037 = vadd.f32 %v9525, 1.0
  %v10038 = vadd.f32 %v9526, 1.0
  %v10039 = vadd.f32 %v9527, 1.0
  %v10040 = vadd.f32 %v9528, 1.0
  %v10041 = vadd.f32 %v9529, 1.0
  %v10042 = vadd.f32 %v9530, 1.0
  %v10043 = vadd.f32 %v9531, 1.0
  %v10044 = vadd.f32 %v9532, 1.0
  %v10045 = vadd.f32 %v9533, 1.0
  %v10046 = vadd.f32 %v9534, 1.0
  %v10047 = vadd.f32 %v9535, 1.0
  %v10048 = vadd.f32 %v9536, 1.0
  %v10049 = vadd.f32 %v9537, 1.0
  %v10050 = vadd.f32 %v9538, 1.0
  %v10051 = vadd.f32 %v9539, 1.0
  %v10052 = vadd.f32 %v9540, 1.0
  %v10053 = vadd.f32 %v9541, 1.0
  %v10054 = vadd.f32 %v9542, 1.0
  %v10055 = vadd.f32 %v9543, 1.0
  %v10056 = vadd.f32 %v9544, 1.0
  %v10057 = vadd.f32 %v9545, 1.0
  %v10058 = vadd.f32 %v9546, 1.0
  %v10059 = vadd.f32 %v9547, 1.0
  %v10060 = vadd.f32 %v9548, 1.0
  %v10061 = vadd.f32 %v9549, 1.0
  %v10062 = vadd.f32 %v9550, 1.0
  %v10063 = vadd.f32 %v9551, 1.0
  %v10064 = vadd.f32 %v9552, 1.0
  %v10065 = vadd.f32 %v9553, 1.0
  %v10066 = vadd.f32 %v9554, 1.0
  %v10067 = vadd.f32 %v9555, 1.0
  %v10068 = vadd.f32 %v9556, 1.0
  %v10069 = vadd.f32 %v9557, 1.0
  %v10070 = vadd.f32 %v9558, 1.0
  %v10071 = vadd.f32 %v9559, 1.0
  %v10072 = vadd.f32 %v9560, 1.0
  %v10073 = vadd.f32 %v9561, 1.0
  %v10074 = vadd.f32 %v9562, 1.0
  %v10075 = vadd.f32 %v9563, 1.0
  %v10076 = vadd.f32 %v9564, 1.0
  %v10077 = vadd.f32 %v9565, 1.0
  %v10078 = vadd.f32 %v9566, 1.0
  %v10079 = vadd.f32 %v9567, 1.0
  %v10080 = vadd.f32 %v9568, 1.0
  %v10081 = vadd.f32 %v9569, 1.0
  %v10082 = vadd.f32 %v9570, 1.0
  %v10083 = vadd.f32 %v9571, 1.0
  %v10084 = vadd.f32 %v9572, 1.0
  %v10085 = vadd.f32 %v9573, 1.0
  %v10086 = vadd.f32 %v9574, 1.0
  %v10087 = vadd.f32 %v9575, 1.0
  %v10088 = vadd.f32 %v9576, 1.0
  %v10089 = vadd.f32 %v9577, 1.0
  %v10090 = vadd.f32 %v9578, 1.0
  %v10091 = vadd.f32 %v9579, 1.0
  %v10092 = vadd.f32 %v9580, 1.0
  %v10093 = vadd.f32 %v9581, 1.0
  %v10094 = vadd.f32 %v9582, 1.0
  %v10095 = vadd.f32 %v9583, 1.0
  %v10096 = vadd.f32 %v9584, 1.0
  %v10097 = vadd.f32 %v9585, 1.0
  %v10098 = vadd.f32 %v9586, 1.0
  %v10099 = vadd.f32 %v9587, 1.0
  %v10100 = vadd.f32 %v9588, 1.0
  %v10101 = vadd.f32 %v9589, 1.0
  %v10102 = vadd.f32 %v9590, 1.0
  %v10103 = vadd.f32 %v9591, 1.0
  %v10104 = vadd.f32 %v9592, 1.0
  %v10105 = vadd.f32 %v9593, 1.0
  %v10106 = vadd.f32 %v9594, 1.0
  %v10107 = vadd.f32 %v9595, 1.0
  %v10108 = vadd.f32 %v9596, 1.0
  %v10109 = vadd.f32 %v9597, 1.0
  %v10110 = vadd.f32 %v9598, 1.0
  %v10111 = vadd.f32 %v9599, 1.0
  %v10112 = vadd.f32 %v9600, 1.0
  %v10113 = vadd.f32 %v9601, 1.0
  %v10114 = vadd.f32 %v9602, 1.0
  %v10115 = vadd.f32 %v9603, 1.0
  %v10116 = vadd.f32 %v9604, 1.0
  %v10117 = vadd.f32 %v9605, 1.0
  %v10118 = vadd.f32 %v9606, 1.0
  %v10119 = vadd.f32 %v9607, 1.0
  %v10120 = vadd.f32 %v9608, 1.0
  %v10121 = vadd.f32 %v9609, 1.0
  %v10122 = vadd.f32 %v9610, 1.0
  %v10123 = vadd.f32 %v9611, 1.0
  %v10124 = vadd.f32 %v9612, 1.0
  %v10125 = vadd.f32 %v9613, 1.0
  %v10126 = vadd.f32 %v9614, 1.0
  %v10127 = vadd.f32 %v9615, 1.0
  %v10128 = vadd.f32 %v9616, 1.0
  %v10129 = vadd.f32 %v9617, 1.0
  %v10130 = vadd.f32 %v9618, 1.0
  %v10131 = vadd.f32 %v9619, 1.0
  %v10132 = vadd.f32 %v9620, 1.0
  %v10133 = vadd.f32 %v9621, 1.0
  %v10134 = vadd.f32 %v9622, 1.0
  %v10135 = vadd.f32 %v9623, 1.0
  %v10136 = vadd.f32 %v9624, 1.0
  %v10137 = vadd.f32 %v9625, 1.0
  %v10138 = vadd.f32 %v9626, 1.0
  %v10139 = vadd.f32 %v9627, 1.0
  %v10140 = vadd.f32 %v9628, 1.0
  %v10141 = vadd.f32 %v9629, 1.0
  %v10142 = vadd.f32 %v9630, 1.0
  %v10143 = vadd.f32 %v9631, 1.0
  %v10144 = vadd.f32 %v9632, 1.0
  %v10145 = vadd.f32 %v9633, 1.0
  %v10146 = vadd.f32 %v9634, 1.0
  %v10147 = vadd.f32 %v9635, 1.0
  %v10148 = vadd.f32 %v9636, 1.0
  %v10149 = vadd.f32 %v9637, 1.0
  %v10150 = vadd.f32 %v9638, 1.0
  %v10151 = vadd.f32 %v9639, 1.0
  %v10152 = vadd.f32 %v9640, 1.0
  %v10153 = vadd.f32 %v9641, 1.0
  %v10154 = vadd.f32 %v9642, 1.0
  %v10155 = vadd.f32 %v9643, 1.0
  %v10156 = vadd.f32 %v9644, 1.0
  %v10157 = vadd.f32 %v9645, 1.0
  %v10158 = vadd.f32 %v9646, 1.0
  %v10159 = vadd.f32 %v9647, 1.0
  %v10160 = vadd.f32 %v9648, 1.0
  %v10161 = vadd.f32 %v9649, 1.0
  %v10162 = vadd.f32 %v9650, 1.0
  %v10163 = vadd.f32 %v9651, 1.0
  %v10164 = vadd.f32 %v9652, 1.0
  %v10165 = vadd.f32 %v9653, 1.0
  %v10166 = vadd.f32 %v9654, 1.0
  %v10167 = vadd.f32 %v9655, 1.0
  %v10168 = vadd.f32 %v9656, 1.0
  %v10169 = vadd.f32 %v9657, 1.0
  %v10170 = vadd.f32 %v9658, 1.0
  %v10171 = vadd.f32 %v9659, 1.0
  %v10172 = vadd.f32 %v9660, 1.0
  %v10173 = vadd.f32 %v9661, 1.0
  %v10174 = vadd.f32 %v9662, 1.0
  %v10175 = vadd.f32 %v9663, 1.0
  %v10176 = vadd.f32 %v9664, 1.0
  %v10177 = vadd.f32 %v9665, 1.0
  %v10178 = vmul.f32 %v8130, %v9666
  %v10179 = vmul.f32 %v8131, %v9667
  %v10180 = vmul.f32 %v8132, %v9668
  %v10181 = vmul.f32 %v8133, %v9669
  %v10182 = vmul.f32 %v8134, %v9670
  %v10183 = vmul.f32 %v8135, %v9671
  %v10184 = vmul.f32 %v8136, %v9672
  %v10185 = vmul.f32 %v8137, %v9673
  %v10186 = vmul.f32 %v8138, %v9674
  %v10187 = vmul.f32 %v8139, %v9675
  %v10188 = vmul.f32 %v8140, %v9676
  %v10189 = vmul.f32 %v8141, %v9677
  %v10190 = vmul.f32 %v8142, %v9678
  %v10191 = vmul.f32 %v8143, %v9679
  %v10192 = vmul.f32 %v8144, %v9680
  %v10193 = vmul.f32 %v8145, %v9681
  %v10194 = vmul.f32 %v8146, %v9682
  %v10195 = vmul.f32 %v8147, %v9683
  %v10196 = vmul.f32 %v8148, %v9684
  %v10197 = vmul.f32 %v8149, %v9685
  %v10198 = vmul.f32 %v8150, %v9686
  %v10199 = vmul.f32 %v8151, %v9687
  %v10200 = vmul.f32 %v8152, %v9688
  %v10201 = vmul.f32 %v8153, %v9689
  %v10202 = vmul.f32 %v8154, %v9690
  %v10203 = vmul.f32 %v8155, %v9691
  %v10204 = vmul.f32 %v8156, %v9692
  %v10205 = vmul.f32 %v8157, %v9693
  %v10206 = vmul.f32 %v8158, %v9694
  %v10207 = vmul.f32 %v8159, %v9695
  %v10208 = vmul.f32 %v8160, %v9696
  %v10209 = vmul.f32 %v8161, %v9697
  %v10210 = vmul.f32 %v8162, %v9698
  %v10211 = vmul.f32 %v8163, %v9699
  %v10212 = vmul.f32 %v8164, %v9700
  %v10213 = vmul.f32 %v8165, %v9701
  %v10214 = vmul.f32 %v8166, %v9702
  %v10215 = vmul.f32 %v8167, %v9703
  %v10216 = vmul.f32 %v8168, %v9704
  %v10217 = vmul.f32 %v8169, %v9705
  %v10218 = vmul.f32 %v8170, %v9706
  %v10219 = vmul.f32 %v8171, %v9707
  %v10220 = vmul.f32 %v8172, %v9708
  %v10221 = vmul.f32 %v8173, %v9709
  %v10222 = vmul.f32 %v8174, %v9710
  %v10223 = vmul.f32 %v8175, %v9711
  %v10224 = vmul.f32 %v8176, %v9712
  %v10225 = vmul.f32 %v8177, %v9713
  %v10226 = vmul.f32 %v8178, %v9714
  %v10227 = vmul.f32 %v8179, %v9715
  %v10228 = vmul.f32 %v8180, %v9716
  %v10229 = vmul.f32 %v8181, %v9717
  %v10230 = vmul.f32 %v8182, %v9718
  %v10231 = vmul.f32 %v8183, %v9719
  %v10232 = vmul.f32 %v8184, %v9720
  %v10233 = vmul.f32 %v8185, %v9721
  %v10234 = vmul.f32 %v8186, %v9722
  %v10235 = vmul.f32 %v8187, %v9723
  %v10236 = vmul.f32 %v8188, %v9724
  %v10237 = vmul.f32 %v8189, %v9725
  %v10238 = vmul.f32 %v8190, %v9726
  %v10239 = vmul.f32 %v8191, %v9727
  %v10240 = vmul.f32 %v8192, %v9728
  %v10241 = vmul.f32 %v8193, %v9729
  %v10242 = vmul.f32 %v8194, %v9730
  %v10243 = vmul.f32 %v8195, %v9731
  %v10244 = vmul.f32 %v8196, %v9732
  %v10245 = vmul.f32 %v8197, %v9733
  %v10246 = vmul.f32 %v8198, %v9734
  %v10247 = vmul.f32 %v8199, %v9735
  %v10248 = vmul.f32 %v8200, %v9736
  %v10249 = vmul.f32 %v8201, %v9737
  %v10250 = vmul.f32 %v8202, %v9738
  %v10251 = vmul.f32 %v8203, %v9739
  %v10252 = vmul.f32 %v8204, %v9740
  %v10253 = vmul.f32 %v8205, %v9741
  %v10254 = vmul.f32 %v8206, %v9742
  %v10255 = vmul.f32 %v8207, %v9743
  %v10256 = vmul.f32 %v8208, %v9744
  %v10257 = vmul.f32 %v8209, %v9745
  %v10258 = vmul.f32 %v8210, %v9746
  %v10259 = vmul.f32 %v8211, %v9747
  %v10260 = vmul.f32 %v8212, %v9748
  %v10261 = vmul.f32 %v8213, %v9749
  %v10262 = vmul.f32 %v8214, %v9750
  %v10263 = vmul.f32 %v8215, %v9751
  %v10264 = vmul.f32 %v8216, %v9752
  %v10265 = vmul.f32 %v8217, %v9753
  %v10266 = vmul.f32 %v8218, %v9754
  %v10267 = vmul.f32 %v8219, %v9755
  %v10268 = vmul.f32 %v8220, %v9756
  %v10269 = vmul.f32 %v8221, %v9757
  %v10270 = vmul.f32 %v8222, %v9758
  %v10271 = vmul.f32 %v8223, %v9759
  %v10272 = vmul.f32 %v8224, %v9760
  %v10273 = vmul.f32 %v8225, %v9761
  %v10274 = vmul.f32 %v8226, %v9762
  %v10275 = vmul.f32 %v8227, %v9763
  %v10276 = vmul.f32 %v8228, %v9764
  %v10277 = vmul.f32 %v8229, %v9765
  %v10278 = vmul.f32 %v8230, %v9766
  %v10279 = vmul.f32 %v8231, %v9767
  %v10280 = vmul.f32 %v8232, %v9768
  %v10281 = vmul.f32 %v8233, %v9769
  %v10282 = vmul.f32 %v8234, %v9770
  %v10283 = vmul.f32 %v8235, %v9771
  %v10284 = vmul.f32 %v8236, %v9772
  %v10285 = vmul.f32 %v8237, %v9773
  %v10286 = vmul.f32 %v8238, %v9774
  %v10287 = vmul.f32 %v8239, %v9775
  %v10288 = vmul.f32 %v8240, %v9776
  %v10289 = vmul.f32 %v8241, %v9777
  %v10290 = vmul.f32 %v8242, %v9778
  %v10291 = vmul.f32 %v8243, %v9779
  %v10292 = vmul.f32 %v8244, %v9780
  %v10293 = vmul.f32 %v8245, %v9781
  %v10294 = vmul.f32 %v8246, %v9782
  %v10295 = vmul.f32 %v8247, %v9783
  %v10296 = vmul.f32 %v8248, %v9784
  %v10297 = vmul.f32 %v8249, %v9785
  %v10298 = vmul.f32 %v8250, %v9786
  %v10299 = vmul.f32 %v8251, %v9787
  %v10300 = vmul.f32 %v8252, %v9788
  %v10301 = vmul.f32 %v8253, %v9789
  %v10302 = vmul.f32 %v8254, %v9790
  %v10303 = vmul.f32 %v8255, %v9791
  %v10304 = vmul.f32 %v8256, %v9792
  %v10305 = vmul.f32 %v8257, %v9793
  %v10306 = vmul.f32 %v8258, %v9794
  %v10307 = vmul.f32 %v8259, %v9795
  %v10308 = vmul.f32 %v8260, %v9796
  %v10309 = vmul.f32 %v8261, %v9797
  %v10310 = vmul.f32 %v8262, %v9798
  %v10311 = vmul.f32 %v8263, %v9799
  %v10312 = vmul.f32 %v8264, %v9800
  %v10313 = vmul.f32 %v8265, %v9801
  %v10314 = vmul.f32 %v8266, %v9802
  %v10315 = vmul.f32 %v8267, %v9803
  %v10316 = vmul.f32 %v8268, %v9804
  %v10317 = vmul.f32 %v8269, %v9805
  %v10318 = vmul.f32 %v8270, %v9806
  %v10319 = vmul.f32 %v8271, %v9807
  %v10320 = vmul.f32 %v8272, %v9808
  %v10321 = vmul.f32 %v8273, %v9809
  %v10322 = vmul.f32 %v8274, %v9810
  %v10323 = vmul.f32 %v8275, %v9811
  %v10324 = vmul.f32 %v8276, %v9812
  %v10325 = vmul.f32 %v8277, %v9813
  %v10326 = vmul.f32 %v8278, %v9814
  %v10327 = vmul.f32 %v8279, %v9815
  %v10328 = vmul.f32 %v8280, %v9816
  %v10329 = vmul.f32 %v8281, %v9817
  %v10330 = vmul.f32 %v8282, %v9818
  %v10331 = vmul.f32 %v8283, %v9819
  %v10332 = vmul.f32 %v8284, %v9820
  %v10333 = vmul.f32 %v8285, %v9821
  %v10334 = vmul.f32 %v8286, %v9822
  %v10335 = vmul.f32 %v8287, %v9823
  %v10336 = vmul.f32 %v8288, %v9824
  %v10337 = vmul.f32 %v8289, %v9825
  %v10338 = vmul.f32 %v8290, %v9826
  %v10339 = vmul.f32 %v8291, %v9827
  %v10340 = vmul.f32 %v8292, %v9828
  %v10341 = vmul.f32 %v8293, %v9829
  %v10342 = vmul.f32 %v8294, %v9830
  %v10343 = vmul.f32 %v8295, %v9831
  %v10344 = vmul.f32 %v8296, %v9832
  %v10345 = vmul.f32 %v8297, %v9833
  %v10346 = vmul.f32 %v8298, %v9834
  %v10347 = vmul.f32 %v8299, %v9835
  %v10348 = vmul.f32 %v8300, %v9836
  %v10349 = vmul.f32 %v8301, %v9837
  %v10350 = vmul.f32 %v8302, %v9838
  %v10351 = vmul.f32 %v8303, %v9839
  %v10352 = vmul.f32 %v8304, %v9840
  %v10353 = vmul.f32 %v8305, %v9841
  %v10354 = vmul.f32 %v8306, %v9842
  %v10355 = vmul.f32 %v8307, %v9843
  %v10356 = vmul.f32 %v8308, %v9844
  %v10357 = vmul.f32 %v8309, %v9845
  %v10358 = vmul.f32 %v8310, %v9846
  %v10359 = vmul.f32 %v8311, %v9847
  %v10360 = vmul.f32 %v8312, %v9848
  %v10361 = vmul.f32 %v8313, %v9849
  %v10362 = vmul.f32 %v8314, %v9850
  %v10363 = vmul.f32 %v8315, %v9851
  %v10364 = vmul.f32 %v8316, %v9852
  %v10365 = vmul.f32 %v8317, %v9853
  %v10366 = vmul.f32 %v8318, %v9854
  %v10367 = vmul.f32 %v8319, %v9855
  %v10368 = vmul.f32 %v8320, %v9856
  %v10369 = vmul.f32 %v8321, %v9857
  %v10370 = vmul.f32 %v8322, %v9858
  %v10371 = vmul.f32 %v8323, %v9859
  %v10372 = vmul.f32 %v8324, %v9860
  %v10373 = vmul.f32 %v8325, %v9861
  %v10374 = vmul.f32 %v8326, %v9862
  %v10375 = vmul.f32 %v8327, %v9863
  %v10376 = vmul.f32 %v8328, %v9864
  %v10377 = vmul.f32 %v8329, %v9865
  %v10378 = vmul.f32 %v8330, %v9866
  %v10379 = vmul.f32 %v8331, %v9867
  %v10380 = vmul.f32 %v8332, %v9868
  %v10381 = vmul.f32 %v8333, %v9869
  %v10382 = vmul.f32 %v8334, %v9870
  %v10383 = vmul.f32 %v8335, %v9871
  %v10384 = vmul.f32 %v8336, %v9872
  %v10385 = vmul.f32 %v8337, %v9873
  %v10386 = vmul.f32 %v8338, %v9874
  %v10387 = vmul.f32 %v8339, %v9875
  %v10388 = vmul.f32 %v8340, %v9876
  %v10389 = vmul.f32 %v8341, %v9877
  %v10390 = vmul.f32 %v8342, %v9878
  %v10391 = vmul.f32 %v8343, %v9879
  %v10392 = vmul.f32 %v8344, %v9880
  %v10393 = vmul.f32 %v8345, %v9881
  %v10394 = vmul.f32 %v8346, %v9882
  %v10395 = vmul.f32 %v8347, %v9883
  %v10396 = vmul.f32 %v8348, %v9884
  %v10397 = vmul.f32 %v8349, %v9885
  %v10398 = vmul.f32 %v8350, %v9886
  %v10399 = vmul.f32 %v8351, %v9887
  %v10400 = vmul.f32 %v8352, %v9888
  %v10401 = vmul.f32 %v8353, %v9889
  %v10402 = vmul.f32 %v8354, %v9890
  %v10403 = vmul.f32 %v8355, %v9891
  %v10404 = vmul.f32 %v8356, %v9892
  %v10405 = vmul.f32 %v8357, %v9893
  %v10406 = vmul.f32 %v8358, %v9894
  %v10407 = vmul.f32 %v8359, %v9895
  %v10408 = vmul.f32 %v8360, %v9896
  %v10409 = vmul.f32 %v8361, %v9897
  %v10410 = vmul.f32 %v8362, %v9898
  %v10411 = vmul.f32 %v8363, %v9899
  %v10412 = vmul.f32 %v8364, %v9900
  %v10413 = vmul.f32 %v8365, %v9901
  %v10414 = vmul.f32 %v8366, %v9902
  %v10415 = vmul.f32 %v8367, %v9903
  %v10416 = vmul.f32 %v8368, %v9904
  %v10417 = vmul.f32 %v8369, %v9905
  %v10418 = vmul.f32 %v8370, %v9906
  %v10419 = vmul.f32 %v8371, %v9907
  %v10420 = vmul.f32 %v8372, %v9908
  %v10421 = vmul.f32 %v8373, %v9909
  %v10422 = vmul.f32 %v8374, %v9910
  %v10423 = vmul.f32 %v8375, %v9911
  %v10424 = vmul.f32 %v8376, %v9912
  %v10425 = vmul.f32 %v8377, %v9913
  %v10426 = vmul.f32 %v8378, %v9914
  %v10427 = vmul.f32 %v8379, %v9915
  %v10428 = vmul.f32 %v8380, %v9916
  %v10429 = vmul.f32 %v8381, %v9917
  %v10430 = vmul.f32 %v8382, %v9918
  %v10431 = vmul.f32 %v8383, %v9919
  %v10432 = vmul.f32 %v8384, %v9920
  %v10433 = vmul.f32 %v8385, %v9921
  %v10434 = vmul.f32 %v8386, %v9922
  %v10435 = vmul.f32 %v8387, %v9923
  %v10436 = vmul.f32 %v8388, %v9924
  %v10437 = vmul.f32 %v8389, %v9925
  %v10438 = vmul.f32 %v8390, %v9926
  %v10439 = vmul.f32 %v8391, %v9927
  %v10440 = vmul.f32 %v8392, %v9928
  %v10441 = vmul.f32 %v8393, %v9929
  %v10442 = vmul.f32 %v8394, %v9930
  %v10443 = vmul.f32 %v8395, %v9931
  %v10444 = vmul.f32 %v8396, %v9932
  %v10445 = vmul.f32 %v8397, %v9933
  %v10446 = vmul.f32 %v8398, %v9934
  %v10447 = vmul.f32 %v8399, %v9935
  %v10448 = vmul.f32 %v8400, %v9936
  %v10449 = vmul.f32 %v8401, %v9937
  %v10450 = vmul.f32 %v8402, %v9938
  %v10451 = vmul.f32 %v8403, %v9939
  %v10452 = vmul.f32 %v8404, %v9940
  %v10453 = vmul.f32 %v8405, %v9941
  %v10454 = vmul.f32 %v8406, %v9942
  %v10455 = vmul.f32 %v8407, %v9943
  %v10456 = vmul.f32 %v8408, %v9944
  %v10457 = vmul.f32 %v8409, %v9945
  %v10458 = vmul.f32 %v8410, %v9946
  %v10459 = vmul.f32 %v8411, %v9947
  %v10460 = vmul.f32 %v8412, %v9948
  %v10461 = vmul.f32 %v8413, %v9949
  %v10462 = vmul.f32 %v8414, %v9950
  %v10463 = vmul.f32 %v8415, %v9951
  %v10464 = vmul.f32 %v8416, %v9952
  %v10465 = vmul.f32 %v8417, %v9953
  %v10466 = vmul.f32 %v8418, %v9954
  %v10467 = vmul.f32 %v8419, %v9955
  %v10468 = vmul.f32 %v8420, %v9956
  %v10469 = vmul.f32 %v8421, %v9957
  %v10470 = vmul.f32 %v8422, %v9958
  %v10471 = vmul.f32 %v8423, %v9959
  %v10472 = vmul.f32 %v8424, %v9960
  %v10473 = vmul.f32 %v8425, %v9961
  %v10474 = vmul.f32 %v8426, %v9962
  %v10475 = vmul.f32 %v8427, %v9963
  %v10476 = vmul.f32 %v8428, %v9964
  %v10477 = vmul.f32 %v8429, %v9965
  %v10478 = vmul.f32 %v8430, %v9966
  %v10479 = vmul.f32 %v8431, %v9967
  %v10480 = vmul.f32 %v8432, %v9968
  %v10481 = vmul.f32 %v8433, %v9969
  %v10482 = vmul.f32 %v8434, %v9970
  %v10483 = vmul.f32 %v8435, %v9971
  %v10484 = vmul.f32 %v8436, %v9972
  %v10485 = vmul.f32 %v8437, %v9973
  %v10486 = vmul.f32 %v8438, %v9974
  %v10487 = vmul.f32 %v8439, %v9975
  %v10488 = vmul.f32 %v8440, %v9976
  %v10489 = vmul.f32 %v8441, %v9977
  %v10490 = vmul.f32 %v8442, %v9978
  %v10491 = vmul.f32 %v8443, %v9979
  %v10492 = vmul.f32 %v8444, %v9980
  %v10493 = vmul.f32 %v8445, %v9981
  %v10494 = vmul.f32 %v8446, %v9982
  %v10495 = vmul.f32 %v8447, %v9983
  %v10496 = vmul.f32 %v8448, %v9984
  %v10497 = vmul.f32 %v8449, %v9985
  %v10498 = vmul.f32 %v8450, %v9986
  %v10499 = vmul.f32 %v8451, %v9987
  %v10500 = vmul.f32 %v8452, %v9988
  %v10501 = vmul.f32 %v8453, %v9989
  %v10502 = vmul.f32 %v8454, %v9990
  %v10503 = vmul.f32 %v8455, %v9991
  %v10504 = vmul.f32 %v8456, %v9992
  %v10505 = vmul.f32 %v8457, %v9993
  %v10506 = vmul.f32 %v8458, %v9994
  %v10507 = vmul.f32 %v8459, %v9995
  %v10508 = vmul.f32 %v8460, %v9996
  %v10509 = vmul.f32 %v8461, %v9997
  %v10510 = vmul.f32 %v8462, %v9998
  %v10511 = vmul.f32 %v8463, %v9999
  %v10512 = vmul.f32 %v8464, %v10000
  %v10513 = vmul.f32 %v8465, %v10001
  %v10514 = vmul.f32 %v8466, %v10002
  %v10515 = vmul.f32 %v8467, %v10003
  %v10516 = vmul.f32 %v8468, %v10004
  %v10517 = vmul.f32 %v8469, %v10005
  %v10518 = vmul.f32 %v8470, %v10006
  %v10519 = vmul.f32 %v8471, %v10007
  %v10520 = vmul.f32 %v8472, %v10008
  %v10521 = vmul.f32 %v8473, %v10009
  %v10522 = vmul.f32 %v8474, %v10010
  %v10523 = vmul.f32 %v8475, %v10011
  %v10524 = vmul.f32 %v8476, %v10012
  %v10525 = vmul.f32 %v8477, %v10013
  %v10526 = vmul.f32 %v8478, %v10014
  %v10527 = vmul.f32 %v8479, %v10015
  %v10528 = vmul.f32 %v8480, %v10016
  %v10529 = vmul.f32 %v8481, %v10017
  %v10530 = vmul.f32 %v8482, %v10018
  %v10531 = vmul.f32 %v8483, %v10019
  %v10532 = vmul.f32 %v8484, %v10020
  %v10533 = vmul.f32 %v8485, %v10021
  %v10534 = vmul.f32 %v8486, %v10022
  %v10535 = vmul.f32 %v8487, %v10023
  %v10536 = vmul.f32 %v8488, %v10024
  %v10537 = vmul.f32 %v8489, %v10025
  %v10538 = vmul.f32 %v8490, %v10026
  %v10539 = vmul.f32 %v8491, %v10027
  %v10540 = vmul.f32 %v8492, %v10028
  %v10541 = vmul.f32 %v8493, %v10029
  %v10542 = vmul.f32 %v8494, %v10030
  %v10543 = vmul.f32 %v8495, %v10031
  %v10544 = vmul.f32 %v8496, %v10032
  %v10545 = vmul.f32 %v8497, %v10033
  %v10546 = vmul.f32 %v8498, %v10034
  %v10547 = vmul.f32 %v8499, %v10035
  %v10548 = vmul.f32 %v8500, %v10036
  %v10549 = vmul.f32 %v8501, %v10037
  %v10550 = vmul.f32 %v8502, %v10038
  %v10551 = vmul.f32 %v8503, %v10039
  %v10552 = vmul.f32 %v8504, %v10040
  %v10553 = vmul.f32 %v8505, %v10041
  %v10554 = vmul.f32 %v8506, %v10042
  %v10555 = vmul.f32 %v8507, %v10043
  %v10556 = vmul.f32 %v8508, %v10044
  %v10557 = vmul.f32 %v8509, %v10045
  %v10558 = vmul.f32 %v8510, %v10046
  %v10559 = vmul.f32 %v8511, %v10047
  %v10560 = vmul.f32 %v8512, %v10048
  %v10561 = vmul.f32 %v8513, %v10049
  %v10562 = vmul.f32 %v8514, %v10050
  %v10563 = vmul.f32 %v8515, %v10051
  %v10564 = vmul.f32 %v8516, %v10052
  %v10565 = vmul.f32 %v8517, %v10053
  %v10566 = vmul.f32 %v8518, %v10054
  %v10567 = vmul.f32 %v8519, %v10055
  %v10568 = vmul.f32 %v8520, %v10056
  %v10569 = vmul.f32 %v8521, %v10057
  %v10570 = vmul.f32 %v8522, %v10058
  %v10571 = vmul.f32 %v8523, %v10059
  %v10572 = vmul.f32 %v8524, %v10060
  %v10573 = vmul.f32 %v8525, %v10061
  %v10574 = vmul.f32 %v8526, %v10062
  %v10575 = vmul.f32 %v8527, %v10063
  %v10576 = vmul.f32 %v8528, %v10064
  %v10577 = vmul.f32 %v8529, %v10065
  %v10578 = vmul.f32 %v8530, %v10066
  %v10579 = vmul.f32 %v8531, %v10067
  %v10580 = vmul.f32 %v8532, %v10068
  %v10581 = vmul.f32 %v8533, %v10069
  %v10582 = vmul.f32 %v8534, %v10070
  %v10583 = vmul.f32 %v8535, %v10071
  %v10584 = vmul.f32 %v8536, %v10072
  %v10585 = vmul.f32 %v8537, %v10073
  %v10586 = vmul.f32 %v8538, %v10074
  %v10587 = vmul.f32 %v8539, %v10075
  %v10588 = vmul.f32 %v8540, %v10076
  %v10589 = vmul.f32 %v8541, %v10077
  %v10590 = vmul.f32 %v8542, %v10078
  %v10591 = vmul.f32 %v8543, %v10079
  %v10592 = vmul.f32 %v8544, %v10080
  %v10593 = vmul.f32 %v8545, %v10081
  %v10594 = vmul.f32 %v8546, %v10082
  %v10595 = vmul.f32 %v8547, %v10083
  %v10596 = vmul.f32 %v8548, %v10084
  %v10597 = vmul.f32 %v8549, %v10085
  %v10598 = vmul.f32 %v8550, %v10086
  %v10599 = vmul.f32 %v8551, %v10087
  %v10600 = vmul.f32 %v8552, %v10088
  %v10601 = vmul.f32 %v8553, %v10089
  %v10602 = vmul.f32 %v8554, %v10090
  %v10603 = vmul.f32 %v8555, %v10091
  %v10604 = vmul.f32 %v8556, %v10092
  %v10605 = vmul.f32 %v8557, %v10093
  %v10606 = vmul.f32 %v8558, %v10094
  %v10607 = vmul.f32 %v8559, %v10095
  %v10608 = vmul.f32 %v8560, %v10096
  %v10609 = vmul.f32 %v8561, %v10097
  %v10610 = vmul.f32 %v8562, %v10098
  %v10611 = vmul.f32 %v8563, %v10099
  %v10612 = vmul.f32 %v8564, %v10100
  %v10613 = vmul.f32 %v8565, %v10101
  %v10614 = vmul.f32 %v8566, %v10102
  %v10615 = vmul.f32 %v8567, %v10103
  %v10616 = vmul.f32 %v8568, %v10104
  %v10617 = vmul.f32 %v8569, %v10105
  %v10618 = vmul.f32 %v8570, %v10106
  %v10619 = vmul.f32 %v8571, %v10107
  %v10620 = vmul.f32 %v8572, %v10108
  %v10621 = vmul.f32 %v8573, %v10109
  %v10622 = vmul.f32 %v8574, %v10110
  %v10623 = vmul.f32 %v8575, %v10111
  %v10624 = vmul.f32 %v8576, %v10112
  %v10625 = vmul.f32 %v8577, %v10113
  %v10626 = vmul.f32 %v8578, %v10114
  %v10627 = vmul.f32 %v8579, %v10115
  %v10628 = vmul.f32 %v8580, %v10116
  %v10629 = vmul.f32 %v8581, %v10117
  %v10630 = vmul.f32 %v8582, %v10118
  %v10631 = vmul.f32 %v8583, %v10119
  %v10632 = vmul.f32 %v8584, %v10120
  %v10633 = vmul.f32 %v8585, %v10121
  %v10634 = vmul.f32 %v8586, %v10122
  %v10635 = vmul.f32 %v8587, %v10123
  %v10636 = vmul.f32 %v8588, %v10124
  %v10637 = vmul.f32 %v8589, %v10125
  %v10638 = vmul.f32 %v8590, %v10126
  %v10639 = vmul.f32 %v8591, %v10127
  %v10640 = vmul.f32 %v8592, %v10128
  %v10641 = vmul.f32 %v8593, %v10129
  %v10642 = vmul.f32 %v8594, %v10130
  %v10643 = vmul.f32 %v8595, %v10131
  %v10644 = vmul.f32 %v8596, %v10132
  %v10645 = vmul.f32 %v8597, %v10133
  %v10646 = vmul.f32 %v8598, %v10134
  %v10647 = vmul.f32 %v8599, %v10135
  %v10648 = vmul.f32 %v8600, %v10136
  %v10649 = vmul.f32 %v8601, %v10137
  %v10650 = vmul.f32 %v8602, %v10138
  %v10651 = vmul.f32 %v8603, %v10139
  %v10652 = vmul.f32 %v8604, %v10140
  %v10653 = vmul.f32 %v8605, %v10141
  %v10654 = vmul.f32 %v8606, %v10142
  %v10655 = vmul.f32 %v8607, %v10143
  %v10656 = vmul.f32 %v8608, %v10144
  %v10657 = vmul.f32 %v8609, %v10145
  %v10658 = vmul.f32 %v8610, %v10146
  %v10659 = vmul.f32 %v8611, %v10147
  %v10660 = vmul.f32 %v8612, %v10148
  %v10661 = vmul.f32 %v8613, %v10149
  %v10662 = vmul.f32 %v8614, %v10150
  %v10663 = vmul.f32 %v8615, %v10151
  %v10664 = vmul.f32 %v8616, %v10152
  %v10665 = vmul.f32 %v8617, %v10153
  %v10666 = vmul.f32 %v8618, %v10154
  %v10667 = vmul.f32 %v8619, %v10155
  %v10668 = vmul.f32 %v8620, %v10156
  %v10669 = vmul.f32 %v8621, %v10157
  %v10670 = vmul.f32 %v8622, %v10158
  %v10671 = vmul.f32 %v8623, %v10159
  %v10672 = vmul.f32 %v8624, %v10160
  %v10673 = vmul.f32 %v8625, %v10161
  %v10674 = vmul.f32 %v8626, %v10162
  %v10675 = vmul.f32 %v8627, %v10163
  %v10676 = vmul.f32 %v8628, %v10164
  %v10677 = vmul.f32 %v8629, %v10165
  %v10678 = vmul.f32 %v8630, %v10166
  %v10679 = vmul.f32 %v8631, %v10167
  %v10680 = vmul.f32 %v8632, %v10168
  %v10681 = vmul.f32 %v8633, %v10169
  %v10682 = vmul.f32 %v8634, %v10170
  %v10683 = vmul.f32 %v8635, %v10171
  %v10684 = vmul.f32 %v8636, %v10172
  %v10685 = vmul.f32 %v8637, %v10173
  %v10686 = vmul.f32 %v8638, %v10174
  %v10687 = vmul.f32 %v8639, %v10175
  %v10688 = vmul.f32 %v8640, %v10176
  %v10689 = vmul.f32 %v8641, %v10177
  %v10690 = vld [vmem:[%s4] sm:$0x1]
  %s10691 = sld [smem:[#allocation2]]
  %v10692 = vstv %s10691
  %10693 = vmatprep.subr.mxu0 %v10179
  %10694 = vmatpush1.msra.mxu0 %v10178
  %10695 = vmatprep.subr.mxu0 %v10211
  %10696 = vmatpush1.msra.mxu0 %v10210
  %10697 = vmatprep.subr.mxu0 %v10243
  %10698 = vmatpush1.msra.mxu0 %v10242
  %10699 = vmatprep.subr.mxu0 %v10275
  %10700 = vmatpush1.msra.mxu0 %v10274
  %10701 = vmatprep.subr.mxu0 %v10307
  %10702 = vmatpush1.msra.mxu0 %v10306
  %10703 = vmatprep.subr.mxu0 %v10339
  %10704 = vmatpush1.msra.mxu0 %v10338
  %10705 = vmatprep.subr.mxu0 %v10371
  %10706 = vmatpush1.msra.mxu0 %v10370
  %10707 = vmatprep.subr.mxu0 %v10403
  %10708 = vmatpush1.msra.mxu0 %v10402
  %10709 = vmatprep.subr.mxu0 %v10435
  %10710 = vmatpush1.msra.mxu0 %v10434
  %10711 = vmatprep.subr.mxu0 %v10467
  %10712 = vmatpush1.msra.mxu0 %v10466
  %10713 = vmatprep.subr.mxu0 %v10499
  %10714 = vmatpush1.msra.mxu0 %v10498
  %10715 = vmatprep.subr.mxu0 %v10531
  %10716 = vmatpush1.msra.mxu0 %v10530
  %10717 = vmatprep.subr.mxu0 %v10563
  %10718 = vmatpush1.msra.mxu0 %v10562
  %10719 = vmatprep.subr.mxu0 %v10595
  %10720 = vmatpush1.msra.mxu0 %v10594
  %10721 = vmatprep.subr.mxu0 %v10627
  %10722 = vmatpush1.msra.mxu0 %v10626
  %10723 = vmatprep.subr.mxu0 %v10659
  %10724 = vmatpush1.msra.mxu0 %v10658
  %10725 = vmatprep.subr.mxu0 0.0
  %10726 = vmatpush1.msra.mxu0 0.0
  %10727 = vmatprep.subr.mxu0 0.0
  %10728 = vmatpush1.msra.mxu0 0.0
  %10729 = vmatprep.subr.mxu0 0.0
  %10730 = vmatpush1.msra.mxu0 0.0
  %10731 = vmatprep.subr.mxu0 0.0
  %10732 = vmatpush1.msra.mxu0 0.0
  %10733 = vmatprep.subr.mxu0 0.0
  %10734 = vmatpush1.msra.mxu0 0.0
  %10735 = vmatprep.subr.mxu0 0.0
  %10736 = vmatpush1.msra.mxu0 0.0
  %10737 = vmatprep.subr.mxu0 0.0
  %10738 = vmatpush1.msra.mxu0 0.0
  %10739 = vmatprep.subr.mxu0 0.0
  %10740 = vmatpush1.msra.mxu0 0.0
  %10741 = vmatprep.subr.mxu0 0.0
  %10742 = vmatpush1.msra.mxu0 0.0
  %10743 = vmatprep.subr.mxu0 0.0
  %10744 = vmatpush1.msra.mxu0 0.0
  %10745 = vmatprep.subr.mxu0 0.0
  %10746 = vmatpush1.msra.mxu0 0.0
  %10747 = vmatprep.subr.mxu0 0.0
  %10748 = vmatpush1.msra.mxu0 0.0
  %10749 = vmatprep.subr.mxu0 0.0
  %10750 = vmatpush1.msra.mxu0 0.0
  %10751 = vmatprep.subr.mxu0 0.0
  %10752 = vmatpush1.msra.mxu0 0.0
  %10753 = vmatprep.subr.mxu0 0.0
  %10754 = vmatpush1.msra.mxu0 0.0
  %10755 = vmatprep.subr.mxu0 0.0
  %10756 = vmatpush1.msra.mxu0 0.0
  %10757 = vmatprep.mubr.f32.mxu0 0.0
  %10758 = vmatmul.mubr.f32.gmra.mrb[0].mxu0 %v10690
  %v10759 = vpop.f32.mrb[0].mxu0
  %v10760 = vadd.f32 %v10692, %v10759
  %v10761 = vpop.f32.mrb[0].mxu0
  %v10762 = vadd.f32 %v10692, %v10761
  %10763 = vdwg.mxu0
  %10764 = vmatprep.subr.mxu0 %v10181
  %10765 = vmatpush1.msra.mxu0 %v10180
  %10766 = vmatprep.subr.mxu0 %v10213
  %10767 = vmatpush1.msra.mxu0 %v10212
  %10768 = vmatprep.subr.mxu0 %v10245
  %10769 = vmatpush1.msra.mxu0 %v10244
  %10770 = vmatprep.subr.mxu0 %v10277
  %10771 = vmatpush1.msra.mxu0 %v10276
  %10772 = vmatprep.subr.mxu0 %v10309
  %10773 = vmatpush1.msra.mxu0 %v10308
  %10774 = vmatprep.subr.mxu0 %v10341
  %10775 = vmatpush1.msra.mxu0 %v10340
  %10776 = vmatprep.subr.mxu0 %v10373
  %10777 = vmatpush1.msra.mxu0 %v10372
  %10778 = vmatprep.subr.mxu0 %v10405
  %10779 = vmatpush1.msra.mxu0 %v10404
  %10780 = vmatprep.subr.mxu0 %v10437
  %10781 = vmatpush1.msra.mxu0 %v10436
  %10782 = vmatprep.subr.mxu0 %v10469
  %10783 = vmatpush1.msra.mxu0 %v10468
  %10784 = vmatprep.subr.mxu0 %v10501
  %10785 = vmatpush1.msra.mxu0 %v10500
  %10786 = vmatprep.subr.mxu0 %v10533
  %10787 = vmatpush1.msra.mxu0 %v10532
  %10788 = vmatprep.subr.mxu0 %v10565
  %10789 = vmatpush1.msra.mxu0 %v10564
  %10790 = vmatprep.subr.mxu0 %v10597
  %10791 = vmatpush1.msra.mxu0 %v10596
  %10792 = vmatprep.subr.mxu0 %v10629
  %10793 = vmatpush1.msra.mxu0 %v10628
  %10794 = vmatprep.subr.mxu0 %v10661
  %10795 = vmatpush1.msra.mxu0 %v10660
  %10796 = vmatprep.subr.mxu0 0.0
  %10797 = vmatpush1.msra.mxu0 0.0
  %10798 = vmatprep.subr.mxu0 0.0
  %10799 = vmatpush1.msra.mxu0 0.0
  %10800 = vmatprep.subr.mxu0 0.0
  %10801 = vmatpush1.msra.mxu0 0.0
  %10802 = vmatprep.subr.mxu0 0.0
  %10803 = vmatpush1.msra.mxu0 0.0
  %10804 = vmatprep.subr.mxu0 0.0
  %10805 = vmatpush1.msra.mxu0 0.0
  %10806 = vmatprep.subr.mxu0 0.0
  %10807 = vmatpush1.msra.mxu0 0.0
  %10808 = vmatprep.subr.mxu0 0.0
  %10809 = vmatpush1.msra.mxu0 0.0
  %10810 = vmatprep.subr.mxu0 0.0
  %10811 = vmatpush1.msra.mxu0 0.0
  %10812 = vmatprep.subr.mxu0 0.0
  %10813 = vmatpush1.msra.mxu0 0.0
  %10814 = vmatprep.subr.mxu0 0.0
  %10815 = vmatpush1.msra.mxu0 0.0
  %10816 = vmatprep.subr.mxu0 0.0
  %10817 = vmatpush1.msra.mxu0 0.0
  %10818 = vmatprep.subr.mxu0 0.0
  %10819 = vmatpush1.msra.mxu0 0.0
  %10820 = vmatprep.subr.mxu0 0.0
  %10821 = vmatpush1.msra.mxu0 0.0
  %10822 = vmatprep.subr.mxu0 0.0
  %10823 = vmatpush1.msra.mxu0 0.0
  %10824 = vmatprep.subr.mxu0 0.0
  %10825 = vmatpush1.msra.mxu0 0.0
  %10826 = vmatprep.subr.mxu0 0.0
  %10827 = vmatpush1.msra.mxu0 0.0
  %10828 = vmatprep.mubr.f32.mxu0 0.0
  %10829 = vmatmul.mubr.f32.gmra.mrb[0].mxu0 %v10690
  %v10830 = vpop.f32.mrb[0].mxu0
  %v10831 = vadd.f32 %v10692, %v10830
  %v10832 = vpop.f32.mrb[0].mxu0
  %v10833 = vadd.f32 %v10692, %v10832
  %10834 = vdwg.mxu0
  %10835 = vmatprep.subr.mxu0 %v10183
  %10836 = vmatpush1.msra.mxu0 %v10182
  %10837 = vmatprep.subr.mxu0 %v10215
  %10838 = vmatpush1.msra.mxu0 %v10214
  %10839 = vmatprep.subr.mxu0 %v10247
  %10840 = vmatpush1.msra.mxu0 %v10246
  %10841 = vmatprep.subr.mxu0 %v10279
  %10842 = vmatpush1.msra.mxu0 %v10278
  %10843 = vmatprep.subr.mxu0 %v10311
  %10844 = vmatpush1.msra.mxu0 %v10310
  %10845 = vmatprep.subr.mxu0 %v10343
  %10846 = vmatpush1.msra.mxu0 %v10342
  %10847 = vmatprep.subr.mxu0 %v10375
  %10848 = vmatpush1.msra.mxu0 %v10374
  %10849 = vmatprep.subr.mxu0 %v10407
  %10850 = vmatpush1.msra.mxu0 %v10406
  %10851 = vmatprep.subr.mxu0 %v10439
  %10852 = vmatpush1.msra.mxu0 %v10438
  %10853 = vmatprep.subr.mxu0 %v10471
  %10854 = vmatpush1.msra.mxu0 %v10470
  %10855 = vmatprep.subr.mxu0 %v10503
  %10856 = vmatpush1.msra.mxu0 %v10502
  %10857 = vmatprep.subr.mxu0 %v10535
  %10858 = vmatpush1.msra.mxu0 %v10534
  %10859 = vmatprep.subr.mxu0 %v10567
  %10860 = vmatpush1.msra.mxu0 %v10566
  %10861 = vmatprep.subr.mxu0 %v10599
  %10862 = vmatpush1.msra.mxu0 %v10598
  %10863 = vmatprep.subr.mxu0 %v10631
  %10864 = vmatpush1.msra.mxu0 %v10630
  %10865 = vmatprep.subr.mxu0 %v10663
  %10866 = vmatpush1.msra.mxu0 %v10662
  %10867 = vmatprep.subr.mxu0 0.0
  %10868 = vmatpush1.msra.mxu0 0.0
  %10869 = vmatprep.subr.mxu0 0.0
  %10870 = vmatpush1.msra.mxu0 0.0
  %10871 = vmatprep.subr.mxu0 0.0
  %10872 = vmatpush1.msra.mxu0 0.0
  %10873 = vmatprep.subr.mxu0 0.0
  %10874 = vmatpush1.msra.mxu0 0.0
  %10875 = vmatprep.subr.mxu0 0.0
  %10876 = vmatpush1.msra.mxu0 0.0
  %10877 = vmatprep.subr.mxu0 0.0
  %10878 = vmatpush1.msra.mxu0 0.0
  %10879 = vmatprep.subr.mxu0 0.0
  %10880 = vmatpush1.msra.mxu0 0.0
  %10881 = vmatprep.subr.mxu0 0.0
  %10882 = vmatpush1.msra.mxu0 0.0
  %10883 = vmatprep.subr.mxu0 0.0
  %10884 = vmatpush1.msra.mxu0 0.0
  %10885 = vmatprep.subr.mxu0 0.0
  %10886 = vmatpush1.msra.mxu0 0.0
  %10887 = vmatprep.subr.mxu0 0.0
  %10888 = vmatpush1.msra.mxu0 0.0
  %10889 = vmatprep.subr.mxu0 0.0
  %10890 = vmatpush1.msra.mxu0 0.0
  %10891 = vmatprep.subr.mxu0 0.0
  %10892 = vmatpush1.msra.mxu0 0.0
  %10893 = vmatprep.subr.mxu0 0.0
  %10894 = vmatpush1.msra.mxu0 0.0
  %10895 = vmatprep.subr.mxu0 0.0
  %10896 = vmatpush1.msra.mxu0 0.0
  %10897 = vmatprep.subr.mxu0 0.0
  %10898 = vmatpush1.msra.mxu0 0.0
  %10899 = vmatprep.mubr.f32.mxu0 0.0
  %10900 = vmatmul.mubr.f32.gmra.mrb[0].mxu0 %v10690
  %v10901 = vpop.f32.mrb[0].mxu0
  %v10902 = vadd.f32 %v10692, %v10901
  %v10903 = vpop.f32.mrb[0].mxu0
  %v10904 = vadd.f32 %v10692, %v10903
  %10905 = vdwg.mxu0
  %10906 = vmatprep.subr.mxu0 %v10185
  %10907 = vmatpush1.msra.mxu0 %v10184
  %10908 = vmatprep.subr.mxu0 %v10217
  %10909 = vmatpush1.msra.mxu0 %v10216
  %10910 = vmatprep.subr.mxu0 %v10249
  %10911 = vmatpush1.msra.mxu0 %v10248
  %10912 = vmatprep.subr.mxu0 %v10281
  %10913 = vmatpush1.msra.mxu0 %v10280
  %10914 = vmatprep.subr.mxu0 %v10313
  %10915 = vmatpush1.msra.mxu0 %v10312
  %10916 = vmatprep.subr.mxu0 %v10345
  %10917 = vmatpush1.msra.mxu0 %v10344
  %10918 = vmatprep.subr.mxu0 %v10377
  %10919 = vmatpush1.msra.mxu0 %v10376
  %10920 = vmatprep.subr.mxu0 %v10409
  %10921 = vmatpush1.msra.mxu0 %v10408
  %10922 = vmatprep.subr.mxu0 %v10441
  %10923 = vmatpush1.msra.mxu0 %v10440
  %10924 = vmatprep.subr.mxu0 %v10473
  %10925 = vmatpush1.msra.mxu0 %v10472
  %10926 = vmatprep.subr.mxu0 %v10505
  %10927 = vmatpush1.msra.mxu0 %v10504
  %10928 = vmatprep.subr.mxu0 %v10537
  %10929 = vmatpush1.msra.mxu0 %v10536
  %10930 = vmatprep.subr.mxu0 %v10569
  %10931 = vmatpush1.msra.mxu0 %v10568
  %10932 = vmatprep.subr.mxu0 %v10601
  %10933 = vmatpush1.msra.mxu0 %v10600
  %10934 = vmatprep.subr.mxu0 %v10633
  %10935 = vmatpush1.msra.mxu0 %v10632
  %10936 = vmatprep.subr.mxu0 %v10665
  %10937 = vmatpush1.msra.mxu0 %v10664
  %10938 = vmatprep.subr.mxu0 0.0
  %10939 = vmatpush1.msra.mxu0 0.0
  %10940 = vmatprep.subr.mxu0 0.0
  %10941 = vmatpush1.msra.mxu0 0.0
  %10942 = vmatprep.subr.mxu0 0.0
  %10943 = vmatpush1.msra.mxu0 0.0
  %10944 = vmatprep.subr.mxu0 0.0
  %10945 = vmatpush1.msra.mxu0 0.0
  %10946 = vmatprep.subr.mxu0 0.0
  %10947 = vmatpush1.msra.mxu0 0.0
  %10948 = vmatprep.subr.mxu0 0.0
  %10949 = vmatpush1.msra.mxu0 0.0
  %10950 = vmatprep.subr.mxu0 0.0
  %10951 = vmatpush1.msra.mxu0 0.0
  %10952 = vmatprep.subr.mxu0 0.0
  %10953 = vmatpush1.msra.mxu0 0.0
  %10954 = vmatprep.subr.mxu0 0.0
  %10955 = vmatpush1.msra.mxu0 0.0
  %10956 = vmatprep.subr.mxu0 0.0
  %10957 = vmatpush1.msra.mxu0 0.0
  %10958 = vmatprep.subr.mxu0 0.0
  %10959 = vmatpush1.msra.mxu0 0.0
  %10960 = vmatprep.subr.mxu0 0.0
  %10961 = vmatpush1.msra.mxu0 0.0
  %10962 = vmatprep.subr.mxu0 0.0
  %10963 = vmatpush1.msra.mxu0 0.0
  %10964 = vmatprep.subr.mxu0 0.0
  %10965 = vmatpush1.msra.mxu0 0.0
  %10966 = vmatprep.subr.mxu0 0.0
  %10967 = vmatpush1.msra.mxu0 0.0
  %10968 = vmatprep.subr.mxu0 0.0
  %10969 = vmatpush1.msra.mxu0 0.0
  %10970 = vmatprep.mubr.f32.mxu0 0.0
  %10971 = vmatmul.mubr.f32.gmra.mrb[0].mxu0 %v10690
  %v10972 = vpop.f32.mrb[0].mxu0
  %v10973 = vadd.f32 %v10692, %v10972
  %v10974 = vpop.f32.mrb[0].mxu0
  %v10975 = vadd.f32 %v10692, %v10974
  %10976 = vdwg.mxu0
  %10977 = vmatprep.subr.mxu0 %v10187
  %10978 = vmatpush1.msra.mxu0 %v10186
  %10979 = vmatprep.subr.mxu0 %v10219
  %10980 = vmatpush1.msra.mxu0 %v10218
  %10981 = vmatprep.subr.mxu0 %v10251
  %10982 = vmatpush1.msra.mxu0 %v10250
  %10983 = vmatprep.subr.mxu0 %v10283
  %10984 = vmatpush1.msra.mxu0 %v10282
  %10985 = vmatprep.subr.mxu0 %v10315
  %10986 = vmatpush1.msra.mxu0 %v10314
  %10987 = vmatprep.subr.mxu0 %v10347
  %10988 = vmatpush1.msra.mxu0 %v10346
  %10989 = vmatprep.subr.mxu0 %v10379
  %10990 = vmatpush1.msra.mxu0 %v10378
  %10991 = vmatprep.subr.mxu0 %v10411
  %10992 = vmatpush1.msra.mxu0 %v10410
  %10993 = vmatprep.subr.mxu0 %v10443
  %10994 = vmatpush1.msra.mxu0 %v10442
  %10995 = vmatprep.subr.mxu0 %v10475
  %10996 = vmatpush1.msra.mxu0 %v10474
  %10997 = vmatprep.subr.mxu0 %v10507
  %10998 = vmatpush1.msra.mxu0 %v10506
  %10999 = vmatprep.subr.mxu0 %v10539
  %11000 = vmatpush1.msra.mxu0 %v10538
  %11001 = vmatprep.subr.mxu0 %v10571
  %11002 = vmatpush1.msra.mxu0 %v10570
  %11003 = vmatprep.subr.mxu0 %v10603
  %11004 = vmatpush1.msra.mxu0 %v10602
  %11005 = vmatprep.subr.mxu0 %v10635
  %11006 = vmatpush1.msra.mxu0 %v10634
  %11007 = vmatprep.subr.mxu0 %v10667
  %11008 = vmatpush1.msra.mxu0 %v10666
  %11009 = vmatprep.subr.mxu0 0.0
  %11010 = vmatpush1.msra.mxu0 0.0
  %11011 = vmatprep.subr.mxu0 0.0
  %11012 = vmatpush1.msra.mxu0 0.0
  %11013 = vmatprep.subr.mxu0 0.0
  %11014 = vmatpush1.msra.mxu0 0.0
  %11015 = vmatprep.subr.mxu0 0.0
  %11016 = vmatpush1.msra.mxu0 0.0
  %11017 = vmatprep.subr.mxu0 0.0
  %11018 = vmatpush1.msra.mxu0 0.0
  %11019 = vmatprep.subr.mxu0 0.0
  %11020 = vmatpush1.msra.mxu0 0.0
  %11021 = vmatprep.subr.mxu0 0.0
  %11022 = vmatpush1.msra.mxu0 0.0
  %11023 = vmatprep.subr.mxu0 0.0
  %11024 = vmatpush1.msra.mxu0 0.0
  %11025 = vmatprep.subr.mxu0 0.0
  %11026 = vmatpush1.msra.mxu0 0.0
  %11027 = vmatprep.subr.mxu0 0.0
  %11028 = vmatpush1.msra.mxu0 0.0
  %11029 = vmatprep.subr.mxu0 0.0
  %11030 = vmatpush1.msra.mxu0 0.0
  %11031 = vmatprep.subr.mxu0 0.0
  %11032 = vmatpush1.msra.mxu0 0.0
  %11033 = vmatprep.subr.mxu0 0.0
  %11034 = vmatpush1.msra.mxu0 0.0
  %11035 = vmatprep.subr.mxu0 0.0
  %11036 = vmatpush1.msra.mxu0 0.0
  %11037 = vmatprep.subr.mxu0 0.0
  %11038 = vmatpush1.msra.mxu0 0.0
  %11039 = vmatprep.subr.mxu0 0.0
  %11040 = vmatpush1.msra.mxu0 0.0
  %11041 = vmatprep.mubr.f32.mxu0 0.0
  %11042 = vmatmul.mubr.f32.gmra.mrb[0].mxu0 %v10690
  %v11043 = vpop.f32.mrb[0].mxu0
  %v11044 = vadd.f32 %v10692, %v11043
  %v11045 = vpop.f32.mrb[0].mxu0
  %v11046 = vadd.f32 %v10692, %v11045
  %11047 = vdwg.mxu0
  %11048 = vmatprep.subr.mxu0 %v10189
  %11049 = vmatpush1.msra.mxu0 %v10188
  %11050 = vmatprep.subr.mxu0 %v10221
  %11051 = vmatpush1.msra.mxu0 %v10220
  %11052 = vmatprep.subr.mxu0 %v10253
  %11053 = vmatpush1.msra.mxu0 %v10252
  %11054 = vmatprep.subr.mxu0 %v10285
  %11055 = vmatpush1.msra.mxu0 %v10284
  %11056 = vmatprep.subr.mxu0 %v10317
  %11057 = vmatpush1.msra.mxu0 %v10316
  %11058 = vmatprep.subr.mxu0 %v10349
  %11059 = vmatpush1.msra.mxu0 %v10348
  %11060 = vmatprep.subr.mxu0 %v10381
  %11061 = vmatpush1.msra.mxu0 %v10380
  %11062 = vmatprep.subr.mxu0 %v10413
  %11063 = vmatpush1.msra.mxu0 %v10412
  %11064 = vmatprep.subr.mxu0 %v10445
  %11065 = vmatpush1.msra.mxu0 %v10444
  %11066 = vmatprep.subr.mxu0 %v10477
  %11067 = vmatpush1.msra.mxu0 %v10476
  %11068 = vmatprep.subr.mxu0 %v10509
  %11069 = vmatpush1.msra.mxu0 %v10508
  %11070 = vmatprep.subr.mxu0 %v10541
  %11071 = vmatpush1.msra.mxu0 %v10540
  %11072 = vmatprep.subr.mxu0 %v10573
  %11073 = vmatpush1.msra.mxu0 %v10572
  %11074 = vmatprep.subr.mxu0 %v10605
  %11075 = vmatpush1.msra.mxu0 %v10604
  %11076 = vmatprep.subr.mxu0 %v10637
  %11077 = vmatpush1.msra.mxu0 %v10636
  %11078 = vmatprep.subr.mxu0 %v10669
  %11079 = vmatpush1.msra.mxu0 %v10668
  %11080 = vmatprep.subr.mxu0 0.0
  %11081 = vmatpush1.msra.mxu0 0.0
  %11082 = vmatprep.subr.mxu0 0.0
  %11083 = vmatpush1.msra.mxu0 0.0
  %11084 = vmatprep.subr.mxu0 0.0
  %11085 = vmatpush1.msra.mxu0 0.0
  %11086 = vmatprep.subr.mxu0 0.0
  %11087 = vmatpush1.msra.mxu0 0.0
  %11088 = vmatprep.subr.mxu0 0.0
  %11089 = vmatpush1.msra.mxu0 0.0
  %11090 = vmatprep.subr.mxu0 0.0
  %11091 = vmatpush1.msra.mxu0 0.0
  %11092 = vmatprep.subr.mxu0 0.0
  %11093 = vmatpush1.msra.mxu0 0.0
  %11094 = vmatprep.subr.mxu0 0.0
  %11095 = vmatpush1.msra.mxu0 0.0
  %11096 = vmatprep.subr.mxu0 0.0
  %11097 = vmatpush1.msra.mxu0 0.0
  %11098 = vmatprep.subr.mxu0 0.0
  %11099 = vmatpush1.msra.mxu0 0.0
  %11100 = vmatprep.subr.mxu0 0.0
  %11101 = vmatpush1.msra.mxu0 0.0
  %11102 = vmatprep.subr.mxu0 0.0
  %11103 = vmatpush1.msra.mxu0 0.0
  %11104 = vmatprep.subr.mxu0 0.0
  %11105 = vmatpush1.msra.mxu0 0.0
  %11106 = vmatprep.subr.mxu0 0.0
  %11107 = vmatpush1.msra.mxu0 0.0
  %11108 = vmatprep.subr.mxu0 0.0
  %11109 = vmatpush1.msra.mxu0 0.0
  %11110 = vmatprep.subr.mxu0 0.0
  %11111 = vmatpush1.msra.mxu0 0.0
  %11112 = vmatprep.mubr.f32.mxu0 0.0
  %11113 = vmatmul.mubr.f32.gmra.mrb[0].mxu0 %v10690
  %v11114 = vpop.f32.mrb[0].mxu0
  %v11115 = vadd.f32 %v10692, %v11114
  %v11116 = vpop.f32.mrb[0].mxu0
  %v11117 = vadd.f32 %v10692, %v11116
  %11118 = vdwg.mxu0
  %11119 = vmatprep.subr.mxu0 %v10191
  %11120 = vmatpush1.msra.mxu0 %v10190
  %11121 = vmatprep.subr.mxu0 %v10223
  %11122 = vmatpush1.msra.mxu0 %v10222
  %11123 = vmatprep.subr.mxu0 %v10255
  %11124 = vmatpush1.msra.mxu0 %v10254
  %11125 = vmatprep.subr.mxu0 %v10287
  %11126 = vmatpush1.msra.mxu0 %v10286
  %11127 = vmatprep.subr.mxu0 %v10319
  %11128 = vmatpush1.msra.mxu0 %v10318
  %11129 = vmatprep.subr.mxu0 %v10351
  %11130 = vmatpush1.msra.mxu0 %v10350
  %11131 = vmatprep.subr.mxu0 %v10383
  %11132 = vmatpush1.msra.mxu0 %v10382
  %11133 = vmatprep.subr.mxu0 %v10415
  %11134 = vmatpush1.msra.mxu0 %v10414
  %11135 = vmatprep.subr.mxu0 %v10447
  %11136 = vmatpush1.msra.mxu0 %v10446
  %11137 = vmatprep.subr.mxu0 %v10479
  %11138 = vmatpush1.msra.mxu0 %v10478
  %11139 = vmatprep.subr.mxu0 %v10511
  %11140 = vmatpush1.msra.mxu0 %v10510
  %11141 = vmatprep.subr.mxu0 %v10543
  %11142 = vmatpush1.msra.mxu0 %v10542
  %11143 = vmatprep.subr.mxu0 %v10575
  %11144 = vmatpush1.msra.mxu0 %v10574
  %11145 = vmatprep.subr.mxu0 %v10607
  %11146 = vmatpush1.msra.mxu0 %v10606
  %11147 = vmatprep.subr.mxu0 %v10639
  %11148 = vmatpush1.msra.mxu0 %v10638
  %11149 = vmatprep.subr.mxu0 %v10671
  %11150 = vmatpush1.msra.mxu0 %v10670
  %11151 = vmatprep.subr.mxu0 0.0
  %11152 = vmatpush1.msra.mxu0 0.0
  %11153 = vmatprep.subr.mxu0 0.0
  %11154 = vmatpush1.msra.mxu0 0.0
  %11155 = vmatprep.subr.mxu0 0.0
  %11156 = vmatpush1.msra.mxu0 0.0
  %11157 = vmatprep.subr.mxu0 0.0
  %11158 = vmatpush1.msra.mxu0 0.0
  %11159 = vmatprep.subr.mxu0 0.0
  %11160 = vmatpush1.msra.mxu0 0.0
  %11161 = vmatprep.subr.mxu0 0.0
  %11162 = vmatpush1.msra.mxu0 0.0
  %11163 = vmatprep.subr.mxu0 0.0
  %11164 = vmatpush1.msra.mxu0 0.0
  %11165 = vmatprep.subr.mxu0 0.0
  %11166 = vmatpush1.msra.mxu0 0.0
  %11167 = vmatprep.subr.mxu0 0.0
  %11168 = vmatpush1.msra.mxu0 0.0
  %11169 = vmatprep.subr.mxu0 0.0
  %11170 = vmatpush1.msra.mxu0 0.0
  %11171 = vmatprep.subr.mxu0 0.0
  %11172 = vmatpush1.msra.mxu0 0.0
  %11173 = vmatprep.subr.mxu0 0.0
  %11174 = vmatpush1.msra.mxu0 0.0
  %11175 = vmatprep.subr.mxu0 0.0
  %11176 = vmatpush1.msra.mxu0 0.0
  %11177 = vmatprep.subr.mxu0 0.0
  %11178 = vmatpush1.msra.mxu0 0.0
  %11179 = vmatprep.subr.mxu0 0.0
  %11180 = vmatpush1.msra.mxu0 0.0
  %11181 = vmatprep.subr.mxu0 0.0
  %11182 = vmatpush1.msra.mxu0 0.0
  %11183 = vmatprep.mubr.f32.mxu0 0.0
  %11184 = vmatmul.mubr.f32.gmra.mrb[0].mxu0 %v10690
  %v11185 = vpop.f32.mrb[0].mxu0
  %v11186 = vadd.f32 %v10692, %v11185
  %v11187 = vpop.f32.mrb[0].mxu0
  %v11188 = vadd.f32 %v10692, %v11187
  %11189 = vdwg.mxu0
  %11190 = vmatprep.subr.mxu0 %v10193
  %11191 = vmatpush1.msra.mxu0 %v10192
  %11192 = vmatprep.subr.mxu0 %v10225
  %11193 = vmatpush1.msra.mxu0 %v10224
  %11194 = vmatprep.subr.mxu0 %v10257
  %11195 = vmatpush1.msra.mxu0 %v10256
  %11196 = vmatprep.subr.mxu0 %v10289
  %11197 = vmatpush1.msra.mxu0 %v10288
  %11198 = vmatprep.subr.mxu0 %v10321
  %11199 = vmatpush1.msra.mxu0 %v10320
  %11200 = vmatprep.subr.mxu0 %v10353
  %11201 = vmatpush1.msra.mxu0 %v10352
  %11202 = vmatprep.subr.mxu0 %v10385
  %11203 = vmatpush1.msra.mxu0 %v10384
  %11204 = vmatprep.subr.mxu0 %v10417
  %11205 = vmatpush1.msra.mxu0 %v10416
  %11206 = vmatprep.subr.mxu0 %v10449
  %11207 = vmatpush1.msra.mxu0 %v10448
  %11208 = vmatprep.subr.mxu0 %v10481
  %11209 = vmatpush1.msra.mxu0 %v10480
  %11210 = vmatprep.subr.mxu0 %v10513
  %11211 = vmatpush1.msra.mxu0 %v10512
  %11212 = vmatprep.subr.mxu0 %v10545
  %11213 = vmatpush1.msra.mxu0 %v10544
  %11214 = vmatprep.subr.mxu0 %v10577
  %11215 = vmatpush1.msra.mxu0 %v10576
  %11216 = vmatprep.subr.mxu0 %v10609
  %11217 = vmatpush1.msra.mxu0 %v10608
  %11218 = vmatprep.subr.mxu0 %v10641
  %11219 = vmatpush1.msra.mxu0 %v10640
  %11220 = vmatprep.subr.mxu0 %v10673
  %11221 = vmatpush1.msra.mxu0 %v10672
  %11222 = vmatprep.subr.mxu0 0.0
  %11223 = vmatpush1.msra.mxu0 0.0
  %11224 = vmatprep.subr.mxu0 0.0
  %11225 = vmatpush1.msra.mxu0 0.0
  %11226 = vmatprep.subr.mxu0 0.0
  %11227 = vmatpush1.msra.mxu0 0.0
  %11228 = vmatprep.subr.mxu0 0.0
  %11229 = vmatpush1.msra.mxu0 0.0
  %11230 = vmatprep.subr.mxu0 0.0
  %11231 = vmatpush1.msra.mxu0 0.0
  %11232 = vmatprep.subr.mxu0 0.0
  %11233 = vmatpush1.msra.mxu0 0.0
  %11234 = vmatprep.subr.mxu0 0.0
  %11235 = vmatpush1.msra.mxu0 0.0
  %11236 = vmatprep.subr.mxu0 0.0
  %11237 = vmatpush1.msra.mxu0 0.0
  %11238 = vmatprep.subr.mxu0 0.0
  %11239 = vmatpush1.msra.mxu0 0.0
  %11240 = vmatprep.subr.mxu0 0.0
  %11241 = vmatpush1.msra.mxu0 0.0
  %11242 = vmatprep.subr.mxu0 0.0
  %11243 = vmatpush1.msra.mxu0 0.0
  %11244 = vmatprep.subr.mxu0 0.0
  %11245 = vmatpush1.msra.mxu0 0.0
  %11246 = vmatprep.subr.mxu0 0.0
  %11247 = vmatpush1.msra.mxu0 0.0
  %11248 = vmatprep.subr.mxu0 0.0
  %11249 = vmatpush1.msra.mxu0 0.0
  %11250 = vmatprep.subr.mxu0 0.0
  %11251 = vmatpush1.msra.mxu0 0.0
  %11252 = vmatprep.subr.mxu0 0.0
  %11253 = vmatpush1.msra.mxu0 0.0
  %11254 = vmatprep.mubr.f32.mxu0 0.0
  %11255 = vmatmul.mubr.f32.gmra.mrb[0].mxu0 %v10690
  %v11256 = vpop.f32.mrb[0].mxu0
  %v11257 = vadd.f32 %v10692, %v11256
  %v11258 = vpop.f32.mrb[0].mxu0
  %v11259 = vadd.f32 %v10692, %v11258
  %11260 = vdwg.mxu0
  %11261 = vmatprep.subr.mxu0 %v10195
  %11262 = vmatpush1.msra.mxu0 %v10194
  %11263 = vmatprep.subr.mxu0 %v10227
  %11264 = vmatpush1.msra.mxu0 %v10226
  %11265 = vmatprep.subr.mxu0 %v10259
  %11266 = vmatpush1.msra.mxu0 %v10258
  %11267 = vmatprep.subr.mxu0 %v10291
  %11268 = vmatpush1.msra.mxu0 %v10290
  %11269 = vmatprep.subr.mxu0 %v10323
  %11270 = vmatpush1.msra.mxu0 %v10322
  %11271 = vmatprep.subr.mxu0 %v10355
  %11272 = vmatpush1.msra.mxu0 %v10354
  %11273 = vmatprep.subr.mxu0 %v10387
  %11274 = vmatpush1.msra.mxu0 %v10386
  %11275 = vmatprep.subr.mxu0 %v10419
  %11276 = vmatpush1.msra.mxu0 %v10418
  %11277 = vmatprep.subr.mxu0 %v10451
  %11278 = vmatpush1.msra.mxu0 %v10450
  %11279 = vmatprep.subr.mxu0 %v10483
  %11280 = vmatpush1.msra.mxu0 %v10482
  %11281 = vmatprep.subr.mxu0 %v10515
  %11282 = vmatpush1.msra.mxu0 %v10514
  %11283 = vmatprep.subr.mxu0 %v10547
  %11284 = vmatpush1.msra.mxu0 %v10546
  %11285 = vmatprep.subr.mxu0 %v10579
  %11286 = vmatpush1.msra.mxu0 %v10578
  %11287 = vmatprep.subr.mxu0 %v10611
  %11288 = vmatpush1.msra.mxu0 %v10610
  %11289 = vmatprep.subr.mxu0 %v10643
  %11290 = vmatpush1.msra.mxu0 %v10642
  %11291 = vmatprep.subr.mxu0 %v10675
  %11292 = vmatpush1.msra.mxu0 %v10674
  %11293 = vmatprep.subr.mxu0 0.0
  %11294 = vmatpush1.msra.mxu0 0.0
  %11295 = vmatprep.subr.mxu0 0.0
  %11296 = vmatpush1.msra.mxu0 0.0
  %11297 = vmatprep.subr.mxu0 0.0
  %11298 = vmatpush1.msra.mxu0 0.0
  %11299 = vmatprep.subr.mxu0 0.0
  %11300 = vmatpush1.msra.mxu0 0.0
  %11301 = vmatprep.subr.mxu0 0.0
  %11302 = vmatpush1.msra.mxu0 0.0
  %11303 = vmatprep.subr.mxu0 0.0
  %11304 = vmatpush1.msra.mxu0 0.0
  %11305 = vmatprep.subr.mxu0 0.0
  %11306 = vmatpush1.msra.mxu0 0.0
  %11307 = vmatprep.subr.mxu0 0.0
  %11308 = vmatpush1.msra.mxu0 0.0
  %11309 = vmatprep.subr.mxu0 0.0
  %11310 = vmatpush1.msra.mxu0 0.0
  %11311 = vmatprep.subr.mxu0 0.0
  %11312 = vmatpush1.msra.mxu0 0.0
  %11313 = vmatprep.subr.mxu0 0.0
  %11314 = vmatpush1.msra.mxu0 0.0
  %11315 = vmatprep.subr.mxu0 0.0
  %11316 = vmatpush1.msra.mxu0 0.0
  %11317 = vmatprep.subr.mxu0 0.0
  %11318 = vmatpush1.msra.mxu0 0.0
  %11319 = vmatprep.subr.mxu0 0.0
  %11320 = vmatpush1.msra.mxu0 0.0
  %11321 = vmatprep.subr.mxu0 0.0
  %11322 = vmatpush1.msra.mxu0 0.0
  %11323 = vmatprep.subr.mxu0 0.0
  %11324 = vmatpush1.msra.mxu0 0.0
  %11325 = vmatprep.mubr.f32.mxu0 0.0
  %11326 = vmatmul.mubr.f32.gmra.mrb[0].mxu0 %v10690
  %v11327 = vpop.f32.mrb[0].mxu0
  %v11328 = vadd.f32 %v10692, %v11327
  %v11329 = vpop.f32.mrb[0].mxu0
  %v11330 = vadd.f32 %v10692, %v11329
  %11331 = vdwg.mxu0
  %11332 = vmatprep.subr.mxu0 %v10197
  %11333 = vmatpush1.msra.mxu0 %v10196
  %11334 = vmatprep.subr.mxu0 %v10229
  %11335 = vmatpush1.msra.mxu0 %v10228
  %11336 = vmatprep.subr.mxu0 %v10261
  %11337 = vmatpush1.msra.mxu0 %v10260
  %11338 = vmatprep.subr.mxu0 %v10293
  %11339 = vmatpush1.msra.mxu0 %v10292
  %11340 = vmatprep.subr.mxu0 %v10325
  %11341 = vmatpush1.msra.mxu0 %v10324
  %11342 = vmatprep.subr.mxu0 %v10357
  %11343 = vmatpush1.msra.mxu0 %v10356
  %11344 = vmatprep.subr.mxu0 %v10389
  %11345 = vmatpush1.msra.mxu0 %v10388
  %11346 = vmatprep.subr.mxu0 %v10421
  %11347 = vmatpush1.msra.mxu0 %v10420
  %11348 = vmatprep.subr.mxu0 %v10453
  %11349 = vmatpush1.msra.mxu0 %v10452
  %11350 = vmatprep.subr.mxu0 %v10485
  %11351 = vmatpush1.msra.mxu0 %v10484
  %11352 = vmatprep.subr.mxu0 %v10517
  %11353 = vmatpush1.msra.mxu0 %v10516
  %11354 = vmatprep.subr.mxu0 %v10549
  %11355 = vmatpush1.msra.mxu0 %v10548
  %11356 = vmatprep.subr.mxu0 %v10581
  %11357 = vmatpush1.msra.mxu0 %v10580
  %11358 = vmatprep.subr.mxu0 %v10613
  %11359 = vmatpush1.msra.mxu0 %v10612
  %11360 = vmatprep.subr.mxu0 %v10645
  %11361 = vmatpush1.msra.mxu0 %v10644
  %11362 = vmatprep.subr.mxu0 %v10677
  %11363 = vmatpush1.msra.mxu0 %v10676
  %11364 = vmatprep.subr.mxu0 0.0
  %11365 = vmatpush1.msra.mxu0 0.0
  %11366 = vmatprep.subr.mxu0 0.0
  %11367 = vmatpush1.msra.mxu0 0.0
  %11368 = vmatprep.subr.mxu0 0.0
  %11369 = vmatpush1.msra.mxu0 0.0
  %11370 = vmatprep.subr.mxu0 0.0
  %11371 = vmatpush1.msra.mxu0 0.0
  %11372 = vmatprep.subr.mxu0 0.0
  %11373 = vmatpush1.msra.mxu0 0.0
  %11374 = vmatprep.subr.mxu0 0.0
  %11375 = vmatpush1.msra.mxu0 0.0
  %11376 = vmatprep.subr.mxu0 0.0
  %11377 = vmatpush1.msra.mxu0 0.0
  %11378 = vmatprep.subr.mxu0 0.0
  %11379 = vmatpush1.msra.mxu0 0.0
  %11380 = vmatprep.subr.mxu0 0.0
  %11381 = vmatpush1.msra.mxu0 0.0
  %11382 = vmatprep.subr.mxu0 0.0
  %11383 = vmatpush1.msra.mxu0 0.0
  %11384 = vmatprep.subr.mxu0 0.0
  %11385 = vmatpush1.msra.mxu0 0.0
  %11386 = vmatprep.subr.mxu0 0.0
  %11387 = vmatpush1.msra.mxu0 0.0
  %11388 = vmatprep.subr.mxu0 0.0
  %11389 = vmatpush1.msra.mxu0 0.0
  %11390 = vmatprep.subr.mxu0 0.0
  %11391 = vmatpush1.msra.mxu0 0.0
  %11392 = vmatprep.subr.mxu0 0.0
  %11393 = vmatpush1.msra.mxu0 0.0
  %11394 = vmatprep.subr.mxu0 0.0
  %11395 = vmatpush1.msra.mxu0 0.0
  %11396 = vmatprep.mubr.f32.mxu0 0.0
  %11397 = vmatmul.mubr.f32.gmra.mrb[0].mxu0 %v10690
  %v11398 = vpop.f32.mrb[0].mxu0
  %v11399 = vadd.f32 %v10692, %v11398
  %v11400 = vpop.f32.mrb[0].mxu0
  %v11401 = vadd.f32 %v10692, %v11400
  %11402 = vdwg.mxu0
  %11403 = vmatprep.subr.mxu0 %v10199
  %11404 = vmatpush1.msra.mxu0 %v10198
  %11405 = vmatprep.subr.mxu0 %v10231
  %11406 = vmatpush1.msra.mxu0 %v10230
  %11407 = vmatprep.subr.mxu0 %v10263
  %11408 = vmatpush1.msra.mxu0 %v10262
  %11409 = vmatprep.subr.mxu0 %v10295
  %11410 = vmatpush1.msra.mxu0 %v10294
  %11411 = vmatprep.subr.mxu0 %v10327
  %11412 = vmatpush1.msra.mxu0 %v10326
  %11413 = vmatprep.subr.mxu0 %v10359
  %11414 = vmatpush1.msra.mxu0 %v10358
  %11415 = vmatprep.subr.mxu0 %v10391
  %11416 = vmatpush1.msra.mxu0 %v10390
  %11417 = vmatprep.subr.mxu0 %v10423
  %11418 = vmatpush1.msra.mxu0 %v10422
  %11419 = vmatprep.subr.mxu0 %v10455
  %11420 = vmatpush1.msra.mxu0 %v10454
  %11421 = vmatprep.subr.mxu0 %v10487
  %11422 = vmatpush1.msra.mxu0 %v10486
  %11423 = vmatprep.subr.mxu0 %v10519
  %11424 = vmatpush1.msra.mxu0 %v10518
  %11425 = vmatprep.subr.mxu0 %v10551
  %11426 = vmatpush1.msra.mxu0 %v10550
  %11427 = vmatprep.subr.mxu0 %v10583
  %11428 = vmatpush1.msra.mxu0 %v10582
  %11429 = vmatprep.subr.mxu0 %v10615
  %11430 = vmatpush1.msra.mxu0 %v10614
  %11431 = vmatprep.subr.mxu0 %v10647
  %11432 = vmatpush1.msra.mxu0 %v10646
  %11433 = vmatprep.subr.mxu0 %v10679
  %11434 = vmatpush1.msra.mxu0 %v10678
  %11435 = vmatprep.subr.mxu0 0.0
  %11436 = vmatpush1.msra.mxu0 0.0
  %11437 = vmatprep.subr.mxu0 0.0
  %11438 = vmatpush1.msra.mxu0 0.0
  %11439 = vmatprep.subr.mxu0 0.0
  %11440 = vmatpush1.msra.mxu0 0.0
  %11441 = vmatprep.subr.mxu0 0.0
  %11442 = vmatpush1.msra.mxu0 0.0
  %11443 = vmatprep.subr.mxu0 0.0
  %11444 = vmatpush1.msra.mxu0 0.0
  %11445 = vmatprep.subr.mxu0 0.0
  %11446 = vmatpush1.msra.mxu0 0.0
  %11447 = vmatprep.subr.mxu0 0.0
  %11448 = vmatpush1.msra.mxu0 0.0
  %11449 = vmatprep.subr.mxu0 0.0
  %11450 = vmatpush1.msra.mxu0 0.0
  %11451 = vmatprep.subr.mxu0 0.0
  %11452 = vmatpush1.msra.mxu0 0.0
  %11453 = vmatprep.subr.mxu0 0.0
  %11454 = vmatpush1.msra.mxu0 0.0
  %11455 = vmatprep.subr.mxu0 0.0
  %11456 = vmatpush1.msra.mxu0 0.0
  %11457 = vmatprep.subr.mxu0 0.0
  %11458 = vmatpush1.msra.mxu0 0.0
  %11459 = vmatprep.subr.mxu0 0.0
  %11460 = vmatpush1.msra.mxu0 0.0
  %11461 = vmatprep.subr.mxu0 0.0
  %11462 = vmatpush1.msra.mxu0 0.0
  %11463 = vmatprep.subr.mxu0 0.0
  %11464 = vmatpush1.msra.mxu0 0.0
  %11465 = vmatprep.subr.mxu0 0.0
  %11466 = vmatpush1.msra.mxu0 0.0
  %11467 = vmatprep.mubr.f32.mxu0 0.0
  %11468 = vmatmul.mubr.f32.gmra.mrb[0].mxu0 %v10690
  %v11469 = vpop.f32.mrb[0].mxu0
  %v11470 = vadd.f32 %v10692, %v11469
  %v11471 = vpop.f32.mrb[0].mxu0
  %v11472 = vadd.f32 %v10692, %v11471
  %11473 = vdwg.mxu0
  %11474 = vmatprep.subr.mxu0 %v10201
  %11475 = vmatpush1.msra.mxu0 %v10200
  %11476 = vmatprep.subr.mxu0 %v10233
  %11477 = vmatpush1.msra.mxu0 %v10232
  %11478 = vmatprep.subr.mxu0 %v10265
  %11479 = vmatpush1.msra.mxu0 %v10264
  %11480 = vmatprep.subr.mxu0 %v10297
  %11481 = vmatpush1.msra.mxu0 %v10296
  %11482 = vmatprep.subr.mxu0 %v10329
  %11483 = vmatpush1.msra.mxu0 %v10328
  %11484 = vmatprep.subr.mxu0 %v10361
  %11485 = vmatpush1.msra.mxu0 %v10360
  %11486 = vmatprep.subr.mxu0 %v10393
  %11487 = vmatpush1.msra.mxu0 %v10392
  %11488 = vmatprep.subr.mxu0 %v10425
  %11489 = vmatpush1.msra.mxu0 %v10424
  %11490 = vmatprep.subr.mxu0 %v10457
  %11491 = vmatpush1.msra.mxu0 %v10456
  %11492 = vmatprep.subr.mxu0 %v10489
  %11493 = vmatpush1.msra.mxu0 %v10488
  %11494 = vmatprep.subr.mxu0 %v10521
  %11495 = vmatpush1.msra.mxu0 %v10520
  %11496 = vmatprep.subr.mxu0 %v10553
  %11497 = vmatpush1.msra.mxu0 %v10552
  %11498 = vmatprep.subr.mxu0 %v10585
  %11499 = vmatpush1.msra.mxu0 %v10584
  %11500 = vmatprep.subr.mxu0 %v10617
  %11501 = vmatpush1.msra.mxu0 %v10616
  %11502 = vmatprep.subr.mxu0 %v10649
  %11503 = vmatpush1.msra.mxu0 %v10648
  %11504 = vmatprep.subr.mxu0 %v10681
  %11505 = vmatpush1.msra.mxu0 %v10680
  %11506 = vmatprep.subr.mxu0 0.0
  %11507 = vmatpush1.msra.mxu0 0.0
  %11508 = vmatprep.subr.mxu0 0.0
  %11509 = vmatpush1.msra.mxu0 0.0
  %11510 = vmatprep.subr.mxu0 0.0
  %11511 = vmatpush1.msra.mxu0 0.0
  %11512 = vmatprep.subr.mxu0 0.0
  %11513 = vmatpush1.msra.mxu0 0.0
  %11514 = vmatprep.subr.mxu0 0.0
  %11515 = vmatpush1.msra.mxu0 0.0
  %11516 = vmatprep.subr.mxu0 0.0
  %11517 = vmatpush1.msra.mxu0 0.0
  %11518 = vmatprep.subr.mxu0 0.0
  %11519 = vmatpush1.msra.mxu0 0.0
  %11520 = vmatprep.subr.mxu0 0.0
  %11521 = vmatpush1.msra.mxu0 0.0
  %11522 = vmatprep.subr.mxu0 0.0
  %11523 = vmatpush1.msra.mxu0 0.0
  %11524 = vmatprep.subr.mxu0 0.0
  %11525 = vmatpush1.msra.mxu0 0.0
  %11526 = vmatprep.subr.mxu0 0.0
  %11527 = vmatpush1.msra.mxu0 0.0
  %11528 = vmatprep.subr.mxu0 0.0
  %11529 = vmatpush1.msra.mxu0 0.0
  %11530 = vmatprep.subr.mxu0 0.0
  %11531 = vmatpush1.msra.mxu0 0.0
  %11532 = vmatprep.subr.mxu0 0.0
  %11533 = vmatpush1.msra.mxu0 0.0
  %11534 = vmatprep.subr.mxu0 0.0
  %11535 = vmatpush1.msra.mxu0 0.0
  %11536 = vmatprep.subr.mxu0 0.0
  %11537 = vmatpush1.msra.mxu0 0.0
  %11538 = vmatprep.mubr.f32.mxu0 0.0
  %11539 = vmatmul.mubr.f32.gmra.mrb[0].mxu0 %v10690
  %v11540 = vpop.f32.mrb[0].mxu0
  %v11541 = vadd.f32 %v10692, %v11540
  %v11542 = vpop.f32.mrb[0].mxu0
  %v11543 = vadd.f32 %v10692, %v11542
  %11544 = vdwg.mxu0
  %11545 = vmatprep.subr.mxu0 %v10203
  %11546 = vmatpush1.msra.mxu0 %v10202
  %11547 = vmatprep.subr.mxu0 %v10235
  %11548 = vmatpush1.msra.mxu0 %v10234
  %11549 = vmatprep.subr.mxu0 %v10267
  %11550 = vmatpush1.msra.mxu0 %v10266
  %11551 = vmatprep.subr.mxu0 %v10299
  %11552 = vmatpush1.msra.mxu0 %v10298
  %11553 = vmatprep.subr.mxu0 %v10331
  %11554 = vmatpush1.msra.mxu0 %v10330
  %11555 = vmatprep.subr.mxu0 %v10363
  %11556 = vmatpush1.msra.mxu0 %v10362
  %11557 = vmatprep.subr.mxu0 %v10395
  %11558 = vmatpush1.msra.mxu0 %v10394
  %11559 = vmatprep.subr.mxu0 %v10427
  %11560 = vmatpush1.msra.mxu0 %v10426
  %11561 = vmatprep.subr.mxu0 %v10459
  %11562 = vmatpush1.msra.mxu0 %v10458
  %11563 = vmatprep.subr.mxu0 %v10491
  %11564 = vmatpush1.msra.mxu0 %v10490
  %11565 = vmatprep.subr.mxu0 %v10523
  %11566 = vmatpush1.msra.mxu0 %v10522
  %11567 = vmatprep.subr.mxu0 %v10555
  %11568 = vmatpush1.msra.mxu0 %v10554
  %11569 = vmatprep.subr.mxu0 %v10587
  %11570 = vmatpush1.msra.mxu0 %v10586
  %11571 = vmatprep.subr.mxu0 %v10619
  %11572 = vmatpush1.msra.mxu0 %v10618
  %11573 = vmatprep.subr.mxu0 %v10651
  %11574 = vmatpush1.msra.mxu0 %v10650
  %11575 = vmatprep.subr.mxu0 %v10683
  %11576 = vmatpush1.msra.mxu0 %v10682
  %11577 = vmatprep.subr.mxu0 0.0
  %11578 = vmatpush1.msra.mxu0 0.0
  %11579 = vmatprep.subr.mxu0 0.0
  %11580 = vmatpush1.msra.mxu0 0.0
  %11581 = vmatprep.subr.mxu0 0.0
  %11582 = vmatpush1.msra.mxu0 0.0
  %11583 = vmatprep.subr.mxu0 0.0
  %11584 = vmatpush1.msra.mxu0 0.0
  %11585 = vmatprep.subr.mxu0 0.0
  %11586 = vmatpush1.msra.mxu0 0.0
  %11587 = vmatprep.subr.mxu0 0.0
  %11588 = vmatpush1.msra.mxu0 0.0
  %11589 = vmatprep.subr.mxu0 0.0
  %11590 = vmatpush1.msra.mxu0 0.0
  %11591 = vmatprep.subr.mxu0 0.0
  %11592 = vmatpush1.msra.mxu0 0.0
  %11593 = vmatprep.subr.mxu0 0.0
  %11594 = vmatpush1.msra.mxu0 0.0
  %11595 = vmatprep.subr.mxu0 0.0
  %11596 = vmatpush1.msra.mxu0 0.0
  %11597 = vmatprep.subr.mxu0 0.0
  %11598 = vmatpush1.msra.mxu0 0.0
  %11599 = vmatprep.subr.mxu0 0.0
  %11600 = vmatpush1.msra.mxu0 0.0
  %11601 = vmatprep.subr.mxu0 0.0
  %11602 = vmatpush1.msra.mxu0 0.0
  %11603 = vmatprep.subr.mxu0 0.0
  %11604 = vmatpush1.msra.mxu0 0.0
  %11605 = vmatprep.subr.mxu0 0.0
  %11606 = vmatpush1.msra.mxu0 0.0
  %11607 = vmatprep.subr.mxu0 0.0
  %11608 = vmatpush1.msra.mxu0 0.0
  %11609 = vmatprep.mubr.f32.mxu0 0.0
  %11610 = vmatmul.mubr.f32.gmra.mrb[0].mxu0 %v10690
  %v11611 = vpop.f32.mrb[0].mxu0
  %v11612 = vadd.f32 %v10692, %v11611
  %v11613 = vpop.f32.mrb[0].mxu0
  %v11614 = vadd.f32 %v10692, %v11613
  %11615 = vdwg.mxu0
  %11616 = vmatprep.subr.mxu0 %v10205
  %11617 = vmatpush1.msra.mxu0 %v10204
  %11618 = vmatprep.subr.mxu0 %v10237
  %11619 = vmatpush1.msra.mxu0 %v10236
  %11620 = vmatprep.subr.mxu0 %v10269
  %11621 = vmatpush1.msra.mxu0 %v10268
  %11622 = vmatprep.subr.mxu0 %v10301
  %11623 = vmatpush1.msra.mxu0 %v10300
  %11624 = vmatprep.subr.mxu0 %v10333
  %11625 = vmatpush1.msra.mxu0 %v10332
  %11626 = vmatprep.subr.mxu0 %v10365
  %11627 = vmatpush1.msra.mxu0 %v10364
  %11628 = vmatprep.subr.mxu0 %v10397
  %11629 = vmatpush1.msra.mxu0 %v10396
  %11630 = vmatprep.subr.mxu0 %v10429
  %11631 = vmatpush1.msra.mxu0 %v10428
  %11632 = vmatprep.subr.mxu0 %v10461
  %11633 = vmatpush1.msra.mxu0 %v10460
  %11634 = vmatprep.subr.mxu0 %v10493
  %11635 = vmatpush1.msra.mxu0 %v10492
  %11636 = vmatprep.subr.mxu0 %v10525
  %11637 = vmatpush1.msra.mxu0 %v10524
  %11638 = vmatprep.subr.mxu0 %v10557
  %11639 = vmatpush1.msra.mxu0 %v10556
  %11640 = vmatprep.subr.mxu0 %v10589
  %11641 = vmatpush1.msra.mxu0 %v10588
  %11642 = vmatprep.subr.mxu0 %v10621
  %11643 = vmatpush1.msra.mxu0 %v10620
  %11644 = vmatprep.subr.mxu0 %v10653
  %11645 = vmatpush1.msra.mxu0 %v10652
  %11646 = vmatprep.subr.mxu0 %v10685
  %11647 = vmatpush1.msra.mxu0 %v10684
  %11648 = vmatprep.subr.mxu0 0.0
  %11649 = vmatpush1.msra.mxu0 0.0
  %11650 = vmatprep.subr.mxu0 0.0
  %11651 = vmatpush1.msra.mxu0 0.0
  %11652 = vmatprep.subr.mxu0 0.0
  %11653 = vmatpush1.msra.mxu0 0.0
  %11654 = vmatprep.subr.mxu0 0.0
  %11655 = vmatpush1.msra.mxu0 0.0
  %11656 = vmatprep.subr.mxu0 0.0
  %11657 = vmatpush1.msra.mxu0 0.0
  %11658 = vmatprep.subr.mxu0 0.0
  %11659 = vmatpush1.msra.mxu0 0.0
  %11660 = vmatprep.subr.mxu0 0.0
  %11661 = vmatpush1.msra.mxu0 0.0
  %11662 = vmatprep.subr.mxu0 0.0
  %11663 = vmatpush1.msra.mxu0 0.0
  %11664 = vmatprep.subr.mxu0 0.0
  %11665 = vmatpush1.msra.mxu0 0.0
  %11666 = vmatprep.subr.mxu0 0.0
  %11667 = vmatpush1.msra.mxu0 0.0
  %11668 = vmatprep.subr.mxu0 0.0
  %11669 = vmatpush1.msra.mxu0 0.0
  %11670 = vmatprep.subr.mxu0 0.0
  %11671 = vmatpush1.msra.mxu0 0.0
  %11672 = vmatprep.subr.mxu0 0.0
  %11673 = vmatpush1.msra.mxu0 0.0
  %11674 = vmatprep.subr.mxu0 0.0
  %11675 = vmatpush1.msra.mxu0 0.0
  %11676 = vmatprep.subr.mxu0 0.0
  %11677 = vmatpush1.msra.mxu0 0.0
  %11678 = vmatprep.subr.mxu0 0.0
  %11679 = vmatpush1.msra.mxu0 0.0
  %11680 = vmatprep.mubr.f32.mxu0 0.0
  %11681 = vmatmul.mubr.f32.gmra.mrb[0].mxu0 %v10690
  %v11682 = vpop.f32.mrb[0].mxu0
  %v11683 = vadd.f32 %v10692, %v11682
  %v11684 = vpop.f32.mrb[0].mxu0
  %v11685 = vadd.f32 %v10692, %v11684
  %11686 = vdwg.mxu0
  %11687 = vmatprep.subr.mxu0 %v10207
  %11688 = vmatpush1.msra.mxu0 %v10206
  %11689 = vmatprep.subr.mxu0 %v10239
  %11690 = vmatpush1.msra.mxu0 %v10238
  %11691 = vmatprep.subr.mxu0 %v10271
  %11692 = vmatpush1.msra.mxu0 %v10270
  %11693 = vmatprep.subr.mxu0 %v10303
  %11694 = vmatpush1.msra.mxu0 %v10302
  %11695 = vmatprep.subr.mxu0 %v10335
  %11696 = vmatpush1.msra.mxu0 %v10334
  %11697 = vmatprep.subr.mxu0 %v10367
  %11698 = vmatpush1.msra.mxu0 %v10366
  %11699 = vmatprep.subr.mxu0 %v10399
  %11700 = vmatpush1.msra.mxu0 %v10398
  %11701 = vmatprep.subr.mxu0 %v10431
  %11702 = vmatpush1.msra.mxu0 %v10430
  %11703 = vmatprep.subr.mxu0 %v10463
  %11704 = vmatpush1.msra.mxu0 %v10462
  %11705 = vmatprep.subr.mxu0 %v10495
  %11706 = vmatpush1.msra.mxu0 %v10494
  %11707 = vmatprep.subr.mxu0 %v10527
  %11708 = vmatpush1.msra.mxu0 %v10526
  %11709 = vmatprep.subr.mxu0 %v10559
  %11710 = vmatpush1.msra.mxu0 %v10558
  %11711 = vmatprep.subr.mxu0 %v10591
  %11712 = vmatpush1.msra.mxu0 %v10590
  %11713 = vmatprep.subr.mxu0 %v10623
  %11714 = vmatpush1.msra.mxu0 %v10622
  %11715 = vmatprep.subr.mxu0 %v10655
  %11716 = vmatpush1.msra.mxu0 %v10654
  %11717 = vmatprep.subr.mxu0 %v10687
  %11718 = vmatpush1.msra.mxu0 %v10686
  %11719 = vmatprep.subr.mxu0 0.0
  %11720 = vmatpush1.msra.mxu0 0.0
  %11721 = vmatprep.subr.mxu0 0.0
  %11722 = vmatpush1.msra.mxu0 0.0
  %11723 = vmatprep.subr.mxu0 0.0
  %11724 = vmatpush1.msra.mxu0 0.0
  %11725 = vmatprep.subr.mxu0 0.0
  %11726 = vmatpush1.msra.mxu0 0.0
  %11727 = vmatprep.subr.mxu0 0.0
  %11728 = vmatpush1.msra.mxu0 0.0
  %11729 = vmatprep.subr.mxu0 0.0
  %11730 = vmatpush1.msra.mxu0 0.0
  %11731 = vmatprep.subr.mxu0 0.0
  %11732 = vmatpush1.msra.mxu0 0.0
  %11733 = vmatprep.subr.mxu0 0.0
  %11734 = vmatpush1.msra.mxu0 0.0
  %11735 = vmatprep.subr.mxu0 0.0
  %11736 = vmatpush1.msra.mxu0 0.0
  %11737 = vmatprep.subr.mxu0 0.0
  %11738 = vmatpush1.msra.mxu0 0.0
  %11739 = vmatprep.subr.mxu0 0.0
  %11740 = vmatpush1.msra.mxu0 0.0
  %11741 = vmatprep.subr.mxu0 0.0
  %11742 = vmatpush1.msra.mxu0 0.0
  %11743 = vmatprep.subr.mxu0 0.0
  %11744 = vmatpush1.msra.mxu0 0.0
  %11745 = vmatprep.subr.mxu0 0.0
  %11746 = vmatpush1.msra.mxu0 0.0
  %11747 = vmatprep.subr.mxu0 0.0
  %11748 = vmatpush1.msra.mxu0 0.0
  %11749 = vmatprep.subr.mxu0 0.0
  %11750 = vmatpush1.msra.mxu0 0.0
  %11751 = vmatprep.mubr.f32.mxu0 0.0
  %11752 = vmatmul.mubr.f32.gmra.mrb[0].mxu0 %v10690
  %v11753 = vpop.f32.mrb[0].mxu0
  %v11754 = vadd.f32 %v10692, %v11753
  %v11755 = vpop.f32.mrb[0].mxu0
  %v11756 = vadd.f32 %v10692, %v11755
  %11757 = vdwg.mxu0
  %11758 = vmatprep.subr.mxu0 %v10209
  %11759 = vmatpush1.msra.mxu0 %v10208
  %11760 = vmatprep.subr.mxu0 %v10241
  %11761 = vmatpush1.msra.mxu0 %v10240
  %11762 = vmatprep.subr.mxu0 %v10273
  %11763 = vmatpush1.msra.mxu0 %v10272
  %11764 = vmatprep.subr.mxu0 %v10305
  %11765 = vmatpush1.msra.mxu0 %v10304
  %11766 = vmatprep.subr.mxu0 %v10337
  %11767 = vmatpush1.msra.mxu0 %v10336
  %11768 = vmatprep.subr.mxu0 %v10369
  %11769 = vmatpush1.msra.mxu0 %v10368
  %11770 = vmatprep.subr.mxu0 %v10401
  %11771 = vmatpush1.msra.mxu0 %v10400
  %11772 = vmatprep.subr.mxu0 %v10433
  %11773 = vmatpush1.msra.mxu0 %v10432
  %11774 = vmatprep.subr.mxu0 %v10465
  %11775 = vmatpush1.msra.mxu0 %v10464
  %11776 = vmatprep.subr.mxu0 %v10497
  %11777 = vmatpush1.msra.mxu0 %v10496
  %11778 = vmatprep.subr.mxu0 %v10529
  %11779 = vmatpush1.msra.mxu0 %v10528
  %11780 = vmatprep.subr.mxu0 %v10561
  %11781 = vmatpush1.msra.mxu0 %v10560
  %11782 = vmatprep.subr.mxu0 %v10593
  %11783 = vmatpush1.msra.mxu0 %v10592
  %11784 = vmatprep.subr.mxu0 %v10625
  %11785 = vmatpush1.msra.mxu0 %v10624
  %11786 = vmatprep.subr.mxu0 %v10657
  %11787 = vmatpush1.msra.mxu0 %v10656
  %11788 = vmatprep.subr.mxu0 %v10689
  %11789 = vmatpush1.msra.mxu0 %v10688
  %11790 = vmatprep.subr.mxu0 0.0
  %11791 = vmatpush1.msra.mxu0 0.0
  %11792 = vmatprep.subr.mxu0 0.0
  %11793 = vmatpush1.msra.mxu0 0.0
  %11794 = vmatprep.subr.mxu0 0.0
  %11795 = vmatpush1.msra.mxu0 0.0
  %11796 = vmatprep.subr.mxu0 0.0
  %11797 = vmatpush1.msra.mxu0 0.0
  %11798 = vmatprep.subr.mxu0 0.0
  %11799 = vmatpush1.msra.mxu0 0.0
  %11800 = vmatprep.subr.mxu0 0.0
  %11801 = vmatpush1.msra.mxu0 0.0
  %11802 = vmatprep.subr.mxu0 0.0
  %11803 = vmatpush1.msra.mxu0 0.0
  %11804 = vmatprep.subr.mxu0 0.0
  %11805 = vmatpush1.msra.mxu0 0.0
  %11806 = vmatprep.subr.mxu0 0.0
  %11807 = vmatpush1.msra.mxu0 0.0
  %11808 = vmatprep.subr.mxu0 0.0
  %11809 = vmatpush1.msra.mxu0 0.0
  %11810 = vmatprep.subr.mxu0 0.0
  %11811 = vmatpush1.msra.mxu0 0.0
  %11812 = vmatprep.subr.mxu0 0.0
  %11813 = vmatpush1.msra.mxu0 0.0
  %11814 = vmatprep.subr.mxu0 0.0
  %11815 = vmatpush1.msra.mxu0 0.0
  %11816 = vmatprep.subr.mxu0 0.0
  %11817 = vmatpush1.msra.mxu0 0.0
  %11818 = vmatprep.subr.mxu0 0.0
  %11819 = vmatpush1.msra.mxu0 0.0
  %11820 = vmatprep.subr.mxu0 0.0
  %11821 = vmatpush1.msra.mxu0 0.0
  %11822 = vmatprep.mubr.f32.mxu0 0.0
  %11823 = vmatmul.mubr.f32.gmra.mrb[0].mxu0 %v10690
  %v11824 = vpop.f32.mrb[0].mxu0
  %v11825 = vadd.f32 %v10692, %v11824
  %v11826 = vpop.f32.mrb[0].mxu0
  %v11827 = vadd.f32 %v10692, %v11826
  %11828 = vdwg.mxu0
  %v11861 = vcombine.low %v10760, %v10762
  %v11862 = vcombine.low %v10831, %v10833
  %v11863 = vcombine.low %v10902, %v10904
  %v11864 = vcombine.low %v10973, %v10975
  %v11866 = vunpack.c.l.s4 1966171168
  %v11867 = vunpack.c.0.s8 %v11866
  %v11868 = vlaneseq
  %v11869 = vshrl.u32 %v11868, 7
  %v11870 = vsub.s32 %v11867, %v11869
  %v11871 = vrot.slane %v11861, %v11870
  %v11873 = vunpack.c.l.s4 1966171168
  %v11874 = vunpack.c.0.s8 %v11873
  %v11875 = vlaneseq
  %v11876 = vshrl.u32 %v11875, 7
  %v11877 = vsub.s32 %v11874, %v11876
  %v11878 = vrot.slane %v11862, %v11877
  %v11880 = vunpack.c.l.s4 1966171168
  %v11881 = vunpack.c.0.s8 %v11880
  %v11882 = vlaneseq
  %v11883 = vshrl.u32 %v11882, 7
  %v11884 = vsub.s32 %v11881, %v11883
  %v11885 = vrot.slane %v11863, %v11884
  %v11887 = vunpack.c.l.s4 1966171168
  %v11888 = vunpack.c.0.s8 %v11887
  %v11889 = vlaneseq
  %v11890 = vshrl.u32 %v11889, 7
  %v11891 = vsub.s32 %v11888, %v11890
  %v11892 = vrot.slane %v11864, %v11891
  %v11893 = vcombine.low %v11871, %v11878
  %v11894 = vcombine.low %v11885, %v11892
  %v11896 = vunpack.c.l.s4 1966171168
  %v11897 = vunpack.c.0.s8 %v11896
  %v11898 = vlaneseq
  %v11899 = vshrl.u32 %v11898, 7
  %v11900 = vsub.s32 %v11897, %v11899
  %v11901 = vrot.slane %v11893, %v11900
  %v11903 = vunpack.c.l.s4 1966171168
  %v11904 = vunpack.c.0.s8 %v11903
  %v11905 = vlaneseq
  %v11906 = vshrl.u32 %v11905, 7
  %v11907 = vsub.s32 %v11904, %v11906
  %v11908 = vrot.slane %v11894, %v11907
  %v11909 = vcombine.low %v11901, %v11908
  %v11910 = vcombine.low %v11044, %v11046
  %v11911 = vcombine.low %v11115, %v11117
  %v11912 = vcombine.low %v11186, %v11188
  %v11913 = vcombine.low %v11257, %v11259
  %v11915 = vunpack.c.l.s4 1966171168
  %v11916 = vunpack.c.0.s8 %v11915
  %v11917 = vlaneseq
  %v11918 = vshrl.u32 %v11917, 7
  %v11919 = vsub.s32 %v11916, %v11918
  %v11920 = vrot.slane %v11910, %v11919
  %v11922 = vunpack.c.l.s4 1966171168
  %v11923 = vunpack.c.0.s8 %v11922
  %v11924 = vlaneseq
  %v11925 = vshrl.u32 %v11924, 7
  %v11926 = vsub.s32 %v11923, %v11925
  %v11927 = vrot.slane %v11911, %v11926
  %v11929 = vunpack.c.l.s4 1966171168
  %v11930 = vunpack.c.0.s8 %v11929
  %v11931 = vlaneseq
  %v11932 = vshrl.u32 %v11931, 7
  %v11933 = vsub.s32 %v11930, %v11932
  %v11934 = vrot.slane %v11912, %v11933
  %v11936 = vunpack.c.l.s4 1966171168
  %v11937 = vunpack.c.0.s8 %v11936
  %v11938 = vlaneseq
  %v11939 = vshrl.u32 %v11938, 7
  %v11940 = vsub.s32 %v11937, %v11939
  %v11941 = vrot.slane %v11913, %v11940
  %v11942 = vcombine.low %v11920, %v11927
  %v11943 = vcombine.low %v11934, %v11941
  %v11945 = vunpack.c.l.s4 1966171168
  %v11946 = vunpack.c.0.s8 %v11945
  %v11947 = vlaneseq
  %v11948 = vshrl.u32 %v11947, 7
  %v11949 = vsub.s32 %v11946, %v11948
  %v11950 = vrot.slane %v11942, %v11949
  %v11952 = vunpack.c.l.s4 1966171168
  %v11953 = vunpack.c.0.s8 %v11952
  %v11954 = vlaneseq
  %v11955 = vshrl.u32 %v11954, 7
  %v11956 = vsub.s32 %v11953, %v11955
  %v11957 = vrot.slane %v11943, %v11956
  %v11958 = vcombine.low %v11950, %v11957
  %v11959 = vcombine.low %v11328, %v11330
  %v11960 = vcombine.low %v11399, %v11401
  %v11961 = vcombine.low %v11470, %v11472
  %v11962 = vcombine.low %v11541, %v11543
  %v11964 = vunpack.c.l.s4 1966171168
  %v11965 = vunpack.c.0.s8 %v11964
  %v11966 = vlaneseq
  %v11967 = vshrl.u32 %v11966, 7
  %v11968 = vsub.s32 %v11965, %v11967
  %v11969 = vrot.slane %v11959, %v11968
  %v11971 = vunpack.c.l.s4 1966171168
  %v11972 = vunpack.c.0.s8 %v11971
  %v11973 = vlaneseq
  %v11974 = vshrl.u32 %v11973, 7
  %v11975 = vsub.s32 %v11972, %v11974
  %v11976 = vrot.slane %v11960, %v11975
  %v11978 = vunpack.c.l.s4 1966171168
  %v11979 = vunpack.c.0.s8 %v11978
  %v11980 = vlaneseq
  %v11981 = vshrl.u32 %v11980, 7
  %v11982 = vsub.s32 %v11979, %v11981
  %v11983 = vrot.slane %v11961, %v11982
  %v11985 = vunpack.c.l.s4 1966171168
  %v11986 = vunpack.c.0.s8 %v11985
  %v11987 = vlaneseq
  %v11988 = vshrl.u32 %v11987, 7
  %v11989 = vsub.s32 %v11986, %v11988
  %v11990 = vrot.slane %v11962, %v11989
  %v11991 = vcombine.low %v11969, %v11976
  %v11992 = vcombine.low %v11983, %v11990
  %v11994 = vunpack.c.l.s4 1966171168
  %v11995 = vunpack.c.0.s8 %v11994
  %v11996 = vlaneseq
  %v11997 = vshrl.u32 %v11996, 7
  %v11998 = vsub.s32 %v11995, %v11997
  %v11999 = vrot.slane %v11991, %v11998
  %v12001 = vunpack.c.l.s4 1966171168
  %v12002 = vunpack.c.0.s8 %v12001
  %v12003 = vlaneseq
  %v12004 = vshrl.u32 %v12003, 7
  %v12005 = vsub.s32 %v12002, %v12004
  %v12006 = vrot.slane %v11992, %v12005
  %v12007 = vcombine.low %v11999, %v12006
  %v12008 = vcombine.low %v11612, %v11614
  %v12009 = vcombine.low %v11683, %v11685
  %v12010 = vcombine.low %v11754, %v11756
  %v12011 = vcombine.low %v11825, %v11827
  %v12013 = vunpack.c.l.s4 1966171168
  %v12014 = vunpack.c.0.s8 %v12013
  %v12015 = vlaneseq
  %v12016 = vshrl.u32 %v12015, 7
  %v12017 = vsub.s32 %v12014, %v12016
  %v12018 = vrot.slane %v12008, %v12017
  %v12020 = vunpack.c.l.s4 1966171168
  %v12021 = vunpack.c.0.s8 %v12020
  %v12022 = vlaneseq
  %v12023 = vshrl.u32 %v12022, 7
  %v12024 = vsub.s32 %v12021, %v12023
  %v12025 = vrot.slane %v12009, %v12024
  %v12027 = vunpack.c.l.s4 1966171168
  %v12028 = vunpack.c.0.s8 %v12027
  %v12029 = vlaneseq
  %v12030 = vshrl.u32 %v12029, 7
  %v12031 = vsub.s32 %v12028, %v12030
  %v12032 = vrot.slane %v12010, %v12031
  %v12034 = vunpack.c.l.s4 1966171168
  %v12035 = vunpack.c.0.s8 %v12034
  %v12036 = vlaneseq
  %v12037 = vshrl.u32 %v12036, 7
  %v12038 = vsub.s32 %v12035, %v12037
  %v12039 = vrot.slane %v12011, %v12038
  %v12040 = vcombine.low %v12018, %v12025
  %v12041 = vcombine.low %v12032, %v12039
  %v12043 = vunpack.c.l.s4 1966171168
  %v12044 = vunpack.c.0.s8 %v12043
  %v12045 = vlaneseq
  %v12046 = vshrl.u32 %v12045, 7
  %v12047 = vsub.s32 %v12044, %v12046
  %v12048 = vrot.slane %v12040, %v12047
  %v12050 = vunpack.c.l.s4 1966171168
  %v12051 = vunpack.c.0.s8 %v12050
  %v12052 = vlaneseq
  %v12053 = vshrl.u32 %v12052, 7
  %v12054 = vsub.s32 %v12051, %v12053
  %v12055 = vrot.slane %v12041, %v12054
  %v12056 = vcombine.low %v12048, %v12055
  %12061 = vst [vmem:[%s6] sm:$0xff] %v11909
  %12062 = vst [vmem:[%s6 + $0x8] sm:$0xff] %v11958
  %12063 = vst [vmem:[%s6 + $0x10] sm:$0xff] %v12007
  %12064 = vst [vmem:[%s6 + $0x18] sm:$0xff] %v12056
  // Predicated region
  $region26: #{mlp_join_forward.1} parent=0 // pred_check
    _
  $region27: #{mlp_join_forward.1} parent=0 // pred_check_branch
    %12066 = sbr.rel (0) target = $region29
  $region28: #{mlp_join_forward.1} parent=0 // pred_region
    _
  $region29: #{mlp_join_forward.1} parent=0 // pred_fallthru
    _
  // Predicated region
  $region30: #{mlp_join_forward.1} parent=0 // pred_check
    _
  $region31: #{mlp_join_forward.1} parent=0 // pred_check_branch
    %12068 = sbr.rel (0) target = $region33
  $region32: #{mlp_join_forward.1} parent=0 // pred_region
    _
  $region33: #{mlp_join_forward.1} parent=0 // pred_fallthru
    _

</llo_original>
